<compile_context>
chip_gen: v6e
topology: v6e:2x2x1
jax: 0.10.0
libtpu: 0.0.40
codegen_flags: <defaults>
</compile_context>

<pallas_src>
import jax
import jax.numpy as jnp
import numpy as np
from jax.experimental import pallas as pl
from jax.experimental.pallas import tpu as pltpu

LANES = 128
NUM_CLASSES = 35
VMEM_LIMIT = 32 * 1024 * 1024


def _round_up(x, m):
    return ((x + m - 1) // m) * m


# -----------------------------------------------------------------------------
# Kernel A/B: conv (3x3) + ReLU + 2x2 MaxPool as a stacked-phase MXU matmul.
#   ph_ref : (4, M_TILE, K) bf16  one im2col patch matrix per pooling phase
#   w_ref  : (K, 128)       bf16  im2col weights (C_out padded to 128 lanes)
#   b_ref  : (1, 128)       f32
#   o_ref  : (M_TILE, 128)  bf16  relu(max_phase(patch @ w) + b)
# -----------------------------------------------------------------------------
def _conv_phases_kernel(ph_ref, w_ref, b_ref, o_ref):
    n_ph, m, k = ph_ref.shape
    # One long-LHS matmul against a single held RHS (no per-phase RHS restaging).
    x = ph_ref[...].reshape(n_ph * m, k)
    z = jnp.dot(x, w_ref[...], preferred_element_type=jnp.float32)
    # Fused 2x2 max-pool: max over the four sublane-contiguous quarters.
    p = jnp.maximum(jnp.maximum(z[0:m], z[m:2 * m]),
                    jnp.maximum(z[2 * m:3 * m], z[3 * m:4 * m]))
    o_ref[...] = jnp.maximum(p + b_ref[...], 0.0).astype(o_ref.dtype)


def conv_relu_pool(phases, w, b, *, num_steps=2):
    """phases: (4, M, K) bf16; w: (K, 128) bf16; b: (1, 128) f32 -> (M, 128) bf16."""
    _, m, k = phases.shape
    steps = num_steps if m >= 16 * num_steps else 1
    m_tile = _round_up(pl.cdiv(m, steps), 16)            # 16 = bf16 sublane tile
    mp = m_tile * steps
    if mp != m:
        phases = jnp.pad(phases, ((0, 0), (0, mp - m), (0, 0)))
    out = pl.pallas_call(
        _conv_phases_kernel,
        out_shape=jax.ShapeDtypeStruct((mp, LANES), jnp.bfloat16),
        grid=(steps,),
        in_specs=[
            pl.BlockSpec((4, m_tile, k), lambda i: (0, i, 0)),
            pl.BlockSpec((k, LANES), lambda i: (0, 0)),
            pl.BlockSpec((1, LANES), lambda i: (0, 0)),
        ],
        out_specs=pl.BlockSpec((m_tile, LANES), lambda i: (i, 0)),
        compiler_params=pltpu.CompilerParams(
            dimension_semantics=("parallel",),   # 2 steps -> both v7x TCs busy
            vmem_limit_bytes=VMEM_LIMIT),
    )(phases, w, b)
    return out[:m]


# -----------------------------------------------------------------------------
# Kernel C: conv3 (+ReLU +pool) + Flatten + FC1 + Tanh + FC2 + Softmax, fused.
#   ph_ref : (4, 4*NB, 576) bf16  conv3 phase patches, rows ordered (h, w, n)
#   w3_ref : (576, 128) bf16 ; b3_ref: (1, 128) f32
#   wf1_ref: (4, 128, 128) bf16  FC1 weights with the NCHW flatten pre-folded:
#                                wf1[q, c, o] = torch_fc1_w[o, c*4 + q], q=h*2+w
#   bf1_ref: (1, 128) f32
#   wf2_ref: (128, 128) bf16     FC2 weights (classes padded to 128 lanes)
#   bf2_ref: (1, 128) f32
#   o_ref  : (NB, 128) f32       softmax probabilities (classes in lanes 0..34)
# -----------------------------------------------------------------------------
def _conv3_fc_kernel(ph_ref, w3_ref, b3_ref, wf1_ref, bf1_ref, wf2_ref, bf2_ref,
                     o_ref):
    nb = o_ref.shape[0]
    m = ph_ref.shape[1]                       # 4 * nb
    k = ph_ref.shape[2]
    # conv3 + ReLU + fused 2x2 pool (same stacked-phase scheme as above).
    x = ph_ref[...].reshape(4 * m, k)
    z = jnp.dot(x, w3_ref[...], preferred_element_type=jnp.float32)
    a = jnp.maximum(jnp.maximum(z[0:m], z[m:2 * m]),
                    jnp.maximum(z[2 * m:3 * m], z[3 * m:4 * m]))
    a = jnp.maximum(a + b3_ref[...], 0.0)     # (4*nb, 128) f32, row = (h*2+w)*nb + n
    # Dropout(0.25) / Dropout(0.4): eval-mode identity.
    # Flatten + FC1: flatten is folded into wf1, so h[n] = sum_q a[q*nb+n, :] @ wf1[q]
    h = jnp.dot(a[0:nb].astype(jnp.bfloat16), wf1_ref[0],
                preferred_element_type=jnp.float32)
    for q in range(1, 4):
        h = h + jnp.dot(a[q * nb:(q + 1) * nb].astype(jnp.bfloat16), wf1_ref[q],
                        preferred_element_type=jnp.float32)
    h = jnp.tanh(h + bf1_ref[...]).astype(jnp.bfloat16)
    zz = jnp.dot(h, wf2_ref[...], preferred_element_type=jnp.float32) + bf2_ref[...]
    # Mask padded classes (safe: logits accumulated in f32), stable softmax.
    col = jax.lax.broadcasted_iota(jnp.int32, zz.shape, 1)
    zz = jnp.where(col < NUM_CLASSES, zz, -1e30)
    zmax = jnp.max(zz, axis=-1, keepdims=True)
    e = jnp.exp(zz - zmax)
    o_ref[...] = e / jnp.sum(e, axis=-1, keepdims=True)   # exact normalization


def conv3_fc_head(ph3, w3, b3, wf1, bf1, wf2, bf2):
    nb = ph3.shape[1] // 4
    full2 = lambda a: pl.BlockSpec(a.shape, lambda i: (0, 0))
    return pl.pallas_call(
        _conv3_fc_kernel,
        out_shape=jax.ShapeDtypeStruct((nb, LANES), jnp.float32),
        grid=(1,),
        in_specs=[
            pl.BlockSpec(ph3.shape, lambda i: (0, 0, 0)),
            full2(w3), full2(b3),
            pl.BlockSpec(wf1.shape, lambda i: (0, 0, 0)),
            full2(bf1), full2(wf2), full2(bf2),
        ],
        out_specs=pl.BlockSpec((nb, LANES), lambda i: (0, 0)),
        compiler_params=pltpu.CompilerParams(
            dimension_semantics=("arbitrary",),
            vmem_limit_bytes=VMEM_LIMIT),
    )(ph3, w3, b3, wf1, bf1, wf2, bf2)


# -----------------------------------------------------------------------------
# JAX glue: phase/patch (im2col) extraction and parameter conversion.
# TODO(synk): move patch extraction inside the Pallas kernels (in-kernel im2col)
#             to avoid HBM round trips of the 4-9x expanded patch matrices.
# -----------------------------------------------------------------------------
def _conv1_phase_taps(xpad, hp, wp):
    # xpad: (N, 30, 30) bf16 -> (4, N*hp*wp, 9); tap order = (kh, kw).
    n = xpad.shape[0]
    phases = []
    for di in range(2):
        for dj in range(2):
            taps = []
            for kh in range(3):
                for kw in range(3):
                    r0, c0 = di + kh, dj + kw
                    taps.append(xpad[:, r0:r0 + 2 * (hp - 1) + 1:2,
                                        c0:c0 + 2 * (wp - 1) + 1:2])
            phases.append(jnp.stack(taps, axis=-1).reshape(n * hp * wp, 9))
    return jnp.stack(phases, axis=0)


def _phase_patches(a, hp, wp, spatial_major=False):
    # a: (N, H, W, C) bf16. 3x3 valid conv then 2x2 pool -> hp x wp.
    # Returns (4, N*hp*wp, 9*C) bf16; K order = (kh, kw, c_in).
    # spatial_major=True orders rows as (h, w, n) (needed by the fused FC head).
    n, _, _, c = a.shape
    phases = []
    for di in range(2):
        for dj in range(2):
            taps = []
            for kh in range(3):
                for kw in range(3):
                    r0, c0 = di + kh, dj + kw
                    taps.append(a[:, r0:r0 + 2 * (hp - 1) + 1:2,
                                     c0:c0 + 2 * (wp - 1) + 1:2, :])
            pat = jnp.stack(taps, axis=3)                  # (n, hp, wp, 9, c)
            if spatial_major:
                pat = jnp.transpose(pat, (1, 2, 0, 3, 4))  # (hp, wp, n, 9, c)
            phases.append(pat.reshape(n * hp * wp, 9 * c))
    return jnp.stack(phases, axis=0).astype(jnp.bfloat16)


def init_torch_params(key):
    # Parameters in PyTorch convention: Conv2d weight (C_out, C_in, kh, kw),
    # Linear weight (out, in) acting on the NCHW flatten.
    ks = jax.random.split(key, 10)

    def u(k, shape, fan_in):
        bound = 1.0 / np.sqrt(fan_in)
        return jax.random.uniform(k, shape, jnp.float32, -bound, bound)

    return {
        "conv1_w": u(ks[0], (32, 1, 3, 3), 9),     "conv1_b": u(ks[1], (32,), 9),
        "conv2_w": u(ks[2], (64, 32, 3, 3), 288),  "conv2_b": u(ks[3], (64,), 288),
        "conv3_w": u(ks[4], (128, 64, 3, 3), 576), "conv3_b": u(ks[5], (128,), 576),
        "fc1_w": u(ks[6], (128, 512), 512),        "fc1_b": u(ks[7], (128,), 512),
        "fc2_w": u(ks[8], (35, 128), 128),         "fc2_b": u(ks[9], (35,), 128),
    }


def prepare_kernel_params(tp):
    def conv_w(w):          # torch (co, ci, kh, kw) -> (kh*kw*ci, 128) bf16
        co, ci, kh, kw = w.shape
        m = jnp.transpose(w, (2, 3, 1, 0)).reshape(kh * kw * ci, co)
        return jnp.pad(m, ((0, 0), (0, LANES - co))).astype(jnp.bfloat16)

    def pad_bias(b):
        return jnp.pad(b, (0, LANES - b.shape[0])).reshape(1, LANES).astype(jnp.float32)

    p = {}
    p["w1"] = conv_w(tp["conv1_w"]); p["b1"] = pad_bias(tp["conv1_b"])
    p["w2"] = conv_w(tp["conv2_w"]); p["b2"] = pad_bias(tp["conv2_b"])
    p["w3"] = conv_w(tp["conv3_w"]); p["b3"] = pad_bias(tp["conv3_b"])
    # FC1: fold the NCHW flatten permutation into the weights:
    #   torch input index = c*4 + h*2 + w  ->  wf1[q=h*2+w][c, o]
    wf1 = tp["fc1_w"].reshape(128, 128, 2, 2)               # (o, c, h, w)
    p["wf1"] = jnp.transpose(wf1, (2, 3, 1, 0)).reshape(4, 128, 128).astype(jnp.bfloat16)
    p["bf1"] = pad_bias(tp["fc1_b"])
    p["wf2"] = jnp.pad(tp["fc2_w"].T, ((0, 0), (0, LANES - NUM_CLASSES))).astype(jnp.bfloat16)
    p["bf2"] = pad_bias(tp["fc2_b"])
    return p


# -----------------------------------------------------------------------------
# Full forward pass (equivalent to CNNModel.forward in eval mode).
# -----------------------------------------------------------------------------
def cnn_forward(params, x):
    # x: (N, 28, 28, 1) f32 NHWC — the module permutes NHWC->NCHW internally.
    n = x.shape[0]
    nb = _round_up(n, 8)
    if nb != n:
        x = jnp.pad(x, ((0, nb - n), (0, 0), (0, 0), (0, 0)))
    # conv1 (pad=1) + ReLU + pool : 28x28x1 -> 14x14x32
    xpad = jnp.pad(x[..., 0], ((0, 0), (1, 1), (1, 1))).astype(jnp.bfloat16)
    ph1 = _conv1_phase_taps(xpad, 14, 14)                    # (4, nb*196, 9)
    a1 = conv_relu_pool(ph1, params["w1"], params["b1"])     # (nb*196, 128) bf16
    a1 = a1[:, :32].reshape(nb, 14, 14, 32)
    # conv2 (valid) + ReLU + pool : 14x14x32 -> 6x6x64
    ph2 = _phase_patches(a1, 6, 6)                           # (4, nb*36, 288)
    a2 = conv_relu_pool(ph2, params["w2"], params["b2"])     # (nb*36, 128) bf16
    a2 = a2[:, :64].reshape(nb, 6, 6, 64)
    # conv3 + ReLU + pool + Flatten + FC1 + Tanh + FC2 + Softmax, one kernel.
    ph3 = _phase_patches(a2, 2, 2, spatial_major=True)       # (4, 4*nb, 576)
    probs = conv3_fc_head(ph3, params["w3"], params["b3"],
                          params["wf1"], params["bf1"],
                          params["wf2"], params["bf2"])
    return probs[:n, :NUM_CLASSES]


# -----------------------------------------------------------------------------
# Pure-JAX f32 reference (torch-convention params) — validation only.
# -----------------------------------------------------------------------------
def reference_forward(tp, x):
    a = jnp.transpose(x, (0, 3, 1, 2))                       # NHWC -> NCHW

    def conv(a, w, b, pad):
        out = jax.lax.conv_general_dilated(
            a, w, (1, 1), [(pad, pad), (pad, pad)],
            dimension_numbers=("NCHW", "OIHW", "NCHW"))
        return out + b.reshape(1, -1, 1, 1)

    def pool(a):
        return jax.lax.reduce_window(a, -jnp.inf, jax.lax.max,
                                     (1, 1, 2, 2), (1, 1, 2, 2), "VALID")

    a = pool(jax.nn.relu(conv(a, tp["conv1_w"], tp["conv1_b"], 1)))
    a = pool(jax.nn.relu(conv(a, tp["conv2_w"], tp["conv2_b"], 0)))
    a = pool(jax.nn.relu(conv(a, tp["conv3_w"], tp["conv3_b"], 0)))
    f = a.reshape(a.shape[0], -1)                            # NCHW flatten
    h = jnp.tanh(f @ tp["fc1_w"].T + tp["fc1_b"])
    z = h @ tp["fc2_w"].T + tp["fc2_b"]
    return jax.nn.softmax(z, axis=1)


if __name__ == "__main__":
    key = jax.random.PRNGKey(0)
    kx, kp = jax.random.split(key)
    batch = 8                      # spatial must be 28x28x1 (fixed by Linear(512, 128))
    x = jax.random.normal(kx, (batch, 28, 28, 1), jnp.float32)
    torch_params = init_torch_params(kp)
    params = prepare_kernel_params(torch_params)

    fwd = jax.jit(cnn_forward)
    out = jax.block_until_ready(fwd(params, x))

    assert out.shape == (batch, NUM_CLASSES), out.shape
    assert bool(jnp.all(jnp.isfinite(out)))
    row_sums = jnp.sum(out, axis=-1)
    assert bool(jnp.all(jnp.abs(row_sums - 1.0) < 1e-3)), row_sums
    ref = reference_forward(torch_params, x)
    err = float(jnp.max(jnp.abs(out - ref)))
    assert err < 2e-2, f"max |pallas - reference| = {err}"
    print("KERNEL_OK")
</pallas_src>

<mosaic_0001>
module attributes {stable_mosaic.version = 11 : i64} {
  func.func @_conv_phases_kernel(%arg0: i32, %arg1: memref<4x784x9xbf16, #tpu.memory_space<vmem>>, %arg2: memref<9x128xbf16, #tpu.memory_space<vmem>>, %arg3: memref<1x128xf32, #tpu.memory_space<vmem>>, %arg4: memref<784x128xbf16, #tpu.memory_space<vmem>>) attributes {dimension_semantics = [#tpu.dimension_semantics<parallel>], iteration_bounds = array<i64: 2>, scalar_prefetch = 0 : i64, scratch_operands = 0 : i64, tpu.core_type = #tpu.core_type<tc>, window_params = [{transform_indices = @transform_0, window_bounds = array<i64: 4, 784, 9>}, {pipeline_mode = #tpu.pipeline_mode<synchronous>, transform_indices = @transform_1, window_bounds = array<i64: 9, 128>}, {pipeline_mode = #tpu.pipeline_mode<synchronous>, transform_indices = @transform_2, window_bounds = array<i64: 1, 128>}, {transform_indices = @transform_3, window_bounds = array<i64: 784, 128>}]} {
    %c0 = arith.constant 0 : index
    %c0_0 = arith.constant 0 : index
    %c0_1 = arith.constant 0 : index
    %0 = vector.load %arg1[%c0, %c0_0, %c0_1] : memref<4x784x9xbf16, #tpu.memory_space<vmem>>, vector<4x784x9xbf16>
    %1 = vector.shape_cast %0 : vector<4x784x9xbf16> to vector<3136x9xbf16>
    %c0_2 = arith.constant 0 : index
    %c0_3 = arith.constant 0 : index
    %2 = vector.load %arg2[%c0_2, %c0_3] : memref<9x128xbf16, #tpu.memory_space<vmem>>, vector<9x128xbf16>
    %cst = arith.constant dense<0.000000e+00> : vector<3136x128xf32>
    %3 = tpu.matmul %1, %2, %cst {dimension_numbers = #tpu.dot_dimension_numbers<[1], [0], [0], [1], [0, 0, 1, 1], [], []>} : vector<3136x9xbf16>, vector<9x128xbf16>, vector<3136x128xf32> -> vector<3136x128xf32>
    %4 = vector.extract_strided_slice %3 {offsets = [0, 0], sizes = [784, 128], strides = [1, 1]} : vector<3136x128xf32> to vector<784x128xf32>
    %5 = vector.extract_strided_slice %3 {offsets = [784, 0], sizes = [784, 128], strides = [1, 1]} : vector<3136x128xf32> to vector<784x128xf32>
    %6 = arith.maximumf %4, %5 : vector<784x128xf32>
    %7 = vector.extract_strided_slice %3 {offsets = [1568, 0], sizes = [784, 128], strides = [1, 1]} : vector<3136x128xf32> to vector<784x128xf32>
    %8 = vector.extract_strided_slice %3 {offsets = [2352, 0], sizes = [784, 128], strides = [1, 1]} : vector<3136x128xf32> to vector<784x128xf32>
    %9 = arith.maximumf %7, %8 : vector<784x128xf32>
    %10 = arith.maximumf %6, %9 : vector<784x128xf32>
    %c0_4 = arith.constant 0 : index
    %c0_5 = arith.constant 0 : index
    %11 = vector.load %arg3[%c0_4, %c0_5] : memref<1x128xf32, #tpu.memory_space<vmem>>, vector<1x128xf32>
    %12 = vector.broadcast %11 : vector<1x128xf32> to vector<784x128xf32>
    %13 = arith.addf %10, %12 : vector<784x128xf32>
    %cst_6 = arith.constant 0.000000e+00 : f32
    %14 = vector.broadcast %cst_6 : f32 to vector<784x128xf32>
    %15 = arith.maximumf %13, %14 : vector<784x128xf32>
    %16 = arith.truncf %15 : vector<784x128xf32> to vector<784x128xbf16>
    %c0_7 = arith.constant 0 : index
    %c0_8 = arith.constant 0 : index
    %17 = vector.load %arg4[%c0_7, %c0_8] : memref<784x128xbf16, #tpu.memory_space<vmem>>, vector<784x128xbf16>
    tpu.vector_store %arg4[%c0_7, %c0_8], %16 {strides = array<i32>} : memref<784x128xbf16, #tpu.memory_space<vmem>>, vector<784x128xbf16>,
    return
  }
  func.func @transform_0(%arg0: i32) -> (i32, i32, i32) {
    %c0_i32 = arith.constant 0 : i32
    %c0_i32_0 = arith.constant 0 : i32
    %c0_i32_1 = arith.constant 0 : i32
    return %c0_i32, %arg0, %c0_i32_0 : i32, i32, i32
  }
  func.func @transform_1(%arg0: i32) -> (i32, i32) {
    %c0_i32 = arith.constant 0 : i32
    %c0_i32_0 = arith.constant 0 : i32
    %c0_i32_1 = arith.constant 0 : i32
    return %c0_i32, %c0_i32_0 : i32, i32
  }
  func.func @transform_2(%arg0: i32) -> (i32, i32) {
    %c0_i32 = arith.constant 0 : i32
    %c0_i32_0 = arith.constant 0 : i32
    %c0_i32_1 = arith.constant 0 : i32
    return %c0_i32, %c0_i32_0 : i32, i32
  }
  func.func @transform_3(%arg0: i32) -> (i32, i32) {
    %c0_i32 = arith.constant 0 : i32
    %c0_i32_0 = arith.constant 0 : i32
    return %arg0, %c0_i32 : i32, i32
  }
}

module attributes {stable_mosaic.version = 11 : i64} {
  func.func @_conv_phases_kernel(%arg0: i32, %arg1: memref<4x144x288xbf16, #tpu.memory_space<vmem>>, %arg2: memref<288x128xbf16, #tpu.memory_space<vmem>>, %arg3: memref<1x128xf32, #tpu.memory_space<vmem>>, %arg4: memref<144x128xbf16, #tpu.memory_space<vmem>>) attributes {dimension_semantics = [#tpu.dimension_semantics<parallel>], iteration_bounds = array<i64: 2>, scalar_prefetch = 0 : i64, scratch_operands = 0 : i64, tpu.core_type = #tpu.core_type<tc>, window_params = [{transform_indices = @transform_0, window_bounds = array<i64: 4, 144, 288>}, {pipeline_mode = #tpu.pipeline_mode<synchronous>, transform_indices = @transform_1, window_bounds = array<i64: 288, 128>}, {pipeline_mode = #tpu.pipeline_mode<synchronous>, transform_indices = @transform_2, window_bounds = array<i64: 1, 128>}, {transform_indices = @transform_3, window_bounds = array<i64: 144, 128>}]} {
    %c0 = arith.constant 0 : index
    %c0_0 = arith.constant 0 : index
    %c0_1 = arith.constant 0 : index
    %0 = vector.load %arg1[%c0, %c0_0, %c0_1] : memref<4x144x288xbf16, #tpu.memory_space<vmem>>, vector<4x144x288xbf16>
    %1 = vector.shape_cast %0 : vector<4x144x288xbf16> to vector<576x288xbf16>
    %c0_2 = arith.constant 0 : index
    %c0_3 = arith.constant 0 : index
    %2 = vector.load %arg2[%c0_2, %c0_3] : memref<288x128xbf16, #tpu.memory_space<vmem>>, vector<288x128xbf16>
    %cst = arith.constant dense<0.000000e+00> : vector<576x128xf32>
    %3 = tpu.matmul %1, %2, %cst {dimension_numbers = #tpu.dot_dimension_numbers<[1], [0], [0], [1], [0, 0, 1, 1], [], []>} : vector<576x288xbf16>, vector<288x128xbf16>, vector<576x128xf32> -> vector<576x128xf32>
    %4 = vector.extract_strided_slice %3 {offsets = [0, 0], sizes = [144, 128], strides = [1, 1]} : vector<576x128xf32> to vector<144x128xf32>
    %5 = vector.extract_strided_slice %3 {offsets = [144, 0], sizes = [144, 128], strides = [1, 1]} : vector<576x128xf32> to vector<144x128xf32>
    %6 = arith.maximumf %4, %5 : vector<144x128xf32>
    %7 = vector.extract_strided_slice %3 {offsets = [288, 0], sizes = [144, 128], strides = [1, 1]} : vector<576x128xf32> to vector<144x128xf32>
    %8 = vector.extract_strided_slice %3 {offsets = [432, 0], sizes = [144, 128], strides = [1, 1]} : vector<576x128xf32> to vector<144x128xf32>
    %9 = arith.maximumf %7, %8 : vector<144x128xf32>
    %10 = arith.maximumf %6, %9 : vector<144x128xf32>
    %c0_4 = arith.constant 0 : index
    %c0_5 = arith.constant 0 : index
    %11 = vector.load %arg3[%c0_4, %c0_5] : memref<1x128xf32, #tpu.memory_space<vmem>>, vector<1x128xf32>
    %12 = vector.broadcast %11 : vector<1x128xf32> to vector<144x128xf32>
    %13 = arith.addf %10, %12 : vector<144x128xf32>
    %cst_6 = arith.constant 0.000000e+00 : f32
    %14 = vector.broadcast %cst_6 : f32 to vector<144x128xf32>
    %15 = arith.maximumf %13, %14 : vector<144x128xf32>
    %16 = arith.truncf %15 : vector<144x128xf32> to vector<144x128xbf16>
    %c0_7 = arith.constant 0 : index
    %c0_8 = arith.constant 0 : index
    %17 = vector.load %arg4[%c0_7, %c0_8] : memref<144x128xbf16, #tpu.memory_space<vmem>>, vector<144x128xbf16>
    tpu.vector_store %arg4[%c0_7, %c0_8], %16 {strides = array<i32>} : memref<144x128xbf16, #tpu.memory_space<vmem>>, vector<144x128xbf16>,
    return
  }
  func.func @transform_0(%arg0: i32) -> (i32, i32, i32) {
    %c0_i32 = arith.constant 0 : i32
    %c0_i32_0 = arith.constant 0 : i32
    %c0_i32_1 = arith.constant 0 : i32
    return %c0_i32, %arg0, %c0_i32_0 : i32, i32, i32
  }
  func.func @transform_1(%arg0: i32) -> (i32, i32) {
    %c0_i32 = arith.constant 0 : i32
    %c0_i32_0 = arith.constant 0 : i32
    %c0_i32_1 = arith.constant 0 : i32
    return %c0_i32, %c0_i32_0 : i32, i32
  }
  func.func @transform_2(%arg0: i32) -> (i32, i32) {
    %c0_i32 = arith.constant 0 : i32
    %c0_i32_0 = arith.constant 0 : i32
    %c0_i32_1 = arith.constant 0 : i32
    return %c0_i32, %c0_i32_0 : i32, i32
  }
  func.func @transform_3(%arg0: i32) -> (i32, i32) {
    %c0_i32 = arith.constant 0 : i32
    %c0_i32_0 = arith.constant 0 : i32
    return %arg0, %c0_i32 : i32, i32
  }
}

module attributes {stable_mosaic.version = 11 : i64} {
  func.func @_conv3_fc_kernel(%arg0: i32, %arg1: memref<4x32x576xbf16, #tpu.memory_space<vmem>>, %arg2: memref<576x128xbf16, #tpu.memory_space<vmem>>, %arg3: memref<1x128xf32, #tpu.memory_space<vmem>>, %arg4: memref<4x128x128xbf16, #tpu.memory_space<vmem>>, %arg5: memref<1x128xf32, #tpu.memory_space<vmem>>, %arg6: memref<128x128xbf16, #tpu.memory_space<vmem>>, %arg7: memref<1x128xf32, #tpu.memory_space<vmem>>, %arg8: memref<8x128xf32, #tpu.memory_space<vmem>>) attributes {dimension_semantics = [#tpu.dimension_semantics<arbitrary>], iteration_bounds = array<i64: 1>, scalar_prefetch = 0 : i64, scratch_operands = 0 : i64, tpu.core_type = #tpu.core_type<tc>, window_params = [{pipeline_mode = #tpu.pipeline_mode<synchronous>, transform_indices = @transform_0, window_bounds = array<i64: 4, 32, 576>}, {pipeline_mode = #tpu.pipeline_mode<synchronous>, transform_indices = @transform_1, window_bounds = array<i64: 576, 128>}, {pipeline_mode = #tpu.pipeline_mode<synchronous>, transform_indices = @transform_2, window_bounds = array<i64: 1, 128>}, {pipeline_mode = #tpu.pipeline_mode<synchronous>, transform_indices = @transform_3, window_bounds = array<i64: 4, 128, 128>}, {pipeline_mode = #tpu.pipeline_mode<synchronous>, transform_indices = @transform_4, window_bounds = array<i64: 1, 128>}, {pipeline_mode = #tpu.pipeline_mode<synchronous>, transform_indices = @transform_5, window_bounds = array<i64: 128, 128>}, {pipeline_mode = #tpu.pipeline_mode<synchronous>, transform_indices = @transform_6, window_bounds = array<i64: 1, 128>}, {pipeline_mode = #tpu.pipeline_mode<synchronous>, transform_indices = @transform_7, window_bounds = array<i64: 8, 128>}]} {
    %c0 = arith.constant 0 : index
    %c0_0 = arith.constant 0 : index
    %c0_1 = arith.constant 0 : index
    %0 = vector.load %arg1[%c0, %c0_0, %c0_1] : memref<4x32x576xbf16, #tpu.memory_space<vmem>>, vector<4x32x576xbf16>
    %1 = vector.shape_cast %0 : vector<4x32x576xbf16> to vector<128x576xbf16>
    %c0_2 = arith.constant 0 : index
    %c0_3 = arith.constant 0 : index
    %2 = vector.load %arg2[%c0_2, %c0_3] : memref<576x128xbf16, #tpu.memory_space<vmem>>, vector<576x128xbf16>
    %cst = arith.constant dense<0.000000e+00> : vector<128x128xf32>
    %3 = tpu.matmul %1, %2, %cst {dimension_numbers = #tpu.dot_dimension_numbers<[1], [0], [0], [1], [0, 0, 1, 1], [], []>} : vector<128x576xbf16>, vector<576x128xbf16>, vector<128x128xf32> -> vector<128x128xf32>
    %4 = vector.extract_strided_slice %3 {offsets = [0, 0], sizes = [32, 128], strides = [1, 1]} : vector<128x128xf32> to vector<32x128xf32>
    %5 = vector.extract_strided_slice %3 {offsets = [32, 0], sizes = [32, 128], strides = [1, 1]} : vector<128x128xf32> to vector<32x128xf32>
    %6 = arith.maximumf %4, %5 : vector<32x128xf32>
    %7 = vector.extract_strided_slice %3 {offsets = [64, 0], sizes = [32, 128], strides = [1, 1]} : vector<128x128xf32> to vector<32x128xf32>
    %8 = vector.extract_strided_slice %3 {offsets = [96, 0], sizes = [32, 128], strides = [1, 1]} : vector<128x128xf32> to vector<32x128xf32>
    %9 = arith.maximumf %7, %8 : vector<32x128xf32>
    %10 = arith.maximumf %6, %9 : vector<32x128xf32>
    %c0_4 = arith.constant 0 : index
    %c0_5 = arith.constant 0 : index
    %11 = vector.load %arg3[%c0_4, %c0_5] : memref<1x128xf32, #tpu.memory_space<vmem>>, vector<1x128xf32>
    %12 = vector.broadcast %11 : vector<1x128xf32> to vector<32x128xf32>
    %13 = arith.addf %10, %12 : vector<32x128xf32>
    %cst_6 = arith.constant 0.000000e+00 : f32
    %14 = vector.broadcast %cst_6 : f32 to vector<32x128xf32>
    %15 = arith.maximumf %13, %14 : vector<32x128xf32>
    %16 = vector.extract_strided_slice %15 {offsets = [0, 0], sizes = [8, 128], strides = [1, 1]} : vector<32x128xf32> to vector<8x128xf32>
    %17 = arith.truncf %16 : vector<8x128xf32> to vector<8x128xbf16>
    %c0_7 = arith.constant 0 : index
    %c0_8 = arith.constant 0 : index
    %c0_9 = arith.constant 0 : index
    %18 = vector.load %arg4[%c0_7, %c0_8, %c0_9] : memref<4x128x128xbf16, #tpu.memory_space<vmem>>, vector<1x128x128xbf16>
    %19 = vector.shape_cast %18 : vector<1x128x128xbf16> to vector<128x128xbf16>
    %cst_10 = arith.constant dense<0.000000e+00> : vector<8x128xf32>
    %20 = tpu.matmul %17, %19, %cst_10 {dimension_numbers = #tpu.dot_dimension_numbers<[1], [0], [0], [1], [0, 0, 1, 1], [], []>} : vector<8x128xbf16>, vector<128x128xbf16>, vector<8x128xf32> -> vector<8x128xf32>
    %21 = vector.extract_strided_slice %15 {offsets = [8, 0], sizes = [8, 128], strides = [1, 1]} : vector<32x128xf32> to vector<8x128xf32>
    %22 = arith.truncf %21 : vector<8x128xf32> to vector<8x128xbf16>
    %c1 = arith.constant 1 : index
    %c0_11 = arith.constant 0 : index
    %c0_12 = arith.constant 0 : index
    %23 = vector.load %arg4[%c1, %c0_11, %c0_12] : memref<4x128x128xbf16, #tpu.memory_space<vmem>>, vector<1x128x128xbf16>
    %24 = vector.shape_cast %23 : vector<1x128x128xbf16> to vector<128x128xbf16>
    %cst_13 = arith.constant dense<0.000000e+00> : vector<8x128xf32>
    %25 = tpu.matmul %22, %24, %cst_13 {dimension_numbers = #tpu.dot_dimension_numbers<[1], [0], [0], [1], [0, 0, 1, 1], [], []>} : vector<8x128xbf16>, vector<128x128xbf16>, vector<8x128xf32> -> vector<8x128xf32>
    %26 = arith.addf %20, %25 : vector<8x128xf32>
    %27 = vector.extract_strided_slice %15 {offsets = [16, 0], sizes = [8, 128], strides = [1, 1]} : vector<32x128xf32> to vector<8x128xf32>
    %28 = arith.truncf %27 : vector<8x128xf32> to vector<8x128xbf16>
    %c2 = arith.constant 2 : index
    %c0_14 = arith.constant 0 : index
    %c0_15 = arith.constant 0 : index
    %29 = vector.load %arg4[%c2, %c0_14, %c0_15] : memref<4x128x128xbf16, #tpu.memory_space<vmem>>, vector<1x128x128xbf16>
    %30 = vector.shape_cast %29 : vector<1x128x128xbf16> to vector<128x128xbf16>
    %cst_16 = arith.constant dense<0.000000e+00> : vector<8x128xf32>
    %31 = tpu.matmul %28, %30, %cst_16 {dimension_numbers = #tpu.dot_dimension_numbers<[1], [0], [0], [1], [0, 0, 1, 1], [], []>} : vector<8x128xbf16>, vector<128x128xbf16>, vector<8x128xf32> -> vector<8x128xf32>
    %32 = arith.addf %26, %31 : vector<8x128xf32>
    %33 = vector.extract_strided_slice %15 {offsets = [24, 0], sizes = [8, 128], strides = [1, 1]} : vector<32x128xf32> to vector<8x128xf32>
    %34 = arith.truncf %33 : vector<8x128xf32> to vector<8x128xbf16>
    %c3 = arith.constant 3 : index
    %c0_17 = arith.constant 0 : index
    %c0_18 = arith.constant 0 : index
    %35 = vector.load %arg4[%c3, %c0_17, %c0_18] : memref<4x128x128xbf16, #tpu.memory_space<vmem>>, vector<1x128x128xbf16>
    %36 = vector.shape_cast %35 : vector<1x128x128xbf16> to vector<128x128xbf16>
    %cst_19 = arith.constant dense<0.000000e+00> : vector<8x128xf32>
    %37 = tpu.matmul %34, %36, %cst_19 {dimension_numbers = #tpu.dot_dimension_numbers<[1], [0], [0], [1], [0, 0, 1, 1], [], []>} : vector<8x128xbf16>, vector<128x128xbf16>, vector<8x128xf32> -> vector<8x128xf32>
    %38 = arith.addf %32, %37 : vector<8x128xf32>
    %c0_20 = arith.constant 0 : index
    %c0_21 = arith.constant 0 : index
    %39 = vector.load %arg5[%c0_20, %c0_21] : memref<1x128xf32, #tpu.memory_space<vmem>>, vector<1x128xf32>
    %40 = vector.broadcast %39 : vector<1x128xf32> to vector<8x128xf32>
    %41 = arith.addf %38, %40 : vector<8x128xf32>
    %42 = math.tanh %41 : vector<8x128xf32>
    %43 = arith.truncf %42 : vector<8x128xf32> to vector<8x128xbf16>
    %c0_22 = arith.constant 0 : index
    %c0_23 = arith.constant 0 : index
    %44 = vector.load %arg6[%c0_22, %c0_23] : memref<128x128xbf16, #tpu.memory_space<vmem>>, vector<128x128xbf16>
    %cst_24 = arith.constant dense<0.000000e+00> : vector<8x128xf32>
    %45 = tpu.matmul %43, %44, %cst_24 {dimension_numbers = #tpu.dot_dimension_numbers<[1], [0], [0], [1], [0, 0, 1, 1], [], []>} : vector<8x128xbf16>, vector<128x128xbf16>, vector<8x128xf32> -> vector<8x128xf32>
    %c0_25 = arith.constant 0 : index
    %c0_26 = arith.constant 0 : index
    %46 = vector.load %arg7[%c0_25, %c0_26] : memref<1x128xf32, #tpu.memory_space<vmem>>, vector<1x128xf32>
    %47 = vector.broadcast %46 : vector<1x128xf32> to vector<8x128xf32>
    %48 = arith.addf %45, %47 : vector<8x128xf32>
    %49 = tpu.iota {dimensions = array<i32: 1>} : vector<8x128xi32>
    %c35_i32 = arith.constant 35 : i32
    %50 = vector.broadcast %c35_i32 : i32 to vector<8x128xi32>
    %51 = arith.cmpi slt, %49, %50 : vector<8x128xi32>
    %cst_27 = arith.constant -1.000000e+30 : f32
    %52 = vector.broadcast %cst_27 : f32 to vector<8x128xf32>
    %53 = arith.select %51, %48, %52 : vector<8x128xi1>, vector<8x128xf32>
    %cst_28 = arith.constant dense<0xFF800000> : vector<8xf32>
    %54 = vector.multi_reduction <maximumf>, %53, %cst_28 [1] : vector<8x128xf32> to vector<8xf32>
    %55 = vector.shape_cast %54 : vector<8xf32> to vector<8x1xf32>
    %56 = vector.broadcast %55 : vector<8x1xf32> to vector<8x128xf32>
    %57 = arith.subf %53, %56 : vector<8x128xf32>
    %58 = math.exp %57 : vector<8x128xf32>
    %cst_29 = arith.constant dense<0.000000e+00> : vector<8xf32>
    %59 = vector.multi_reduction <add>, %58, %cst_29 [1] : vector<8x128xf32> to vector<8xf32>
    %60 = vector.shape_cast %59 : vector<8xf32> to vector<8x1xf32>
    %61 = vector.broadcast %60 : vector<8x1xf32> to vector<8x128xf32>
    %62 = arith.divf %58, %61 : vector<8x128xf32>
    %c0_30 = arith.constant 0 : index
    %c0_31 = arith.constant 0 : index
    %63 = vector.load %arg8[%c0_30, %c0_31] : memref<8x128xf32, #tpu.memory_space<vmem>>, vector<8x128xf32>
    tpu.vector_store %arg8[%c0_30, %c0_31], %62 {strides = array<i32>} : memref<8x128xf32, #tpu.memory_space<vmem>>, vector<8x128xf32>,
    return
  }
  func.func @transform_0(%arg0: i32) -> (i32, i32, i32) {
    %c0_i32 = arith.constant 0 : i32
    %c0_i32_0 = arith.constant 0 : i32
    %c0_i32_1 = arith.constant 0 : i32
    %c0_i32_2 = arith.constant 0 : i32
    return %c0_i32, %c0_i32_0, %c0_i32_1 : i32, i32, i32
  }
  func.func @transform_1(%arg0: i32) -> (i32, i32) {
    %c0_i32 = arith.constant 0 : i32
    %c0_i32_0 = arith.constant 0 : i32
    %c0_i32_1 = arith.constant 0 : i32
    return %c0_i32, %c0_i32_0 : i32, i32
  }
  func.func @transform_2(%arg0: i32) -> (i32, i32) {
    %c0_i32 = arith.constant 0 : i32
    %c0_i32_0 = arith.constant 0 : i32
    %c0_i32_1 = arith.constant 0 : i32
    return %c0_i32, %c0_i32_0 : i32, i32
  }
  func.func @transform_3(%arg0: i32) -> (i32, i32, i32) {
    %c0_i32 = arith.constant 0 : i32
    %c0_i32_0 = arith.constant 0 : i32
    %c0_i32_1 = arith.constant 0 : i32
    %c0_i32_2 = arith.constant 0 : i32
    return %c0_i32, %c0_i32_0, %c0_i32_1 : i32, i32, i32
  }
  func.func @transform_4(%arg0: i32) -> (i32, i32) {
    %c0_i32 = arith.constant 0 : i32
    %c0_i32_0 = arith.constant 0 : i32
    %c0_i32_1 = arith.constant 0 : i32
    return %c0_i32, %c0_i32_0 : i32, i32
  }
  func.func @transform_5(%arg0: i32) -> (i32, i32) {
    %c0_i32 = arith.constant 0 : i32
    %c0_i32_0 = arith.constant 0 : i32
    %c0_i32_1 = arith.constant 0 : i32
    return %c0_i32, %c0_i32_0 : i32, i32
  }
  func.func @transform_6(%arg0: i32) -> (i32, i32) {
    %c0_i32 = arith.constant 0 : i32
    %c0_i32_0 = arith.constant 0 : i32
    %c0_i32_1 = arith.constant 0 : i32
    return %c0_i32, %c0_i32_0 : i32, i32
  }
  func.func @transform_7(%arg0: i32) -> (i32, i32) {
    %c0_i32 = arith.constant 0 : i32
    %c0_i32_0 = arith.constant 0 : i32
    %c0_i32_1 = arith.constant 0 : i32
    return %c0_i32, %c0_i32_0 : i32, i32
  }
}

</mosaic_0001>

<llo_original>
// kernel: cnn_forward.3
$region0: #{cnn_forward.3}
  #allocation0 [shape = 'u32[]', space=smem, size = 0x4, offset = 0x4, fixed_abs, tag = 'smem constant byte address 0x4 - core index']
  #allocation1 [shape = 'u32[144,128]{1,0:T(1,128)}', space=vmem, size = 0x12000, scoped, tag = 'internal scratch']
  %s0 = inlined_call_operand.vmem [shape: bf16[4,1568,9], index: 0, kind: input, shape index: {}]
  %s1 = inlined_call_operand.vmem [shape: bf16[9,128], index: 1, kind: input, shape index: {}]
  %s2 = inlined_call_operand.vmem [shape: f32[1,128], index: 2, kind: input, shape index: {}]
  %s3 = inlined_call_operand.vmem [shape: bf16[1568,128], index: 3, kind: output, shape index: {}]
  %s4 = sld [smem:[#allocation0]]
  $region86: #{cnn_forward.3} parent=0
    _
  %s6 = ssub.s32 1, %s4
  %s7 = scalar_select 0, %s6, %s4
  $region1: #{cnn_forward.3} parent=0
    #allocation2 [shape = 'u8[1605632]{0}', space=vmem, size = 0x188000, scoped, tag = 'input window, operand 0']
    loop: start=0, step=1, limit=4
    $region2: #{cnn_forward.3} parent=1 // loop_pre_header
      _
    $region3: #{cnn_forward.3} parent=1 // loop_header
      %s9 = sphi 0, %s13
      %p10 = scmp.ge.s32.totalorder %s9, 4
      %s19 = sphi 0, %s21
      %s22 = sphi 0, %s19
      %s23 = sphi 0, %s22
      %s39 = sphi 0, %s23
      %s43 = sphi 0, %s43
      %s45 = sphi 0, %s43
      %s46 = sphi 0, %s45
      %s60 = sphi 0, %s46
      %s64 = sphi 0, %s64
      %s66 = sphi 0, %s64
      %s67 = sphi 0, %s66
      %s81 = sphi 0, %s67
      %s87 = sphi 0, %s89
      %s90 = sphi 0, %s87
      %s91 = sphi 0, %s90
      %s107 = sphi 0, %s91
    $region4: #{cnn_forward.3} parent=1 // loop_header_branch
      %12 = sbr.rel (%p10) target = $region8
    $region5: #{cnn_forward.3} parent=1 // loop_body
      %s14 = ssub.s32 %s9, 1
      %s15 = ssub.s32 %s9, 2
      %s16 = sadd.s32 %s9, 1
      %s17 = ssub.s32 %s9, %s16
      %p18 = scmp.eq.s32.totalorder %s17, 0
      %s20 = sadd.s32 %s19, 1
      %s21 = scalar_select %p18, %s19, %s20
      %p24 = pneg %p18
      %p25 = scmp.eq.s32.totalorder %s9, 1
      %p26 = por %p24, %p25
      %p27 = scmp.ne.s32.totalorder %s19, %s22
      %p28 = scmp.eq.s32.totalorder %s9, 0
      %p29 = por %p27, %p28
      %p30 = scmp.ne.s32.totalorder %s19, %s22
      %p31 = scmp.eq.s32.totalorder %s14, 1
      %p32 = por %p30, %p31
      %p33 = scmp.ne.s32.totalorder %s22, %s23
      %p34 = scmp.eq.s32.totalorder %s14, 0
      %p35 = por %p33, %p34
      %p36 = scmp.ne.s32.totalorder %s22, %s23
      %p37 = scmp.eq.s32.totalorder %s15, 1
      %p38 = por %p36, %p37
      %p40 = scmp.ne.s32.totalorder %s23, %s39
      %p41 = scmp.eq.s32.totalorder %s15, 0
      %p42 = por %p40, %p41
      %s44 = sadd.s32 %s43, 1
      %p47 = scmp.eq.s32.totalorder %s9, 1
      %p48 = scmp.ne.s32.totalorder %s43, %s45
      %p49 = scmp.eq.s32.totalorder %s9, 0
      %p50 = por %p48, %p49
      %p51 = scmp.ne.s32.totalorder %s43, %s45
      %p52 = scmp.eq.s32.totalorder %s14, 1
      %p53 = por %p51, %p52
      %p54 = scmp.ne.s32.totalorder %s45, %s46
      %p55 = scmp.eq.s32.totalorder %s14, 0
      %p56 = por %p54, %p55
      %p57 = scmp.ne.s32.totalorder %s45, %s46
      %p58 = scmp.eq.s32.totalorder %s15, 1
      %p59 = por %p57, %p58
      %p61 = scmp.ne.s32.totalorder %s46, %s60
      %p62 = scmp.eq.s32.totalorder %s15, 0
      %p63 = por %p61, %p62
      %s65 = sadd.s32 %s64, 1
      %p68 = scmp.eq.s32.totalorder %s9, 1
      %p69 = scmp.ne.s32.totalorder %s64, %s66
      %p70 = scmp.eq.s32.totalorder %s9, 0
      %p71 = por %p69, %p70
      %p72 = scmp.ne.s32.totalorder %s64, %s66
      %p73 = scmp.eq.s32.totalorder %s14, 1
      %p74 = por %p72, %p73
      %p75 = scmp.ne.s32.totalorder %s66, %s67
      %p76 = scmp.eq.s32.totalorder %s14, 0
      %p77 = por %p75, %p76
      %p78 = scmp.ne.s32.totalorder %s66, %s67
      %p79 = scmp.eq.s32.totalorder %s15, 1
      %p80 = por %p78, %p79
      %p82 = scmp.ne.s32.totalorder %s67, %s81
      %p83 = scmp.eq.s32.totalorder %s15, 0
      %p84 = por %p82, %p83
      %s85 = ssub.s32 %s9, %s16
      %p86 = scmp.eq.s32.totalorder %s85, 0
      %s88 = sadd.s32 %s87, 1
      %s89 = scalar_select %p86, %s87, %s88
      %p92 = pneg %p86
      %p93 = scmp.eq.s32.totalorder %s9, 1
      %p94 = por %p92, %p93
      %p95 = scmp.ne.s32.totalorder %s87, %s90
      %p96 = scmp.eq.s32.totalorder %s9, 0
      %p97 = por %p95, %p96
      %p98 = scmp.ne.s32.totalorder %s87, %s90
      %p99 = scmp.eq.s32.totalorder %s14, 1
      %p100 = por %p98, %p99
      %p101 = scmp.ne.s32.totalorder %s90, %s91
      %p102 = scmp.eq.s32.totalorder %s14, 0
      %p103 = por %p101, %p102
      %p104 = scmp.ne.s32.totalorder %s90, %s91
      %p105 = scmp.eq.s32.totalorder %s15, 1
      %p106 = por %p104, %p105
      %p108 = scmp.ne.s32.totalorder %s91, %s107
      %p109 = scmp.eq.s32.totalorder %s15, 0
      %p110 = por %p108, %p109
      %p111 = scmp.le.s32.totalorder 1, %s9
      %p112 = scmp.lt.s32.totalorder %s9, 3
      %p113 = pnand %p111, %p112
      %p114 = pneg %p113
      // Predicated region
      $region9: #{cnn_forward.3} parent=5 // pred_check
        _
      $region10: #{cnn_forward.3} parent=5 // pred_check_branch
        %116 = sbr.rel (%p113) target = $region12
      $region11: #{cnn_forward.3} parent=5 // pred_region
        %s117 = ssub.s32 %s9, 1
        // Predicated region
        $region13: #{cnn_forward.3} parent=11 // pred_check
          %p118 = pneg %p56
        $region14: #{cnn_forward.3} parent=11 // pred_check_branch
          %120 = sbr.rel (%p118) target = $region16
        $region15: #{cnn_forward.3} parent=11 // pred_region
          _
        $region16: #{cnn_forward.3} parent=11 // pred_fallthru
          _
        // Predicated region
        $region17: #{cnn_forward.3} parent=11 // pred_check
          %p121 = pneg %p77
        $region18: #{cnn_forward.3} parent=11 // pred_check_branch
          %123 = sbr.rel (%p121) target = $region20
        $region19: #{cnn_forward.3} parent=11 // pred_region
          _
        $region20: #{cnn_forward.3} parent=11 // pred_fallthru
          _
      $region12: #{cnn_forward.3} parent=5 // pred_fallthru
        _
      %p124 = scmp.lt.s32.totalorder %s9, 2
      // Predicated region
      $region21: #{cnn_forward.3} parent=5 // pred_check
        %p125 = pneg %p124
      $region22: #{cnn_forward.3} parent=5 // pred_check_branch
        %127 = sbr.rel (%p125) target = $region24
      $region23: #{cnn_forward.3} parent=5 // pred_region
        // Predicated region
        $region25: #{cnn_forward.3} parent=23 // pred_check
          %p128 = pneg %p29
        $region26: #{cnn_forward.3} parent=23 // pred_check_branch
          %130 = sbr.rel (%p128) target = $region28
        $region27: #{cnn_forward.3} parent=23 // pred_region
          %s131 = sand.u32 %s19, 1
          %s132 = sand.u32 %s19, 1
          %s133 = smul.addr %s132, 1568
          %s134 = scalar_lea.vmem [#allocation2], %s133
          %s135 = smul.u32 98, %s9
          %s136 = smul.addr %s135, 4
          %s137 = scalar_lea.vmem %s0, %s136
          // Predicated region
          $region29: #{cnn_forward.3} parent=27 // pred_check
            _
          $region30: #{cnn_forward.3} parent=27 // pred_check_branch
            %139 = sbr.rel (0) target = $region32
          $region31: #{cnn_forward.3} parent=27 // pred_region
            // Predicated region
            $region33: #{cnn_forward.3} parent=31 // pred_check
              _
            $region34: #{cnn_forward.3} parent=31 // pred_check_branch
              %141 = sbr.rel target = $region36
            $region35: #{cnn_forward.3} parent=31 // pred_region
              // Predicated region
              $region48: #{cnn_forward.3} parent=35 // pred_check
                _
              $region49: #{cnn_forward.3} parent=35 // pred_check_branch
                %939 = sbr.rel (0) target = $region51
              $region50: #{cnn_forward.3} parent=35 // pred_region
                loop: start=0, step=1, limit=1
                $region52: #{cnn_forward.3} parent=50 // loop_pre_header
                  _
                $region53: #{cnn_forward.3} parent=50 // loop_header
                  %s941 = sphi 0, %s945
                  %p942 = scmp.ge.s32.totalorder %s941, 1
                  %s946 = sphi %s137, %s137
                  %s947 = sphi %s134, %s134
                $region54: #{cnn_forward.3} parent=50 // loop_header_branch
                  %944 = sbr.rel (%p942) target = $region58
                $region55: #{cnn_forward.3} parent=50 // loop_body
                  _
                $region56: #{cnn_forward.3} parent=50 // loop_footer
                  %s945 = sadd.s32 1, %s941
                $region57: #{cnn_forward.3} parent=50 // loop_footer_branch
                  %940 = sbr.rel target = $region53
                $region58: #{cnn_forward.3} parent=50 // loop_exit
                  _
                %s949 = ssub.s32 16, 1
                loop: start=0, step=1, limit=1
                $region59: #{cnn_forward.3} parent=50 // loop_pre_header
                  _
                $region60: #{cnn_forward.3} parent=50 // loop_header
                  %s951 = sphi 0, %s955
                  %p952 = scmp.ge.s32.totalorder %s951, 1
                  %s956 = sphi %s137, %s137
                  %s957 = sphi %s134, %s134
                $region61: #{cnn_forward.3} parent=50 // loop_header_branch
                  %954 = sbr.rel (%p952) target = $region65
                $region62: #{cnn_forward.3} parent=50 // loop_body
                  %v958 = vld [vmem:[%s956] sm:%s949]
                  %959 = vst [vmem:[%s957] sm:%s949] %v958
                  %v960 = vld [vmem:[%s956 + $0x4] sm:%s949]
                  %961 = vst [vmem:[%s957 + $0x4] sm:%s949] %v960
                  %v962 = vld [vmem:[%s956 + $0x8] sm:%s949]
                  %963 = vst [vmem:[%s957 + $0x8] sm:%s949] %v962
                  %v964 = vld [vmem:[%s956 + $0xc] sm:%s949]
                  %965 = vst [vmem:[%s957 + $0xc] sm:%s949] %v964
                  %v966 = vld [vmem:[%s956 + $0x10] sm:%s949]
                  %967 = vst [vmem:[%s957 + $0x10] sm:%s949] %v966
                  %v968 = vld [vmem:[%s956 + $0x14] sm:%s949]
                  %969 = vst [vmem:[%s957 + $0x14] sm:%s949] %v968
                  %v970 = vld [vmem:[%s956 + $0x18] sm:%s949]
                  %971 = vst [vmem:[%s957 + $0x18] sm:%s949] %v970
                  %v972 = vld [vmem:[%s956 + $0x1c] sm:%s949]
                  %973 = vst [vmem:[%s957 + $0x1c] sm:%s949] %v972
                  %v974 = vld [vmem:[%s956 + $0x20] sm:%s949]
                  %975 = vst [vmem:[%s957 + $0x20] sm:%s949] %v974
                  %v976 = vld [vmem:[%s956 + $0x24] sm:%s949]
                  %977 = vst [vmem:[%s957 + $0x24] sm:%s949] %v976
                  %v978 = vld [vmem:[%s956 + $0x28] sm:%s949]
                  %979 = vst [vmem:[%s957 + $0x28] sm:%s949] %v978
                  %v980 = vld [vmem:[%s956 + $0x2c] sm:%s949]
                  %981 = vst [vmem:[%s957 + $0x2c] sm:%s949] %v980
                  %v982 = vld [vmem:[%s956 + $0x30] sm:%s949]
                  %983 = vst [vmem:[%s957 + $0x30] sm:%s949] %v982
                  %v984 = vld [vmem:[%s956 + $0x34] sm:%s949]
                  %985 = vst [vmem:[%s957 + $0x34] sm:%s949] %v984
                  %v986 = vld [vmem:[%s956 + $0x38] sm:%s949]
                  %987 = vst [vmem:[%s957 + $0x38] sm:%s949] %v986
                  %v988 = vld [vmem:[%s956 + $0x3c] sm:%s949]
                  %989 = vst [vmem:[%s957 + $0x3c] sm:%s949] %v988
                  %v990 = vld [vmem:[%s956 + $0x40] sm:%s949]
                  %991 = vst [vmem:[%s957 + $0x40] sm:%s949] %v990
                  %v992 = vld [vmem:[%s956 + $0x44] sm:%s949]
                  %993 = vst [vmem:[%s957 + $0x44] sm:%s949] %v992
                  %v994 = vld [vmem:[%s956 + $0x48] sm:%s949]
                  %995 = vst [vmem:[%s957 + $0x48] sm:%s949] %v994
                  %v996 = vld [vmem:[%s956 + $0x4c] sm:%s949]
                  %997 = vst [vmem:[%s957 + $0x4c] sm:%s949] %v996
                  %v998 = vld [vmem:[%s956 + $0x50] sm:%s949]
                  %999 = vst [vmem:[%s957 + $0x50] sm:%s949] %v998
                  %v1000 = vld [vmem:[%s956 + $0x54] sm:%s949]
                  %1001 = vst [vmem:[%s957 + $0x54] sm:%s949] %v1000
                  %v1002 = vld [vmem:[%s956 + $0x58] sm:%s949]
                  %1003 = vst [vmem:[%s957 + $0x58] sm:%s949] %v1002
                  %v1004 = vld [vmem:[%s956 + $0x5c] sm:%s949]
                  %1005 = vst [vmem:[%s957 + $0x5c] sm:%s949] %v1004
                  %v1006 = vld [vmem:[%s956 + $0x60] sm:%s949]
                  %1007 = vst [vmem:[%s957 + $0x60] sm:%s949] %v1006
                  %v1008 = vld [vmem:[%s956 + $0x64] sm:%s949]
                  %1009 = vst [vmem:[%s957 + $0x64] sm:%s949] %v1008
                  %v1010 = vld [vmem:[%s956 + $0x68] sm:%s949]
                  %1011 = vst [vmem:[%s957 + $0x68] sm:%s949] %v1010
                  %v1012 = vld [vmem:[%s956 + $0x6c] sm:%s949]
                  %1013 = vst [vmem:[%s957 + $0x6c] sm:%s949] %v1012
                  %v1014 = vld [vmem:[%s956 + $0x70] sm:%s949]
                  %1015 = vst [vmem:[%s957 + $0x70] sm:%s949] %v1014
                  %v1016 = vld [vmem:[%s956 + $0x74] sm:%s949]
                  %1017 = vst [vmem:[%s957 + $0x74] sm:%s949] %v1016
                  %v1018 = vld [vmem:[%s956 + $0x78] sm:%s949]
                  %1019 = vst [vmem:[%s957 + $0x78] sm:%s949] %v1018
                  %v1020 = vld [vmem:[%s956 + $0x7c] sm:%s949]
                  %1021 = vst [vmem:[%s957 + $0x7c] sm:%s949] %v1020
                  %v1022 = vld [vmem:[%s956 + $0x80] sm:%s949]
                  %1023 = vst [vmem:[%s957 + $0x80] sm:%s949] %v1022
                  %v1024 = vld [vmem:[%s956 + $0x84] sm:%s949]
                  %1025 = vst [vmem:[%s957 + $0x84] sm:%s949] %v1024
                  %v1026 = vld [vmem:[%s956 + $0x88] sm:%s949]
                  %1027 = vst [vmem:[%s957 + $0x88] sm:%s949] %v1026
                  %v1028 = vld [vmem:[%s956 + $0x8c] sm:%s949]
                  %1029 = vst [vmem:[%s957 + $0x8c] sm:%s949] %v1028
                  %v1030 = vld [vmem:[%s956 + $0x90] sm:%s949]
                  %1031 = vst [vmem:[%s957 + $0x90] sm:%s949] %v1030
                  %v1032 = vld [vmem:[%s956 + $0x94] sm:%s949]
                  %1033 = vst [vmem:[%s957 + $0x94] sm:%s949] %v1032
                  %v1034 = vld [vmem:[%s956 + $0x98] sm:%s949]
                  %1035 = vst [vmem:[%s957 + $0x98] sm:%s949] %v1034
                  %v1036 = vld [vmem:[%s956 + $0x9c] sm:%s949]
                  %1037 = vst [vmem:[%s957 + $0x9c] sm:%s949] %v1036
                  %v1038 = vld [vmem:[%s956 + $0xa0] sm:%s949]
                  %1039 = vst [vmem:[%s957 + $0xa0] sm:%s949] %v1038
                  %v1040 = vld [vmem:[%s956 + $0xa4] sm:%s949]
                  %1041 = vst [vmem:[%s957 + $0xa4] sm:%s949] %v1040
                  %v1042 = vld [vmem:[%s956 + $0xa8] sm:%s949]
                  %1043 = vst [vmem:[%s957 + $0xa8] sm:%s949] %v1042
                  %v1044 = vld [vmem:[%s956 + $0xac] sm:%s949]
                  %1045 = vst [vmem:[%s957 + $0xac] sm:%s949] %v1044
                  %v1046 = vld [vmem:[%s956 + $0xb0] sm:%s949]
                  %1047 = vst [vmem:[%s957 + $0xb0] sm:%s949] %v1046
                  %v1048 = vld [vmem:[%s956 + $0xb4] sm:%s949]
                  %1049 = vst [vmem:[%s957 + $0xb4] sm:%s949] %v1048
                  %v1050 = vld [vmem:[%s956 + $0xb8] sm:%s949]
                  %1051 = vst [vmem:[%s957 + $0xb8] sm:%s949] %v1050
                  %v1052 = vld [vmem:[%s956 + $0xbc] sm:%s949]
                  %1053 = vst [vmem:[%s957 + $0xbc] sm:%s949] %v1052
                  %v1054 = vld [vmem:[%s956 + $0xc0] sm:%s949]
                  %1055 = vst [vmem:[%s957 + $0xc0] sm:%s949] %v1054
                  %v1056 = vld [vmem:[%s956 + $0xc4] sm:%s949]
                  %1057 = vst [vmem:[%s957 + $0xc4] sm:%s949] %v1056
                  %v1058 = vld [vmem:[%s956 + $0xc8] sm:%s949]
                  %1059 = vst [vmem:[%s957 + $0xc8] sm:%s949] %v1058
                  %v1060 = vld [vmem:[%s956 + $0xcc] sm:%s949]
                  %1061 = vst [vmem:[%s957 + $0xcc] sm:%s949] %v1060
                  %v1062 = vld [vmem:[%s956 + $0xd0] sm:%s949]
                  %1063 = vst [vmem:[%s957 + $0xd0] sm:%s949] %v1062
                  %v1064 = vld [vmem:[%s956 + $0xd4] sm:%s949]
                  %1065 = vst [vmem:[%s957 + $0xd4] sm:%s949] %v1064
                  %v1066 = vld [vmem:[%s956 + $0xd8] sm:%s949]
                  %1067 = vst [vmem:[%s957 + $0xd8] sm:%s949] %v1066
                  %v1068 = vld [vmem:[%s956 + $0xdc] sm:%s949]
                  %1069 = vst [vmem:[%s957 + $0xdc] sm:%s949] %v1068
                  %v1070 = vld [vmem:[%s956 + $0xe0] sm:%s949]
                  %1071 = vst [vmem:[%s957 + $0xe0] sm:%s949] %v1070
                  %v1072 = vld [vmem:[%s956 + $0xe4] sm:%s949]
                  %1073 = vst [vmem:[%s957 + $0xe4] sm:%s949] %v1072
                  %v1074 = vld [vmem:[%s956 + $0xe8] sm:%s949]
                  %1075 = vst [vmem:[%s957 + $0xe8] sm:%s949] %v1074
                  %v1076 = vld [vmem:[%s956 + $0xec] sm:%s949]
                  %1077 = vst [vmem:[%s957 + $0xec] sm:%s949] %v1076
                  %v1078 = vld [vmem:[%s956 + $0xf0] sm:%s949]
                  %1079 = vst [vmem:[%s957 + $0xf0] sm:%s949] %v1078
                  %v1080 = vld [vmem:[%s956 + $0xf4] sm:%s949]
                  %1081 = vst [vmem:[%s957 + $0xf4] sm:%s949] %v1080
                  %v1082 = vld [vmem:[%s956 + $0xf8] sm:%s949]
                  %1083 = vst [vmem:[%s957 + $0xf8] sm:%s949] %v1082
                  %v1084 = vld [vmem:[%s956 + $0xfc] sm:%s949]
                  %1085 = vst [vmem:[%s957 + $0xfc] sm:%s949] %v1084
                  %v1086 = vld [vmem:[%s956 + $0x100] sm:%s949]
                  %1087 = vst [vmem:[%s957 + $0x100] sm:%s949] %v1086
                  %v1088 = vld [vmem:[%s956 + $0x104] sm:%s949]
                  %1089 = vst [vmem:[%s957 + $0x104] sm:%s949] %v1088
                  %v1090 = vld [vmem:[%s956 + $0x108] sm:%s949]
                  %1091 = vst [vmem:[%s957 + $0x108] sm:%s949] %v1090
                  %v1092 = vld [vmem:[%s956 + $0x10c] sm:%s949]
                  %1093 = vst [vmem:[%s957 + $0x10c] sm:%s949] %v1092
                  %v1094 = vld [vmem:[%s956 + $0x110] sm:%s949]
                  %1095 = vst [vmem:[%s957 + $0x110] sm:%s949] %v1094
                  %v1096 = vld [vmem:[%s956 + $0x114] sm:%s949]
                  %1097 = vst [vmem:[%s957 + $0x114] sm:%s949] %v1096
                  %v1098 = vld [vmem:[%s956 + $0x118] sm:%s949]
                  %1099 = vst [vmem:[%s957 + $0x118] sm:%s949] %v1098
                  %v1100 = vld [vmem:[%s956 + $0x11c] sm:%s949]
                  %1101 = vst [vmem:[%s957 + $0x11c] sm:%s949] %v1100
                  %v1102 = vld [vmem:[%s956 + $0x120] sm:%s949]
                  %1103 = vst [vmem:[%s957 + $0x120] sm:%s949] %v1102
                  %v1104 = vld [vmem:[%s956 + $0x124] sm:%s949]
                  %1105 = vst [vmem:[%s957 + $0x124] sm:%s949] %v1104
                  %v1106 = vld [vmem:[%s956 + $0x128] sm:%s949]
                  %1107 = vst [vmem:[%s957 + $0x128] sm:%s949] %v1106
                  %v1108 = vld [vmem:[%s956 + $0x12c] sm:%s949]
                  %1109 = vst [vmem:[%s957 + $0x12c] sm:%s949] %v1108
                  %v1110 = vld [vmem:[%s956 + $0x130] sm:%s949]
                  %1111 = vst [vmem:[%s957 + $0x130] sm:%s949] %v1110
                  %v1112 = vld [vmem:[%s956 + $0x134] sm:%s949]
                  %1113 = vst [vmem:[%s957 + $0x134] sm:%s949] %v1112
                  %v1114 = vld [vmem:[%s956 + $0x138] sm:%s949]
                  %1115 = vst [vmem:[%s957 + $0x138] sm:%s949] %v1114
                  %v1116 = vld [vmem:[%s956 + $0x13c] sm:%s949]
                  %1117 = vst [vmem:[%s957 + $0x13c] sm:%s949] %v1116
                  %v1118 = vld [vmem:[%s956 + $0x140] sm:%s949]
                  %1119 = vst [vmem:[%s957 + $0x140] sm:%s949] %v1118
                  %v1120 = vld [vmem:[%s956 + $0x144] sm:%s949]
                  %1121 = vst [vmem:[%s957 + $0x144] sm:%s949] %v1120
                  %v1122 = vld [vmem:[%s956 + $0x148] sm:%s949]
                  %1123 = vst [vmem:[%s957 + $0x148] sm:%s949] %v1122
                  %v1124 = vld [vmem:[%s956 + $0x14c] sm:%s949]
                  %1125 = vst [vmem:[%s957 + $0x14c] sm:%s949] %v1124
                  %v1126 = vld [vmem:[%s956 + $0x150] sm:%s949]
                  %1127 = vst [vmem:[%s957 + $0x150] sm:%s949] %v1126
                  %v1128 = vld [vmem:[%s956 + $0x154] sm:%s949]
                  %1129 = vst [vmem:[%s957 + $0x154] sm:%s949] %v1128
                  %v1130 = vld [vmem:[%s956 + $0x158] sm:%s949]
                  %1131 = vst [vmem:[%s957 + $0x158] sm:%s949] %v1130
                  %v1132 = vld [vmem:[%s956 + $0x15c] sm:%s949]
                  %1133 = vst [vmem:[%s957 + $0x15c] sm:%s949] %v1132
                  %v1134 = vld [vmem:[%s956 + $0x160] sm:%s949]
                  %1135 = vst [vmem:[%s957 + $0x160] sm:%s949] %v1134
                  %v1136 = vld [vmem:[%s956 + $0x164] sm:%s949]
                  %1137 = vst [vmem:[%s957 + $0x164] sm:%s949] %v1136
                  %v1138 = vld [vmem:[%s956 + $0x168] sm:%s949]
                  %1139 = vst [vmem:[%s957 + $0x168] sm:%s949] %v1138
                  %v1140 = vld [vmem:[%s956 + $0x16c] sm:%s949]
                  %1141 = vst [vmem:[%s957 + $0x16c] sm:%s949] %v1140
                  %v1142 = vld [vmem:[%s956 + $0x170] sm:%s949]
                  %1143 = vst [vmem:[%s957 + $0x170] sm:%s949] %v1142
                  %v1144 = vld [vmem:[%s956 + $0x174] sm:%s949]
                  %1145 = vst [vmem:[%s957 + $0x174] sm:%s949] %v1144
                  %v1146 = vld [vmem:[%s956 + $0x178] sm:%s949]
                  %1147 = vst [vmem:[%s957 + $0x178] sm:%s949] %v1146
                  %v1148 = vld [vmem:[%s956 + $0x17c] sm:%s949]
                  %1149 = vst [vmem:[%s957 + $0x17c] sm:%s949] %v1148
                  %v1150 = vld [vmem:[%s956 + $0x180] sm:%s949]
                  %1151 = vst [vmem:[%s957 + $0x180] sm:%s949] %v1150
                  %v1152 = vld [vmem:[%s956 + $0x184] sm:%s949]
                  %1153 = vst [vmem:[%s957 + $0x184] sm:%s949] %v1152
                  %v1154 = vld [vmem:[%s956 + $0x310] sm:%s949]
                  %1155 = vst [vmem:[%s957 + $0x188] sm:%s949] %v1154
                  %v1156 = vld [vmem:[%s956 + $0x314] sm:%s949]
                  %1157 = vst [vmem:[%s957 + $0x18c] sm:%s949] %v1156
                  %v1158 = vld [vmem:[%s956 + $0x318] sm:%s949]
                  %1159 = vst [vmem:[%s957 + $0x190] sm:%s949] %v1158
                  %v1160 = vld [vmem:[%s956 + $0x31c] sm:%s949]
                  %1161 = vst [vmem:[%s957 + $0x194] sm:%s949] %v1160
                  %v1162 = vld [vmem:[%s956 + $0x320] sm:%s949]
                  %1163 = vst [vmem:[%s957 + $0x198] sm:%s949] %v1162
                  %v1164 = vld [vmem:[%s956 + $0x324] sm:%s949]
                  %1165 = vst [vmem:[%s957 + $0x19c] sm:%s949] %v1164
                  %v1166 = vld [vmem:[%s956 + $0x328] sm:%s949]
                  %1167 = vst [vmem:[%s957 + $0x1a0] sm:%s949] %v1166
                  %v1168 = vld [vmem:[%s956 + $0x32c] sm:%s949]
                  %1169 = vst [vmem:[%s957 + $0x1a4] sm:%s949] %v1168
                  %v1170 = vld [vmem:[%s956 + $0x330] sm:%s949]
                  %1171 = vst [vmem:[%s957 + $0x1a8] sm:%s949] %v1170
                  %v1172 = vld [vmem:[%s956 + $0x334] sm:%s949]
                  %1173 = vst [vmem:[%s957 + $0x1ac] sm:%s949] %v1172
                  %v1174 = vld [vmem:[%s956 + $0x338] sm:%s949]
                  %1175 = vst [vmem:[%s957 + $0x1b0] sm:%s949] %v1174
                  %v1176 = vld [vmem:[%s956 + $0x33c] sm:%s949]
                  %1177 = vst [vmem:[%s957 + $0x1b4] sm:%s949] %v1176
                  %v1178 = vld [vmem:[%s956 + $0x340] sm:%s949]
                  %1179 = vst [vmem:[%s957 + $0x1b8] sm:%s949] %v1178
                  %v1180 = vld [vmem:[%s956 + $0x344] sm:%s949]
                  %1181 = vst [vmem:[%s957 + $0x1bc] sm:%s949] %v1180
                  %v1182 = vld [vmem:[%s956 + $0x348] sm:%s949]
                  %1183 = vst [vmem:[%s957 + $0x1c0] sm:%s949] %v1182
                  %v1184 = vld [vmem:[%s956 + $0x34c] sm:%s949]
                  %1185 = vst [vmem:[%s957 + $0x1c4] sm:%s949] %v1184
                  %v1186 = vld [vmem:[%s956 + $0x350] sm:%s949]
                  %1187 = vst [vmem:[%s957 + $0x1c8] sm:%s949] %v1186
                  %v1188 = vld [vmem:[%s956 + $0x354] sm:%s949]
                  %1189 = vst [vmem:[%s957 + $0x1cc] sm:%s949] %v1188
                  %v1190 = vld [vmem:[%s956 + $0x358] sm:%s949]
                  %1191 = vst [vmem:[%s957 + $0x1d0] sm:%s949] %v1190
                  %v1192 = vld [vmem:[%s956 + $0x35c] sm:%s949]
                  %1193 = vst [vmem:[%s957 + $0x1d4] sm:%s949] %v1192
                  %v1194 = vld [vmem:[%s956 + $0x360] sm:%s949]
                  %1195 = vst [vmem:[%s957 + $0x1d8] sm:%s949] %v1194
                  %v1196 = vld [vmem:[%s956 + $0x364] sm:%s949]
                  %1197 = vst [vmem:[%s957 + $0x1dc] sm:%s949] %v1196
                  %v1198 = vld [vmem:[%s956 + $0x368] sm:%s949]
                  %1199 = vst [vmem:[%s957 + $0x1e0] sm:%s949] %v1198
                  %v1200 = vld [vmem:[%s956 + $0x36c] sm:%s949]
                  %1201 = vst [vmem:[%s957 + $0x1e4] sm:%s949] %v1200
                  %v1202 = vld [vmem:[%s956 + $0x370] sm:%s949]
                  %1203 = vst [vmem:[%s957 + $0x1e8] sm:%s949] %v1202
                  %v1204 = vld [vmem:[%s956 + $0x374] sm:%s949]
                  %1205 = vst [vmem:[%s957 + $0x1ec] sm:%s949] %v1204
                  %v1206 = vld [vmem:[%s956 + $0x378] sm:%s949]
                  %1207 = vst [vmem:[%s957 + $0x1f0] sm:%s949] %v1206
                  %v1208 = vld [vmem:[%s956 + $0x37c] sm:%s949]
                  %1209 = vst [vmem:[%s957 + $0x1f4] sm:%s949] %v1208
                  %v1210 = vld [vmem:[%s956 + $0x380] sm:%s949]
                  %1211 = vst [vmem:[%s957 + $0x1f8] sm:%s949] %v1210
                  %v1212 = vld [vmem:[%s956 + $0x384] sm:%s949]
                  %1213 = vst [vmem:[%s957 + $0x1fc] sm:%s949] %v1212
                  %v1214 = vld [vmem:[%s956 + $0x388] sm:%s949]
                  %1215 = vst [vmem:[%s957 + $0x200] sm:%s949] %v1214
                  %v1216 = vld [vmem:[%s956 + $0x38c] sm:%s949]
                  %1217 = vst [vmem:[%s957 + $0x204] sm:%s949] %v1216
                  %v1218 = vld [vmem:[%s956 + $0x390] sm:%s949]
                  %1219 = vst [vmem:[%s957 + $0x208] sm:%s949] %v1218
                  %v1220 = vld [vmem:[%s956 + $0x394] sm:%s949]
                  %1221 = vst [vmem:[%s957 + $0x20c] sm:%s949] %v1220
                  %v1222 = vld [vmem:[%s956 + $0x398] sm:%s949]
                  %1223 = vst [vmem:[%s957 + $0x210] sm:%s949] %v1222
                  %v1224 = vld [vmem:[%s956 + $0x39c] sm:%s949]
                  %1225 = vst [vmem:[%s957 + $0x214] sm:%s949] %v1224
                  %v1226 = vld [vmem:[%s956 + $0x3a0] sm:%s949]
                  %1227 = vst [vmem:[%s957 + $0x218] sm:%s949] %v1226
                  %v1228 = vld [vmem:[%s956 + $0x3a4] sm:%s949]
                  %1229 = vst [vmem:[%s957 + $0x21c] sm:%s949] %v1228
                  %v1230 = vld [vmem:[%s956 + $0x3a8] sm:%s949]
                  %1231 = vst [vmem:[%s957 + $0x220] sm:%s949] %v1230
                  %v1232 = vld [vmem:[%s956 + $0x3ac] sm:%s949]
                  %1233 = vst [vmem:[%s957 + $0x224] sm:%s949] %v1232
                  %v1234 = vld [vmem:[%s956 + $0x3b0] sm:%s949]
                  %1235 = vst [vmem:[%s957 + $0x228] sm:%s949] %v1234
                  %v1236 = vld [vmem:[%s956 + $0x3b4] sm:%s949]
                  %1237 = vst [vmem:[%s957 + $0x22c] sm:%s949] %v1236
                  %v1238 = vld [vmem:[%s956 + $0x3b8] sm:%s949]
                  %1239 = vst [vmem:[%s957 + $0x230] sm:%s949] %v1238
                  %v1240 = vld [vmem:[%s956 + $0x3bc] sm:%s949]
                  %1241 = vst [vmem:[%s957 + $0x234] sm:%s949] %v1240
                  %v1242 = vld [vmem:[%s956 + $0x3c0] sm:%s949]
                  %1243 = vst [vmem:[%s957 + $0x238] sm:%s949] %v1242
                  %v1244 = vld [vmem:[%s956 + $0x3c4] sm:%s949]
                  %1245 = vst [vmem:[%s957 + $0x23c] sm:%s949] %v1244
                  %v1246 = vld [vmem:[%s956 + $0x3c8] sm:%s949]
                  %1247 = vst [vmem:[%s957 + $0x240] sm:%s949] %v1246
                  %v1248 = vld [vmem:[%s956 + $0x3cc] sm:%s949]
                  %1249 = vst [vmem:[%s957 + $0x244] sm:%s949] %v1248
                  %v1250 = vld [vmem:[%s956 + $0x3d0] sm:%s949]
                  %1251 = vst [vmem:[%s957 + $0x248] sm:%s949] %v1250
                  %v1252 = vld [vmem:[%s956 + $0x3d4] sm:%s949]
                  %1253 = vst [vmem:[%s957 + $0x24c] sm:%s949] %v1252
                  %v1254 = vld [vmem:[%s956 + $0x3d8] sm:%s949]
                  %1255 = vst [vmem:[%s957 + $0x250] sm:%s949] %v1254
                  %v1256 = vld [vmem:[%s956 + $0x3dc] sm:%s949]
                  %1257 = vst [vmem:[%s957 + $0x254] sm:%s949] %v1256
                  %v1258 = vld [vmem:[%s956 + $0x3e0] sm:%s949]
                  %1259 = vst [vmem:[%s957 + $0x258] sm:%s949] %v1258
                  %v1260 = vld [vmem:[%s956 + $0x3e4] sm:%s949]
                  %1261 = vst [vmem:[%s957 + $0x25c] sm:%s949] %v1260
                  %v1262 = vld [vmem:[%s956 + $0x3e8] sm:%s949]
                  %1263 = vst [vmem:[%s957 + $0x260] sm:%s949] %v1262
                  %v1264 = vld [vmem:[%s956 + $0x3ec] sm:%s949]
                  %1265 = vst [vmem:[%s957 + $0x264] sm:%s949] %v1264
                  %v1266 = vld [vmem:[%s956 + $0x3f0] sm:%s949]
                  %1267 = vst [vmem:[%s957 + $0x268] sm:%s949] %v1266
                  %v1268 = vld [vmem:[%s956 + $0x3f4] sm:%s949]
                  %1269 = vst [vmem:[%s957 + $0x26c] sm:%s949] %v1268
                  %v1270 = vld [vmem:[%s956 + $0x3f8] sm:%s949]
                  %1271 = vst [vmem:[%s957 + $0x270] sm:%s949] %v1270
                  %v1272 = vld [vmem:[%s956 + $0x3fc] sm:%s949]
                  %1273 = vst [vmem:[%s957 + $0x274] sm:%s949] %v1272
                  %v1274 = vld [vmem:[%s956 + $0x400] sm:%s949]
                  %1275 = vst [vmem:[%s957 + $0x278] sm:%s949] %v1274
                  %v1276 = vld [vmem:[%s956 + $0x404] sm:%s949]
                  %1277 = vst [vmem:[%s957 + $0x27c] sm:%s949] %v1276
                  %v1278 = vld [vmem:[%s956 + $0x408] sm:%s949]
                  %1279 = vst [vmem:[%s957 + $0x280] sm:%s949] %v1278
                  %v1280 = vld [vmem:[%s956 + $0x40c] sm:%s949]
                  %1281 = vst [vmem:[%s957 + $0x284] sm:%s949] %v1280
                  %v1282 = vld [vmem:[%s956 + $0x410] sm:%s949]
                  %1283 = vst [vmem:[%s957 + $0x288] sm:%s949] %v1282
                  %v1284 = vld [vmem:[%s956 + $0x414] sm:%s949]
                  %1285 = vst [vmem:[%s957 + $0x28c] sm:%s949] %v1284
                  %v1286 = vld [vmem:[%s956 + $0x418] sm:%s949]
                  %1287 = vst [vmem:[%s957 + $0x290] sm:%s949] %v1286
                  %v1288 = vld [vmem:[%s956 + $0x41c] sm:%s949]
                  %1289 = vst [vmem:[%s957 + $0x294] sm:%s949] %v1288
                  %v1290 = vld [vmem:[%s956 + $0x420] sm:%s949]
                  %1291 = vst [vmem:[%s957 + $0x298] sm:%s949] %v1290
                  %v1292 = vld [vmem:[%s956 + $0x424] sm:%s949]
                  %1293 = vst [vmem:[%s957 + $0x29c] sm:%s949] %v1292
                  %v1294 = vld [vmem:[%s956 + $0x428] sm:%s949]
                  %1295 = vst [vmem:[%s957 + $0x2a0] sm:%s949] %v1294
                  %v1296 = vld [vmem:[%s956 + $0x42c] sm:%s949]
                  %1297 = vst [vmem:[%s957 + $0x2a4] sm:%s949] %v1296
                  %v1298 = vld [vmem:[%s956 + $0x430] sm:%s949]
                  %1299 = vst [vmem:[%s957 + $0x2a8] sm:%s949] %v1298
                  %v1300 = vld [vmem:[%s956 + $0x434] sm:%s949]
                  %1301 = vst [vmem:[%s957 + $0x2ac] sm:%s949] %v1300
                  %v1302 = vld [vmem:[%s956 + $0x438] sm:%s949]
                  %1303 = vst [vmem:[%s957 + $0x2b0] sm:%s949] %v1302
                  %v1304 = vld [vmem:[%s956 + $0x43c] sm:%s949]
                  %1305 = vst [vmem:[%s957 + $0x2b4] sm:%s949] %v1304
                  %v1306 = vld [vmem:[%s956 + $0x440] sm:%s949]
                  %1307 = vst [vmem:[%s957 + $0x2b8] sm:%s949] %v1306
                  %v1308 = vld [vmem:[%s956 + $0x444] sm:%s949]
                  %1309 = vst [vmem:[%s957 + $0x2bc] sm:%s949] %v1308
                  %v1310 = vld [vmem:[%s956 + $0x448] sm:%s949]
                  %1311 = vst [vmem:[%s957 + $0x2c0] sm:%s949] %v1310
                  %v1312 = vld [vmem:[%s956 + $0x44c] sm:%s949]
                  %1313 = vst [vmem:[%s957 + $0x2c4] sm:%s949] %v1312
                  %v1314 = vld [vmem:[%s956 + $0x450] sm:%s949]
                  %1315 = vst [vmem:[%s957 + $0x2c8] sm:%s949] %v1314
                  %v1316 = vld [vmem:[%s956 + $0x454] sm:%s949]
                  %1317 = vst [vmem:[%s957 + $0x2cc] sm:%s949] %v1316
                  %v1318 = vld [vmem:[%s956 + $0x458] sm:%s949]
                  %1319 = vst [vmem:[%s957 + $0x2d0] sm:%s949] %v1318
                  %v1320 = vld [vmem:[%s956 + $0x45c] sm:%s949]
                  %1321 = vst [vmem:[%s957 + $0x2d4] sm:%s949] %v1320
                  %v1322 = vld [vmem:[%s956 + $0x460] sm:%s949]
                  %1323 = vst [vmem:[%s957 + $0x2d8] sm:%s949] %v1322
                  %v1324 = vld [vmem:[%s956 + $0x464] sm:%s949]
                  %1325 = vst [vmem:[%s957 + $0x2dc] sm:%s949] %v1324
                  %v1326 = vld [vmem:[%s956 + $0x468] sm:%s949]
                  %1327 = vst [vmem:[%s957 + $0x2e0] sm:%s949] %v1326
                  %v1328 = vld [vmem:[%s956 + $0x46c] sm:%s949]
                  %1329 = vst [vmem:[%s957 + $0x2e4] sm:%s949] %v1328
                  %v1330 = vld [vmem:[%s956 + $0x470] sm:%s949]
                  %1331 = vst [vmem:[%s957 + $0x2e8] sm:%s949] %v1330
                  %v1332 = vld [vmem:[%s956 + $0x474] sm:%s949]
                  %1333 = vst [vmem:[%s957 + $0x2ec] sm:%s949] %v1332
                  %v1334 = vld [vmem:[%s956 + $0x478] sm:%s949]
                  %1335 = vst [vmem:[%s957 + $0x2f0] sm:%s949] %v1334
                  %v1336 = vld [vmem:[%s956 + $0x47c] sm:%s949]
                  %1337 = vst [vmem:[%s957 + $0x2f4] sm:%s949] %v1336
                  %v1338 = vld [vmem:[%s956 + $0x480] sm:%s949]
                  %1339 = vst [vmem:[%s957 + $0x2f8] sm:%s949] %v1338
                  %v1340 = vld [vmem:[%s956 + $0x484] sm:%s949]
                  %1341 = vst [vmem:[%s957 + $0x2fc] sm:%s949] %v1340
                  %v1342 = vld [vmem:[%s956 + $0x488] sm:%s949]
                  %1343 = vst [vmem:[%s957 + $0x300] sm:%s949] %v1342
                  %v1344 = vld [vmem:[%s956 + $0x48c] sm:%s949]
                  %1345 = vst [vmem:[%s957 + $0x304] sm:%s949] %v1344
                  %v1346 = vld [vmem:[%s956 + $0x490] sm:%s949]
                  %1347 = vst [vmem:[%s957 + $0x308] sm:%s949] %v1346
                  %v1348 = vld [vmem:[%s956 + $0x494] sm:%s949]
                  %1349 = vst [vmem:[%s957 + $0x30c] sm:%s949] %v1348
                  %v1350 = vld [vmem:[%s956 + $0x620] sm:%s949]
                  %1351 = vst [vmem:[%s957 + $0x310] sm:%s949] %v1350
                  %v1352 = vld [vmem:[%s956 + $0x624] sm:%s949]
                  %1353 = vst [vmem:[%s957 + $0x314] sm:%s949] %v1352
                  %v1354 = vld [vmem:[%s956 + $0x628] sm:%s949]
                  %1355 = vst [vmem:[%s957 + $0x318] sm:%s949] %v1354
                  %v1356 = vld [vmem:[%s956 + $0x62c] sm:%s949]
                  %1357 = vst [vmem:[%s957 + $0x31c] sm:%s949] %v1356
                  %v1358 = vld [vmem:[%s956 + $0x630] sm:%s949]
                  %1359 = vst [vmem:[%s957 + $0x320] sm:%s949] %v1358
                  %v1360 = vld [vmem:[%s956 + $0x634] sm:%s949]
                  %1361 = vst [vmem:[%s957 + $0x324] sm:%s949] %v1360
                  %v1362 = vld [vmem:[%s956 + $0x638] sm:%s949]
                  %1363 = vst [vmem:[%s957 + $0x328] sm:%s949] %v1362
                  %v1364 = vld [vmem:[%s956 + $0x63c] sm:%s949]
                  %1365 = vst [vmem:[%s957 + $0x32c] sm:%s949] %v1364
                  %v1366 = vld [vmem:[%s956 + $0x640] sm:%s949]
                  %1367 = vst [vmem:[%s957 + $0x330] sm:%s949] %v1366
                  %v1368 = vld [vmem:[%s956 + $0x644] sm:%s949]
                  %1369 = vst [vmem:[%s957 + $0x334] sm:%s949] %v1368
                  %v1370 = vld [vmem:[%s956 + $0x648] sm:%s949]
                  %1371 = vst [vmem:[%s957 + $0x338] sm:%s949] %v1370
                  %v1372 = vld [vmem:[%s956 + $0x64c] sm:%s949]
                  %1373 = vst [vmem:[%s957 + $0x33c] sm:%s949] %v1372
                  %v1374 = vld [vmem:[%s956 + $0x650] sm:%s949]
                  %1375 = vst [vmem:[%s957 + $0x340] sm:%s949] %v1374
                  %v1376 = vld [vmem:[%s956 + $0x654] sm:%s949]
                  %1377 = vst [vmem:[%s957 + $0x344] sm:%s949] %v1376
                  %v1378 = vld [vmem:[%s956 + $0x658] sm:%s949]
                  %1379 = vst [vmem:[%s957 + $0x348] sm:%s949] %v1378
                  %v1380 = vld [vmem:[%s956 + $0x65c] sm:%s949]
                  %1381 = vst [vmem:[%s957 + $0x34c] sm:%s949] %v1380
                  %v1382 = vld [vmem:[%s956 + $0x660] sm:%s949]
                  %1383 = vst [vmem:[%s957 + $0x350] sm:%s949] %v1382
                  %v1384 = vld [vmem:[%s956 + $0x664] sm:%s949]
                  %1385 = vst [vmem:[%s957 + $0x354] sm:%s949] %v1384
                  %v1386 = vld [vmem:[%s956 + $0x668] sm:%s949]
                  %1387 = vst [vmem:[%s957 + $0x358] sm:%s949] %v1386
                  %v1388 = vld [vmem:[%s956 + $0x66c] sm:%s949]
                  %1389 = vst [vmem:[%s957 + $0x35c] sm:%s949] %v1388
                  %v1390 = vld [vmem:[%s956 + $0x670] sm:%s949]
                  %1391 = vst [vmem:[%s957 + $0x360] sm:%s949] %v1390
                  %v1392 = vld [vmem:[%s956 + $0x674] sm:%s949]
                  %1393 = vst [vmem:[%s957 + $0x364] sm:%s949] %v1392
                  %v1394 = vld [vmem:[%s956 + $0x678] sm:%s949]
                  %1395 = vst [vmem:[%s957 + $0x368] sm:%s949] %v1394
                  %v1396 = vld [vmem:[%s956 + $0x67c] sm:%s949]
                  %1397 = vst [vmem:[%s957 + $0x36c] sm:%s949] %v1396
                  %v1398 = vld [vmem:[%s956 + $0x680] sm:%s949]
                  %1399 = vst [vmem:[%s957 + $0x370] sm:%s949] %v1398
                  %v1400 = vld [vmem:[%s956 + $0x684] sm:%s949]
                  %1401 = vst [vmem:[%s957 + $0x374] sm:%s949] %v1400
                  %v1402 = vld [vmem:[%s956 + $0x688] sm:%s949]
                  %1403 = vst [vmem:[%s957 + $0x378] sm:%s949] %v1402
                  %v1404 = vld [vmem:[%s956 + $0x68c] sm:%s949]
                  %1405 = vst [vmem:[%s957 + $0x37c] sm:%s949] %v1404
                  %v1406 = vld [vmem:[%s956 + $0x690] sm:%s949]
                  %1407 = vst [vmem:[%s957 + $0x380] sm:%s949] %v1406
                  %v1408 = vld [vmem:[%s956 + $0x694] sm:%s949]
                  %1409 = vst [vmem:[%s957 + $0x384] sm:%s949] %v1408
                  %v1410 = vld [vmem:[%s956 + $0x698] sm:%s949]
                  %1411 = vst [vmem:[%s957 + $0x388] sm:%s949] %v1410
                  %v1412 = vld [vmem:[%s956 + $0x69c] sm:%s949]
                  %1413 = vst [vmem:[%s957 + $0x38c] sm:%s949] %v1412
                  %v1414 = vld [vmem:[%s956 + $0x6a0] sm:%s949]
                  %1415 = vst [vmem:[%s957 + $0x390] sm:%s949] %v1414
                  %v1416 = vld [vmem:[%s956 + $0x6a4] sm:%s949]
                  %1417 = vst [vmem:[%s957 + $0x394] sm:%s949] %v1416
                  %v1418 = vld [vmem:[%s956 + $0x6a8] sm:%s949]
                  %1419 = vst [vmem:[%s957 + $0x398] sm:%s949] %v1418
                  %v1420 = vld [vmem:[%s956 + $0x6ac] sm:%s949]
                  %1421 = vst [vmem:[%s957 + $0x39c] sm:%s949] %v1420
                  %v1422 = vld [vmem:[%s956 + $0x6b0] sm:%s949]
                  %1423 = vst [vmem:[%s957 + $0x3a0] sm:%s949] %v1422
                  %v1424 = vld [vmem:[%s956 + $0x6b4] sm:%s949]
                  %1425 = vst [vmem:[%s957 + $0x3a4] sm:%s949] %v1424
                  %v1426 = vld [vmem:[%s956 + $0x6b8] sm:%s949]
                  %1427 = vst [vmem:[%s957 + $0x3a8] sm:%s949] %v1426
                  %v1428 = vld [vmem:[%s956 + $0x6bc] sm:%s949]
                  %1429 = vst [vmem:[%s957 + $0x3ac] sm:%s949] %v1428
                  %v1430 = vld [vmem:[%s956 + $0x6c0] sm:%s949]
                  %1431 = vst [vmem:[%s957 + $0x3b0] sm:%s949] %v1430
                  %v1432 = vld [vmem:[%s956 + $0x6c4] sm:%s949]
                  %1433 = vst [vmem:[%s957 + $0x3b4] sm:%s949] %v1432
                  %v1434 = vld [vmem:[%s956 + $0x6c8] sm:%s949]
                  %1435 = vst [vmem:[%s957 + $0x3b8] sm:%s949] %v1434
                  %v1436 = vld [vmem:[%s956 + $0x6cc] sm:%s949]
                  %1437 = vst [vmem:[%s957 + $0x3bc] sm:%s949] %v1436
                  %v1438 = vld [vmem:[%s956 + $0x6d0] sm:%s949]
                  %1439 = vst [vmem:[%s957 + $0x3c0] sm:%s949] %v1438
                  %v1440 = vld [vmem:[%s956 + $0x6d4] sm:%s949]
                  %1441 = vst [vmem:[%s957 + $0x3c4] sm:%s949] %v1440
                  %v1442 = vld [vmem:[%s956 + $0x6d8] sm:%s949]
                  %1443 = vst [vmem:[%s957 + $0x3c8] sm:%s949] %v1442
                  %v1444 = vld [vmem:[%s956 + $0x6dc] sm:%s949]
                  %1445 = vst [vmem:[%s957 + $0x3cc] sm:%s949] %v1444
                  %v1446 = vld [vmem:[%s956 + $0x6e0] sm:%s949]
                  %1447 = vst [vmem:[%s957 + $0x3d0] sm:%s949] %v1446
                  %v1448 = vld [vmem:[%s956 + $0x6e4] sm:%s949]
                  %1449 = vst [vmem:[%s957 + $0x3d4] sm:%s949] %v1448
                  %v1450 = vld [vmem:[%s956 + $0x6e8] sm:%s949]
                  %1451 = vst [vmem:[%s957 + $0x3d8] sm:%s949] %v1450
                  %v1452 = vld [vmem:[%s956 + $0x6ec] sm:%s949]
                  %1453 = vst [vmem:[%s957 + $0x3dc] sm:%s949] %v1452
                  %v1454 = vld [vmem:[%s956 + $0x6f0] sm:%s949]
                  %1455 = vst [vmem:[%s957 + $0x3e0] sm:%s949] %v1454
                  %v1456 = vld [vmem:[%s956 + $0x6f4] sm:%s949]
                  %1457 = vst [vmem:[%s957 + $0x3e4] sm:%s949] %v1456
                  %v1458 = vld [vmem:[%s956 + $0x6f8] sm:%s949]
                  %1459 = vst [vmem:[%s957 + $0x3e8] sm:%s949] %v1458
                  %v1460 = vld [vmem:[%s956 + $0x6fc] sm:%s949]
                  %1461 = vst [vmem:[%s957 + $0x3ec] sm:%s949] %v1460
                  %v1462 = vld [vmem:[%s956 + $0x700] sm:%s949]
                  %1463 = vst [vmem:[%s957 + $0x3f0] sm:%s949] %v1462
                  %v1464 = vld [vmem:[%s956 + $0x704] sm:%s949]
                  %1465 = vst [vmem:[%s957 + $0x3f4] sm:%s949] %v1464
                  %v1466 = vld [vmem:[%s956 + $0x708] sm:%s949]
                  %1467 = vst [vmem:[%s957 + $0x3f8] sm:%s949] %v1466
                  %v1468 = vld [vmem:[%s956 + $0x70c] sm:%s949]
                  %1469 = vst [vmem:[%s957 + $0x3fc] sm:%s949] %v1468
                  %v1470 = vld [vmem:[%s956 + $0x710] sm:%s949]
                  %1471 = vst [vmem:[%s957 + $0x400] sm:%s949] %v1470
                  %v1472 = vld [vmem:[%s956 + $0x714] sm:%s949]
                  %1473 = vst [vmem:[%s957 + $0x404] sm:%s949] %v1472
                  %v1474 = vld [vmem:[%s956 + $0x718] sm:%s949]
                  %1475 = vst [vmem:[%s957 + $0x408] sm:%s949] %v1474
                  %v1476 = vld [vmem:[%s956 + $0x71c] sm:%s949]
                  %1477 = vst [vmem:[%s957 + $0x40c] sm:%s949] %v1476
                  %v1478 = vld [vmem:[%s956 + $0x720] sm:%s949]
                  %1479 = vst [vmem:[%s957 + $0x410] sm:%s949] %v1478
                  %v1480 = vld [vmem:[%s956 + $0x724] sm:%s949]
                  %1481 = vst [vmem:[%s957 + $0x414] sm:%s949] %v1480
                  %v1482 = vld [vmem:[%s956 + $0x728] sm:%s949]
                  %1483 = vst [vmem:[%s957 + $0x418] sm:%s949] %v1482
                  %v1484 = vld [vmem:[%s956 + $0x72c] sm:%s949]
                  %1485 = vst [vmem:[%s957 + $0x41c] sm:%s949] %v1484
                  %v1486 = vld [vmem:[%s956 + $0x730] sm:%s949]
                  %1487 = vst [vmem:[%s957 + $0x420] sm:%s949] %v1486
                  %v1488 = vld [vmem:[%s956 + $0x734] sm:%s949]
                  %1489 = vst [vmem:[%s957 + $0x424] sm:%s949] %v1488
                  %v1490 = vld [vmem:[%s956 + $0x738] sm:%s949]
                  %1491 = vst [vmem:[%s957 + $0x428] sm:%s949] %v1490
                  %v1492 = vld [vmem:[%s956 + $0x73c] sm:%s949]
                  %1493 = vst [vmem:[%s957 + $0x42c] sm:%s949] %v1492
                  %v1494 = vld [vmem:[%s956 + $0x740] sm:%s949]
                  %1495 = vst [vmem:[%s957 + $0x430] sm:%s949] %v1494
                  %v1496 = vld [vmem:[%s956 + $0x744] sm:%s949]
                  %1497 = vst [vmem:[%s957 + $0x434] sm:%s949] %v1496
                  %v1498 = vld [vmem:[%s956 + $0x748] sm:%s949]
                  %1499 = vst [vmem:[%s957 + $0x438] sm:%s949] %v1498
                  %v1500 = vld [vmem:[%s956 + $0x74c] sm:%s949]
                  %1501 = vst [vmem:[%s957 + $0x43c] sm:%s949] %v1500
                  %v1502 = vld [vmem:[%s956 + $0x750] sm:%s949]
                  %1503 = vst [vmem:[%s957 + $0x440] sm:%s949] %v1502
                  %v1504 = vld [vmem:[%s956 + $0x754] sm:%s949]
                  %1505 = vst [vmem:[%s957 + $0x444] sm:%s949] %v1504
                  %v1506 = vld [vmem:[%s956 + $0x758] sm:%s949]
                  %1507 = vst [vmem:[%s957 + $0x448] sm:%s949] %v1506
                  %v1508 = vld [vmem:[%s956 + $0x75c] sm:%s949]
                  %1509 = vst [vmem:[%s957 + $0x44c] sm:%s949] %v1508
                  %v1510 = vld [vmem:[%s956 + $0x760] sm:%s949]
                  %1511 = vst [vmem:[%s957 + $0x450] sm:%s949] %v1510
                  %v1512 = vld [vmem:[%s956 + $0x764] sm:%s949]
                  %1513 = vst [vmem:[%s957 + $0x454] sm:%s949] %v1512
                  %v1514 = vld [vmem:[%s956 + $0x768] sm:%s949]
                  %1515 = vst [vmem:[%s957 + $0x458] sm:%s949] %v1514
                  %v1516 = vld [vmem:[%s956 + $0x76c] sm:%s949]
                  %1517 = vst [vmem:[%s957 + $0x45c] sm:%s949] %v1516
                  %v1518 = vld [vmem:[%s956 + $0x770] sm:%s949]
                  %1519 = vst [vmem:[%s957 + $0x460] sm:%s949] %v1518
                  %v1520 = vld [vmem:[%s956 + $0x774] sm:%s949]
                  %1521 = vst [vmem:[%s957 + $0x464] sm:%s949] %v1520
                  %v1522 = vld [vmem:[%s956 + $0x778] sm:%s949]
                  %1523 = vst [vmem:[%s957 + $0x468] sm:%s949] %v1522
                  %v1524 = vld [vmem:[%s956 + $0x77c] sm:%s949]
                  %1525 = vst [vmem:[%s957 + $0x46c] sm:%s949] %v1524
                  %v1526 = vld [vmem:[%s956 + $0x780] sm:%s949]
                  %1527 = vst [vmem:[%s957 + $0x470] sm:%s949] %v1526
                  %v1528 = vld [vmem:[%s956 + $0x784] sm:%s949]
                  %1529 = vst [vmem:[%s957 + $0x474] sm:%s949] %v1528
                  %v1530 = vld [vmem:[%s956 + $0x788] sm:%s949]
                  %1531 = vst [vmem:[%s957 + $0x478] sm:%s949] %v1530
                  %v1532 = vld [vmem:[%s956 + $0x78c] sm:%s949]
                  %1533 = vst [vmem:[%s957 + $0x47c] sm:%s949] %v1532
                  %v1534 = vld [vmem:[%s956 + $0x790] sm:%s949]
                  %1535 = vst [vmem:[%s957 + $0x480] sm:%s949] %v1534
                  %v1536 = vld [vmem:[%s956 + $0x794] sm:%s949]
                  %1537 = vst [vmem:[%s957 + $0x484] sm:%s949] %v1536
                  %v1538 = vld [vmem:[%s956 + $0x798] sm:%s949]
                  %1539 = vst [vmem:[%s957 + $0x488] sm:%s949] %v1538
                  %v1540 = vld [vmem:[%s956 + $0x79c] sm:%s949]
                  %1541 = vst [vmem:[%s957 + $0x48c] sm:%s949] %v1540
                  %v1542 = vld [vmem:[%s956 + $0x7a0] sm:%s949]
                  %1543 = vst [vmem:[%s957 + $0x490] sm:%s949] %v1542
                  %v1544 = vld [vmem:[%s956 + $0x7a4] sm:%s949]
                  %1545 = vst [vmem:[%s957 + $0x494] sm:%s949] %v1544
                  %v1546 = vld [vmem:[%s956 + $0x930] sm:%s949]
                  %1547 = vst [vmem:[%s957 + $0x498] sm:%s949] %v1546
                  %v1548 = vld [vmem:[%s956 + $0x934] sm:%s949]
                  %1549 = vst [vmem:[%s957 + $0x49c] sm:%s949] %v1548
                  %v1550 = vld [vmem:[%s956 + $0x938] sm:%s949]
                  %1551 = vst [vmem:[%s957 + $0x4a0] sm:%s949] %v1550
                  %v1552 = vld [vmem:[%s956 + $0x93c] sm:%s949]
                  %1553 = vst [vmem:[%s957 + $0x4a4] sm:%s949] %v1552
                  %v1554 = vld [vmem:[%s956 + $0x940] sm:%s949]
                  %1555 = vst [vmem:[%s957 + $0x4a8] sm:%s949] %v1554
                  %v1556 = vld [vmem:[%s956 + $0x944] sm:%s949]
                  %1557 = vst [vmem:[%s957 + $0x4ac] sm:%s949] %v1556
                  %v1558 = vld [vmem:[%s956 + $0x948] sm:%s949]
                  %1559 = vst [vmem:[%s957 + $0x4b0] sm:%s949] %v1558
                  %v1560 = vld [vmem:[%s956 + $0x94c] sm:%s949]
                  %1561 = vst [vmem:[%s957 + $0x4b4] sm:%s949] %v1560
                  %v1562 = vld [vmem:[%s956 + $0x950] sm:%s949]
                  %1563 = vst [vmem:[%s957 + $0x4b8] sm:%s949] %v1562
                  %v1564 = vld [vmem:[%s956 + $0x954] sm:%s949]
                  %1565 = vst [vmem:[%s957 + $0x4bc] sm:%s949] %v1564
                  %v1566 = vld [vmem:[%s956 + $0x958] sm:%s949]
                  %1567 = vst [vmem:[%s957 + $0x4c0] sm:%s949] %v1566
                  %v1568 = vld [vmem:[%s956 + $0x95c] sm:%s949]
                  %1569 = vst [vmem:[%s957 + $0x4c4] sm:%s949] %v1568
                  %v1570 = vld [vmem:[%s956 + $0x960] sm:%s949]
                  %1571 = vst [vmem:[%s957 + $0x4c8] sm:%s949] %v1570
                  %v1572 = vld [vmem:[%s956 + $0x964] sm:%s949]
                  %1573 = vst [vmem:[%s957 + $0x4cc] sm:%s949] %v1572
                  %v1574 = vld [vmem:[%s956 + $0x968] sm:%s949]
                  %1575 = vst [vmem:[%s957 + $0x4d0] sm:%s949] %v1574
                  %v1576 = vld [vmem:[%s956 + $0x96c] sm:%s949]
                  %1577 = vst [vmem:[%s957 + $0x4d4] sm:%s949] %v1576
                  %v1578 = vld [vmem:[%s956 + $0x970] sm:%s949]
                  %1579 = vst [vmem:[%s957 + $0x4d8] sm:%s949] %v1578
                  %v1580 = vld [vmem:[%s956 + $0x974] sm:%s949]
                  %1581 = vst [vmem:[%s957 + $0x4dc] sm:%s949] %v1580
                  %v1582 = vld [vmem:[%s956 + $0x978] sm:%s949]
                  %1583 = vst [vmem:[%s957 + $0x4e0] sm:%s949] %v1582
                  %v1584 = vld [vmem:[%s956 + $0x97c] sm:%s949]
                  %1585 = vst [vmem:[%s957 + $0x4e4] sm:%s949] %v1584
                  %v1586 = vld [vmem:[%s956 + $0x980] sm:%s949]
                  %1587 = vst [vmem:[%s957 + $0x4e8] sm:%s949] %v1586
                  %v1588 = vld [vmem:[%s956 + $0x984] sm:%s949]
                  %1589 = vst [vmem:[%s957 + $0x4ec] sm:%s949] %v1588
                  %v1590 = vld [vmem:[%s956 + $0x988] sm:%s949]
                  %1591 = vst [vmem:[%s957 + $0x4f0] sm:%s949] %v1590
                  %v1592 = vld [vmem:[%s956 + $0x98c] sm:%s949]
                  %1593 = vst [vmem:[%s957 + $0x4f4] sm:%s949] %v1592
                  %v1594 = vld [vmem:[%s956 + $0x990] sm:%s949]
                  %1595 = vst [vmem:[%s957 + $0x4f8] sm:%s949] %v1594
                  %v1596 = vld [vmem:[%s956 + $0x994] sm:%s949]
                  %1597 = vst [vmem:[%s957 + $0x4fc] sm:%s949] %v1596
                  %v1598 = vld [vmem:[%s956 + $0x998] sm:%s949]
                  %1599 = vst [vmem:[%s957 + $0x500] sm:%s949] %v1598
                  %v1600 = vld [vmem:[%s956 + $0x99c] sm:%s949]
                  %1601 = vst [vmem:[%s957 + $0x504] sm:%s949] %v1600
                  %v1602 = vld [vmem:[%s956 + $0x9a0] sm:%s949]
                  %1603 = vst [vmem:[%s957 + $0x508] sm:%s949] %v1602
                  %v1604 = vld [vmem:[%s956 + $0x9a4] sm:%s949]
                  %1605 = vst [vmem:[%s957 + $0x50c] sm:%s949] %v1604
                  %v1606 = vld [vmem:[%s956 + $0x9a8] sm:%s949]
                  %1607 = vst [vmem:[%s957 + $0x510] sm:%s949] %v1606
                  %v1608 = vld [vmem:[%s956 + $0x9ac] sm:%s949]
                  %1609 = vst [vmem:[%s957 + $0x514] sm:%s949] %v1608
                  %v1610 = vld [vmem:[%s956 + $0x9b0] sm:%s949]
                  %1611 = vst [vmem:[%s957 + $0x518] sm:%s949] %v1610
                  %v1612 = vld [vmem:[%s956 + $0x9b4] sm:%s949]
                  %1613 = vst [vmem:[%s957 + $0x51c] sm:%s949] %v1612
                  %v1614 = vld [vmem:[%s956 + $0x9b8] sm:%s949]
                  %1615 = vst [vmem:[%s957 + $0x520] sm:%s949] %v1614
                  %v1616 = vld [vmem:[%s956 + $0x9bc] sm:%s949]
                  %1617 = vst [vmem:[%s957 + $0x524] sm:%s949] %v1616
                  %v1618 = vld [vmem:[%s956 + $0x9c0] sm:%s949]
                  %1619 = vst [vmem:[%s957 + $0x528] sm:%s949] %v1618
                  %v1620 = vld [vmem:[%s956 + $0x9c4] sm:%s949]
                  %1621 = vst [vmem:[%s957 + $0x52c] sm:%s949] %v1620
                  %v1622 = vld [vmem:[%s956 + $0x9c8] sm:%s949]
                  %1623 = vst [vmem:[%s957 + $0x530] sm:%s949] %v1622
                  %v1624 = vld [vmem:[%s956 + $0x9cc] sm:%s949]
                  %1625 = vst [vmem:[%s957 + $0x534] sm:%s949] %v1624
                  %v1626 = vld [vmem:[%s956 + $0x9d0] sm:%s949]
                  %1627 = vst [vmem:[%s957 + $0x538] sm:%s949] %v1626
                  %v1628 = vld [vmem:[%s956 + $0x9d4] sm:%s949]
                  %1629 = vst [vmem:[%s957 + $0x53c] sm:%s949] %v1628
                  %v1630 = vld [vmem:[%s956 + $0x9d8] sm:%s949]
                  %1631 = vst [vmem:[%s957 + $0x540] sm:%s949] %v1630
                  %v1632 = vld [vmem:[%s956 + $0x9dc] sm:%s949]
                  %1633 = vst [vmem:[%s957 + $0x544] sm:%s949] %v1632
                  %v1634 = vld [vmem:[%s956 + $0x9e0] sm:%s949]
                  %1635 = vst [vmem:[%s957 + $0x548] sm:%s949] %v1634
                  %v1636 = vld [vmem:[%s956 + $0x9e4] sm:%s949]
                  %1637 = vst [vmem:[%s957 + $0x54c] sm:%s949] %v1636
                  %v1638 = vld [vmem:[%s956 + $0x9e8] sm:%s949]
                  %1639 = vst [vmem:[%s957 + $0x550] sm:%s949] %v1638
                  %v1640 = vld [vmem:[%s956 + $0x9ec] sm:%s949]
                  %1641 = vst [vmem:[%s957 + $0x554] sm:%s949] %v1640
                  %v1642 = vld [vmem:[%s956 + $0x9f0] sm:%s949]
                  %1643 = vst [vmem:[%s957 + $0x558] sm:%s949] %v1642
                  %v1644 = vld [vmem:[%s956 + $0x9f4] sm:%s949]
                  %1645 = vst [vmem:[%s957 + $0x55c] sm:%s949] %v1644
                  %v1646 = vld [vmem:[%s956 + $0x9f8] sm:%s949]
                  %1647 = vst [vmem:[%s957 + $0x560] sm:%s949] %v1646
                  %v1648 = vld [vmem:[%s956 + $0x9fc] sm:%s949]
                  %1649 = vst [vmem:[%s957 + $0x564] sm:%s949] %v1648
                  %v1650 = vld [vmem:[%s956 + $0xa00] sm:%s949]
                  %1651 = vst [vmem:[%s957 + $0x568] sm:%s949] %v1650
                  %v1652 = vld [vmem:[%s956 + $0xa04] sm:%s949]
                  %1653 = vst [vmem:[%s957 + $0x56c] sm:%s949] %v1652
                  %v1654 = vld [vmem:[%s956 + $0xa08] sm:%s949]
                  %1655 = vst [vmem:[%s957 + $0x570] sm:%s949] %v1654
                  %v1656 = vld [vmem:[%s956 + $0xa0c] sm:%s949]
                  %1657 = vst [vmem:[%s957 + $0x574] sm:%s949] %v1656
                  %v1658 = vld [vmem:[%s956 + $0xa10] sm:%s949]
                  %1659 = vst [vmem:[%s957 + $0x578] sm:%s949] %v1658
                  %v1660 = vld [vmem:[%s956 + $0xa14] sm:%s949]
                  %1661 = vst [vmem:[%s957 + $0x57c] sm:%s949] %v1660
                  %v1662 = vld [vmem:[%s956 + $0xa18] sm:%s949]
                  %1663 = vst [vmem:[%s957 + $0x580] sm:%s949] %v1662
                  %v1664 = vld [vmem:[%s956 + $0xa1c] sm:%s949]
                  %1665 = vst [vmem:[%s957 + $0x584] sm:%s949] %v1664
                  %v1666 = vld [vmem:[%s956 + $0xa20] sm:%s949]
                  %1667 = vst [vmem:[%s957 + $0x588] sm:%s949] %v1666
                  %v1668 = vld [vmem:[%s956 + $0xa24] sm:%s949]
                  %1669 = vst [vmem:[%s957 + $0x58c] sm:%s949] %v1668
                  %v1670 = vld [vmem:[%s956 + $0xa28] sm:%s949]
                  %1671 = vst [vmem:[%s957 + $0x590] sm:%s949] %v1670
                  %v1672 = vld [vmem:[%s956 + $0xa2c] sm:%s949]
                  %1673 = vst [vmem:[%s957 + $0x594] sm:%s949] %v1672
                  %v1674 = vld [vmem:[%s956 + $0xa30] sm:%s949]
                  %1675 = vst [vmem:[%s957 + $0x598] sm:%s949] %v1674
                  %v1676 = vld [vmem:[%s956 + $0xa34] sm:%s949]
                  %1677 = vst [vmem:[%s957 + $0x59c] sm:%s949] %v1676
                  %v1678 = vld [vmem:[%s956 + $0xa38] sm:%s949]
                  %1679 = vst [vmem:[%s957 + $0x5a0] sm:%s949] %v1678
                  %v1680 = vld [vmem:[%s956 + $0xa3c] sm:%s949]
                  %1681 = vst [vmem:[%s957 + $0x5a4] sm:%s949] %v1680
                  %v1682 = vld [vmem:[%s956 + $0xa40] sm:%s949]
                  %1683 = vst [vmem:[%s957 + $0x5a8] sm:%s949] %v1682
                  %v1684 = vld [vmem:[%s956 + $0xa44] sm:%s949]
                  %1685 = vst [vmem:[%s957 + $0x5ac] sm:%s949] %v1684
                  %v1686 = vld [vmem:[%s956 + $0xa48] sm:%s949]
                  %1687 = vst [vmem:[%s957 + $0x5b0] sm:%s949] %v1686
                  %v1688 = vld [vmem:[%s956 + $0xa4c] sm:%s949]
                  %1689 = vst [vmem:[%s957 + $0x5b4] sm:%s949] %v1688
                  %v1690 = vld [vmem:[%s956 + $0xa50] sm:%s949]
                  %1691 = vst [vmem:[%s957 + $0x5b8] sm:%s949] %v1690
                  %v1692 = vld [vmem:[%s956 + $0xa54] sm:%s949]
                  %1693 = vst [vmem:[%s957 + $0x5bc] sm:%s949] %v1692
                  %v1694 = vld [vmem:[%s956 + $0xa58] sm:%s949]
                  %1695 = vst [vmem:[%s957 + $0x5c0] sm:%s949] %v1694
                  %v1696 = vld [vmem:[%s956 + $0xa5c] sm:%s949]
                  %1697 = vst [vmem:[%s957 + $0x5c4] sm:%s949] %v1696
                  %v1698 = vld [vmem:[%s956 + $0xa60] sm:%s949]
                  %1699 = vst [vmem:[%s957 + $0x5c8] sm:%s949] %v1698
                  %v1700 = vld [vmem:[%s956 + $0xa64] sm:%s949]
                  %1701 = vst [vmem:[%s957 + $0x5cc] sm:%s949] %v1700
                  %v1702 = vld [vmem:[%s956 + $0xa68] sm:%s949]
                  %1703 = vst [vmem:[%s957 + $0x5d0] sm:%s949] %v1702
                  %v1704 = vld [vmem:[%s956 + $0xa6c] sm:%s949]
                  %1705 = vst [vmem:[%s957 + $0x5d4] sm:%s949] %v1704
                  %v1706 = vld [vmem:[%s956 + $0xa70] sm:%s949]
                  %1707 = vst [vmem:[%s957 + $0x5d8] sm:%s949] %v1706
                  %v1708 = vld [vmem:[%s956 + $0xa74] sm:%s949]
                  %1709 = vst [vmem:[%s957 + $0x5dc] sm:%s949] %v1708
                  %v1710 = vld [vmem:[%s956 + $0xa78] sm:%s949]
                  %1711 = vst [vmem:[%s957 + $0x5e0] sm:%s949] %v1710
                  %v1712 = vld [vmem:[%s956 + $0xa7c] sm:%s949]
                  %1713 = vst [vmem:[%s957 + $0x5e4] sm:%s949] %v1712
                  %v1714 = vld [vmem:[%s956 + $0xa80] sm:%s949]
                  %1715 = vst [vmem:[%s957 + $0x5e8] sm:%s949] %v1714
                  %v1716 = vld [vmem:[%s956 + $0xa84] sm:%s949]
                  %1717 = vst [vmem:[%s957 + $0x5ec] sm:%s949] %v1716
                  %v1718 = vld [vmem:[%s956 + $0xa88] sm:%s949]
                  %1719 = vst [vmem:[%s957 + $0x5f0] sm:%s949] %v1718
                  %v1720 = vld [vmem:[%s956 + $0xa8c] sm:%s949]
                  %1721 = vst [vmem:[%s957 + $0x5f4] sm:%s949] %v1720
                  %v1722 = vld [vmem:[%s956 + $0xa90] sm:%s949]
                  %1723 = vst [vmem:[%s957 + $0x5f8] sm:%s949] %v1722
                  %v1724 = vld [vmem:[%s956 + $0xa94] sm:%s949]
                  %1725 = vst [vmem:[%s957 + $0x5fc] sm:%s949] %v1724
                  %v1726 = vld [vmem:[%s956 + $0xa98] sm:%s949]
                  %1727 = vst [vmem:[%s957 + $0x600] sm:%s949] %v1726
                  %v1728 = vld [vmem:[%s956 + $0xa9c] sm:%s949]
                  %1729 = vst [vmem:[%s957 + $0x604] sm:%s949] %v1728
                  %v1730 = vld [vmem:[%s956 + $0xaa0] sm:%s949]
                  %1731 = vst [vmem:[%s957 + $0x608] sm:%s949] %v1730
                  %v1732 = vld [vmem:[%s956 + $0xaa4] sm:%s949]
                  %1733 = vst [vmem:[%s957 + $0x60c] sm:%s949] %v1732
                  %v1734 = vld [vmem:[%s956 + $0xaa8] sm:%s949]
                  %1735 = vst [vmem:[%s957 + $0x610] sm:%s949] %v1734
                  %v1736 = vld [vmem:[%s956 + $0xaac] sm:%s949]
                  %1737 = vst [vmem:[%s957 + $0x614] sm:%s949] %v1736
                  %v1738 = vld [vmem:[%s956 + $0xab0] sm:%s949]
                  %1739 = vst [vmem:[%s957 + $0x618] sm:%s949] %v1738
                  %v1740 = vld [vmem:[%s956 + $0xab4] sm:%s949]
                  %1741 = vst [vmem:[%s957 + $0x61c] sm:%s949] %v1740
                $region63: #{cnn_forward.3} parent=50 // loop_footer
                  %s955 = sadd.s32 1, %s951
                $region64: #{cnn_forward.3} parent=50 // loop_footer_branch
                  %950 = sbr.rel target = $region60
                $region65: #{cnn_forward.3} parent=50 // loop_exit
                  _
              $region51: #{cnn_forward.3} parent=35 // pred_fallthru
                _
            $region36: #{cnn_forward.3} parent=31 // pred_fallthru
              _
            // Predicated region
            $region37: #{cnn_forward.3} parent=31 // pred_check
              _
            $region38: #{cnn_forward.3} parent=31 // pred_check_branch
              %143 = sbr.rel (0) target = $region40
            $region39: #{cnn_forward.3} parent=31 // pred_region
              %s145 = ssub.s32 16, 1
              loop: start=0, step=1, limit=1
              $region41: #{cnn_forward.3} parent=39 // loop_pre_header
                _
              $region42: #{cnn_forward.3} parent=39 // loop_header
                %s147 = sphi 0, %s151
                %p148 = scmp.ge.s32.totalorder %s147, 1
                %s152 = sphi %s137, %s137
                %s153 = sphi %s134, %s134
              $region43: #{cnn_forward.3} parent=39 // loop_header_branch
                %150 = sbr.rel (%p148) target = $region47
              $region44: #{cnn_forward.3} parent=39 // loop_body
                %v154 = vld [vmem:[%s152] sm:%s145]
                %155 = vst [vmem:[%s153] sm:%s145] %v154
                %v156 = vld [vmem:[%s152 + $0x4] sm:%s145]
                %157 = vst [vmem:[%s153 + $0x4] sm:%s145] %v156
                %v158 = vld [vmem:[%s152 + $0x8] sm:%s145]
                %159 = vst [vmem:[%s153 + $0x8] sm:%s145] %v158
                %v160 = vld [vmem:[%s152 + $0xc] sm:%s145]
                %161 = vst [vmem:[%s153 + $0xc] sm:%s145] %v160
                %v162 = vld [vmem:[%s152 + $0x10] sm:%s145]
                %163 = vst [vmem:[%s153 + $0x10] sm:%s145] %v162
                %v164 = vld [vmem:[%s152 + $0x14] sm:%s145]
                %165 = vst [vmem:[%s153 + $0x14] sm:%s145] %v164
                %v166 = vld [vmem:[%s152 + $0x18] sm:%s145]
                %167 = vst [vmem:[%s153 + $0x18] sm:%s145] %v166
                %v168 = vld [vmem:[%s152 + $0x1c] sm:%s145]
                %169 = vst [vmem:[%s153 + $0x1c] sm:%s145] %v168
                %v170 = vld [vmem:[%s152 + $0x20] sm:%s145]
                %171 = vst [vmem:[%s153 + $0x20] sm:%s145] %v170
                %v172 = vld [vmem:[%s152 + $0x24] sm:%s145]
                %173 = vst [vmem:[%s153 + $0x24] sm:%s145] %v172
                %v174 = vld [vmem:[%s152 + $0x28] sm:%s145]
                %175 = vst [vmem:[%s153 + $0x28] sm:%s145] %v174
                %v176 = vld [vmem:[%s152 + $0x2c] sm:%s145]
                %177 = vst [vmem:[%s153 + $0x2c] sm:%s145] %v176
                %v178 = vld [vmem:[%s152 + $0x30] sm:%s145]
                %179 = vst [vmem:[%s153 + $0x30] sm:%s145] %v178
                %v180 = vld [vmem:[%s152 + $0x34] sm:%s145]
                %181 = vst [vmem:[%s153 + $0x34] sm:%s145] %v180
                %v182 = vld [vmem:[%s152 + $0x38] sm:%s145]
                %183 = vst [vmem:[%s153 + $0x38] sm:%s145] %v182
                %v184 = vld [vmem:[%s152 + $0x3c] sm:%s145]
                %185 = vst [vmem:[%s153 + $0x3c] sm:%s145] %v184
                %v186 = vld [vmem:[%s152 + $0x40] sm:%s145]
                %187 = vst [vmem:[%s153 + $0x40] sm:%s145] %v186
                %v188 = vld [vmem:[%s152 + $0x44] sm:%s145]
                %189 = vst [vmem:[%s153 + $0x44] sm:%s145] %v188
                %v190 = vld [vmem:[%s152 + $0x48] sm:%s145]
                %191 = vst [vmem:[%s153 + $0x48] sm:%s145] %v190
                %v192 = vld [vmem:[%s152 + $0x4c] sm:%s145]
                %193 = vst [vmem:[%s153 + $0x4c] sm:%s145] %v192
                %v194 = vld [vmem:[%s152 + $0x50] sm:%s145]
                %195 = vst [vmem:[%s153 + $0x50] sm:%s145] %v194
                %v196 = vld [vmem:[%s152 + $0x54] sm:%s145]
                %197 = vst [vmem:[%s153 + $0x54] sm:%s145] %v196
                %v198 = vld [vmem:[%s152 + $0x58] sm:%s145]
                %199 = vst [vmem:[%s153 + $0x58] sm:%s145] %v198
                %v200 = vld [vmem:[%s152 + $0x5c] sm:%s145]
                %201 = vst [vmem:[%s153 + $0x5c] sm:%s145] %v200
                %v202 = vld [vmem:[%s152 + $0x60] sm:%s145]
                %203 = vst [vmem:[%s153 + $0x60] sm:%s145] %v202
                %v204 = vld [vmem:[%s152 + $0x64] sm:%s145]
                %205 = vst [vmem:[%s153 + $0x64] sm:%s145] %v204
                %v206 = vld [vmem:[%s152 + $0x68] sm:%s145]
                %207 = vst [vmem:[%s153 + $0x68] sm:%s145] %v206
                %v208 = vld [vmem:[%s152 + $0x6c] sm:%s145]
                %209 = vst [vmem:[%s153 + $0x6c] sm:%s145] %v208
                %v210 = vld [vmem:[%s152 + $0x70] sm:%s145]
                %211 = vst [vmem:[%s153 + $0x70] sm:%s145] %v210
                %v212 = vld [vmem:[%s152 + $0x74] sm:%s145]
                %213 = vst [vmem:[%s153 + $0x74] sm:%s145] %v212
                %v214 = vld [vmem:[%s152 + $0x78] sm:%s145]
                %215 = vst [vmem:[%s153 + $0x78] sm:%s145] %v214
                %v216 = vld [vmem:[%s152 + $0x7c] sm:%s145]
                %217 = vst [vmem:[%s153 + $0x7c] sm:%s145] %v216
                %v218 = vld [vmem:[%s152 + $0x80] sm:%s145]
                %219 = vst [vmem:[%s153 + $0x80] sm:%s145] %v218
                %v220 = vld [vmem:[%s152 + $0x84] sm:%s145]
                %221 = vst [vmem:[%s153 + $0x84] sm:%s145] %v220
                %v222 = vld [vmem:[%s152 + $0x88] sm:%s145]
                %223 = vst [vmem:[%s153 + $0x88] sm:%s145] %v222
                %v224 = vld [vmem:[%s152 + $0x8c] sm:%s145]
                %225 = vst [vmem:[%s153 + $0x8c] sm:%s145] %v224
                %v226 = vld [vmem:[%s152 + $0x90] sm:%s145]
                %227 = vst [vmem:[%s153 + $0x90] sm:%s145] %v226
                %v228 = vld [vmem:[%s152 + $0x94] sm:%s145]
                %229 = vst [vmem:[%s153 + $0x94] sm:%s145] %v228
                %v230 = vld [vmem:[%s152 + $0x98] sm:%s145]
                %231 = vst [vmem:[%s153 + $0x98] sm:%s145] %v230
                %v232 = vld [vmem:[%s152 + $0x9c] sm:%s145]
                %233 = vst [vmem:[%s153 + $0x9c] sm:%s145] %v232
                %v234 = vld [vmem:[%s152 + $0xa0] sm:%s145]
                %235 = vst [vmem:[%s153 + $0xa0] sm:%s145] %v234
                %v236 = vld [vmem:[%s152 + $0xa4] sm:%s145]
                %237 = vst [vmem:[%s153 + $0xa4] sm:%s145] %v236
                %v238 = vld [vmem:[%s152 + $0xa8] sm:%s145]
                %239 = vst [vmem:[%s153 + $0xa8] sm:%s145] %v238
                %v240 = vld [vmem:[%s152 + $0xac] sm:%s145]
                %241 = vst [vmem:[%s153 + $0xac] sm:%s145] %v240
                %v242 = vld [vmem:[%s152 + $0xb0] sm:%s145]
                %243 = vst [vmem:[%s153 + $0xb0] sm:%s145] %v242
                %v244 = vld [vmem:[%s152 + $0xb4] sm:%s145]
                %245 = vst [vmem:[%s153 + $0xb4] sm:%s145] %v244
                %v246 = vld [vmem:[%s152 + $0xb8] sm:%s145]
                %247 = vst [vmem:[%s153 + $0xb8] sm:%s145] %v246
                %v248 = vld [vmem:[%s152 + $0xbc] sm:%s145]
                %249 = vst [vmem:[%s153 + $0xbc] sm:%s145] %v248
                %v250 = vld [vmem:[%s152 + $0xc0] sm:%s145]
                %251 = vst [vmem:[%s153 + $0xc0] sm:%s145] %v250
                %v252 = vld [vmem:[%s152 + $0xc4] sm:%s145]
                %253 = vst [vmem:[%s153 + $0xc4] sm:%s145] %v252
                %v254 = vld [vmem:[%s152 + $0xc8] sm:%s145]
                %255 = vst [vmem:[%s153 + $0xc8] sm:%s145] %v254
                %v256 = vld [vmem:[%s152 + $0xcc] sm:%s145]
                %257 = vst [vmem:[%s153 + $0xcc] sm:%s145] %v256
                %v258 = vld [vmem:[%s152 + $0xd0] sm:%s145]
                %259 = vst [vmem:[%s153 + $0xd0] sm:%s145] %v258
                %v260 = vld [vmem:[%s152 + $0xd4] sm:%s145]
                %261 = vst [vmem:[%s153 + $0xd4] sm:%s145] %v260
                %v262 = vld [vmem:[%s152 + $0xd8] sm:%s145]
                %263 = vst [vmem:[%s153 + $0xd8] sm:%s145] %v262
                %v264 = vld [vmem:[%s152 + $0xdc] sm:%s145]
                %265 = vst [vmem:[%s153 + $0xdc] sm:%s145] %v264
                %v266 = vld [vmem:[%s152 + $0xe0] sm:%s145]
                %267 = vst [vmem:[%s153 + $0xe0] sm:%s145] %v266
                %v268 = vld [vmem:[%s152 + $0xe4] sm:%s145]
                %269 = vst [vmem:[%s153 + $0xe4] sm:%s145] %v268
                %v270 = vld [vmem:[%s152 + $0xe8] sm:%s145]
                %271 = vst [vmem:[%s153 + $0xe8] sm:%s145] %v270
                %v272 = vld [vmem:[%s152 + $0xec] sm:%s145]
                %273 = vst [vmem:[%s153 + $0xec] sm:%s145] %v272
                %v274 = vld [vmem:[%s152 + $0xf0] sm:%s145]
                %275 = vst [vmem:[%s153 + $0xf0] sm:%s145] %v274
                %v276 = vld [vmem:[%s152 + $0xf4] sm:%s145]
                %277 = vst [vmem:[%s153 + $0xf4] sm:%s145] %v276
                %v278 = vld [vmem:[%s152 + $0xf8] sm:%s145]
                %279 = vst [vmem:[%s153 + $0xf8] sm:%s145] %v278
                %v280 = vld [vmem:[%s152 + $0xfc] sm:%s145]
                %281 = vst [vmem:[%s153 + $0xfc] sm:%s145] %v280
                %v282 = vld [vmem:[%s152 + $0x100] sm:%s145]
                %283 = vst [vmem:[%s153 + $0x100] sm:%s145] %v282
                %v284 = vld [vmem:[%s152 + $0x104] sm:%s145]
                %285 = vst [vmem:[%s153 + $0x104] sm:%s145] %v284
                %v286 = vld [vmem:[%s152 + $0x108] sm:%s145]
                %287 = vst [vmem:[%s153 + $0x108] sm:%s145] %v286
                %v288 = vld [vmem:[%s152 + $0x10c] sm:%s145]
                %289 = vst [vmem:[%s153 + $0x10c] sm:%s145] %v288
                %v290 = vld [vmem:[%s152 + $0x110] sm:%s145]
                %291 = vst [vmem:[%s153 + $0x110] sm:%s145] %v290
                %v292 = vld [vmem:[%s152 + $0x114] sm:%s145]
                %293 = vst [vmem:[%s153 + $0x114] sm:%s145] %v292
                %v294 = vld [vmem:[%s152 + $0x118] sm:%s145]
                %295 = vst [vmem:[%s153 + $0x118] sm:%s145] %v294
                %v296 = vld [vmem:[%s152 + $0x11c] sm:%s145]
                %297 = vst [vmem:[%s153 + $0x11c] sm:%s145] %v296
                %v298 = vld [vmem:[%s152 + $0x120] sm:%s145]
                %299 = vst [vmem:[%s153 + $0x120] sm:%s145] %v298
                %v300 = vld [vmem:[%s152 + $0x124] sm:%s145]
                %301 = vst [vmem:[%s153 + $0x124] sm:%s145] %v300
                %v302 = vld [vmem:[%s152 + $0x128] sm:%s145]
                %303 = vst [vmem:[%s153 + $0x128] sm:%s145] %v302
                %v304 = vld [vmem:[%s152 + $0x12c] sm:%s145]
                %305 = vst [vmem:[%s153 + $0x12c] sm:%s145] %v304
                %v306 = vld [vmem:[%s152 + $0x130] sm:%s145]
                %307 = vst [vmem:[%s153 + $0x130] sm:%s145] %v306
                %v308 = vld [vmem:[%s152 + $0x134] sm:%s145]
                %309 = vst [vmem:[%s153 + $0x134] sm:%s145] %v308
                %v310 = vld [vmem:[%s152 + $0x138] sm:%s145]
                %311 = vst [vmem:[%s153 + $0x138] sm:%s145] %v310
                %v312 = vld [vmem:[%s152 + $0x13c] sm:%s145]
                %313 = vst [vmem:[%s153 + $0x13c] sm:%s145] %v312
                %v314 = vld [vmem:[%s152 + $0x140] sm:%s145]
                %315 = vst [vmem:[%s153 + $0x140] sm:%s145] %v314
                %v316 = vld [vmem:[%s152 + $0x144] sm:%s145]
                %317 = vst [vmem:[%s153 + $0x144] sm:%s145] %v316
                %v318 = vld [vmem:[%s152 + $0x148] sm:%s145]
                %319 = vst [vmem:[%s153 + $0x148] sm:%s145] %v318
                %v320 = vld [vmem:[%s152 + $0x14c] sm:%s145]
                %321 = vst [vmem:[%s153 + $0x14c] sm:%s145] %v320
                %v322 = vld [vmem:[%s152 + $0x150] sm:%s145]
                %323 = vst [vmem:[%s153 + $0x150] sm:%s145] %v322
                %v324 = vld [vmem:[%s152 + $0x154] sm:%s145]
                %325 = vst [vmem:[%s153 + $0x154] sm:%s145] %v324
                %v326 = vld [vmem:[%s152 + $0x158] sm:%s145]
                %327 = vst [vmem:[%s153 + $0x158] sm:%s145] %v326
                %v328 = vld [vmem:[%s152 + $0x15c] sm:%s145]
                %329 = vst [vmem:[%s153 + $0x15c] sm:%s145] %v328
                %v330 = vld [vmem:[%s152 + $0x160] sm:%s145]
                %331 = vst [vmem:[%s153 + $0x160] sm:%s145] %v330
                %v332 = vld [vmem:[%s152 + $0x164] sm:%s145]
                %333 = vst [vmem:[%s153 + $0x164] sm:%s145] %v332
                %v334 = vld [vmem:[%s152 + $0x168] sm:%s145]
                %335 = vst [vmem:[%s153 + $0x168] sm:%s145] %v334
                %v336 = vld [vmem:[%s152 + $0x16c] sm:%s145]
                %337 = vst [vmem:[%s153 + $0x16c] sm:%s145] %v336
                %v338 = vld [vmem:[%s152 + $0x170] sm:%s145]
                %339 = vst [vmem:[%s153 + $0x170] sm:%s145] %v338
                %v340 = vld [vmem:[%s152 + $0x174] sm:%s145]
                %341 = vst [vmem:[%s153 + $0x174] sm:%s145] %v340
                %v342 = vld [vmem:[%s152 + $0x178] sm:%s145]
                %343 = vst [vmem:[%s153 + $0x178] sm:%s145] %v342
                %v344 = vld [vmem:[%s152 + $0x17c] sm:%s145]
                %345 = vst [vmem:[%s153 + $0x17c] sm:%s145] %v344
                %v346 = vld [vmem:[%s152 + $0x180] sm:%s145]
                %347 = vst [vmem:[%s153 + $0x180] sm:%s145] %v346
                %v348 = vld [vmem:[%s152 + $0x184] sm:%s145]
                %349 = vst [vmem:[%s153 + $0x184] sm:%s145] %v348
                %v350 = vld [vmem:[%s152 + $0x310] sm:%s145]
                %351 = vst [vmem:[%s153 + $0x188] sm:%s145] %v350
                %v352 = vld [vmem:[%s152 + $0x314] sm:%s145]
                %353 = vst [vmem:[%s153 + $0x18c] sm:%s145] %v352
                %v354 = vld [vmem:[%s152 + $0x318] sm:%s145]
                %355 = vst [vmem:[%s153 + $0x190] sm:%s145] %v354
                %v356 = vld [vmem:[%s152 + $0x31c] sm:%s145]
                %357 = vst [vmem:[%s153 + $0x194] sm:%s145] %v356
                %v358 = vld [vmem:[%s152 + $0x320] sm:%s145]
                %359 = vst [vmem:[%s153 + $0x198] sm:%s145] %v358
                %v360 = vld [vmem:[%s152 + $0x324] sm:%s145]
                %361 = vst [vmem:[%s153 + $0x19c] sm:%s145] %v360
                %v362 = vld [vmem:[%s152 + $0x328] sm:%s145]
                %363 = vst [vmem:[%s153 + $0x1a0] sm:%s145] %v362
                %v364 = vld [vmem:[%s152 + $0x32c] sm:%s145]
                %365 = vst [vmem:[%s153 + $0x1a4] sm:%s145] %v364
                %v366 = vld [vmem:[%s152 + $0x330] sm:%s145]
                %367 = vst [vmem:[%s153 + $0x1a8] sm:%s145] %v366
                %v368 = vld [vmem:[%s152 + $0x334] sm:%s145]
                %369 = vst [vmem:[%s153 + $0x1ac] sm:%s145] %v368
                %v370 = vld [vmem:[%s152 + $0x338] sm:%s145]
                %371 = vst [vmem:[%s153 + $0x1b0] sm:%s145] %v370
                %v372 = vld [vmem:[%s152 + $0x33c] sm:%s145]
                %373 = vst [vmem:[%s153 + $0x1b4] sm:%s145] %v372
                %v374 = vld [vmem:[%s152 + $0x340] sm:%s145]
                %375 = vst [vmem:[%s153 + $0x1b8] sm:%s145] %v374
                %v376 = vld [vmem:[%s152 + $0x344] sm:%s145]
                %377 = vst [vmem:[%s153 + $0x1bc] sm:%s145] %v376
                %v378 = vld [vmem:[%s152 + $0x348] sm:%s145]
                %379 = vst [vmem:[%s153 + $0x1c0] sm:%s145] %v378
                %v380 = vld [vmem:[%s152 + $0x34c] sm:%s145]
                %381 = vst [vmem:[%s153 + $0x1c4] sm:%s145] %v380
                %v382 = vld [vmem:[%s152 + $0x350] sm:%s145]
                %383 = vst [vmem:[%s153 + $0x1c8] sm:%s145] %v382
                %v384 = vld [vmem:[%s152 + $0x354] sm:%s145]
                %385 = vst [vmem:[%s153 + $0x1cc] sm:%s145] %v384
                %v386 = vld [vmem:[%s152 + $0x358] sm:%s145]
                %387 = vst [vmem:[%s153 + $0x1d0] sm:%s145] %v386
                %v388 = vld [vmem:[%s152 + $0x35c] sm:%s145]
                %389 = vst [vmem:[%s153 + $0x1d4] sm:%s145] %v388
                %v390 = vld [vmem:[%s152 + $0x360] sm:%s145]
                %391 = vst [vmem:[%s153 + $0x1d8] sm:%s145] %v390
                %v392 = vld [vmem:[%s152 + $0x364] sm:%s145]
                %393 = vst [vmem:[%s153 + $0x1dc] sm:%s145] %v392
                %v394 = vld [vmem:[%s152 + $0x368] sm:%s145]
                %395 = vst [vmem:[%s153 + $0x1e0] sm:%s145] %v394
                %v396 = vld [vmem:[%s152 + $0x36c] sm:%s145]
                %397 = vst [vmem:[%s153 + $0x1e4] sm:%s145] %v396
                %v398 = vld [vmem:[%s152 + $0x370] sm:%s145]
                %399 = vst [vmem:[%s153 + $0x1e8] sm:%s145] %v398
                %v400 = vld [vmem:[%s152 + $0x374] sm:%s145]
                %401 = vst [vmem:[%s153 + $0x1ec] sm:%s145] %v400
                %v402 = vld [vmem:[%s152 + $0x378] sm:%s145]
                %403 = vst [vmem:[%s153 + $0x1f0] sm:%s145] %v402
                %v404 = vld [vmem:[%s152 + $0x37c] sm:%s145]
                %405 = vst [vmem:[%s153 + $0x1f4] sm:%s145] %v404
                %v406 = vld [vmem:[%s152 + $0x380] sm:%s145]
                %407 = vst [vmem:[%s153 + $0x1f8] sm:%s145] %v406
                %v408 = vld [vmem:[%s152 + $0x384] sm:%s145]
                %409 = vst [vmem:[%s153 + $0x1fc] sm:%s145] %v408
                %v410 = vld [vmem:[%s152 + $0x388] sm:%s145]
                %411 = vst [vmem:[%s153 + $0x200] sm:%s145] %v410
                %v412 = vld [vmem:[%s152 + $0x38c] sm:%s145]
                %413 = vst [vmem:[%s153 + $0x204] sm:%s145] %v412
                %v414 = vld [vmem:[%s152 + $0x390] sm:%s145]
                %415 = vst [vmem:[%s153 + $0x208] sm:%s145] %v414
                %v416 = vld [vmem:[%s152 + $0x394] sm:%s145]
                %417 = vst [vmem:[%s153 + $0x20c] sm:%s145] %v416
                %v418 = vld [vmem:[%s152 + $0x398] sm:%s145]
                %419 = vst [vmem:[%s153 + $0x210] sm:%s145] %v418
                %v420 = vld [vmem:[%s152 + $0x39c] sm:%s145]
                %421 = vst [vmem:[%s153 + $0x214] sm:%s145] %v420
                %v422 = vld [vmem:[%s152 + $0x3a0] sm:%s145]
                %423 = vst [vmem:[%s153 + $0x218] sm:%s145] %v422
                %v424 = vld [vmem:[%s152 + $0x3a4] sm:%s145]
                %425 = vst [vmem:[%s153 + $0x21c] sm:%s145] %v424
                %v426 = vld [vmem:[%s152 + $0x3a8] sm:%s145]
                %427 = vst [vmem:[%s153 + $0x220] sm:%s145] %v426
                %v428 = vld [vmem:[%s152 + $0x3ac] sm:%s145]
                %429 = vst [vmem:[%s153 + $0x224] sm:%s145] %v428
                %v430 = vld [vmem:[%s152 + $0x3b0] sm:%s145]
                %431 = vst [vmem:[%s153 + $0x228] sm:%s145] %v430
                %v432 = vld [vmem:[%s152 + $0x3b4] sm:%s145]
                %433 = vst [vmem:[%s153 + $0x22c] sm:%s145] %v432
                %v434 = vld [vmem:[%s152 + $0x3b8] sm:%s145]
                %435 = vst [vmem:[%s153 + $0x230] sm:%s145] %v434
                %v436 = vld [vmem:[%s152 + $0x3bc] sm:%s145]
                %437 = vst [vmem:[%s153 + $0x234] sm:%s145] %v436
                %v438 = vld [vmem:[%s152 + $0x3c0] sm:%s145]
                %439 = vst [vmem:[%s153 + $0x238] sm:%s145] %v438
                %v440 = vld [vmem:[%s152 + $0x3c4] sm:%s145]
                %441 = vst [vmem:[%s153 + $0x23c] sm:%s145] %v440
                %v442 = vld [vmem:[%s152 + $0x3c8] sm:%s145]
                %443 = vst [vmem:[%s153 + $0x240] sm:%s145] %v442
                %v444 = vld [vmem:[%s152 + $0x3cc] sm:%s145]
                %445 = vst [vmem:[%s153 + $0x244] sm:%s145] %v444
                %v446 = vld [vmem:[%s152 + $0x3d0] sm:%s145]
                %447 = vst [vmem:[%s153 + $0x248] sm:%s145] %v446
                %v448 = vld [vmem:[%s152 + $0x3d4] sm:%s145]
                %449 = vst [vmem:[%s153 + $0x24c] sm:%s145] %v448
                %v450 = vld [vmem:[%s152 + $0x3d8] sm:%s145]
                %451 = vst [vmem:[%s153 + $0x250] sm:%s145] %v450
                %v452 = vld [vmem:[%s152 + $0x3dc] sm:%s145]
                %453 = vst [vmem:[%s153 + $0x254] sm:%s145] %v452
                %v454 = vld [vmem:[%s152 + $0x3e0] sm:%s145]
                %455 = vst [vmem:[%s153 + $0x258] sm:%s145] %v454
                %v456 = vld [vmem:[%s152 + $0x3e4] sm:%s145]
                %457 = vst [vmem:[%s153 + $0x25c] sm:%s145] %v456
                %v458 = vld [vmem:[%s152 + $0x3e8] sm:%s145]
                %459 = vst [vmem:[%s153 + $0x260] sm:%s145] %v458
                %v460 = vld [vmem:[%s152 + $0x3ec] sm:%s145]
                %461 = vst [vmem:[%s153 + $0x264] sm:%s145] %v460
                %v462 = vld [vmem:[%s152 + $0x3f0] sm:%s145]
                %463 = vst [vmem:[%s153 + $0x268] sm:%s145] %v462
                %v464 = vld [vmem:[%s152 + $0x3f4] sm:%s145]
                %465 = vst [vmem:[%s153 + $0x26c] sm:%s145] %v464
                %v466 = vld [vmem:[%s152 + $0x3f8] sm:%s145]
                %467 = vst [vmem:[%s153 + $0x270] sm:%s145] %v466
                %v468 = vld [vmem:[%s152 + $0x3fc] sm:%s145]
                %469 = vst [vmem:[%s153 + $0x274] sm:%s145] %v468
                %v470 = vld [vmem:[%s152 + $0x400] sm:%s145]
                %471 = vst [vmem:[%s153 + $0x278] sm:%s145] %v470
                %v472 = vld [vmem:[%s152 + $0x404] sm:%s145]
                %473 = vst [vmem:[%s153 + $0x27c] sm:%s145] %v472
                %v474 = vld [vmem:[%s152 + $0x408] sm:%s145]
                %475 = vst [vmem:[%s153 + $0x280] sm:%s145] %v474
                %v476 = vld [vmem:[%s152 + $0x40c] sm:%s145]
                %477 = vst [vmem:[%s153 + $0x284] sm:%s145] %v476
                %v478 = vld [vmem:[%s152 + $0x410] sm:%s145]
                %479 = vst [vmem:[%s153 + $0x288] sm:%s145] %v478
                %v480 = vld [vmem:[%s152 + $0x414] sm:%s145]
                %481 = vst [vmem:[%s153 + $0x28c] sm:%s145] %v480
                %v482 = vld [vmem:[%s152 + $0x418] sm:%s145]
                %483 = vst [vmem:[%s153 + $0x290] sm:%s145] %v482
                %v484 = vld [vmem:[%s152 + $0x41c] sm:%s145]
                %485 = vst [vmem:[%s153 + $0x294] sm:%s145] %v484
                %v486 = vld [vmem:[%s152 + $0x420] sm:%s145]
                %487 = vst [vmem:[%s153 + $0x298] sm:%s145] %v486
                %v488 = vld [vmem:[%s152 + $0x424] sm:%s145]
                %489 = vst [vmem:[%s153 + $0x29c] sm:%s145] %v488
                %v490 = vld [vmem:[%s152 + $0x428] sm:%s145]
                %491 = vst [vmem:[%s153 + $0x2a0] sm:%s145] %v490
                %v492 = vld [vmem:[%s152 + $0x42c] sm:%s145]
                %493 = vst [vmem:[%s153 + $0x2a4] sm:%s145] %v492
                %v494 = vld [vmem:[%s152 + $0x430] sm:%s145]
                %495 = vst [vmem:[%s153 + $0x2a8] sm:%s145] %v494
                %v496 = vld [vmem:[%s152 + $0x434] sm:%s145]
                %497 = vst [vmem:[%s153 + $0x2ac] sm:%s145] %v496
                %v498 = vld [vmem:[%s152 + $0x438] sm:%s145]
                %499 = vst [vmem:[%s153 + $0x2b0] sm:%s145] %v498
                %v500 = vld [vmem:[%s152 + $0x43c] sm:%s145]
                %501 = vst [vmem:[%s153 + $0x2b4] sm:%s145] %v500
                %v502 = vld [vmem:[%s152 + $0x440] sm:%s145]
                %503 = vst [vmem:[%s153 + $0x2b8] sm:%s145] %v502
                %v504 = vld [vmem:[%s152 + $0x444] sm:%s145]
                %505 = vst [vmem:[%s153 + $0x2bc] sm:%s145] %v504
                %v506 = vld [vmem:[%s152 + $0x448] sm:%s145]
                %507 = vst [vmem:[%s153 + $0x2c0] sm:%s145] %v506
                %v508 = vld [vmem:[%s152 + $0x44c] sm:%s145]
                %509 = vst [vmem:[%s153 + $0x2c4] sm:%s145] %v508
                %v510 = vld [vmem:[%s152 + $0x450] sm:%s145]
                %511 = vst [vmem:[%s153 + $0x2c8] sm:%s145] %v510
                %v512 = vld [vmem:[%s152 + $0x454] sm:%s145]
                %513 = vst [vmem:[%s153 + $0x2cc] sm:%s145] %v512
                %v514 = vld [vmem:[%s152 + $0x458] sm:%s145]
                %515 = vst [vmem:[%s153 + $0x2d0] sm:%s145] %v514
                %v516 = vld [vmem:[%s152 + $0x45c] sm:%s145]
                %517 = vst [vmem:[%s153 + $0x2d4] sm:%s145] %v516
                %v518 = vld [vmem:[%s152 + $0x460] sm:%s145]
                %519 = vst [vmem:[%s153 + $0x2d8] sm:%s145] %v518
                %v520 = vld [vmem:[%s152 + $0x464] sm:%s145]
                %521 = vst [vmem:[%s153 + $0x2dc] sm:%s145] %v520
                %v522 = vld [vmem:[%s152 + $0x468] sm:%s145]
                %523 = vst [vmem:[%s153 + $0x2e0] sm:%s145] %v522
                %v524 = vld [vmem:[%s152 + $0x46c] sm:%s145]
                %525 = vst [vmem:[%s153 + $0x2e4] sm:%s145] %v524
                %v526 = vld [vmem:[%s152 + $0x470] sm:%s145]
                %527 = vst [vmem:[%s153 + $0x2e8] sm:%s145] %v526
                %v528 = vld [vmem:[%s152 + $0x474] sm:%s145]
                %529 = vst [vmem:[%s153 + $0x2ec] sm:%s145] %v528
                %v530 = vld [vmem:[%s152 + $0x478] sm:%s145]
                %531 = vst [vmem:[%s153 + $0x2f0] sm:%s145] %v530
                %v532 = vld [vmem:[%s152 + $0x47c] sm:%s145]
                %533 = vst [vmem:[%s153 + $0x2f4] sm:%s145] %v532
                %v534 = vld [vmem:[%s152 + $0x480] sm:%s145]
                %535 = vst [vmem:[%s153 + $0x2f8] sm:%s145] %v534
                %v536 = vld [vmem:[%s152 + $0x484] sm:%s145]
                %537 = vst [vmem:[%s153 + $0x2fc] sm:%s145] %v536
                %v538 = vld [vmem:[%s152 + $0x488] sm:%s145]
                %539 = vst [vmem:[%s153 + $0x300] sm:%s145] %v538
                %v540 = vld [vmem:[%s152 + $0x48c] sm:%s145]
                %541 = vst [vmem:[%s153 + $0x304] sm:%s145] %v540
                %v542 = vld [vmem:[%s152 + $0x490] sm:%s145]
                %543 = vst [vmem:[%s153 + $0x308] sm:%s145] %v542
                %v544 = vld [vmem:[%s152 + $0x494] sm:%s145]
                %545 = vst [vmem:[%s153 + $0x30c] sm:%s145] %v544
                %v546 = vld [vmem:[%s152 + $0x620] sm:%s145]
                %547 = vst [vmem:[%s153 + $0x310] sm:%s145] %v546
                %v548 = vld [vmem:[%s152 + $0x624] sm:%s145]
                %549 = vst [vmem:[%s153 + $0x314] sm:%s145] %v548
                %v550 = vld [vmem:[%s152 + $0x628] sm:%s145]
                %551 = vst [vmem:[%s153 + $0x318] sm:%s145] %v550
                %v552 = vld [vmem:[%s152 + $0x62c] sm:%s145]
                %553 = vst [vmem:[%s153 + $0x31c] sm:%s145] %v552
                %v554 = vld [vmem:[%s152 + $0x630] sm:%s145]
                %555 = vst [vmem:[%s153 + $0x320] sm:%s145] %v554
                %v556 = vld [vmem:[%s152 + $0x634] sm:%s145]
                %557 = vst [vmem:[%s153 + $0x324] sm:%s145] %v556
                %v558 = vld [vmem:[%s152 + $0x638] sm:%s145]
                %559 = vst [vmem:[%s153 + $0x328] sm:%s145] %v558
                %v560 = vld [vmem:[%s152 + $0x63c] sm:%s145]
                %561 = vst [vmem:[%s153 + $0x32c] sm:%s145] %v560
                %v562 = vld [vmem:[%s152 + $0x640] sm:%s145]
                %563 = vst [vmem:[%s153 + $0x330] sm:%s145] %v562
                %v564 = vld [vmem:[%s152 + $0x644] sm:%s145]
                %565 = vst [vmem:[%s153 + $0x334] sm:%s145] %v564
                %v566 = vld [vmem:[%s152 + $0x648] sm:%s145]
                %567 = vst [vmem:[%s153 + $0x338] sm:%s145] %v566
                %v568 = vld [vmem:[%s152 + $0x64c] sm:%s145]
                %569 = vst [vmem:[%s153 + $0x33c] sm:%s145] %v568
                %v570 = vld [vmem:[%s152 + $0x650] sm:%s145]
                %571 = vst [vmem:[%s153 + $0x340] sm:%s145] %v570
                %v572 = vld [vmem:[%s152 + $0x654] sm:%s145]
                %573 = vst [vmem:[%s153 + $0x344] sm:%s145] %v572
                %v574 = vld [vmem:[%s152 + $0x658] sm:%s145]
                %575 = vst [vmem:[%s153 + $0x348] sm:%s145] %v574
                %v576 = vld [vmem:[%s152 + $0x65c] sm:%s145]
                %577 = vst [vmem:[%s153 + $0x34c] sm:%s145] %v576
                %v578 = vld [vmem:[%s152 + $0x660] sm:%s145]
                %579 = vst [vmem:[%s153 + $0x350] sm:%s145] %v578
                %v580 = vld [vmem:[%s152 + $0x664] sm:%s145]
                %581 = vst [vmem:[%s153 + $0x354] sm:%s145] %v580
                %v582 = vld [vmem:[%s152 + $0x668] sm:%s145]
                %583 = vst [vmem:[%s153 + $0x358] sm:%s145] %v582
                %v584 = vld [vmem:[%s152 + $0x66c] sm:%s145]
                %585 = vst [vmem:[%s153 + $0x35c] sm:%s145] %v584
                %v586 = vld [vmem:[%s152 + $0x670] sm:%s145]
                %587 = vst [vmem:[%s153 + $0x360] sm:%s145] %v586
                %v588 = vld [vmem:[%s152 + $0x674] sm:%s145]
                %589 = vst [vmem:[%s153 + $0x364] sm:%s145] %v588
                %v590 = vld [vmem:[%s152 + $0x678] sm:%s145]
                %591 = vst [vmem:[%s153 + $0x368] sm:%s145] %v590
                %v592 = vld [vmem:[%s152 + $0x67c] sm:%s145]
                %593 = vst [vmem:[%s153 + $0x36c] sm:%s145] %v592
                %v594 = vld [vmem:[%s152 + $0x680] sm:%s145]
                %595 = vst [vmem:[%s153 + $0x370] sm:%s145] %v594
                %v596 = vld [vmem:[%s152 + $0x684] sm:%s145]
                %597 = vst [vmem:[%s153 + $0x374] sm:%s145] %v596
                %v598 = vld [vmem:[%s152 + $0x688] sm:%s145]
                %599 = vst [vmem:[%s153 + $0x378] sm:%s145] %v598
                %v600 = vld [vmem:[%s152 + $0x68c] sm:%s145]
                %601 = vst [vmem:[%s153 + $0x37c] sm:%s145] %v600
                %v602 = vld [vmem:[%s152 + $0x690] sm:%s145]
                %603 = vst [vmem:[%s153 + $0x380] sm:%s145] %v602
                %v604 = vld [vmem:[%s152 + $0x694] sm:%s145]
                %605 = vst [vmem:[%s153 + $0x384] sm:%s145] %v604
                %v606 = vld [vmem:[%s152 + $0x698] sm:%s145]
                %607 = vst [vmem:[%s153 + $0x388] sm:%s145] %v606
                %v608 = vld [vmem:[%s152 + $0x69c] sm:%s145]
                %609 = vst [vmem:[%s153 + $0x38c] sm:%s145] %v608
                %v610 = vld [vmem:[%s152 + $0x6a0] sm:%s145]
                %611 = vst [vmem:[%s153 + $0x390] sm:%s145] %v610
                %v612 = vld [vmem:[%s152 + $0x6a4] sm:%s145]
                %613 = vst [vmem:[%s153 + $0x394] sm:%s145] %v612
                %v614 = vld [vmem:[%s152 + $0x6a8] sm:%s145]
                %615 = vst [vmem:[%s153 + $0x398] sm:%s145] %v614
                %v616 = vld [vmem:[%s152 + $0x6ac] sm:%s145]
                %617 = vst [vmem:[%s153 + $0x39c] sm:%s145] %v616
                %v618 = vld [vmem:[%s152 + $0x6b0] sm:%s145]
                %619 = vst [vmem:[%s153 + $0x3a0] sm:%s145] %v618
                %v620 = vld [vmem:[%s152 + $0x6b4] sm:%s145]
                %621 = vst [vmem:[%s153 + $0x3a4] sm:%s145] %v620
                %v622 = vld [vmem:[%s152 + $0x6b8] sm:%s145]
                %623 = vst [vmem:[%s153 + $0x3a8] sm:%s145] %v622
                %v624 = vld [vmem:[%s152 + $0x6bc] sm:%s145]
                %625 = vst [vmem:[%s153 + $0x3ac] sm:%s145] %v624
                %v626 = vld [vmem:[%s152 + $0x6c0] sm:%s145]
                %627 = vst [vmem:[%s153 + $0x3b0] sm:%s145] %v626
                %v628 = vld [vmem:[%s152 + $0x6c4] sm:%s145]
                %629 = vst [vmem:[%s153 + $0x3b4] sm:%s145] %v628
                %v630 = vld [vmem:[%s152 + $0x6c8] sm:%s145]
                %631 = vst [vmem:[%s153 + $0x3b8] sm:%s145] %v630
                %v632 = vld [vmem:[%s152 + $0x6cc] sm:%s145]
                %633 = vst [vmem:[%s153 + $0x3bc] sm:%s145] %v632
                %v634 = vld [vmem:[%s152 + $0x6d0] sm:%s145]
                %635 = vst [vmem:[%s153 + $0x3c0] sm:%s145] %v634
                %v636 = vld [vmem:[%s152 + $0x6d4] sm:%s145]
                %637 = vst [vmem:[%s153 + $0x3c4] sm:%s145] %v636
                %v638 = vld [vmem:[%s152 + $0x6d8] sm:%s145]
                %639 = vst [vmem:[%s153 + $0x3c8] sm:%s145] %v638
                %v640 = vld [vmem:[%s152 + $0x6dc] sm:%s145]
                %641 = vst [vmem:[%s153 + $0x3cc] sm:%s145] %v640
                %v642 = vld [vmem:[%s152 + $0x6e0] sm:%s145]
                %643 = vst [vmem:[%s153 + $0x3d0] sm:%s145] %v642
                %v644 = vld [vmem:[%s152 + $0x6e4] sm:%s145]
                %645 = vst [vmem:[%s153 + $0x3d4] sm:%s145] %v644
                %v646 = vld [vmem:[%s152 + $0x6e8] sm:%s145]
                %647 = vst [vmem:[%s153 + $0x3d8] sm:%s145] %v646
                %v648 = vld [vmem:[%s152 + $0x6ec] sm:%s145]
                %649 = vst [vmem:[%s153 + $0x3dc] sm:%s145] %v648
                %v650 = vld [vmem:[%s152 + $0x6f0] sm:%s145]
                %651 = vst [vmem:[%s153 + $0x3e0] sm:%s145] %v650
                %v652 = vld [vmem:[%s152 + $0x6f4] sm:%s145]
                %653 = vst [vmem:[%s153 + $0x3e4] sm:%s145] %v652
                %v654 = vld [vmem:[%s152 + $0x6f8] sm:%s145]
                %655 = vst [vmem:[%s153 + $0x3e8] sm:%s145] %v654
                %v656 = vld [vmem:[%s152 + $0x6fc] sm:%s145]
                %657 = vst [vmem:[%s153 + $0x3ec] sm:%s145] %v656
                %v658 = vld [vmem:[%s152 + $0x700] sm:%s145]
                %659 = vst [vmem:[%s153 + $0x3f0] sm:%s145] %v658
                %v660 = vld [vmem:[%s152 + $0x704] sm:%s145]
                %661 = vst [vmem:[%s153 + $0x3f4] sm:%s145] %v660
                %v662 = vld [vmem:[%s152 + $0x708] sm:%s145]
                %663 = vst [vmem:[%s153 + $0x3f8] sm:%s145] %v662
                %v664 = vld [vmem:[%s152 + $0x70c] sm:%s145]
                %665 = vst [vmem:[%s153 + $0x3fc] sm:%s145] %v664
                %v666 = vld [vmem:[%s152 + $0x710] sm:%s145]
                %667 = vst [vmem:[%s153 + $0x400] sm:%s145] %v666
                %v668 = vld [vmem:[%s152 + $0x714] sm:%s145]
                %669 = vst [vmem:[%s153 + $0x404] sm:%s145] %v668
                %v670 = vld [vmem:[%s152 + $0x718] sm:%s145]
                %671 = vst [vmem:[%s153 + $0x408] sm:%s145] %v670
                %v672 = vld [vmem:[%s152 + $0x71c] sm:%s145]
                %673 = vst [vmem:[%s153 + $0x40c] sm:%s145] %v672
                %v674 = vld [vmem:[%s152 + $0x720] sm:%s145]
                %675 = vst [vmem:[%s153 + $0x410] sm:%s145] %v674
                %v676 = vld [vmem:[%s152 + $0x724] sm:%s145]
                %677 = vst [vmem:[%s153 + $0x414] sm:%s145] %v676
                %v678 = vld [vmem:[%s152 + $0x728] sm:%s145]
                %679 = vst [vmem:[%s153 + $0x418] sm:%s145] %v678
                %v680 = vld [vmem:[%s152 + $0x72c] sm:%s145]
                %681 = vst [vmem:[%s153 + $0x41c] sm:%s145] %v680
                %v682 = vld [vmem:[%s152 + $0x730] sm:%s145]
                %683 = vst [vmem:[%s153 + $0x420] sm:%s145] %v682
                %v684 = vld [vmem:[%s152 + $0x734] sm:%s145]
                %685 = vst [vmem:[%s153 + $0x424] sm:%s145] %v684
                %v686 = vld [vmem:[%s152 + $0x738] sm:%s145]
                %687 = vst [vmem:[%s153 + $0x428] sm:%s145] %v686
                %v688 = vld [vmem:[%s152 + $0x73c] sm:%s145]
                %689 = vst [vmem:[%s153 + $0x42c] sm:%s145] %v688
                %v690 = vld [vmem:[%s152 + $0x740] sm:%s145]
                %691 = vst [vmem:[%s153 + $0x430] sm:%s145] %v690
                %v692 = vld [vmem:[%s152 + $0x744] sm:%s145]
                %693 = vst [vmem:[%s153 + $0x434] sm:%s145] %v692
                %v694 = vld [vmem:[%s152 + $0x748] sm:%s145]
                %695 = vst [vmem:[%s153 + $0x438] sm:%s145] %v694
                %v696 = vld [vmem:[%s152 + $0x74c] sm:%s145]
                %697 = vst [vmem:[%s153 + $0x43c] sm:%s145] %v696
                %v698 = vld [vmem:[%s152 + $0x750] sm:%s145]
                %699 = vst [vmem:[%s153 + $0x440] sm:%s145] %v698
                %v700 = vld [vmem:[%s152 + $0x754] sm:%s145]
                %701 = vst [vmem:[%s153 + $0x444] sm:%s145] %v700
                %v702 = vld [vmem:[%s152 + $0x758] sm:%s145]
                %703 = vst [vmem:[%s153 + $0x448] sm:%s145] %v702
                %v704 = vld [vmem:[%s152 + $0x75c] sm:%s145]
                %705 = vst [vmem:[%s153 + $0x44c] sm:%s145] %v704
                %v706 = vld [vmem:[%s152 + $0x760] sm:%s145]
                %707 = vst [vmem:[%s153 + $0x450] sm:%s145] %v706
                %v708 = vld [vmem:[%s152 + $0x764] sm:%s145]
                %709 = vst [vmem:[%s153 + $0x454] sm:%s145] %v708
                %v710 = vld [vmem:[%s152 + $0x768] sm:%s145]
                %711 = vst [vmem:[%s153 + $0x458] sm:%s145] %v710
                %v712 = vld [vmem:[%s152 + $0x76c] sm:%s145]
                %713 = vst [vmem:[%s153 + $0x45c] sm:%s145] %v712
                %v714 = vld [vmem:[%s152 + $0x770] sm:%s145]
                %715 = vst [vmem:[%s153 + $0x460] sm:%s145] %v714
                %v716 = vld [vmem:[%s152 + $0x774] sm:%s145]
                %717 = vst [vmem:[%s153 + $0x464] sm:%s145] %v716
                %v718 = vld [vmem:[%s152 + $0x778] sm:%s145]
                %719 = vst [vmem:[%s153 + $0x468] sm:%s145] %v718
                %v720 = vld [vmem:[%s152 + $0x77c] sm:%s145]
                %721 = vst [vmem:[%s153 + $0x46c] sm:%s145] %v720
                %v722 = vld [vmem:[%s152 + $0x780] sm:%s145]
                %723 = vst [vmem:[%s153 + $0x470] sm:%s145] %v722
                %v724 = vld [vmem:[%s152 + $0x784] sm:%s145]
                %725 = vst [vmem:[%s153 + $0x474] sm:%s145] %v724
                %v726 = vld [vmem:[%s152 + $0x788] sm:%s145]
                %727 = vst [vmem:[%s153 + $0x478] sm:%s145] %v726
                %v728 = vld [vmem:[%s152 + $0x78c] sm:%s145]
                %729 = vst [vmem:[%s153 + $0x47c] sm:%s145] %v728
                %v730 = vld [vmem:[%s152 + $0x790] sm:%s145]
                %731 = vst [vmem:[%s153 + $0x480] sm:%s145] %v730
                %v732 = vld [vmem:[%s152 + $0x794] sm:%s145]
                %733 = vst [vmem:[%s153 + $0x484] sm:%s145] %v732
                %v734 = vld [vmem:[%s152 + $0x798] sm:%s145]
                %735 = vst [vmem:[%s153 + $0x488] sm:%s145] %v734
                %v736 = vld [vmem:[%s152 + $0x79c] sm:%s145]
                %737 = vst [vmem:[%s153 + $0x48c] sm:%s145] %v736
                %v738 = vld [vmem:[%s152 + $0x7a0] sm:%s145]
                %739 = vst [vmem:[%s153 + $0x490] sm:%s145] %v738
                %v740 = vld [vmem:[%s152 + $0x7a4] sm:%s145]
                %741 = vst [vmem:[%s153 + $0x494] sm:%s145] %v740
                %v742 = vld [vmem:[%s152 + $0x930] sm:%s145]
                %743 = vst [vmem:[%s153 + $0x498] sm:%s145] %v742
                %v744 = vld [vmem:[%s152 + $0x934] sm:%s145]
                %745 = vst [vmem:[%s153 + $0x49c] sm:%s145] %v744
                %v746 = vld [vmem:[%s152 + $0x938] sm:%s145]
                %747 = vst [vmem:[%s153 + $0x4a0] sm:%s145] %v746
                %v748 = vld [vmem:[%s152 + $0x93c] sm:%s145]
                %749 = vst [vmem:[%s153 + $0x4a4] sm:%s145] %v748
                %v750 = vld [vmem:[%s152 + $0x940] sm:%s145]
                %751 = vst [vmem:[%s153 + $0x4a8] sm:%s145] %v750
                %v752 = vld [vmem:[%s152 + $0x944] sm:%s145]
                %753 = vst [vmem:[%s153 + $0x4ac] sm:%s145] %v752
                %v754 = vld [vmem:[%s152 + $0x948] sm:%s145]
                %755 = vst [vmem:[%s153 + $0x4b0] sm:%s145] %v754
                %v756 = vld [vmem:[%s152 + $0x94c] sm:%s145]
                %757 = vst [vmem:[%s153 + $0x4b4] sm:%s145] %v756
                %v758 = vld [vmem:[%s152 + $0x950] sm:%s145]
                %759 = vst [vmem:[%s153 + $0x4b8] sm:%s145] %v758
                %v760 = vld [vmem:[%s152 + $0x954] sm:%s145]
                %761 = vst [vmem:[%s153 + $0x4bc] sm:%s145] %v760
                %v762 = vld [vmem:[%s152 + $0x958] sm:%s145]
                %763 = vst [vmem:[%s153 + $0x4c0] sm:%s145] %v762
                %v764 = vld [vmem:[%s152 + $0x95c] sm:%s145]
                %765 = vst [vmem:[%s153 + $0x4c4] sm:%s145] %v764
                %v766 = vld [vmem:[%s152 + $0x960] sm:%s145]
                %767 = vst [vmem:[%s153 + $0x4c8] sm:%s145] %v766
                %v768 = vld [vmem:[%s152 + $0x964] sm:%s145]
                %769 = vst [vmem:[%s153 + $0x4cc] sm:%s145] %v768
                %v770 = vld [vmem:[%s152 + $0x968] sm:%s145]
                %771 = vst [vmem:[%s153 + $0x4d0] sm:%s145] %v770
                %v772 = vld [vmem:[%s152 + $0x96c] sm:%s145]
                %773 = vst [vmem:[%s153 + $0x4d4] sm:%s145] %v772
                %v774 = vld [vmem:[%s152 + $0x970] sm:%s145]
                %775 = vst [vmem:[%s153 + $0x4d8] sm:%s145] %v774
                %v776 = vld [vmem:[%s152 + $0x974] sm:%s145]
                %777 = vst [vmem:[%s153 + $0x4dc] sm:%s145] %v776
                %v778 = vld [vmem:[%s152 + $0x978] sm:%s145]
                %779 = vst [vmem:[%s153 + $0x4e0] sm:%s145] %v778
                %v780 = vld [vmem:[%s152 + $0x97c] sm:%s145]
                %781 = vst [vmem:[%s153 + $0x4e4] sm:%s145] %v780
                %v782 = vld [vmem:[%s152 + $0x980] sm:%s145]
                %783 = vst [vmem:[%s153 + $0x4e8] sm:%s145] %v782
                %v784 = vld [vmem:[%s152 + $0x984] sm:%s145]
                %785 = vst [vmem:[%s153 + $0x4ec] sm:%s145] %v784
                %v786 = vld [vmem:[%s152 + $0x988] sm:%s145]
                %787 = vst [vmem:[%s153 + $0x4f0] sm:%s145] %v786
                %v788 = vld [vmem:[%s152 + $0x98c] sm:%s145]
                %789 = vst [vmem:[%s153 + $0x4f4] sm:%s145] %v788
                %v790 = vld [vmem:[%s152 + $0x990] sm:%s145]
                %791 = vst [vmem:[%s153 + $0x4f8] sm:%s145] %v790
                %v792 = vld [vmem:[%s152 + $0x994] sm:%s145]
                %793 = vst [vmem:[%s153 + $0x4fc] sm:%s145] %v792
                %v794 = vld [vmem:[%s152 + $0x998] sm:%s145]
                %795 = vst [vmem:[%s153 + $0x500] sm:%s145] %v794
                %v796 = vld [vmem:[%s152 + $0x99c] sm:%s145]
                %797 = vst [vmem:[%s153 + $0x504] sm:%s145] %v796
                %v798 = vld [vmem:[%s152 + $0x9a0] sm:%s145]
                %799 = vst [vmem:[%s153 + $0x508] sm:%s145] %v798
                %v800 = vld [vmem:[%s152 + $0x9a4] sm:%s145]
                %801 = vst [vmem:[%s153 + $0x50c] sm:%s145] %v800
                %v802 = vld [vmem:[%s152 + $0x9a8] sm:%s145]
                %803 = vst [vmem:[%s153 + $0x510] sm:%s145] %v802
                %v804 = vld [vmem:[%s152 + $0x9ac] sm:%s145]
                %805 = vst [vmem:[%s153 + $0x514] sm:%s145] %v804
                %v806 = vld [vmem:[%s152 + $0x9b0] sm:%s145]
                %807 = vst [vmem:[%s153 + $0x518] sm:%s145] %v806
                %v808 = vld [vmem:[%s152 + $0x9b4] sm:%s145]
                %809 = vst [vmem:[%s153 + $0x51c] sm:%s145] %v808
                %v810 = vld [vmem:[%s152 + $0x9b8] sm:%s145]
                %811 = vst [vmem:[%s153 + $0x520] sm:%s145] %v810
                %v812 = vld [vmem:[%s152 + $0x9bc] sm:%s145]
                %813 = vst [vmem:[%s153 + $0x524] sm:%s145] %v812
                %v814 = vld [vmem:[%s152 + $0x9c0] sm:%s145]
                %815 = vst [vmem:[%s153 + $0x528] sm:%s145] %v814
                %v816 = vld [vmem:[%s152 + $0x9c4] sm:%s145]
                %817 = vst [vmem:[%s153 + $0x52c] sm:%s145] %v816
                %v818 = vld [vmem:[%s152 + $0x9c8] sm:%s145]
                %819 = vst [vmem:[%s153 + $0x530] sm:%s145] %v818
                %v820 = vld [vmem:[%s152 + $0x9cc] sm:%s145]
                %821 = vst [vmem:[%s153 + $0x534] sm:%s145] %v820
                %v822 = vld [vmem:[%s152 + $0x9d0] sm:%s145]
                %823 = vst [vmem:[%s153 + $0x538] sm:%s145] %v822
                %v824 = vld [vmem:[%s152 + $0x9d4] sm:%s145]
                %825 = vst [vmem:[%s153 + $0x53c] sm:%s145] %v824
                %v826 = vld [vmem:[%s152 + $0x9d8] sm:%s145]
                %827 = vst [vmem:[%s153 + $0x540] sm:%s145] %v826
                %v828 = vld [vmem:[%s152 + $0x9dc] sm:%s145]
                %829 = vst [vmem:[%s153 + $0x544] sm:%s145] %v828
                %v830 = vld [vmem:[%s152 + $0x9e0] sm:%s145]
                %831 = vst [vmem:[%s153 + $0x548] sm:%s145] %v830
                %v832 = vld [vmem:[%s152 + $0x9e4] sm:%s145]
                %833 = vst [vmem:[%s153 + $0x54c] sm:%s145] %v832
                %v834 = vld [vmem:[%s152 + $0x9e8] sm:%s145]
                %835 = vst [vmem:[%s153 + $0x550] sm:%s145] %v834
                %v836 = vld [vmem:[%s152 + $0x9ec] sm:%s145]
                %837 = vst [vmem:[%s153 + $0x554] sm:%s145] %v836
                %v838 = vld [vmem:[%s152 + $0x9f0] sm:%s145]
                %839 = vst [vmem:[%s153 + $0x558] sm:%s145] %v838
                %v840 = vld [vmem:[%s152 + $0x9f4] sm:%s145]
                %841 = vst [vmem:[%s153 + $0x55c] sm:%s145] %v840
                %v842 = vld [vmem:[%s152 + $0x9f8] sm:%s145]
                %843 = vst [vmem:[%s153 + $0x560] sm:%s145] %v842
                %v844 = vld [vmem:[%s152 + $0x9fc] sm:%s145]
                %845 = vst [vmem:[%s153 + $0x564] sm:%s145] %v844
                %v846 = vld [vmem:[%s152 + $0xa00] sm:%s145]
                %847 = vst [vmem:[%s153 + $0x568] sm:%s145] %v846
                %v848 = vld [vmem:[%s152 + $0xa04] sm:%s145]
                %849 = vst [vmem:[%s153 + $0x56c] sm:%s145] %v848
                %v850 = vld [vmem:[%s152 + $0xa08] sm:%s145]
                %851 = vst [vmem:[%s153 + $0x570] sm:%s145] %v850
                %v852 = vld [vmem:[%s152 + $0xa0c] sm:%s145]
                %853 = vst [vmem:[%s153 + $0x574] sm:%s145] %v852
                %v854 = vld [vmem:[%s152 + $0xa10] sm:%s145]
                %855 = vst [vmem:[%s153 + $0x578] sm:%s145] %v854
                %v856 = vld [vmem:[%s152 + $0xa14] sm:%s145]
                %857 = vst [vmem:[%s153 + $0x57c] sm:%s145] %v856
                %v858 = vld [vmem:[%s152 + $0xa18] sm:%s145]
                %859 = vst [vmem:[%s153 + $0x580] sm:%s145] %v858
                %v860 = vld [vmem:[%s152 + $0xa1c] sm:%s145]
                %861 = vst [vmem:[%s153 + $0x584] sm:%s145] %v860
                %v862 = vld [vmem:[%s152 + $0xa20] sm:%s145]
                %863 = vst [vmem:[%s153 + $0x588] sm:%s145] %v862
                %v864 = vld [vmem:[%s152 + $0xa24] sm:%s145]
                %865 = vst [vmem:[%s153 + $0x58c] sm:%s145] %v864
                %v866 = vld [vmem:[%s152 + $0xa28] sm:%s145]
                %867 = vst [vmem:[%s153 + $0x590] sm:%s145] %v866
                %v868 = vld [vmem:[%s152 + $0xa2c] sm:%s145]
                %869 = vst [vmem:[%s153 + $0x594] sm:%s145] %v868
                %v870 = vld [vmem:[%s152 + $0xa30] sm:%s145]
                %871 = vst [vmem:[%s153 + $0x598] sm:%s145] %v870
                %v872 = vld [vmem:[%s152 + $0xa34] sm:%s145]
                %873 = vst [vmem:[%s153 + $0x59c] sm:%s145] %v872
                %v874 = vld [vmem:[%s152 + $0xa38] sm:%s145]
                %875 = vst [vmem:[%s153 + $0x5a0] sm:%s145] %v874
                %v876 = vld [vmem:[%s152 + $0xa3c] sm:%s145]
                %877 = vst [vmem:[%s153 + $0x5a4] sm:%s145] %v876
                %v878 = vld [vmem:[%s152 + $0xa40] sm:%s145]
                %879 = vst [vmem:[%s153 + $0x5a8] sm:%s145] %v878
                %v880 = vld [vmem:[%s152 + $0xa44] sm:%s145]
                %881 = vst [vmem:[%s153 + $0x5ac] sm:%s145] %v880
                %v882 = vld [vmem:[%s152 + $0xa48] sm:%s145]
                %883 = vst [vmem:[%s153 + $0x5b0] sm:%s145] %v882
                %v884 = vld [vmem:[%s152 + $0xa4c] sm:%s145]
                %885 = vst [vmem:[%s153 + $0x5b4] sm:%s145] %v884
                %v886 = vld [vmem:[%s152 + $0xa50] sm:%s145]
                %887 = vst [vmem:[%s153 + $0x5b8] sm:%s145] %v886
                %v888 = vld [vmem:[%s152 + $0xa54] sm:%s145]
                %889 = vst [vmem:[%s153 + $0x5bc] sm:%s145] %v888
                %v890 = vld [vmem:[%s152 + $0xa58] sm:%s145]
                %891 = vst [vmem:[%s153 + $0x5c0] sm:%s145] %v890
                %v892 = vld [vmem:[%s152 + $0xa5c] sm:%s145]
                %893 = vst [vmem:[%s153 + $0x5c4] sm:%s145] %v892
                %v894 = vld [vmem:[%s152 + $0xa60] sm:%s145]
                %895 = vst [vmem:[%s153 + $0x5c8] sm:%s145] %v894
                %v896 = vld [vmem:[%s152 + $0xa64] sm:%s145]
                %897 = vst [vmem:[%s153 + $0x5cc] sm:%s145] %v896
                %v898 = vld [vmem:[%s152 + $0xa68] sm:%s145]
                %899 = vst [vmem:[%s153 + $0x5d0] sm:%s145] %v898
                %v900 = vld [vmem:[%s152 + $0xa6c] sm:%s145]
                %901 = vst [vmem:[%s153 + $0x5d4] sm:%s145] %v900
                %v902 = vld [vmem:[%s152 + $0xa70] sm:%s145]
                %903 = vst [vmem:[%s153 + $0x5d8] sm:%s145] %v902
                %v904 = vld [vmem:[%s152 + $0xa74] sm:%s145]
                %905 = vst [vmem:[%s153 + $0x5dc] sm:%s145] %v904
                %v906 = vld [vmem:[%s152 + $0xa78] sm:%s145]
                %907 = vst [vmem:[%s153 + $0x5e0] sm:%s145] %v906
                %v908 = vld [vmem:[%s152 + $0xa7c] sm:%s145]
                %909 = vst [vmem:[%s153 + $0x5e4] sm:%s145] %v908
                %v910 = vld [vmem:[%s152 + $0xa80] sm:%s145]
                %911 = vst [vmem:[%s153 + $0x5e8] sm:%s145] %v910
                %v912 = vld [vmem:[%s152 + $0xa84] sm:%s145]
                %913 = vst [vmem:[%s153 + $0x5ec] sm:%s145] %v912
                %v914 = vld [vmem:[%s152 + $0xa88] sm:%s145]
                %915 = vst [vmem:[%s153 + $0x5f0] sm:%s145] %v914
                %v916 = vld [vmem:[%s152 + $0xa8c] sm:%s145]
                %917 = vst [vmem:[%s153 + $0x5f4] sm:%s145] %v916
                %v918 = vld [vmem:[%s152 + $0xa90] sm:%s145]
                %919 = vst [vmem:[%s153 + $0x5f8] sm:%s145] %v918
                %v920 = vld [vmem:[%s152 + $0xa94] sm:%s145]
                %921 = vst [vmem:[%s153 + $0x5fc] sm:%s145] %v920
                %v922 = vld [vmem:[%s152 + $0xa98] sm:%s145]
                %923 = vst [vmem:[%s153 + $0x600] sm:%s145] %v922
                %v924 = vld [vmem:[%s152 + $0xa9c] sm:%s145]
                %925 = vst [vmem:[%s153 + $0x604] sm:%s145] %v924
                %v926 = vld [vmem:[%s152 + $0xaa0] sm:%s145]
                %927 = vst [vmem:[%s153 + $0x608] sm:%s145] %v926
                %v928 = vld [vmem:[%s152 + $0xaa4] sm:%s145]
                %929 = vst [vmem:[%s153 + $0x60c] sm:%s145] %v928
                %v930 = vld [vmem:[%s152 + $0xaa8] sm:%s145]
                %931 = vst [vmem:[%s153 + $0x610] sm:%s145] %v930
                %v932 = vld [vmem:[%s152 + $0xaac] sm:%s145]
                %933 = vst [vmem:[%s153 + $0x614] sm:%s145] %v932
                %v934 = vld [vmem:[%s152 + $0xab0] sm:%s145]
                %935 = vst [vmem:[%s153 + $0x618] sm:%s145] %v934
                %v936 = vld [vmem:[%s152 + $0xab4] sm:%s145]
                %937 = vst [vmem:[%s153 + $0x61c] sm:%s145] %v936
              $region45: #{cnn_forward.3} parent=39 // loop_footer
                %s151 = sadd.s32 1, %s147
              $region46: #{cnn_forward.3} parent=39 // loop_footer_branch
                %146 = sbr.rel target = $region42
              $region47: #{cnn_forward.3} parent=39 // loop_exit
                _
            $region40: #{cnn_forward.3} parent=31 // pred_fallthru
              _
          $region32: #{cnn_forward.3} parent=27 // pred_fallthru
            _
          %1742 = vnop
        $region28: #{cnn_forward.3} parent=23 // pred_fallthru
          _
      $region24: #{cnn_forward.3} parent=5 // pred_fallthru
        _
      %p1743 = scmp.le.s32.totalorder 1, %s9
      %p1744 = scmp.lt.s32.totalorder %s9, 3
      %p1745 = pnand %p1743, %p1744
      %p1746 = pneg %p1745
      // Predicated region
      $region66: #{cnn_forward.3} parent=5 // pred_check
        _
      $region67: #{cnn_forward.3} parent=5 // pred_check_branch
        %1748 = sbr.rel (%p1745) target = $region69
      $region68: #{cnn_forward.3} parent=5 // pred_region
        %s1749 = ssub.s32 %s9, 1
        %s1750 = sand.u32 %s22, 1
        %s1751 = sand.u32 %s22, 1
        %s1752 = smul.addr %s1751, 1568
        %s1753 = scalar_lea.vmem [#allocation2], %s1752
        // Predicated region
        $region70: #{cnn_forward.3} parent=68 // pred_check
          %p1754 = pneg %p35
        $region71: #{cnn_forward.3} parent=68 // pred_check_branch
          %1756 = sbr.rel (%p1754) target = $region73
        $region72: #{cnn_forward.3} parent=68 // pred_region
          _
        $region73: #{cnn_forward.3} parent=68 // pred_fallthru
          _
        %s1757 = sand.u32 %s22, 1
        %s1758 = sand.u32 %s22, 1
        %s1759 = smul.addr %s1758, 1568
        %s1760 = scalar_lea.vmem [#allocation2], %s1759
        %p1761 = pneg %p35
        %p1762 = pneg %p32
        %p1763 = pneg %p56
        %p1764 = pneg %p53
        %p1765 = pneg %p77
        %p1766 = pneg %p74
        %p1767 = pneg %p103
        %p1768 = pneg %p100
        %s1769 = smul.u32 98, %s14
        %p1770 = scmp.lt.s32.totalorder %s1769, 195
        %s1771 = scalar_select %p1770, %s1769, 195
        %s1772 = smul.addr %s1771, 4
        %s1773 = scalar_lea.vmem %s3, %s1772
        %s1774 = smul.u32 98, %s14
        %s1775 = smul.u32 98, %s14
        %p1776 = scmp.lt.s32.totalorder %s1775, 195
        %s1777 = scalar_select %p1776, %s1775, 195
        %s1778 = smul.addr %s1777, 4
        %s1779 = scalar_lea.vmem %s3, %s1778
        %s1780 = smul.u32 98, %s14
        %v1782 = vld [vmem:[%s1753] sm:$0xf]
        %v1783 = vld [vmem:[%s1753 + $0x4] sm:$0xf]
        %v1784 = vld [vmem:[%s1753 + $0x8] sm:$0xf]
        %v1785 = vld [vmem:[%s1753 + $0xc] sm:$0xf]
        %v1786 = vld [vmem:[%s1753 + $0x10] sm:$0xf]
        %v1787 = vld [vmem:[%s1753 + $0x14] sm:$0xf]
        %v1788 = vld [vmem:[%s1753 + $0x18] sm:$0xf]
        %v1789 = vld [vmem:[%s1753 + $0x1c] sm:$0xf]
        %v1790 = vld [vmem:[%s1753 + $0x20] sm:$0xf]
        %v1791 = vld [vmem:[%s1753 + $0x24] sm:$0xf]
        %v1792 = vld [vmem:[%s1753 + $0x28] sm:$0xf]
        %v1793 = vld [vmem:[%s1753 + $0x2c] sm:$0xf]
        %v1794 = vld [vmem:[%s1753 + $0x30] sm:$0xf]
        %v1795 = vld [vmem:[%s1753 + $0x34] sm:$0xf]
        %v1796 = vld [vmem:[%s1753 + $0x38] sm:$0xf]
        %v1797 = vld [vmem:[%s1753 + $0x3c] sm:$0xf]
        %v1798 = vld [vmem:[%s1753 + $0x40] sm:$0xf]
        %v1799 = vld [vmem:[%s1753 + $0x44] sm:$0xf]
        %v1800 = vld [vmem:[%s1753 + $0x48] sm:$0xf]
        %v1801 = vld [vmem:[%s1753 + $0x4c] sm:$0xf]
        %v1802 = vld [vmem:[%s1753 + $0x50] sm:$0xf]
        %v1803 = vld [vmem:[%s1753 + $0x54] sm:$0xf]
        %v1804 = vld [vmem:[%s1753 + $0x58] sm:$0xf]
        %v1805 = vld [vmem:[%s1753 + $0x5c] sm:$0xf]
        %v1806 = vld [vmem:[%s1753 + $0x60] sm:$0xf]
        %v1807 = vld [vmem:[%s1753 + $0x64] sm:$0xf]
        %v1808 = vld [vmem:[%s1753 + $0x68] sm:$0xf]
        %v1809 = vld [vmem:[%s1753 + $0x6c] sm:$0xf]
        %v1810 = vld [vmem:[%s1753 + $0x70] sm:$0xf]
        %v1811 = vld [vmem:[%s1753 + $0x74] sm:$0xf]
        %v1812 = vld [vmem:[%s1753 + $0x78] sm:$0xf]
        %v1813 = vld [vmem:[%s1753 + $0x7c] sm:$0xf]
        %v1814 = vld [vmem:[%s1753 + $0x80] sm:$0xf]
        %v1815 = vld [vmem:[%s1753 + $0x84] sm:$0xf]
        %v1816 = vld [vmem:[%s1753 + $0x88] sm:$0xf]
        %v1817 = vld [vmem:[%s1753 + $0x8c] sm:$0xf]
        %v1818 = vld [vmem:[%s1753 + $0x90] sm:$0xf]
        %v1819 = vld [vmem:[%s1753 + $0x94] sm:$0xf]
        %v1820 = vld [vmem:[%s1753 + $0x98] sm:$0xf]
        %v1821 = vld [vmem:[%s1753 + $0x9c] sm:$0xf]
        %v1822 = vld [vmem:[%s1753 + $0xa0] sm:$0xf]
        %v1823 = vld [vmem:[%s1753 + $0xa4] sm:$0xf]
        %v1824 = vld [vmem:[%s1753 + $0xa8] sm:$0xf]
        %v1825 = vld [vmem:[%s1753 + $0xac] sm:$0xf]
        %v1826 = vld [vmem:[%s1753 + $0xb0] sm:$0xf]
        %v1827 = vld [vmem:[%s1753 + $0xb4] sm:$0xf]
        %v1828 = vld [vmem:[%s1753 + $0xb8] sm:$0xf]
        %v1829 = vld [vmem:[%s1753 + $0xbc] sm:$0xf]
        %v1830 = vld [vmem:[%s1753 + $0xc0] sm:$0xf]
        %v1831 = vld [vmem:[%s1753 + $0xc4] sm:$0xf]
        %v1832 = vld [vmem:[%s1753 + $0xc8] sm:$0xf]
        %v1833 = vld [vmem:[%s1753 + $0xcc] sm:$0xf]
        %v1834 = vld [vmem:[%s1753 + $0xd0] sm:$0xf]
        %v1835 = vld [vmem:[%s1753 + $0xd4] sm:$0xf]
        %v1836 = vld [vmem:[%s1753 + $0xd8] sm:$0xf]
        %v1837 = vld [vmem:[%s1753 + $0xdc] sm:$0xf]
        %v1838 = vld [vmem:[%s1753 + $0xe0] sm:$0xf]
        %v1839 = vld [vmem:[%s1753 + $0xe4] sm:$0xf]
        %v1840 = vld [vmem:[%s1753 + $0xe8] sm:$0xf]
        %v1841 = vld [vmem:[%s1753 + $0xec] sm:$0xf]
        %v1842 = vld [vmem:[%s1753 + $0xf0] sm:$0xf]
        %v1843 = vld [vmem:[%s1753 + $0xf4] sm:$0xf]
        %v1844 = vld [vmem:[%s1753 + $0xf8] sm:$0xf]
        %v1845 = vld [vmem:[%s1753 + $0xfc] sm:$0xf]
        %v1846 = vld [vmem:[%s1753 + $0x100] sm:$0xf]
        %v1847 = vld [vmem:[%s1753 + $0x104] sm:$0xf]
        %v1848 = vld [vmem:[%s1753 + $0x108] sm:$0xf]
        %v1849 = vld [vmem:[%s1753 + $0x10c] sm:$0xf]
        %v1850 = vld [vmem:[%s1753 + $0x110] sm:$0xf]
        %v1851 = vld [vmem:[%s1753 + $0x114] sm:$0xf]
        %v1852 = vld [vmem:[%s1753 + $0x118] sm:$0xf]
        %v1853 = vld [vmem:[%s1753 + $0x11c] sm:$0xf]
        %v1854 = vld [vmem:[%s1753 + $0x120] sm:$0xf]
        %v1855 = vld [vmem:[%s1753 + $0x124] sm:$0xf]
        %v1856 = vld [vmem:[%s1753 + $0x128] sm:$0xf]
        %v1857 = vld [vmem:[%s1753 + $0x12c] sm:$0xf]
        %v1858 = vld [vmem:[%s1753 + $0x130] sm:$0xf]
        %v1859 = vld [vmem:[%s1753 + $0x134] sm:$0xf]
        %v1860 = vld [vmem:[%s1753 + $0x138] sm:$0xf]
        %v1861 = vld [vmem:[%s1753 + $0x13c] sm:$0xf]
        %v1862 = vld [vmem:[%s1753 + $0x140] sm:$0xf]
        %v1863 = vld [vmem:[%s1753 + $0x144] sm:$0xf]
        %v1864 = vld [vmem:[%s1753 + $0x148] sm:$0xf]
        %v1865 = vld [vmem:[%s1753 + $0x14c] sm:$0xf]
        %v1866 = vld [vmem:[%s1753 + $0x150] sm:$0xf]
        %v1867 = vld [vmem:[%s1753 + $0x154] sm:$0xf]
        %v1868 = vld [vmem:[%s1753 + $0x158] sm:$0xf]
        %v1869 = vld [vmem:[%s1753 + $0x15c] sm:$0xf]
        %v1870 = vld [vmem:[%s1753 + $0x160] sm:$0xf]
        %v1871 = vld [vmem:[%s1753 + $0x164] sm:$0xf]
        %v1872 = vld [vmem:[%s1753 + $0x168] sm:$0xf]
        %v1873 = vld [vmem:[%s1753 + $0x16c] sm:$0xf]
        %v1874 = vld [vmem:[%s1753 + $0x170] sm:$0xf]
        %v1875 = vld [vmem:[%s1753 + $0x174] sm:$0xf]
        %v1876 = vld [vmem:[%s1753 + $0x178] sm:$0xf]
        %v1877 = vld [vmem:[%s1753 + $0x17c] sm:$0xf]
        %v1878 = vld [vmem:[%s1753 + $0x180] sm:$0xf]
        %v1879 = vld [vmem:[%s1753 + $0x184] sm:$0xf]
        %v1880 = vld [vmem:[%s1753 + $0x188] sm:$0xf]
        %v1881 = vld [vmem:[%s1753 + $0x18c] sm:$0xf]
        %v1882 = vld [vmem:[%s1753 + $0x190] sm:$0xf]
        %v1883 = vld [vmem:[%s1753 + $0x194] sm:$0xf]
        %v1884 = vld [vmem:[%s1753 + $0x198] sm:$0xf]
        %v1885 = vld [vmem:[%s1753 + $0x19c] sm:$0xf]
        %v1886 = vld [vmem:[%s1753 + $0x1a0] sm:$0xf]
        %v1887 = vld [vmem:[%s1753 + $0x1a4] sm:$0xf]
        %v1888 = vld [vmem:[%s1753 + $0x1a8] sm:$0xf]
        %v1889 = vld [vmem:[%s1753 + $0x1ac] sm:$0xf]
        %v1890 = vld [vmem:[%s1753 + $0x1b0] sm:$0xf]
        %v1891 = vld [vmem:[%s1753 + $0x1b4] sm:$0xf]
        %v1892 = vld [vmem:[%s1753 + $0x1b8] sm:$0xf]
        %v1893 = vld [vmem:[%s1753 + $0x1bc] sm:$0xf]
        %v1894 = vld [vmem:[%s1753 + $0x1c0] sm:$0xf]
        %v1895 = vld [vmem:[%s1753 + $0x1c4] sm:$0xf]
        %v1896 = vld [vmem:[%s1753 + $0x1c8] sm:$0xf]
        %v1897 = vld [vmem:[%s1753 + $0x1cc] sm:$0xf]
        %v1898 = vld [vmem:[%s1753 + $0x1d0] sm:$0xf]
        %v1899 = vld [vmem:[%s1753 + $0x1d4] sm:$0xf]
        %v1900 = vld [vmem:[%s1753 + $0x1d8] sm:$0xf]
        %v1901 = vld [vmem:[%s1753 + $0x1dc] sm:$0xf]
        %v1902 = vld [vmem:[%s1753 + $0x1e0] sm:$0xf]
        %v1903 = vld [vmem:[%s1753 + $0x1e4] sm:$0xf]
        %v1904 = vld [vmem:[%s1753 + $0x1e8] sm:$0xf]
        %v1905 = vld [vmem:[%s1753 + $0x1ec] sm:$0xf]
        %v1906 = vld [vmem:[%s1753 + $0x1f0] sm:$0xf]
        %v1907 = vld [vmem:[%s1753 + $0x1f4] sm:$0xf]
        %v1908 = vld [vmem:[%s1753 + $0x1f8] sm:$0xf]
        %v1909 = vld [vmem:[%s1753 + $0x1fc] sm:$0xf]
        %v1910 = vld [vmem:[%s1753 + $0x200] sm:$0xf]
        %v1911 = vld [vmem:[%s1753 + $0x204] sm:$0xf]
        %v1912 = vld [vmem:[%s1753 + $0x208] sm:$0xf]
        %v1913 = vld [vmem:[%s1753 + $0x20c] sm:$0xf]
        %v1914 = vld [vmem:[%s1753 + $0x210] sm:$0xf]
        %v1915 = vld [vmem:[%s1753 + $0x214] sm:$0xf]
        %v1916 = vld [vmem:[%s1753 + $0x218] sm:$0xf]
        %v1917 = vld [vmem:[%s1753 + $0x21c] sm:$0xf]
        %v1918 = vld [vmem:[%s1753 + $0x220] sm:$0xf]
        %v1919 = vld [vmem:[%s1753 + $0x224] sm:$0xf]
        %v1920 = vld [vmem:[%s1753 + $0x228] sm:$0xf]
        %v1921 = vld [vmem:[%s1753 + $0x22c] sm:$0xf]
        %v1922 = vld [vmem:[%s1753 + $0x230] sm:$0xf]
        %v1923 = vld [vmem:[%s1753 + $0x234] sm:$0xf]
        %v1924 = vld [vmem:[%s1753 + $0x238] sm:$0xf]
        %v1925 = vld [vmem:[%s1753 + $0x23c] sm:$0xf]
        %v1926 = vld [vmem:[%s1753 + $0x240] sm:$0xf]
        %v1927 = vld [vmem:[%s1753 + $0x244] sm:$0xf]
        %v1928 = vld [vmem:[%s1753 + $0x248] sm:$0xf]
        %v1929 = vld [vmem:[%s1753 + $0x24c] sm:$0xf]
        %v1930 = vld [vmem:[%s1753 + $0x250] sm:$0xf]
        %v1931 = vld [vmem:[%s1753 + $0x254] sm:$0xf]
        %v1932 = vld [vmem:[%s1753 + $0x258] sm:$0xf]
        %v1933 = vld [vmem:[%s1753 + $0x25c] sm:$0xf]
        %v1934 = vld [vmem:[%s1753 + $0x260] sm:$0xf]
        %v1935 = vld [vmem:[%s1753 + $0x264] sm:$0xf]
        %v1936 = vld [vmem:[%s1753 + $0x268] sm:$0xf]
        %v1937 = vld [vmem:[%s1753 + $0x26c] sm:$0xf]
        %v1938 = vld [vmem:[%s1753 + $0x270] sm:$0xf]
        %v1939 = vld [vmem:[%s1753 + $0x274] sm:$0xf]
        %v1940 = vld [vmem:[%s1753 + $0x278] sm:$0xf]
        %v1941 = vld [vmem:[%s1753 + $0x27c] sm:$0xf]
        %v1942 = vld [vmem:[%s1753 + $0x280] sm:$0xf]
        %v1943 = vld [vmem:[%s1753 + $0x284] sm:$0xf]
        %v1944 = vld [vmem:[%s1753 + $0x288] sm:$0xf]
        %v1945 = vld [vmem:[%s1753 + $0x28c] sm:$0xf]
        %v1946 = vld [vmem:[%s1753 + $0x290] sm:$0xf]
        %v1947 = vld [vmem:[%s1753 + $0x294] sm:$0xf]
        %v1948 = vld [vmem:[%s1753 + $0x298] sm:$0xf]
        %v1949 = vld [vmem:[%s1753 + $0x29c] sm:$0xf]
        %v1950 = vld [vmem:[%s1753 + $0x2a0] sm:$0xf]
        %v1951 = vld [vmem:[%s1753 + $0x2a4] sm:$0xf]
        %v1952 = vld [vmem:[%s1753 + $0x2a8] sm:$0xf]
        %v1953 = vld [vmem:[%s1753 + $0x2ac] sm:$0xf]
        %v1954 = vld [vmem:[%s1753 + $0x2b0] sm:$0xf]
        %v1955 = vld [vmem:[%s1753 + $0x2b4] sm:$0xf]
        %v1956 = vld [vmem:[%s1753 + $0x2b8] sm:$0xf]
        %v1957 = vld [vmem:[%s1753 + $0x2bc] sm:$0xf]
        %v1958 = vld [vmem:[%s1753 + $0x2c0] sm:$0xf]
        %v1959 = vld [vmem:[%s1753 + $0x2c4] sm:$0xf]
        %v1960 = vld [vmem:[%s1753 + $0x2c8] sm:$0xf]
        %v1961 = vld [vmem:[%s1753 + $0x2cc] sm:$0xf]
        %v1962 = vld [vmem:[%s1753 + $0x2d0] sm:$0xf]
        %v1963 = vld [vmem:[%s1753 + $0x2d4] sm:$0xf]
        %v1964 = vld [vmem:[%s1753 + $0x2d8] sm:$0xf]
        %v1965 = vld [vmem:[%s1753 + $0x2dc] sm:$0xf]
        %v1966 = vld [vmem:[%s1753 + $0x2e0] sm:$0xf]
        %v1967 = vld [vmem:[%s1753 + $0x2e4] sm:$0xf]
        %v1968 = vld [vmem:[%s1753 + $0x2e8] sm:$0xf]
        %v1969 = vld [vmem:[%s1753 + $0x2ec] sm:$0xf]
        %v1970 = vld [vmem:[%s1753 + $0x2f0] sm:$0xf]
        %v1971 = vld [vmem:[%s1753 + $0x2f4] sm:$0xf]
        %v1972 = vld [vmem:[%s1753 + $0x2f8] sm:$0xf]
        %v1973 = vld [vmem:[%s1753 + $0x2fc] sm:$0xf]
        %v1974 = vld [vmem:[%s1753 + $0x300] sm:$0xf]
        %v1975 = vld [vmem:[%s1753 + $0x304] sm:$0xf]
        %v1976 = vld [vmem:[%s1753 + $0x308] sm:$0xf]
        %v1977 = vld [vmem:[%s1753 + $0x30c] sm:$0xf]
        %v1978 = vld [vmem:[%s1753 + $0x310] sm:$0xf]
        %v1979 = vld [vmem:[%s1753 + $0x314] sm:$0xf]
        %v1980 = vld [vmem:[%s1753 + $0x318] sm:$0xf]
        %v1981 = vld [vmem:[%s1753 + $0x31c] sm:$0xf]
        %v1982 = vld [vmem:[%s1753 + $0x320] sm:$0xf]
        %v1983 = vld [vmem:[%s1753 + $0x324] sm:$0xf]
        %v1984 = vld [vmem:[%s1753 + $0x328] sm:$0xf]
        %v1985 = vld [vmem:[%s1753 + $0x32c] sm:$0xf]
        %v1986 = vld [vmem:[%s1753 + $0x330] sm:$0xf]
        %v1987 = vld [vmem:[%s1753 + $0x334] sm:$0xf]
        %v1988 = vld [vmem:[%s1753 + $0x338] sm:$0xf]
        %v1989 = vld [vmem:[%s1753 + $0x33c] sm:$0xf]
        %v1990 = vld [vmem:[%s1753 + $0x340] sm:$0xf]
        %v1991 = vld [vmem:[%s1753 + $0x344] sm:$0xf]
        %v1992 = vld [vmem:[%s1753 + $0x348] sm:$0xf]
        %v1993 = vld [vmem:[%s1753 + $0x34c] sm:$0xf]
        %v1994 = vld [vmem:[%s1753 + $0x350] sm:$0xf]
        %v1995 = vld [vmem:[%s1753 + $0x354] sm:$0xf]
        %v1996 = vld [vmem:[%s1753 + $0x358] sm:$0xf]
        %v1997 = vld [vmem:[%s1753 + $0x35c] sm:$0xf]
        %v1998 = vld [vmem:[%s1753 + $0x360] sm:$0xf]
        %v1999 = vld [vmem:[%s1753 + $0x364] sm:$0xf]
        %v2000 = vld [vmem:[%s1753 + $0x368] sm:$0xf]
        %v2001 = vld [vmem:[%s1753 + $0x36c] sm:$0xf]
        %v2002 = vld [vmem:[%s1753 + $0x370] sm:$0xf]
        %v2003 = vld [vmem:[%s1753 + $0x374] sm:$0xf]
        %v2004 = vld [vmem:[%s1753 + $0x378] sm:$0xf]
        %v2005 = vld [vmem:[%s1753 + $0x37c] sm:$0xf]
        %v2006 = vld [vmem:[%s1753 + $0x380] sm:$0xf]
        %v2007 = vld [vmem:[%s1753 + $0x384] sm:$0xf]
        %v2008 = vld [vmem:[%s1753 + $0x388] sm:$0xf]
        %v2009 = vld [vmem:[%s1753 + $0x38c] sm:$0xf]
        %v2010 = vld [vmem:[%s1753 + $0x390] sm:$0xf]
        %v2011 = vld [vmem:[%s1753 + $0x394] sm:$0xf]
        %v2012 = vld [vmem:[%s1753 + $0x398] sm:$0xf]
        %v2013 = vld [vmem:[%s1753 + $0x39c] sm:$0xf]
        %v2014 = vld [vmem:[%s1753 + $0x3a0] sm:$0xf]
        %v2015 = vld [vmem:[%s1753 + $0x3a4] sm:$0xf]
        %v2016 = vld [vmem:[%s1753 + $0x3a8] sm:$0xf]
        %v2017 = vld [vmem:[%s1753 + $0x3ac] sm:$0xf]
        %v2018 = vld [vmem:[%s1753 + $0x3b0] sm:$0xf]
        %v2019 = vld [vmem:[%s1753 + $0x3b4] sm:$0xf]
        %v2020 = vld [vmem:[%s1753 + $0x3b8] sm:$0xf]
        %v2021 = vld [vmem:[%s1753 + $0x3bc] sm:$0xf]
        %v2022 = vld [vmem:[%s1753 + $0x3c0] sm:$0xf]
        %v2023 = vld [vmem:[%s1753 + $0x3c4] sm:$0xf]
        %v2024 = vld [vmem:[%s1753 + $0x3c8] sm:$0xf]
        %v2025 = vld [vmem:[%s1753 + $0x3cc] sm:$0xf]
        %v2026 = vld [vmem:[%s1753 + $0x3d0] sm:$0xf]
        %v2027 = vld [vmem:[%s1753 + $0x3d4] sm:$0xf]
        %v2028 = vld [vmem:[%s1753 + $0x3d8] sm:$0xf]
        %v2029 = vld [vmem:[%s1753 + $0x3dc] sm:$0xf]
        %v2030 = vld [vmem:[%s1753 + $0x3e0] sm:$0xf]
        %v2031 = vld [vmem:[%s1753 + $0x3e4] sm:$0xf]
        %v2032 = vld [vmem:[%s1753 + $0x3e8] sm:$0xf]
        %v2033 = vld [vmem:[%s1753 + $0x3ec] sm:$0xf]
        %v2034 = vld [vmem:[%s1753 + $0x3f0] sm:$0xf]
        %v2035 = vld [vmem:[%s1753 + $0x3f4] sm:$0xf]
        %v2036 = vld [vmem:[%s1753 + $0x3f8] sm:$0xf]
        %v2037 = vld [vmem:[%s1753 + $0x3fc] sm:$0xf]
        %v2038 = vld [vmem:[%s1753 + $0x400] sm:$0xf]
        %v2039 = vld [vmem:[%s1753 + $0x404] sm:$0xf]
        %v2040 = vld [vmem:[%s1753 + $0x408] sm:$0xf]
        %v2041 = vld [vmem:[%s1753 + $0x40c] sm:$0xf]
        %v2042 = vld [vmem:[%s1753 + $0x410] sm:$0xf]
        %v2043 = vld [vmem:[%s1753 + $0x414] sm:$0xf]
        %v2044 = vld [vmem:[%s1753 + $0x418] sm:$0xf]
        %v2045 = vld [vmem:[%s1753 + $0x41c] sm:$0xf]
        %v2046 = vld [vmem:[%s1753 + $0x420] sm:$0xf]
        %v2047 = vld [vmem:[%s1753 + $0x424] sm:$0xf]
        %v2048 = vld [vmem:[%s1753 + $0x428] sm:$0xf]
        %v2049 = vld [vmem:[%s1753 + $0x42c] sm:$0xf]
        %v2050 = vld [vmem:[%s1753 + $0x430] sm:$0xf]
        %v2051 = vld [vmem:[%s1753 + $0x434] sm:$0xf]
        %v2052 = vld [vmem:[%s1753 + $0x438] sm:$0xf]
        %v2053 = vld [vmem:[%s1753 + $0x43c] sm:$0xf]
        %v2054 = vld [vmem:[%s1753 + $0x440] sm:$0xf]
        %v2055 = vld [vmem:[%s1753 + $0x444] sm:$0xf]
        %v2056 = vld [vmem:[%s1753 + $0x448] sm:$0xf]
        %v2057 = vld [vmem:[%s1753 + $0x44c] sm:$0xf]
        %v2058 = vld [vmem:[%s1753 + $0x450] sm:$0xf]
        %v2059 = vld [vmem:[%s1753 + $0x454] sm:$0xf]
        %v2060 = vld [vmem:[%s1753 + $0x458] sm:$0xf]
        %v2061 = vld [vmem:[%s1753 + $0x45c] sm:$0xf]
        %v2062 = vld [vmem:[%s1753 + $0x460] sm:$0xf]
        %v2063 = vld [vmem:[%s1753 + $0x464] sm:$0xf]
        %v2064 = vld [vmem:[%s1753 + $0x468] sm:$0xf]
        %v2065 = vld [vmem:[%s1753 + $0x46c] sm:$0xf]
        %v2066 = vld [vmem:[%s1753 + $0x470] sm:$0xf]
        %v2067 = vld [vmem:[%s1753 + $0x474] sm:$0xf]
        %v2068 = vld [vmem:[%s1753 + $0x478] sm:$0xf]
        %v2069 = vld [vmem:[%s1753 + $0x47c] sm:$0xf]
        %v2070 = vld [vmem:[%s1753 + $0x480] sm:$0xf]
        %v2071 = vld [vmem:[%s1753 + $0x484] sm:$0xf]
        %v2072 = vld [vmem:[%s1753 + $0x488] sm:$0xf]
        %v2073 = vld [vmem:[%s1753 + $0x48c] sm:$0xf]
        %v2074 = vld [vmem:[%s1753 + $0x490] sm:$0xf]
        %v2075 = vld [vmem:[%s1753 + $0x494] sm:$0xf]
        %v2076 = vld [vmem:[%s1753 + $0x498] sm:$0xf]
        %v2077 = vld [vmem:[%s1753 + $0x49c] sm:$0xf]
        %v2078 = vld [vmem:[%s1753 + $0x4a0] sm:$0xf]
        %v2079 = vld [vmem:[%s1753 + $0x4a4] sm:$0xf]
        %v2080 = vld [vmem:[%s1753 + $0x4a8] sm:$0xf]
        %v2081 = vld [vmem:[%s1753 + $0x4ac] sm:$0xf]
        %v2082 = vld [vmem:[%s1753 + $0x4b0] sm:$0xf]
        %v2083 = vld [vmem:[%s1753 + $0x4b4] sm:$0xf]
        %v2084 = vld [vmem:[%s1753 + $0x4b8] sm:$0xf]
        %v2085 = vld [vmem:[%s1753 + $0x4bc] sm:$0xf]
        %v2086 = vld [vmem:[%s1753 + $0x4c0] sm:$0xf]
        %v2087 = vld [vmem:[%s1753 + $0x4c4] sm:$0xf]
        %v2088 = vld [vmem:[%s1753 + $0x4c8] sm:$0xf]
        %v2089 = vld [vmem:[%s1753 + $0x4cc] sm:$0xf]
        %v2090 = vld [vmem:[%s1753 + $0x4d0] sm:$0xf]
        %v2091 = vld [vmem:[%s1753 + $0x4d4] sm:$0xf]
        %v2092 = vld [vmem:[%s1753 + $0x4d8] sm:$0xf]
        %v2093 = vld [vmem:[%s1753 + $0x4dc] sm:$0xf]
        %v2094 = vld [vmem:[%s1753 + $0x4e0] sm:$0xf]
        %v2095 = vld [vmem:[%s1753 + $0x4e4] sm:$0xf]
        %v2096 = vld [vmem:[%s1753 + $0x4e8] sm:$0xf]
        %v2097 = vld [vmem:[%s1753 + $0x4ec] sm:$0xf]
        %v2098 = vld [vmem:[%s1753 + $0x4f0] sm:$0xf]
        %v2099 = vld [vmem:[%s1753 + $0x4f4] sm:$0xf]
        %v2100 = vld [vmem:[%s1753 + $0x4f8] sm:$0xf]
        %v2101 = vld [vmem:[%s1753 + $0x4fc] sm:$0xf]
        %v2102 = vld [vmem:[%s1753 + $0x500] sm:$0xf]
        %v2103 = vld [vmem:[%s1753 + $0x504] sm:$0xf]
        %v2104 = vld [vmem:[%s1753 + $0x508] sm:$0xf]
        %v2105 = vld [vmem:[%s1753 + $0x50c] sm:$0xf]
        %v2106 = vld [vmem:[%s1753 + $0x510] sm:$0xf]
        %v2107 = vld [vmem:[%s1753 + $0x514] sm:$0xf]
        %v2108 = vld [vmem:[%s1753 + $0x518] sm:$0xf]
        %v2109 = vld [vmem:[%s1753 + $0x51c] sm:$0xf]
        %v2110 = vld [vmem:[%s1753 + $0x520] sm:$0xf]
        %v2111 = vld [vmem:[%s1753 + $0x524] sm:$0xf]
        %v2112 = vld [vmem:[%s1753 + $0x528] sm:$0xf]
        %v2113 = vld [vmem:[%s1753 + $0x52c] sm:$0xf]
        %v2114 = vld [vmem:[%s1753 + $0x530] sm:$0xf]
        %v2115 = vld [vmem:[%s1753 + $0x534] sm:$0xf]
        %v2116 = vld [vmem:[%s1753 + $0x538] sm:$0xf]
        %v2117 = vld [vmem:[%s1753 + $0x53c] sm:$0xf]
        %v2118 = vld [vmem:[%s1753 + $0x540] sm:$0xf]
        %v2119 = vld [vmem:[%s1753 + $0x544] sm:$0xf]
        %v2120 = vld [vmem:[%s1753 + $0x548] sm:$0xf]
        %v2121 = vld [vmem:[%s1753 + $0x54c] sm:$0xf]
        %v2122 = vld [vmem:[%s1753 + $0x550] sm:$0xf]
        %v2123 = vld [vmem:[%s1753 + $0x554] sm:$0xf]
        %v2124 = vld [vmem:[%s1753 + $0x558] sm:$0xf]
        %v2125 = vld [vmem:[%s1753 + $0x55c] sm:$0xf]
        %v2126 = vld [vmem:[%s1753 + $0x560] sm:$0xf]
        %v2127 = vld [vmem:[%s1753 + $0x564] sm:$0xf]
        %v2128 = vld [vmem:[%s1753 + $0x568] sm:$0xf]
        %v2129 = vld [vmem:[%s1753 + $0x56c] sm:$0xf]
        %v2130 = vld [vmem:[%s1753 + $0x570] sm:$0xf]
        %v2131 = vld [vmem:[%s1753 + $0x574] sm:$0xf]
        %v2132 = vld [vmem:[%s1753 + $0x578] sm:$0xf]
        %v2133 = vld [vmem:[%s1753 + $0x57c] sm:$0xf]
        %v2134 = vld [vmem:[%s1753 + $0x580] sm:$0xf]
        %v2135 = vld [vmem:[%s1753 + $0x584] sm:$0xf]
        %v2136 = vld [vmem:[%s1753 + $0x588] sm:$0xf]
        %v2137 = vld [vmem:[%s1753 + $0x58c] sm:$0xf]
        %v2138 = vld [vmem:[%s1753 + $0x590] sm:$0xf]
        %v2139 = vld [vmem:[%s1753 + $0x594] sm:$0xf]
        %v2140 = vld [vmem:[%s1753 + $0x598] sm:$0xf]
        %v2141 = vld [vmem:[%s1753 + $0x59c] sm:$0xf]
        %v2142 = vld [vmem:[%s1753 + $0x5a0] sm:$0xf]
        %v2143 = vld [vmem:[%s1753 + $0x5a4] sm:$0xf]
        %v2144 = vld [vmem:[%s1753 + $0x5a8] sm:$0xf]
        %v2145 = vld [vmem:[%s1753 + $0x5ac] sm:$0xf]
        %v2146 = vld [vmem:[%s1753 + $0x5b0] sm:$0xf]
        %v2147 = vld [vmem:[%s1753 + $0x5b4] sm:$0xf]
        %v2148 = vld [vmem:[%s1753 + $0x5b8] sm:$0xf]
        %v2149 = vld [vmem:[%s1753 + $0x5bc] sm:$0xf]
        %v2150 = vld [vmem:[%s1753 + $0x5c0] sm:$0xf]
        %v2151 = vld [vmem:[%s1753 + $0x5c4] sm:$0xf]
        %v2152 = vld [vmem:[%s1753 + $0x5c8] sm:$0xf]
        %v2153 = vld [vmem:[%s1753 + $0x5cc] sm:$0xf]
        %v2154 = vld [vmem:[%s1753 + $0x5d0] sm:$0xf]
        %v2155 = vld [vmem:[%s1753 + $0x5d4] sm:$0xf]
        %v2156 = vld [vmem:[%s1753 + $0x5d8] sm:$0xf]
        %v2157 = vld [vmem:[%s1753 + $0x5dc] sm:$0xf]
        %v2158 = vld [vmem:[%s1753 + $0x5e0] sm:$0xf]
        %v2159 = vld [vmem:[%s1753 + $0x5e4] sm:$0xf]
        %v2160 = vld [vmem:[%s1753 + $0x5e8] sm:$0xf]
        %v2161 = vld [vmem:[%s1753 + $0x5ec] sm:$0xf]
        %v2162 = vld [vmem:[%s1753 + $0x5f0] sm:$0xf]
        %v2163 = vld [vmem:[%s1753 + $0x5f4] sm:$0xf]
        %v2164 = vld [vmem:[%s1753 + $0x5f8] sm:$0xf]
        %v2165 = vld [vmem:[%s1753 + $0x5fc] sm:$0xf]
        %v2166 = vld [vmem:[%s1753 + $0x600] sm:$0xf]
        %v2167 = vld [vmem:[%s1753 + $0x604] sm:$0xf]
        %v2168 = vld [vmem:[%s1753 + $0x608] sm:$0xf]
        %v2169 = vld [vmem:[%s1753 + $0x60c] sm:$0xf]
        %v2170 = vld [vmem:[%s1753 + $0x610] sm:$0xf]
        %v2171 = vld [vmem:[%s1753 + $0x614] sm:$0xf]
        %v2172 = vld [vmem:[%s1753 + $0x618] sm:$0xf]
        %v2173 = vld [vmem:[%s1753 + $0x61c] sm:$0xf]
        %v2174 = vld [vmem:[%s1] sm:$0xf]
        %v2175 = vld [vmem:[%s1 + $0x4] sm:$0x1]
        %v2568 = vunpack.c.l.b16 %v1782
        %v2569 = vunpack.c.l.b16 %v1783
        %v2570 = vunpack.c.l.b16 %v1784
        %v2571 = vunpack.c.l.b16 %v1785
        %v2572 = vunpack.c.l.b16 %v1786
        %v2573 = vunpack.c.l.b16 %v1787
        %v2574 = vunpack.c.l.b16 %v1788
        %v2575 = vunpack.c.l.b16 %v1789
        %v2576 = vunpack.c.l.b16 %v1790
        %v2577 = vunpack.c.l.b16 %v1791
        %v2578 = vunpack.c.l.b16 %v1792
        %v2579 = vunpack.c.l.b16 %v1793
        %v2580 = vunpack.c.l.b16 %v1794
        %v2581 = vunpack.c.l.b16 %v1795
        %v2582 = vunpack.c.l.b16 %v1796
        %v2583 = vunpack.c.l.b16 %v1797
        %v2584 = vunpack.c.l.b16 %v1798
        %v2585 = vunpack.c.l.b16 %v1799
        %v2586 = vunpack.c.l.b16 %v1800
        %v2587 = vunpack.c.l.b16 %v1801
        %v2588 = vunpack.c.l.b16 %v1802
        %v2589 = vunpack.c.l.b16 %v1803
        %v2590 = vunpack.c.l.b16 %v1804
        %v2591 = vunpack.c.l.b16 %v1805
        %v2592 = vunpack.c.l.b16 %v1806
        %v2593 = vunpack.c.l.b16 %v1807
        %v2594 = vunpack.c.l.b16 %v1808
        %v2595 = vunpack.c.l.b16 %v1809
        %v2596 = vunpack.c.l.b16 %v1810
        %v2597 = vunpack.c.l.b16 %v1811
        %v2598 = vunpack.c.l.b16 %v1812
        %v2599 = vunpack.c.l.b16 %v1813
        %v2600 = vunpack.c.l.b16 %v1814
        %v2601 = vunpack.c.l.b16 %v1815
        %v2602 = vunpack.c.l.b16 %v1816
        %v2603 = vunpack.c.l.b16 %v1817
        %v2604 = vunpack.c.l.b16 %v1818
        %v2605 = vunpack.c.l.b16 %v1819
        %v2606 = vunpack.c.l.b16 %v1820
        %v2607 = vunpack.c.l.b16 %v1821
        %v2608 = vunpack.c.l.b16 %v1822
        %v2609 = vunpack.c.l.b16 %v1823
        %v2610 = vunpack.c.l.b16 %v1824
        %v2611 = vunpack.c.l.b16 %v1825
        %v2612 = vunpack.c.l.b16 %v1826
        %v2613 = vunpack.c.l.b16 %v1827
        %v2614 = vunpack.c.l.b16 %v1828
        %v2615 = vunpack.c.l.b16 %v1829
        %v2616 = vunpack.c.l.b16 %v1830
        %v2617 = vunpack.c.l.b16 %v1831
        %v2618 = vunpack.c.l.b16 %v1832
        %v2619 = vunpack.c.l.b16 %v1833
        %v2620 = vunpack.c.l.b16 %v1834
        %v2621 = vunpack.c.l.b16 %v1835
        %v2622 = vunpack.c.l.b16 %v1836
        %v2623 = vunpack.c.l.b16 %v1837
        %v2624 = vunpack.c.l.b16 %v1838
        %v2625 = vunpack.c.l.b16 %v1839
        %v2626 = vunpack.c.l.b16 %v1840
        %v2627 = vunpack.c.l.b16 %v1841
        %v2628 = vunpack.c.l.b16 %v1842
        %v2629 = vunpack.c.l.b16 %v1843
        %v2630 = vunpack.c.l.b16 %v1844
        %v2631 = vunpack.c.l.b16 %v1845
        %v2632 = vunpack.c.l.b16 %v1846
        %v2633 = vunpack.c.l.b16 %v1847
        %v2634 = vunpack.c.l.b16 %v1848
        %v2635 = vunpack.c.l.b16 %v1849
        %v2636 = vunpack.c.l.b16 %v1850
        %v2637 = vunpack.c.l.b16 %v1851
        %v2638 = vunpack.c.l.b16 %v1852
        %v2639 = vunpack.c.l.b16 %v1853
        %v2640 = vunpack.c.l.b16 %v1854
        %v2641 = vunpack.c.l.b16 %v1855
        %v2642 = vunpack.c.l.b16 %v1856
        %v2643 = vunpack.c.l.b16 %v1857
        %v2644 = vunpack.c.l.b16 %v1858
        %v2645 = vunpack.c.l.b16 %v1859
        %v2646 = vunpack.c.l.b16 %v1860
        %v2647 = vunpack.c.l.b16 %v1861
        %v2648 = vunpack.c.l.b16 %v1862
        %v2649 = vunpack.c.l.b16 %v1863
        %v2650 = vunpack.c.l.b16 %v1864
        %v2651 = vunpack.c.l.b16 %v1865
        %v2652 = vunpack.c.l.b16 %v1866
        %v2653 = vunpack.c.l.b16 %v1867
        %v2654 = vunpack.c.l.b16 %v1868
        %v2655 = vunpack.c.l.b16 %v1869
        %v2656 = vunpack.c.l.b16 %v1870
        %v2657 = vunpack.c.l.b16 %v1871
        %v2658 = vunpack.c.l.b16 %v1872
        %v2659 = vunpack.c.l.b16 %v1873
        %v2660 = vunpack.c.l.b16 %v1874
        %v2661 = vunpack.c.l.b16 %v1875
        %v2662 = vunpack.c.l.b16 %v1876
        %v2663 = vunpack.c.l.b16 %v1877
        %v2664 = vunpack.c.l.b16 %v1878
        %v2665 = vunpack.c.l.b16 %v1879
        %v2666 = vunpack.c.l.b16 %v1880
        %v2667 = vunpack.c.l.b16 %v1881
        %v2668 = vunpack.c.l.b16 %v1882
        %v2669 = vunpack.c.l.b16 %v1883
        %v2670 = vunpack.c.l.b16 %v1884
        %v2671 = vunpack.c.l.b16 %v1885
        %v2672 = vunpack.c.l.b16 %v1886
        %v2673 = vunpack.c.l.b16 %v1887
        %v2674 = vunpack.c.l.b16 %v1888
        %v2675 = vunpack.c.l.b16 %v1889
        %v2676 = vunpack.c.l.b16 %v1890
        %v2677 = vunpack.c.l.b16 %v1891
        %v2678 = vunpack.c.l.b16 %v1892
        %v2679 = vunpack.c.l.b16 %v1893
        %v2680 = vunpack.c.l.b16 %v1894
        %v2681 = vunpack.c.l.b16 %v1895
        %v2682 = vunpack.c.l.b16 %v1896
        %v2683 = vunpack.c.l.b16 %v1897
        %v2684 = vunpack.c.l.b16 %v1898
        %v2685 = vunpack.c.l.b16 %v1899
        %v2686 = vunpack.c.l.b16 %v1900
        %v2687 = vunpack.c.l.b16 %v1901
        %v2688 = vunpack.c.l.b16 %v1902
        %v2689 = vunpack.c.l.b16 %v1903
        %v2690 = vunpack.c.l.b16 %v1904
        %v2691 = vunpack.c.l.b16 %v1905
        %v2692 = vunpack.c.l.b16 %v1906
        %v2693 = vunpack.c.l.b16 %v1907
        %v2694 = vunpack.c.l.b16 %v1908
        %v2695 = vunpack.c.l.b16 %v1909
        %v2696 = vunpack.c.l.b16 %v1910
        %v2697 = vunpack.c.l.b16 %v1911
        %v2698 = vunpack.c.l.b16 %v1912
        %v2699 = vunpack.c.l.b16 %v1913
        %v2700 = vunpack.c.l.b16 %v1914
        %v2701 = vunpack.c.l.b16 %v1915
        %v2702 = vunpack.c.l.b16 %v1916
        %v2703 = vunpack.c.l.b16 %v1917
        %v2704 = vunpack.c.l.b16 %v1918
        %v2705 = vunpack.c.l.b16 %v1919
        %v2706 = vunpack.c.l.b16 %v1920
        %v2707 = vunpack.c.l.b16 %v1921
        %v2708 = vunpack.c.l.b16 %v1922
        %v2709 = vunpack.c.l.b16 %v1923
        %v2710 = vunpack.c.l.b16 %v1924
        %v2711 = vunpack.c.l.b16 %v1925
        %v2712 = vunpack.c.l.b16 %v1926
        %v2713 = vunpack.c.l.b16 %v1927
        %v2714 = vunpack.c.l.b16 %v1928
        %v2715 = vunpack.c.l.b16 %v1929
        %v2716 = vunpack.c.l.b16 %v1930
        %v2717 = vunpack.c.l.b16 %v1931
        %v2718 = vunpack.c.l.b16 %v1932
        %v2719 = vunpack.c.l.b16 %v1933
        %v2720 = vunpack.c.l.b16 %v1934
        %v2721 = vunpack.c.l.b16 %v1935
        %v2722 = vunpack.c.l.b16 %v1936
        %v2723 = vunpack.c.l.b16 %v1937
        %v2724 = vunpack.c.l.b16 %v1938
        %v2725 = vunpack.c.l.b16 %v1939
        %v2726 = vunpack.c.l.b16 %v1940
        %v2727 = vunpack.c.l.b16 %v1941
        %v2728 = vunpack.c.l.b16 %v1942
        %v2729 = vunpack.c.l.b16 %v1943
        %v2730 = vunpack.c.l.b16 %v1944
        %v2731 = vunpack.c.l.b16 %v1945
        %v2732 = vunpack.c.l.b16 %v1946
        %v2733 = vunpack.c.l.b16 %v1947
        %v2734 = vunpack.c.l.b16 %v1948
        %v2735 = vunpack.c.l.b16 %v1949
        %v2736 = vunpack.c.l.b16 %v1950
        %v2737 = vunpack.c.l.b16 %v1951
        %v2738 = vunpack.c.l.b16 %v1952
        %v2739 = vunpack.c.l.b16 %v1953
        %v2740 = vunpack.c.l.b16 %v1954
        %v2741 = vunpack.c.l.b16 %v1955
        %v2742 = vunpack.c.l.b16 %v1956
        %v2743 = vunpack.c.l.b16 %v1957
        %v2744 = vunpack.c.l.b16 %v1958
        %v2745 = vunpack.c.l.b16 %v1959
        %v2746 = vunpack.c.l.b16 %v1960
        %v2747 = vunpack.c.l.b16 %v1961
        %v2748 = vunpack.c.l.b16 %v1962
        %v2749 = vunpack.c.l.b16 %v1963
        %v2750 = vunpack.c.l.b16 %v1964
        %v2751 = vunpack.c.l.b16 %v1965
        %v2752 = vunpack.c.l.b16 %v1966
        %v2753 = vunpack.c.l.b16 %v1967
        %v2754 = vunpack.c.l.b16 %v1968
        %v2755 = vunpack.c.l.b16 %v1969
        %v2756 = vunpack.c.l.b16 %v1970
        %v2757 = vunpack.c.l.b16 %v1971
        %v2758 = vunpack.c.l.b16 %v1972
        %v2759 = vunpack.c.l.b16 %v1973
        %v2760 = vunpack.c.l.b16 %v1974
        %v2761 = vunpack.c.l.b16 %v1975
        %v2762 = vunpack.c.l.b16 %v1976
        %v2763 = vunpack.c.l.b16 %v1977
        %v2764 = vunpack.c.l.b16 %v1978
        %v2765 = vunpack.c.l.b16 %v1979
        %v2766 = vunpack.c.l.b16 %v1980
        %v2767 = vunpack.c.l.b16 %v1981
        %v2768 = vunpack.c.l.b16 %v1982
        %v2769 = vunpack.c.l.b16 %v1983
        %v2770 = vunpack.c.l.b16 %v1984
        %v2771 = vunpack.c.l.b16 %v1985
        %v2772 = vunpack.c.l.b16 %v1986
        %v2773 = vunpack.c.l.b16 %v1987
        %v2774 = vunpack.c.l.b16 %v1988
        %v2775 = vunpack.c.l.b16 %v1989
        %v2776 = vunpack.c.l.b16 %v1990
        %v2777 = vunpack.c.l.b16 %v1991
        %v2778 = vunpack.c.l.b16 %v1992
        %v2779 = vunpack.c.l.b16 %v1993
        %v2780 = vunpack.c.l.b16 %v1994
        %v2781 = vunpack.c.l.b16 %v1995
        %v2782 = vunpack.c.l.b16 %v1996
        %v2783 = vunpack.c.l.b16 %v1997
        %v2784 = vunpack.c.l.b16 %v1998
        %v2785 = vunpack.c.l.b16 %v1999
        %v2786 = vunpack.c.l.b16 %v2000
        %v2787 = vunpack.c.l.b16 %v2001
        %v2788 = vunpack.c.l.b16 %v2002
        %v2789 = vunpack.c.l.b16 %v2003
        %v2790 = vunpack.c.l.b16 %v2004
        %v2791 = vunpack.c.l.b16 %v2005
        %v2792 = vunpack.c.l.b16 %v2006
        %v2793 = vunpack.c.l.b16 %v2007
        %v2794 = vunpack.c.l.b16 %v2008
        %v2795 = vunpack.c.l.b16 %v2009
        %v2796 = vunpack.c.l.b16 %v2010
        %v2797 = vunpack.c.l.b16 %v2011
        %v2798 = vunpack.c.l.b16 %v2012
        %v2799 = vunpack.c.l.b16 %v2013
        %v2800 = vunpack.c.l.b16 %v2014
        %v2801 = vunpack.c.l.b16 %v2015
        %v2802 = vunpack.c.l.b16 %v2016
        %v2803 = vunpack.c.l.b16 %v2017
        %v2804 = vunpack.c.l.b16 %v2018
        %v2805 = vunpack.c.l.b16 %v2019
        %v2806 = vunpack.c.l.b16 %v2020
        %v2807 = vunpack.c.l.b16 %v2021
        %v2808 = vunpack.c.l.b16 %v2022
        %v2809 = vunpack.c.l.b16 %v2023
        %v2810 = vunpack.c.l.b16 %v2024
        %v2811 = vunpack.c.l.b16 %v2025
        %v2812 = vunpack.c.l.b16 %v2026
        %v2813 = vunpack.c.l.b16 %v2027
        %v2814 = vunpack.c.l.b16 %v2028
        %v2815 = vunpack.c.l.b16 %v2029
        %v2816 = vunpack.c.l.b16 %v2030
        %v2817 = vunpack.c.l.b16 %v2031
        %v2818 = vunpack.c.l.b16 %v2032
        %v2819 = vunpack.c.l.b16 %v2033
        %v2820 = vunpack.c.l.b16 %v2034
        %v2821 = vunpack.c.l.b16 %v2035
        %v2822 = vunpack.c.l.b16 %v2036
        %v2823 = vunpack.c.l.b16 %v2037
        %v2824 = vunpack.c.l.b16 %v2038
        %v2825 = vunpack.c.l.b16 %v2039
        %v2826 = vunpack.c.l.b16 %v2040
        %v2827 = vunpack.c.l.b16 %v2041
        %v2828 = vunpack.c.l.b16 %v2042
        %v2829 = vunpack.c.l.b16 %v2043
        %v2830 = vunpack.c.l.b16 %v2044
        %v2831 = vunpack.c.l.b16 %v2045
        %v2832 = vunpack.c.l.b16 %v2046
        %v2833 = vunpack.c.l.b16 %v2047
        %v2834 = vunpack.c.l.b16 %v2048
        %v2835 = vunpack.c.l.b16 %v2049
        %v2836 = vunpack.c.l.b16 %v2050
        %v2837 = vunpack.c.l.b16 %v2051
        %v2838 = vunpack.c.l.b16 %v2052
        %v2839 = vunpack.c.l.b16 %v2053
        %v2840 = vunpack.c.l.b16 %v2054
        %v2841 = vunpack.c.l.b16 %v2055
        %v2842 = vunpack.c.l.b16 %v2056
        %v2843 = vunpack.c.l.b16 %v2057
        %v2844 = vunpack.c.l.b16 %v2058
        %v2845 = vunpack.c.l.b16 %v2059
        %v2846 = vunpack.c.l.b16 %v2060
        %v2847 = vunpack.c.l.b16 %v2061
        %v2848 = vunpack.c.l.b16 %v2062
        %v2849 = vunpack.c.l.b16 %v2063
        %v2850 = vunpack.c.l.b16 %v2064
        %v2851 = vunpack.c.l.b16 %v2065
        %v2852 = vunpack.c.l.b16 %v2066
        %v2853 = vunpack.c.l.b16 %v2067
        %v2854 = vunpack.c.l.b16 %v2068
        %v2855 = vunpack.c.l.b16 %v2069
        %v2856 = vunpack.c.l.b16 %v2070
        %v2857 = vunpack.c.l.b16 %v2071
        %v2858 = vunpack.c.l.b16 %v2072
        %v2859 = vunpack.c.l.b16 %v2073
        %v2860 = vunpack.c.l.b16 %v2074
        %v2861 = vunpack.c.l.b16 %v2075
        %v2862 = vunpack.c.l.b16 %v2076
        %v2863 = vunpack.c.l.b16 %v2077
        %v2864 = vunpack.c.l.b16 %v2078
        %v2865 = vunpack.c.l.b16 %v2079
        %v2866 = vunpack.c.l.b16 %v2080
        %v2867 = vunpack.c.l.b16 %v2081
        %v2868 = vunpack.c.l.b16 %v2082
        %v2869 = vunpack.c.l.b16 %v2083
        %v2870 = vunpack.c.l.b16 %v2084
        %v2871 = vunpack.c.l.b16 %v2085
        %v2872 = vunpack.c.l.b16 %v2086
        %v2873 = vunpack.c.l.b16 %v2087
        %v2874 = vunpack.c.l.b16 %v2088
        %v2875 = vunpack.c.l.b16 %v2089
        %v2876 = vunpack.c.l.b16 %v2090
        %v2877 = vunpack.c.l.b16 %v2091
        %v2878 = vunpack.c.l.b16 %v2092
        %v2879 = vunpack.c.l.b16 %v2093
        %v2880 = vunpack.c.l.b16 %v2094
        %v2881 = vunpack.c.l.b16 %v2095
        %v2882 = vunpack.c.l.b16 %v2096
        %v2883 = vunpack.c.l.b16 %v2097
        %v2884 = vunpack.c.l.b16 %v2098
        %v2885 = vunpack.c.l.b16 %v2099
        %v2886 = vunpack.c.l.b16 %v2100
        %v2887 = vunpack.c.l.b16 %v2101
        %v2888 = vunpack.c.l.b16 %v2102
        %v2889 = vunpack.c.l.b16 %v2103
        %v2890 = vunpack.c.l.b16 %v2104
        %v2891 = vunpack.c.l.b16 %v2105
        %v2892 = vunpack.c.l.b16 %v2106
        %v2893 = vunpack.c.l.b16 %v2107
        %v2894 = vunpack.c.l.b16 %v2108
        %v2895 = vunpack.c.l.b16 %v2109
        %v2896 = vunpack.c.l.b16 %v2110
        %v2897 = vunpack.c.l.b16 %v2111
        %v2898 = vunpack.c.l.b16 %v2112
        %v2899 = vunpack.c.l.b16 %v2113
        %v2900 = vunpack.c.l.b16 %v2114
        %v2901 = vunpack.c.l.b16 %v2115
        %v2902 = vunpack.c.l.b16 %v2116
        %v2903 = vunpack.c.l.b16 %v2117
        %v2904 = vunpack.c.l.b16 %v2118
        %v2905 = vunpack.c.l.b16 %v2119
        %v2906 = vunpack.c.l.b16 %v2120
        %v2907 = vunpack.c.l.b16 %v2121
        %v2908 = vunpack.c.l.b16 %v2122
        %v2909 = vunpack.c.l.b16 %v2123
        %v2910 = vunpack.c.l.b16 %v2124
        %v2911 = vunpack.c.l.b16 %v2125
        %v2912 = vunpack.c.l.b16 %v2126
        %v2913 = vunpack.c.l.b16 %v2127
        %v2914 = vunpack.c.l.b16 %v2128
        %v2915 = vunpack.c.l.b16 %v2129
        %v2916 = vunpack.c.l.b16 %v2130
        %v2917 = vunpack.c.l.b16 %v2131
        %v2918 = vunpack.c.l.b16 %v2132
        %v2919 = vunpack.c.l.b16 %v2133
        %v2920 = vunpack.c.l.b16 %v2134
        %v2921 = vunpack.c.l.b16 %v2135
        %v2922 = vunpack.c.l.b16 %v2136
        %v2923 = vunpack.c.l.b16 %v2137
        %v2924 = vunpack.c.l.b16 %v2138
        %v2925 = vunpack.c.l.b16 %v2139
        %v2926 = vunpack.c.l.b16 %v2140
        %v2927 = vunpack.c.l.b16 %v2141
        %v2928 = vunpack.c.l.b16 %v2142
        %v2929 = vunpack.c.l.b16 %v2143
        %v2930 = vunpack.c.l.b16 %v2144
        %v2931 = vunpack.c.l.b16 %v2145
        %v2932 = vunpack.c.l.b16 %v2146
        %v2933 = vunpack.c.l.b16 %v2147
        %v2934 = vunpack.c.l.b16 %v2148
        %v2935 = vunpack.c.l.b16 %v2149
        %v2936 = vunpack.c.l.b16 %v2150
        %v2937 = vunpack.c.l.b16 %v2151
        %v2938 = vunpack.c.l.b16 %v2152
        %v2939 = vunpack.c.l.b16 %v2153
        %v2940 = vunpack.c.l.b16 %v2154
        %v2941 = vunpack.c.l.b16 %v2155
        %v2942 = vunpack.c.l.b16 %v2156
        %v2943 = vunpack.c.l.b16 %v2157
        %v2944 = vunpack.c.l.b16 %v2158
        %v2945 = vunpack.c.l.b16 %v2159
        %v2946 = vunpack.c.l.b16 %v2160
        %v2947 = vunpack.c.l.b16 %v2161
        %v2948 = vunpack.c.l.b16 %v2162
        %v2949 = vunpack.c.l.b16 %v2163
        %v2950 = vunpack.c.l.b16 %v2164
        %v2951 = vunpack.c.l.b16 %v2165
        %v2952 = vunpack.c.l.b16 %v2166
        %v2953 = vunpack.c.l.b16 %v2167
        %v2954 = vunpack.c.l.b16 %v2168
        %v2955 = vunpack.c.l.b16 %v2169
        %v2956 = vunpack.c.l.b16 %v2170
        %v2957 = vunpack.c.l.b16 %v2171
        %v2958 = vunpack.c.l.b16 %v2172
        %v2959 = vunpack.c.l.b16 %v2173
        %v2960 = vpack.c.b16 %v2569, %v2568
        %v2961 = vpack.c.b16 %v2571, %v2570
        %v2962 = vpack.c.b16 %v2573, %v2572
        %v2963 = vpack.c.b16 %v2575, %v2574
        %v2964 = vpack.c.b16 %v2577, %v2576
        %v2965 = vpack.c.b16 %v2579, %v2578
        %v2966 = vpack.c.b16 %v2581, %v2580
        %v2967 = vpack.c.b16 %v2583, %v2582
        %v2968 = vpack.c.b16 %v2585, %v2584
        %v2969 = vpack.c.b16 %v2587, %v2586
        %v2970 = vpack.c.b16 %v2589, %v2588
        %v2971 = vpack.c.b16 %v2591, %v2590
        %v2972 = vpack.c.b16 %v2593, %v2592
        %v2973 = vpack.c.b16 %v2595, %v2594
        %v2974 = vpack.c.b16 %v2597, %v2596
        %v2975 = vpack.c.b16 %v2599, %v2598
        %v2976 = vpack.c.b16 %v2601, %v2600
        %v2977 = vpack.c.b16 %v2603, %v2602
        %v2978 = vpack.c.b16 %v2605, %v2604
        %v2979 = vpack.c.b16 %v2607, %v2606
        %v2980 = vpack.c.b16 %v2609, %v2608
        %v2981 = vpack.c.b16 %v2611, %v2610
        %v2982 = vpack.c.b16 %v2613, %v2612
        %v2983 = vpack.c.b16 %v2615, %v2614
        %v2984 = vpack.c.b16 %v2617, %v2616
        %v2985 = vpack.c.b16 %v2619, %v2618
        %v2986 = vpack.c.b16 %v2621, %v2620
        %v2987 = vpack.c.b16 %v2623, %v2622
        %v2988 = vpack.c.b16 %v2625, %v2624
        %v2989 = vpack.c.b16 %v2627, %v2626
        %v2990 = vpack.c.b16 %v2629, %v2628
        %v2991 = vpack.c.b16 %v2631, %v2630
        %v2992 = vpack.c.b16 %v2633, %v2632
        %v2993 = vpack.c.b16 %v2635, %v2634
        %v2994 = vpack.c.b16 %v2637, %v2636
        %v2995 = vpack.c.b16 %v2639, %v2638
        %v2996 = vpack.c.b16 %v2641, %v2640
        %v2997 = vpack.c.b16 %v2643, %v2642
        %v2998 = vpack.c.b16 %v2645, %v2644
        %v2999 = vpack.c.b16 %v2647, %v2646
        %v3000 = vpack.c.b16 %v2649, %v2648
        %v3001 = vpack.c.b16 %v2651, %v2650
        %v3002 = vpack.c.b16 %v2653, %v2652
        %v3003 = vpack.c.b16 %v2655, %v2654
        %v3004 = vpack.c.b16 %v2657, %v2656
        %v3005 = vpack.c.b16 %v2659, %v2658
        %v3006 = vpack.c.b16 %v2661, %v2660
        %v3007 = vpack.c.b16 %v2663, %v2662
        %v3008 = vpack.c.b16 %v2665, %v2664
        %v3009 = vpack.c.b16 %v2667, %v2666
        %v3010 = vpack.c.b16 %v2669, %v2668
        %v3011 = vpack.c.b16 %v2671, %v2670
        %v3012 = vpack.c.b16 %v2673, %v2672
        %v3013 = vpack.c.b16 %v2675, %v2674
        %v3014 = vpack.c.b16 %v2677, %v2676
        %v3015 = vpack.c.b16 %v2679, %v2678
        %v3016 = vpack.c.b16 %v2681, %v2680
        %v3017 = vpack.c.b16 %v2683, %v2682
        %v3018 = vpack.c.b16 %v2685, %v2684
        %v3019 = vpack.c.b16 %v2687, %v2686
        %v3020 = vpack.c.b16 %v2689, %v2688
        %v3021 = vpack.c.b16 %v2691, %v2690
        %v3022 = vpack.c.b16 %v2693, %v2692
        %v3023 = vpack.c.b16 %v2695, %v2694
        %v3024 = vpack.c.b16 %v2697, %v2696
        %v3025 = vpack.c.b16 %v2699, %v2698
        %v3026 = vpack.c.b16 %v2701, %v2700
        %v3027 = vpack.c.b16 %v2703, %v2702
        %v3028 = vpack.c.b16 %v2705, %v2704
        %v3029 = vpack.c.b16 %v2707, %v2706
        %v3030 = vpack.c.b16 %v2709, %v2708
        %v3031 = vpack.c.b16 %v2711, %v2710
        %v3032 = vpack.c.b16 %v2713, %v2712
        %v3033 = vpack.c.b16 %v2715, %v2714
        %v3034 = vpack.c.b16 %v2717, %v2716
        %v3035 = vpack.c.b16 %v2719, %v2718
        %v3036 = vpack.c.b16 %v2721, %v2720
        %v3037 = vpack.c.b16 %v2723, %v2722
        %v3038 = vpack.c.b16 %v2725, %v2724
        %v3039 = vpack.c.b16 %v2727, %v2726
        %v3040 = vpack.c.b16 %v2729, %v2728
        %v3041 = vpack.c.b16 %v2731, %v2730
        %v3042 = vpack.c.b16 %v2733, %v2732
        %v3043 = vpack.c.b16 %v2735, %v2734
        %v3044 = vpack.c.b16 %v2737, %v2736
        %v3045 = vpack.c.b16 %v2739, %v2738
        %v3046 = vpack.c.b16 %v2741, %v2740
        %v3047 = vpack.c.b16 %v2743, %v2742
        %v3048 = vpack.c.b16 %v2745, %v2744
        %v3049 = vpack.c.b16 %v2747, %v2746
        %v3050 = vpack.c.b16 %v2749, %v2748
        %v3051 = vpack.c.b16 %v2751, %v2750
        %v3052 = vpack.c.b16 %v2753, %v2752
        %v3053 = vpack.c.b16 %v2755, %v2754
        %v3054 = vpack.c.b16 %v2757, %v2756
        %v3055 = vpack.c.b16 %v2759, %v2758
        %v3056 = vpack.c.b16 %v2761, %v2760
        %v3057 = vpack.c.b16 %v2763, %v2762
        %v3058 = vpack.c.b16 %v2765, %v2764
        %v3059 = vpack.c.b16 %v2767, %v2766
        %v3060 = vpack.c.b16 %v2769, %v2768
        %v3061 = vpack.c.b16 %v2771, %v2770
        %v3062 = vpack.c.b16 %v2773, %v2772
        %v3063 = vpack.c.b16 %v2775, %v2774
        %v3064 = vpack.c.b16 %v2777, %v2776
        %v3065 = vpack.c.b16 %v2779, %v2778
        %v3066 = vpack.c.b16 %v2781, %v2780
        %v3067 = vpack.c.b16 %v2783, %v2782
        %v3068 = vpack.c.b16 %v2785, %v2784
        %v3069 = vpack.c.b16 %v2787, %v2786
        %v3070 = vpack.c.b16 %v2789, %v2788
        %v3071 = vpack.c.b16 %v2791, %v2790
        %v3072 = vpack.c.b16 %v2793, %v2792
        %v3073 = vpack.c.b16 %v2795, %v2794
        %v3074 = vpack.c.b16 %v2797, %v2796
        %v3075 = vpack.c.b16 %v2799, %v2798
        %v3076 = vpack.c.b16 %v2801, %v2800
        %v3077 = vpack.c.b16 %v2803, %v2802
        %v3078 = vpack.c.b16 %v2805, %v2804
        %v3079 = vpack.c.b16 %v2807, %v2806
        %v3080 = vpack.c.b16 %v2809, %v2808
        %v3081 = vpack.c.b16 %v2811, %v2810
        %v3082 = vpack.c.b16 %v2813, %v2812
        %v3083 = vpack.c.b16 %v2815, %v2814
        %v3084 = vpack.c.b16 %v2817, %v2816
        %v3085 = vpack.c.b16 %v2819, %v2818
        %v3086 = vpack.c.b16 %v2821, %v2820
        %v3087 = vpack.c.b16 %v2823, %v2822
        %v3088 = vpack.c.b16 %v2825, %v2824
        %v3089 = vpack.c.b16 %v2827, %v2826
        %v3090 = vpack.c.b16 %v2829, %v2828
        %v3091 = vpack.c.b16 %v2831, %v2830
        %v3092 = vpack.c.b16 %v2833, %v2832
        %v3093 = vpack.c.b16 %v2835, %v2834
        %v3094 = vpack.c.b16 %v2837, %v2836
        %v3095 = vpack.c.b16 %v2839, %v2838
        %v3096 = vpack.c.b16 %v2841, %v2840
        %v3097 = vpack.c.b16 %v2843, %v2842
        %v3098 = vpack.c.b16 %v2845, %v2844
        %v3099 = vpack.c.b16 %v2847, %v2846
        %v3100 = vpack.c.b16 %v2849, %v2848
        %v3101 = vpack.c.b16 %v2851, %v2850
        %v3102 = vpack.c.b16 %v2853, %v2852
        %v3103 = vpack.c.b16 %v2855, %v2854
        %v3104 = vpack.c.b16 %v2857, %v2856
        %v3105 = vpack.c.b16 %v2859, %v2858
        %v3106 = vpack.c.b16 %v2861, %v2860
        %v3107 = vpack.c.b16 %v2863, %v2862
        %v3108 = vpack.c.b16 %v2865, %v2864
        %v3109 = vpack.c.b16 %v2867, %v2866
        %v3110 = vpack.c.b16 %v2869, %v2868
        %v3111 = vpack.c.b16 %v2871, %v2870
        %v3112 = vpack.c.b16 %v2873, %v2872
        %v3113 = vpack.c.b16 %v2875, %v2874
        %v3114 = vpack.c.b16 %v2877, %v2876
        %v3115 = vpack.c.b16 %v2879, %v2878
        %v3116 = vpack.c.b16 %v2881, %v2880
        %v3117 = vpack.c.b16 %v2883, %v2882
        %v3118 = vpack.c.b16 %v2885, %v2884
        %v3119 = vpack.c.b16 %v2887, %v2886
        %v3120 = vpack.c.b16 %v2889, %v2888
        %v3121 = vpack.c.b16 %v2891, %v2890
        %v3122 = vpack.c.b16 %v2893, %v2892
        %v3123 = vpack.c.b16 %v2895, %v2894
        %v3124 = vpack.c.b16 %v2897, %v2896
        %v3125 = vpack.c.b16 %v2899, %v2898
        %v3126 = vpack.c.b16 %v2901, %v2900
        %v3127 = vpack.c.b16 %v2903, %v2902
        %v3128 = vpack.c.b16 %v2905, %v2904
        %v3129 = vpack.c.b16 %v2907, %v2906
        %v3130 = vpack.c.b16 %v2909, %v2908
        %v3131 = vpack.c.b16 %v2911, %v2910
        %v3132 = vpack.c.b16 %v2913, %v2912
        %v3133 = vpack.c.b16 %v2915, %v2914
        %v3134 = vpack.c.b16 %v2917, %v2916
        %v3135 = vpack.c.b16 %v2919, %v2918
        %v3136 = vpack.c.b16 %v2921, %v2920
        %v3137 = vpack.c.b16 %v2923, %v2922
        %v3138 = vpack.c.b16 %v2925, %v2924
        %v3139 = vpack.c.b16 %v2927, %v2926
        %v3140 = vpack.c.b16 %v2929, %v2928
        %v3141 = vpack.c.b16 %v2931, %v2930
        %v3142 = vpack.c.b16 %v2933, %v2932
        %v3143 = vpack.c.b16 %v2935, %v2934
        %v3144 = vpack.c.b16 %v2937, %v2936
        %v3145 = vpack.c.b16 %v2939, %v2938
        %v3146 = vpack.c.b16 %v2941, %v2940
        %v3147 = vpack.c.b16 %v2943, %v2942
        %v3148 = vpack.c.b16 %v2945, %v2944
        %v3149 = vpack.c.b16 %v2947, %v2946
        %v3150 = vpack.c.b16 %v2949, %v2948
        %v3151 = vpack.c.b16 %v2951, %v2950
        %v3152 = vpack.c.b16 %v2953, %v2952
        %v3153 = vpack.c.b16 %v2955, %v2954
        %v3154 = vpack.c.b16 %v2957, %v2956
        %v3155 = vpack.c.b16 %v2959, %v2958
        %v3158 = vunpack.c.l.b16 %v2174
        %v3159 = vunpack.c.l.b16 %v2175
        %v3160 = vpack.c.b16 %v3159, %v3158
        %vm3161 = vcmask 72704
        %v3163 = vsel %vm3161, %v2960, 0
        %v3166 = vsel %vm3161, %v2961, 0
        %v3169 = vsel %vm3161, %v2962, 0
        %v3172 = vsel %vm3161, %v2963, 0
        %v3175 = vsel %vm3161, %v2964, 0
        %v3178 = vsel %vm3161, %v2965, 0
        %v3181 = vsel %vm3161, %v2966, 0
        %v3184 = vsel %vm3161, %v2967, 0
        %v3187 = vsel %vm3161, %v2968, 0
        %v3190 = vsel %vm3161, %v2969, 0
        %v3193 = vsel %vm3161, %v2970, 0
        %v3196 = vsel %vm3161, %v2971, 0
        %v3199 = vsel %vm3161, %v2972, 0
        %v3202 = vsel %vm3161, %v2973, 0
        %v3205 = vsel %vm3161, %v2974, 0
        %v3208 = vsel %vm3161, %v2975, 0
        %v3211 = vsel %vm3161, %v2976, 0
        %v3214 = vsel %vm3161, %v2977, 0
        %v3217 = vsel %vm3161, %v2978, 0
        %v3220 = vsel %vm3161, %v2979, 0
        %v3223 = vsel %vm3161, %v2980, 0
        %v3226 = vsel %vm3161, %v2981, 0
        %v3229 = vsel %vm3161, %v2982, 0
        %v3232 = vsel %vm3161, %v2983, 0
        %v3235 = vsel %vm3161, %v2984, 0
        %v3238 = vsel %vm3161, %v2985, 0
        %v3241 = vsel %vm3161, %v2986, 0
        %v3244 = vsel %vm3161, %v2987, 0
        %v3247 = vsel %vm3161, %v2988, 0
        %v3250 = vsel %vm3161, %v2989, 0
        %v3253 = vsel %vm3161, %v2990, 0
        %v3256 = vsel %vm3161, %v2991, 0
        %v3259 = vsel %vm3161, %v2992, 0
        %v3262 = vsel %vm3161, %v2993, 0
        %v3265 = vsel %vm3161, %v2994, 0
        %v3268 = vsel %vm3161, %v2995, 0
        %v3271 = vsel %vm3161, %v2996, 0
        %v3274 = vsel %vm3161, %v2997, 0
        %v3277 = vsel %vm3161, %v2998, 0
        %v3280 = vsel %vm3161, %v2999, 0
        %v3283 = vsel %vm3161, %v3000, 0
        %v3286 = vsel %vm3161, %v3001, 0
        %v3289 = vsel %vm3161, %v3002, 0
        %v3292 = vsel %vm3161, %v3003, 0
        %v3295 = vsel %vm3161, %v3004, 0
        %v3298 = vsel %vm3161, %v3005, 0
        %v3301 = vsel %vm3161, %v3006, 0
        %v3304 = vsel %vm3161, %v3007, 0
        %v3307 = vsel %vm3161, %v3008, 0
        %v3310 = vsel %vm3161, %v3009, 0
        %v3313 = vsel %vm3161, %v3010, 0
        %v3316 = vsel %vm3161, %v3011, 0
        %v3319 = vsel %vm3161, %v3012, 0
        %v3322 = vsel %vm3161, %v3013, 0
        %v3325 = vsel %vm3161, %v3014, 0
        %v3328 = vsel %vm3161, %v3015, 0
        %v3331 = vsel %vm3161, %v3016, 0
        %v3334 = vsel %vm3161, %v3017, 0
        %v3337 = vsel %vm3161, %v3018, 0
        %v3340 = vsel %vm3161, %v3019, 0
        %v3343 = vsel %vm3161, %v3020, 0
        %v3346 = vsel %vm3161, %v3021, 0
        %v3349 = vsel %vm3161, %v3022, 0
        %v3352 = vsel %vm3161, %v3023, 0
        %v3355 = vsel %vm3161, %v3024, 0
        %v3358 = vsel %vm3161, %v3025, 0
        %v3361 = vsel %vm3161, %v3026, 0
        %v3364 = vsel %vm3161, %v3027, 0
        %v3367 = vsel %vm3161, %v3028, 0
        %v3370 = vsel %vm3161, %v3029, 0
        %v3373 = vsel %vm3161, %v3030, 0
        %v3376 = vsel %vm3161, %v3031, 0
        %v3379 = vsel %vm3161, %v3032, 0
        %v3382 = vsel %vm3161, %v3033, 0
        %v3385 = vsel %vm3161, %v3034, 0
        %v3388 = vsel %vm3161, %v3035, 0
        %v3391 = vsel %vm3161, %v3036, 0
        %v3394 = vsel %vm3161, %v3037, 0
        %v3397 = vsel %vm3161, %v3038, 0
        %v3400 = vsel %vm3161, %v3039, 0
        %v3403 = vsel %vm3161, %v3040, 0
        %v3406 = vsel %vm3161, %v3041, 0
        %v3409 = vsel %vm3161, %v3042, 0
        %v3412 = vsel %vm3161, %v3043, 0
        %v3415 = vsel %vm3161, %v3044, 0
        %v3418 = vsel %vm3161, %v3045, 0
        %v3421 = vsel %vm3161, %v3046, 0
        %v3424 = vsel %vm3161, %v3047, 0
        %v3427 = vsel %vm3161, %v3048, 0
        %v3430 = vsel %vm3161, %v3049, 0
        %v3433 = vsel %vm3161, %v3050, 0
        %v3436 = vsel %vm3161, %v3051, 0
        %v3439 = vsel %vm3161, %v3052, 0
        %v3442 = vsel %vm3161, %v3053, 0
        %v3445 = vsel %vm3161, %v3054, 0
        %v3448 = vsel %vm3161, %v3055, 0
        %v3451 = vsel %vm3161, %v3056, 0
        %v3454 = vsel %vm3161, %v3057, 0
        %v3457 = vsel %vm3161, %v3058, 0
        %v3460 = vsel %vm3161, %v3059, 0
        %v3463 = vsel %vm3161, %v3060, 0
        %v3466 = vsel %vm3161, %v3061, 0
        %v3469 = vsel %vm3161, %v3062, 0
        %v3472 = vsel %vm3161, %v3063, 0
        %v3475 = vsel %vm3161, %v3064, 0
        %v3478 = vsel %vm3161, %v3065, 0
        %v3481 = vsel %vm3161, %v3066, 0
        %v3484 = vsel %vm3161, %v3067, 0
        %v3487 = vsel %vm3161, %v3068, 0
        %v3490 = vsel %vm3161, %v3069, 0
        %v3493 = vsel %vm3161, %v3070, 0
        %v3496 = vsel %vm3161, %v3071, 0
        %v3499 = vsel %vm3161, %v3072, 0
        %v3502 = vsel %vm3161, %v3073, 0
        %v3505 = vsel %vm3161, %v3074, 0
        %v3508 = vsel %vm3161, %v3075, 0
        %v3511 = vsel %vm3161, %v3076, 0
        %v3514 = vsel %vm3161, %v3077, 0
        %v3517 = vsel %vm3161, %v3078, 0
        %v3520 = vsel %vm3161, %v3079, 0
        %v3523 = vsel %vm3161, %v3080, 0
        %v3526 = vsel %vm3161, %v3081, 0
        %v3529 = vsel %vm3161, %v3082, 0
        %v3532 = vsel %vm3161, %v3083, 0
        %v3535 = vsel %vm3161, %v3084, 0
        %v3538 = vsel %vm3161, %v3085, 0
        %v3541 = vsel %vm3161, %v3086, 0
        %v3544 = vsel %vm3161, %v3087, 0
        %v3547 = vsel %vm3161, %v3088, 0
        %v3550 = vsel %vm3161, %v3089, 0
        %v3553 = vsel %vm3161, %v3090, 0
        %v3556 = vsel %vm3161, %v3091, 0
        %v3559 = vsel %vm3161, %v3092, 0
        %v3562 = vsel %vm3161, %v3093, 0
        %v3565 = vsel %vm3161, %v3094, 0
        %v3568 = vsel %vm3161, %v3095, 0
        %v3571 = vsel %vm3161, %v3096, 0
        %v3574 = vsel %vm3161, %v3097, 0
        %v3577 = vsel %vm3161, %v3098, 0
        %v3580 = vsel %vm3161, %v3099, 0
        %v3583 = vsel %vm3161, %v3100, 0
        %v3586 = vsel %vm3161, %v3101, 0
        %v3589 = vsel %vm3161, %v3102, 0
        %v3592 = vsel %vm3161, %v3103, 0
        %v3595 = vsel %vm3161, %v3104, 0
        %v3598 = vsel %vm3161, %v3105, 0
        %v3601 = vsel %vm3161, %v3106, 0
        %v3604 = vsel %vm3161, %v3107, 0
        %v3607 = vsel %vm3161, %v3108, 0
        %v3610 = vsel %vm3161, %v3109, 0
        %v3613 = vsel %vm3161, %v3110, 0
        %v3616 = vsel %vm3161, %v3111, 0
        %v3619 = vsel %vm3161, %v3112, 0
        %v3622 = vsel %vm3161, %v3113, 0
        %v3625 = vsel %vm3161, %v3114, 0
        %v3628 = vsel %vm3161, %v3115, 0
        %v3631 = vsel %vm3161, %v3116, 0
        %v3634 = vsel %vm3161, %v3117, 0
        %v3637 = vsel %vm3161, %v3118, 0
        %v3640 = vsel %vm3161, %v3119, 0
        %v3643 = vsel %vm3161, %v3120, 0
        %v3646 = vsel %vm3161, %v3121, 0
        %v3649 = vsel %vm3161, %v3122, 0
        %v3652 = vsel %vm3161, %v3123, 0
        %v3655 = vsel %vm3161, %v3124, 0
        %v3658 = vsel %vm3161, %v3125, 0
        %v3661 = vsel %vm3161, %v3126, 0
        %v3664 = vsel %vm3161, %v3127, 0
        %v3667 = vsel %vm3161, %v3128, 0
        %v3670 = vsel %vm3161, %v3129, 0
        %v3673 = vsel %vm3161, %v3130, 0
        %v3676 = vsel %vm3161, %v3131, 0
        %v3679 = vsel %vm3161, %v3132, 0
        %v3682 = vsel %vm3161, %v3133, 0
        %v3685 = vsel %vm3161, %v3134, 0
        %v3688 = vsel %vm3161, %v3135, 0
        %v3691 = vsel %vm3161, %v3136, 0
        %v3694 = vsel %vm3161, %v3137, 0
        %v3697 = vsel %vm3161, %v3138, 0
        %v3700 = vsel %vm3161, %v3139, 0
        %v3703 = vsel %vm3161, %v3140, 0
        %v3706 = vsel %vm3161, %v3141, 0
        %v3709 = vsel %vm3161, %v3142, 0
        %v3712 = vsel %vm3161, %v3143, 0
        %v3715 = vsel %vm3161, %v3144, 0
        %v3718 = vsel %vm3161, %v3145, 0
        %v3721 = vsel %vm3161, %v3146, 0
        %v3724 = vsel %vm3161, %v3147, 0
        %v3727 = vsel %vm3161, %v3148, 0
        %v3730 = vsel %vm3161, %v3149, 0
        %v3733 = vsel %vm3161, %v3150, 0
        %v3736 = vsel %vm3161, %v3151, 0
        %v3739 = vsel %vm3161, %v3152, 0
        %v3742 = vsel %vm3161, %v3153, 0
        %v3745 = vsel %vm3161, %v3154, 0
        %v3748 = vsel %vm3161, %v3155, 0
        %vm3750 = vcmask 1043456
        %vm3751 = vcmask 1044480
        %v3752 = vsel %vm3750, 4294967295, 65535
        %v3753 = vsel %vm3751, %v3752, 0
        %v3755 = vand.u32 %v3160, %v3753
        %3757 = vmatprep.subr.bf16.mxu0 0
        %3758 = vmatpush1.bf16.msra.mxu0 0
        %3759 = vmatprep.subr.bf16.mxu0 0
        %3760 = vmatpush1.bf16.msra.mxu0 0
        %3761 = vmatprep.subr.bf16.mxu0 0
        %3762 = vmatpush1.bf16.msra.mxu0 0
        %3763 = vmatprep.subr.bf16.mxu0 0
        %3764 = vmatpush1.bf16.msra.mxu0 0
        %3765 = vmatprep.subr.bf16.mxu0 0
        %3766 = vmatpush1.bf16.msra.mxu0 0
        %3767 = vmatprep.subr.bf16.mxu0 0
        %3768 = vmatpush1.bf16.msra.mxu0 0
        %3769 = vmatprep.subr.bf16.mxu0 0
        %3770 = vmatpush1.bf16.msra.mxu0 0
        %3771 = vmatprep.subr.bf16.mxu0 0
        %3772 = vmatpush1.bf16.msra.mxu0 %v3755
        %3773 = vmatprep.subr.bf16.mxu0 0
        %3774 = vmatpush2.bf16.msra.mxu0 0
        %3775 = vmatprep.subr.bf16.mxu0 0
        %3776 = vmatpush2.bf16.msra.mxu0 0
        %3777 = vmatprep.subr.bf16.mxu0 0
        %3778 = vmatpush2.bf16.msra.mxu0 0
        %3779 = vmatprep.subr.bf16.mxu0 0
        %3780 = vmatpush2.bf16.msra.mxu0 0
        %3781 = vmatprep.subr.bf16.mxu0 0
        %3782 = vmatpush2.bf16.msra.mxu0 0
        %3783 = vmatprep.subr.bf16.mxu0 0
        %3784 = vmatpush2.bf16.msra.mxu0 0
        %3785 = vmatprep.subr.bf16.mxu0 0
        %3786 = vmatpush2.bf16.msra.mxu0 0
        %3787 = vmatprep.subr.bf16.mxu0 0
        %3788 = vmatpush2.bf16.msra.mxu0 0
        %3789 = vmatprep.mubr.bf16.mxu0 0
        %3790 = vmatmul.mubr.bf16.gmra.mxu0 %v3163
        %v3791 = vpop.f32.mrf.mxu0
        %v3792 = vadd.f32 0.0, %v3791
        %v3793 = vpop.f32.mrf.mxu0
        %v3794 = vpop.f32.mrf.mxu0
        %v3795 = vadd.f32 0.0, %v3794
        %v3796 = vpop.f32.mrf.mxu0
        %3797 = vmatprep.mubr.bf16.mxu0 0
        %3798 = vmatmul.mubr.bf16.gmra.mxu0 %v3166
        %v3799 = vpop.f32.mrf.mxu0
        %v3800 = vadd.f32 0.0, %v3799
        %v3801 = vpop.f32.mrf.mxu0
        %v3802 = vpop.f32.mrf.mxu0
        %v3803 = vadd.f32 0.0, %v3802
        %v3804 = vpop.f32.mrf.mxu0
        %3805 = vmatprep.mubr.bf16.mxu0 0
        %3806 = vmatmul.mubr.bf16.gmra.mxu0 %v3169
        %v3807 = vpop.f32.mrf.mxu0
        %v3808 = vadd.f32 0.0, %v3807
        %v3809 = vpop.f32.mrf.mxu0
        %v3810 = vpop.f32.mrf.mxu0
        %v3811 = vadd.f32 0.0, %v3810
        %v3812 = vpop.f32.mrf.mxu0
        %3813 = vmatprep.mubr.bf16.mxu0 0
        %3814 = vmatmul.mubr.bf16.gmra.mxu0 %v3172
        %v3815 = vpop.f32.mrf.mxu0
        %v3816 = vadd.f32 0.0, %v3815
        %v3817 = vpop.f32.mrf.mxu0
        %v3818 = vpop.f32.mrf.mxu0
        %v3819 = vadd.f32 0.0, %v3818
        %v3820 = vpop.f32.mrf.mxu0
        %3821 = vmatprep.mubr.bf16.mxu0 0
        %3822 = vmatmul.mubr.bf16.gmra.mxu0 %v3175
        %v3823 = vpop.f32.mrf.mxu0
        %v3824 = vadd.f32 0.0, %v3823
        %v3825 = vpop.f32.mrf.mxu0
        %v3826 = vpop.f32.mrf.mxu0
        %v3827 = vadd.f32 0.0, %v3826
        %v3828 = vpop.f32.mrf.mxu0
        %3829 = vmatprep.mubr.bf16.mxu0 0
        %3830 = vmatmul.mubr.bf16.gmra.mxu0 %v3178
        %v3831 = vpop.f32.mrf.mxu0
        %v3832 = vadd.f32 0.0, %v3831
        %v3833 = vpop.f32.mrf.mxu0
        %v3834 = vpop.f32.mrf.mxu0
        %v3835 = vadd.f32 0.0, %v3834
        %v3836 = vpop.f32.mrf.mxu0
        %3837 = vmatprep.mubr.bf16.mxu0 0
        %3838 = vmatmul.mubr.bf16.gmra.mxu0 %v3181
        %v3839 = vpop.f32.mrf.mxu0
        %v3840 = vadd.f32 0.0, %v3839
        %v3841 = vpop.f32.mrf.mxu0
        %v3842 = vpop.f32.mrf.mxu0
        %v3843 = vadd.f32 0.0, %v3842
        %v3844 = vpop.f32.mrf.mxu0
        %3845 = vmatprep.mubr.bf16.mxu0 0
        %3846 = vmatmul.mubr.bf16.gmra.mxu0 %v3184
        %v3847 = vpop.f32.mrf.mxu0
        %v3848 = vadd.f32 0.0, %v3847
        %v3849 = vpop.f32.mrf.mxu0
        %v3850 = vpop.f32.mrf.mxu0
        %v3851 = vadd.f32 0.0, %v3850
        %v3852 = vpop.f32.mrf.mxu0
        %3853 = vmatprep.mubr.bf16.mxu0 0
        %3854 = vmatmul.mubr.bf16.gmra.mxu0 %v3187
        %v3855 = vpop.f32.mrf.mxu0
        %v3856 = vadd.f32 0.0, %v3855
        %v3857 = vpop.f32.mrf.mxu0
        %v3858 = vpop.f32.mrf.mxu0
        %v3859 = vadd.f32 0.0, %v3858
        %v3860 = vpop.f32.mrf.mxu0
        %3861 = vmatprep.mubr.bf16.mxu0 0
        %3862 = vmatmul.mubr.bf16.gmra.mxu0 %v3190
        %v3863 = vpop.f32.mrf.mxu0
        %v3864 = vadd.f32 0.0, %v3863
        %v3865 = vpop.f32.mrf.mxu0
        %v3866 = vpop.f32.mrf.mxu0
        %v3867 = vadd.f32 0.0, %v3866
        %v3868 = vpop.f32.mrf.mxu0
        %3869 = vmatprep.mubr.bf16.mxu0 0
        %3870 = vmatmul.mubr.bf16.gmra.mxu0 %v3193
        %v3871 = vpop.f32.mrf.mxu0
        %v3872 = vadd.f32 0.0, %v3871
        %v3873 = vpop.f32.mrf.mxu0
        %v3874 = vpop.f32.mrf.mxu0
        %v3875 = vadd.f32 0.0, %v3874
        %v3876 = vpop.f32.mrf.mxu0
        %3877 = vmatprep.mubr.bf16.mxu0 0
        %3878 = vmatmul.mubr.bf16.gmra.mxu0 %v3196
        %v3879 = vpop.f32.mrf.mxu0
        %v3880 = vadd.f32 0.0, %v3879
        %v3881 = vpop.f32.mrf.mxu0
        %v3882 = vpop.f32.mrf.mxu0
        %v3883 = vadd.f32 0.0, %v3882
        %v3884 = vpop.f32.mrf.mxu0
        %3885 = vmatprep.mubr.bf16.mxu0 0
        %3886 = vmatmul.mubr.bf16.gmra.mxu0 %v3199
        %v3887 = vpop.f32.mrf.mxu0
        %v3888 = vadd.f32 0.0, %v3887
        %v3889 = vpop.f32.mrf.mxu0
        %v3890 = vpop.f32.mrf.mxu0
        %v3891 = vadd.f32 0.0, %v3890
        %v3892 = vpop.f32.mrf.mxu0
        %3893 = vmatprep.mubr.bf16.mxu0 0
        %3894 = vmatmul.mubr.bf16.gmra.mxu0 %v3202
        %v3895 = vpop.f32.mrf.mxu0
        %v3896 = vadd.f32 0.0, %v3895
        %v3897 = vpop.f32.mrf.mxu0
        %v3898 = vpop.f32.mrf.mxu0
        %v3899 = vadd.f32 0.0, %v3898
        %v3900 = vpop.f32.mrf.mxu0
        %3901 = vmatprep.mubr.bf16.mxu0 0
        %3902 = vmatmul.mubr.bf16.gmra.mxu0 %v3205
        %v3903 = vpop.f32.mrf.mxu0
        %v3904 = vadd.f32 0.0, %v3903
        %v3905 = vpop.f32.mrf.mxu0
        %v3906 = vpop.f32.mrf.mxu0
        %v3907 = vadd.f32 0.0, %v3906
        %v3908 = vpop.f32.mrf.mxu0
        %3909 = vmatprep.mubr.bf16.mxu0 0
        %3910 = vmatmul.mubr.bf16.gmra.mxu0 %v3208
        %v3911 = vpop.f32.mrf.mxu0
        %v3912 = vadd.f32 0.0, %v3911
        %v3913 = vpop.f32.mrf.mxu0
        %v3914 = vpop.f32.mrf.mxu0
        %v3915 = vadd.f32 0.0, %v3914
        %v3916 = vpop.f32.mrf.mxu0
        %3917 = vmatprep.mubr.bf16.mxu0 0
        %3918 = vmatmul.mubr.bf16.gmra.mxu0 %v3211
        %v3919 = vpop.f32.mrf.mxu0
        %v3920 = vadd.f32 0.0, %v3919
        %v3921 = vpop.f32.mrf.mxu0
        %v3922 = vpop.f32.mrf.mxu0
        %v3923 = vadd.f32 0.0, %v3922
        %v3924 = vpop.f32.mrf.mxu0
        %3925 = vmatprep.mubr.bf16.mxu0 0
        %3926 = vmatmul.mubr.bf16.gmra.mxu0 %v3214
        %v3927 = vpop.f32.mrf.mxu0
        %v3928 = vadd.f32 0.0, %v3927
        %v3929 = vpop.f32.mrf.mxu0
        %v3930 = vpop.f32.mrf.mxu0
        %v3931 = vadd.f32 0.0, %v3930
        %v3932 = vpop.f32.mrf.mxu0
        %3933 = vmatprep.mubr.bf16.mxu0 0
        %3934 = vmatmul.mubr.bf16.gmra.mxu0 %v3217
        %v3935 = vpop.f32.mrf.mxu0
        %v3936 = vadd.f32 0.0, %v3935
        %v3937 = vpop.f32.mrf.mxu0
        %v3938 = vpop.f32.mrf.mxu0
        %v3939 = vadd.f32 0.0, %v3938
        %v3940 = vpop.f32.mrf.mxu0
        %3941 = vmatprep.mubr.bf16.mxu0 0
        %3942 = vmatmul.mubr.bf16.gmra.mxu0 %v3220
        %v3943 = vpop.f32.mrf.mxu0
        %v3944 = vadd.f32 0.0, %v3943
        %v3945 = vpop.f32.mrf.mxu0
        %v3946 = vpop.f32.mrf.mxu0
        %v3947 = vadd.f32 0.0, %v3946
        %v3948 = vpop.f32.mrf.mxu0
        %3949 = vmatprep.mubr.bf16.mxu0 0
        %3950 = vmatmul.mubr.bf16.gmra.mxu0 %v3223
        %v3951 = vpop.f32.mrf.mxu0
        %v3952 = vadd.f32 0.0, %v3951
        %v3953 = vpop.f32.mrf.mxu0
        %v3954 = vpop.f32.mrf.mxu0
        %v3955 = vadd.f32 0.0, %v3954
        %v3956 = vpop.f32.mrf.mxu0
        %3957 = vmatprep.mubr.bf16.mxu0 0
        %3958 = vmatmul.mubr.bf16.gmra.mxu0 %v3226
        %v3959 = vpop.f32.mrf.mxu0
        %v3960 = vadd.f32 0.0, %v3959
        %v3961 = vpop.f32.mrf.mxu0
        %v3962 = vpop.f32.mrf.mxu0
        %v3963 = vadd.f32 0.0, %v3962
        %v3964 = vpop.f32.mrf.mxu0
        %3965 = vmatprep.mubr.bf16.mxu0 0
        %3966 = vmatmul.mubr.bf16.gmra.mxu0 %v3229
        %v3967 = vpop.f32.mrf.mxu0
        %v3968 = vadd.f32 0.0, %v3967
        %v3969 = vpop.f32.mrf.mxu0
        %v3970 = vpop.f32.mrf.mxu0
        %v3971 = vadd.f32 0.0, %v3970
        %v3972 = vpop.f32.mrf.mxu0
        %3973 = vmatprep.mubr.bf16.mxu0 0
        %3974 = vmatmul.mubr.bf16.gmra.mxu0 %v3232
        %v3975 = vpop.f32.mrf.mxu0
        %v3976 = vadd.f32 0.0, %v3975
        %v3977 = vpop.f32.mrf.mxu0
        %v3978 = vpop.f32.mrf.mxu0
        %v3979 = vadd.f32 0.0, %v3978
        %v3980 = vpop.f32.mrf.mxu0
        %3981 = vmatprep.mubr.bf16.mxu0 0
        %3982 = vmatmul.mubr.bf16.gmra.mxu0 %v3235
        %v3983 = vpop.f32.mrf.mxu0
        %v3984 = vadd.f32 0.0, %v3983
        %v3985 = vpop.f32.mrf.mxu0
        %v3986 = vpop.f32.mrf.mxu0
        %v3987 = vadd.f32 0.0, %v3986
        %v3988 = vpop.f32.mrf.mxu0
        %3989 = vmatprep.mubr.bf16.mxu0 0
        %3990 = vmatmul.mubr.bf16.gmra.mxu0 %v3238
        %v3991 = vpop.f32.mrf.mxu0
        %v3992 = vadd.f32 0.0, %v3991
        %v3993 = vpop.f32.mrf.mxu0
        %v3994 = vpop.f32.mrf.mxu0
        %v3995 = vadd.f32 0.0, %v3994
        %v3996 = vpop.f32.mrf.mxu0
        %3997 = vmatprep.mubr.bf16.mxu0 0
        %3998 = vmatmul.mubr.bf16.gmra.mxu0 %v3241
        %v3999 = vpop.f32.mrf.mxu0
        %v4000 = vadd.f32 0.0, %v3999
        %v4001 = vpop.f32.mrf.mxu0
        %v4002 = vpop.f32.mrf.mxu0
        %v4003 = vadd.f32 0.0, %v4002
        %v4004 = vpop.f32.mrf.mxu0
        %4005 = vmatprep.mubr.bf16.mxu0 0
        %4006 = vmatmul.mubr.bf16.gmra.mxu0 %v3244
        %v4007 = vpop.f32.mrf.mxu0
        %v4008 = vadd.f32 0.0, %v4007
        %v4009 = vpop.f32.mrf.mxu0
        %v4010 = vpop.f32.mrf.mxu0
        %v4011 = vadd.f32 0.0, %v4010
        %v4012 = vpop.f32.mrf.mxu0
        %4013 = vmatprep.mubr.bf16.mxu0 0
        %4014 = vmatmul.mubr.bf16.gmra.mxu0 %v3247
        %v4015 = vpop.f32.mrf.mxu0
        %v4016 = vadd.f32 0.0, %v4015
        %v4017 = vpop.f32.mrf.mxu0
        %v4018 = vpop.f32.mrf.mxu0
        %v4019 = vadd.f32 0.0, %v4018
        %v4020 = vpop.f32.mrf.mxu0
        %4021 = vmatprep.mubr.bf16.mxu0 0
        %4022 = vmatmul.mubr.bf16.gmra.mxu0 %v3250
        %v4023 = vpop.f32.mrf.mxu0
        %v4024 = vadd.f32 0.0, %v4023
        %v4025 = vpop.f32.mrf.mxu0
        %v4026 = vpop.f32.mrf.mxu0
        %v4027 = vadd.f32 0.0, %v4026
        %v4028 = vpop.f32.mrf.mxu0
        %4029 = vmatprep.mubr.bf16.mxu0 0
        %4030 = vmatmul.mubr.bf16.gmra.mxu0 %v3253
        %v4031 = vpop.f32.mrf.mxu0
        %v4032 = vadd.f32 0.0, %v4031
        %v4033 = vpop.f32.mrf.mxu0
        %v4034 = vpop.f32.mrf.mxu0
        %v4035 = vadd.f32 0.0, %v4034
        %v4036 = vpop.f32.mrf.mxu0
        %4037 = vmatprep.mubr.bf16.mxu0 0
        %4038 = vmatmul.mubr.bf16.gmra.mxu0 %v3256
        %v4039 = vpop.f32.mrf.mxu0
        %v4040 = vadd.f32 0.0, %v4039
        %v4041 = vpop.f32.mrf.mxu0
        %v4042 = vpop.f32.mrf.mxu0
        %v4043 = vadd.f32 0.0, %v4042
        %v4044 = vpop.f32.mrf.mxu0
        %4045 = vmatprep.mubr.bf16.mxu0 0
        %4046 = vmatmul.mubr.bf16.gmra.mxu0 %v3259
        %v4047 = vpop.f32.mrf.mxu0
        %v4048 = vadd.f32 0.0, %v4047
        %v4049 = vpop.f32.mrf.mxu0
        %v4050 = vpop.f32.mrf.mxu0
        %v4051 = vadd.f32 0.0, %v4050
        %v4052 = vpop.f32.mrf.mxu0
        %4053 = vmatprep.mubr.bf16.mxu0 0
        %4054 = vmatmul.mubr.bf16.gmra.mxu0 %v3262
        %v4055 = vpop.f32.mrf.mxu0
        %v4056 = vadd.f32 0.0, %v4055
        %v4057 = vpop.f32.mrf.mxu0
        %v4058 = vpop.f32.mrf.mxu0
        %v4059 = vadd.f32 0.0, %v4058
        %v4060 = vpop.f32.mrf.mxu0
        %4061 = vmatprep.mubr.bf16.mxu0 0
        %4062 = vmatmul.mubr.bf16.gmra.mxu0 %v3265
        %v4063 = vpop.f32.mrf.mxu0
        %v4064 = vadd.f32 0.0, %v4063
        %v4065 = vpop.f32.mrf.mxu0
        %v4066 = vpop.f32.mrf.mxu0
        %v4067 = vadd.f32 0.0, %v4066
        %v4068 = vpop.f32.mrf.mxu0
        %4069 = vmatprep.mubr.bf16.mxu0 0
        %4070 = vmatmul.mubr.bf16.gmra.mxu0 %v3268
        %v4071 = vpop.f32.mrf.mxu0
        %v4072 = vadd.f32 0.0, %v4071
        %v4073 = vpop.f32.mrf.mxu0
        %v4074 = vpop.f32.mrf.mxu0
        %v4075 = vadd.f32 0.0, %v4074
        %v4076 = vpop.f32.mrf.mxu0
        %4077 = vmatprep.mubr.bf16.mxu0 0
        %4078 = vmatmul.mubr.bf16.gmra.mxu0 %v3271
        %v4079 = vpop.f32.mrf.mxu0
        %v4080 = vadd.f32 0.0, %v4079
        %v4081 = vpop.f32.mrf.mxu0
        %v4082 = vpop.f32.mrf.mxu0
        %v4083 = vadd.f32 0.0, %v4082
        %v4084 = vpop.f32.mrf.mxu0
        %4085 = vmatprep.mubr.bf16.mxu0 0
        %4086 = vmatmul.mubr.bf16.gmra.mxu0 %v3274
        %v4087 = vpop.f32.mrf.mxu0
        %v4088 = vadd.f32 0.0, %v4087
        %v4089 = vpop.f32.mrf.mxu0
        %v4090 = vpop.f32.mrf.mxu0
        %v4091 = vadd.f32 0.0, %v4090
        %v4092 = vpop.f32.mrf.mxu0
        %4093 = vmatprep.mubr.bf16.mxu0 0
        %4094 = vmatmul.mubr.bf16.gmra.mxu0 %v3277
        %v4095 = vpop.f32.mrf.mxu0
        %v4096 = vadd.f32 0.0, %v4095
        %v4097 = vpop.f32.mrf.mxu0
        %v4098 = vpop.f32.mrf.mxu0
        %v4099 = vadd.f32 0.0, %v4098
        %v4100 = vpop.f32.mrf.mxu0
        %4101 = vmatprep.mubr.bf16.mxu0 0
        %4102 = vmatmul.mubr.bf16.gmra.mxu0 %v3280
        %v4103 = vpop.f32.mrf.mxu0
        %v4104 = vadd.f32 0.0, %v4103
        %v4105 = vpop.f32.mrf.mxu0
        %v4106 = vpop.f32.mrf.mxu0
        %v4107 = vadd.f32 0.0, %v4106
        %v4108 = vpop.f32.mrf.mxu0
        %4109 = vmatprep.mubr.bf16.mxu0 0
        %4110 = vmatmul.mubr.bf16.gmra.mxu0 %v3283
        %v4111 = vpop.f32.mrf.mxu0
        %v4112 = vadd.f32 0.0, %v4111
        %v4113 = vpop.f32.mrf.mxu0
        %v4114 = vpop.f32.mrf.mxu0
        %v4115 = vadd.f32 0.0, %v4114
        %v4116 = vpop.f32.mrf.mxu0
        %4117 = vmatprep.mubr.bf16.mxu0 0
        %4118 = vmatmul.mubr.bf16.gmra.mxu0 %v3286
        %v4119 = vpop.f32.mrf.mxu0
        %v4120 = vadd.f32 0.0, %v4119
        %v4121 = vpop.f32.mrf.mxu0
        %v4122 = vpop.f32.mrf.mxu0
        %v4123 = vadd.f32 0.0, %v4122
        %v4124 = vpop.f32.mrf.mxu0
        %4125 = vmatprep.mubr.bf16.mxu0 0
        %4126 = vmatmul.mubr.bf16.gmra.mxu0 %v3289
        %v4127 = vpop.f32.mrf.mxu0
        %v4128 = vadd.f32 0.0, %v4127
        %v4129 = vpop.f32.mrf.mxu0
        %v4130 = vpop.f32.mrf.mxu0
        %v4131 = vadd.f32 0.0, %v4130
        %v4132 = vpop.f32.mrf.mxu0
        %4133 = vmatprep.mubr.bf16.mxu0 0
        %4134 = vmatmul.mubr.bf16.gmra.mxu0 %v3292
        %v4135 = vpop.f32.mrf.mxu0
        %v4136 = vadd.f32 0.0, %v4135
        %v4137 = vpop.f32.mrf.mxu0
        %v4138 = vpop.f32.mrf.mxu0
        %v4139 = vadd.f32 0.0, %v4138
        %v4140 = vpop.f32.mrf.mxu0
        %4141 = vmatprep.mubr.bf16.mxu0 0
        %4142 = vmatmul.mubr.bf16.gmra.mxu0 %v3295
        %v4143 = vpop.f32.mrf.mxu0
        %v4144 = vadd.f32 0.0, %v4143
        %v4145 = vpop.f32.mrf.mxu0
        %v4146 = vpop.f32.mrf.mxu0
        %v4147 = vadd.f32 0.0, %v4146
        %v4148 = vpop.f32.mrf.mxu0
        %4149 = vmatprep.mubr.bf16.mxu0 0
        %4150 = vmatmul.mubr.bf16.gmra.mxu0 %v3298
        %v4151 = vpop.f32.mrf.mxu0
        %v4152 = vadd.f32 0.0, %v4151
        %v4153 = vpop.f32.mrf.mxu0
        %v4154 = vpop.f32.mrf.mxu0
        %v4155 = vadd.f32 0.0, %v4154
        %v4156 = vpop.f32.mrf.mxu0
        %4157 = vmatprep.mubr.bf16.mxu0 0
        %4158 = vmatmul.mubr.bf16.gmra.mxu0 %v3301
        %v4159 = vpop.f32.mrf.mxu0
        %v4160 = vadd.f32 0.0, %v4159
        %v4161 = vpop.f32.mrf.mxu0
        %v4162 = vpop.f32.mrf.mxu0
        %v4163 = vadd.f32 0.0, %v4162
        %v4164 = vpop.f32.mrf.mxu0
        %4165 = vmatprep.mubr.bf16.mxu0 0
        %4166 = vmatmul.mubr.bf16.gmra.mxu0 %v3304
        %v4167 = vpop.f32.mrf.mxu0
        %v4168 = vadd.f32 0.0, %v4167
        %v4169 = vpop.f32.mrf.mxu0
        %v4170 = vpop.f32.mrf.mxu0
        %v4171 = vadd.f32 0.0, %v4170
        %v4172 = vpop.f32.mrf.mxu0
        %4173 = vmatprep.mubr.bf16.mxu0 0
        %4174 = vmatmul.mubr.bf16.gmra.mxu0 %v3307
        %v4175 = vpop.f32.mrf.mxu0
        %v4176 = vadd.f32 0.0, %v4175
        %v4177 = vpop.f32.mrf.mxu0
        %v4178 = vpop.f32.mrf.mxu0
        %v4179 = vadd.f32 0.0, %v4178
        %v4180 = vpop.f32.mrf.mxu0
        %4181 = vmatprep.mubr.bf16.mxu0 0
        %4182 = vmatmul.mubr.bf16.gmra.mxu0 %v3310
        %v4183 = vpop.f32.mrf.mxu0
        %v4184 = vadd.f32 0.0, %v4183
        %v4185 = vpop.f32.mrf.mxu0
        %v4186 = vpop.f32.mrf.mxu0
        %v4187 = vadd.f32 0.0, %v4186
        %v4188 = vpop.f32.mrf.mxu0
        %4189 = vmatprep.mubr.bf16.mxu0 0
        %4190 = vmatmul.mubr.bf16.gmra.mxu0 %v3313
        %v4191 = vpop.f32.mrf.mxu0
        %v4192 = vadd.f32 0.0, %v4191
        %v4193 = vpop.f32.mrf.mxu0
        %v4194 = vpop.f32.mrf.mxu0
        %v4195 = vadd.f32 0.0, %v4194
        %v4196 = vpop.f32.mrf.mxu0
        %4197 = vmatprep.mubr.bf16.mxu0 0
        %4198 = vmatmul.mubr.bf16.gmra.mxu0 %v3316
        %v4199 = vpop.f32.mrf.mxu0
        %v4200 = vadd.f32 0.0, %v4199
        %v4201 = vpop.f32.mrf.mxu0
        %v4202 = vpop.f32.mrf.mxu0
        %v4203 = vadd.f32 0.0, %v4202
        %v4204 = vpop.f32.mrf.mxu0
        %4205 = vmatprep.mubr.bf16.mxu0 0
        %4206 = vmatmul.mubr.bf16.gmra.mxu0 %v3319
        %v4207 = vpop.f32.mrf.mxu0
        %v4208 = vadd.f32 0.0, %v4207
        %v4209 = vpop.f32.mrf.mxu0
        %v4210 = vpop.f32.mrf.mxu0
        %v4211 = vadd.f32 0.0, %v4210
        %v4212 = vpop.f32.mrf.mxu0
        %4213 = vmatprep.mubr.bf16.mxu0 0
        %4214 = vmatmul.mubr.bf16.gmra.mxu0 %v3322
        %v4215 = vpop.f32.mrf.mxu0
        %v4216 = vadd.f32 0.0, %v4215
        %v4217 = vpop.f32.mrf.mxu0
        %v4218 = vpop.f32.mrf.mxu0
        %v4219 = vadd.f32 0.0, %v4218
        %v4220 = vpop.f32.mrf.mxu0
        %4221 = vmatprep.mubr.bf16.mxu0 0
        %4222 = vmatmul.mubr.bf16.gmra.mxu0 %v3325
        %v4223 = vpop.f32.mrf.mxu0
        %v4224 = vadd.f32 0.0, %v4223
        %v4225 = vpop.f32.mrf.mxu0
        %v4226 = vpop.f32.mrf.mxu0
        %v4227 = vadd.f32 0.0, %v4226
        %v4228 = vpop.f32.mrf.mxu0
        %4229 = vmatprep.mubr.bf16.mxu0 0
        %4230 = vmatmul.mubr.bf16.gmra.mxu0 %v3328
        %v4231 = vpop.f32.mrf.mxu0
        %v4232 = vadd.f32 0.0, %v4231
        %v4233 = vpop.f32.mrf.mxu0
        %v4234 = vpop.f32.mrf.mxu0
        %v4235 = vadd.f32 0.0, %v4234
        %v4236 = vpop.f32.mrf.mxu0
        %4237 = vmatprep.mubr.bf16.mxu0 0
        %4238 = vmatmul.mubr.bf16.gmra.mxu0 %v3331
        %v4239 = vpop.f32.mrf.mxu0
        %v4240 = vadd.f32 0.0, %v4239
        %v4241 = vpop.f32.mrf.mxu0
        %v4242 = vpop.f32.mrf.mxu0
        %v4243 = vadd.f32 0.0, %v4242
        %v4244 = vpop.f32.mrf.mxu0
        %4245 = vmatprep.mubr.bf16.mxu0 0
        %4246 = vmatmul.mubr.bf16.gmra.mxu0 %v3334
        %v4247 = vpop.f32.mrf.mxu0
        %v4248 = vadd.f32 0.0, %v4247
        %v4249 = vpop.f32.mrf.mxu0
        %v4250 = vpop.f32.mrf.mxu0
        %v4251 = vadd.f32 0.0, %v4250
        %v4252 = vpop.f32.mrf.mxu0
        %4253 = vmatprep.mubr.bf16.mxu0 0
        %4254 = vmatmul.mubr.bf16.gmra.mxu0 %v3337
        %v4255 = vpop.f32.mrf.mxu0
        %v4256 = vadd.f32 0.0, %v4255
        %v4257 = vpop.f32.mrf.mxu0
        %v4258 = vpop.f32.mrf.mxu0
        %v4259 = vadd.f32 0.0, %v4258
        %v4260 = vpop.f32.mrf.mxu0
        %4261 = vmatprep.mubr.bf16.mxu0 0
        %4262 = vmatmul.mubr.bf16.gmra.mxu0 %v3340
        %v4263 = vpop.f32.mrf.mxu0
        %v4264 = vadd.f32 0.0, %v4263
        %v4265 = vpop.f32.mrf.mxu0
        %v4266 = vpop.f32.mrf.mxu0
        %v4267 = vadd.f32 0.0, %v4266
        %v4268 = vpop.f32.mrf.mxu0
        %4269 = vmatprep.mubr.bf16.mxu0 0
        %4270 = vmatmul.mubr.bf16.gmra.mxu0 %v3343
        %v4271 = vpop.f32.mrf.mxu0
        %v4272 = vadd.f32 0.0, %v4271
        %v4273 = vpop.f32.mrf.mxu0
        %v4274 = vpop.f32.mrf.mxu0
        %v4275 = vadd.f32 0.0, %v4274
        %v4276 = vpop.f32.mrf.mxu0
        %4277 = vmatprep.mubr.bf16.mxu0 0
        %4278 = vmatmul.mubr.bf16.gmra.mxu0 %v3346
        %v4279 = vpop.f32.mrf.mxu0
        %v4280 = vadd.f32 0.0, %v4279
        %v4281 = vpop.f32.mrf.mxu0
        %v4282 = vpop.f32.mrf.mxu0
        %v4283 = vadd.f32 0.0, %v4282
        %v4284 = vpop.f32.mrf.mxu0
        %4285 = vmatprep.mubr.bf16.mxu0 0
        %4286 = vmatmul.mubr.bf16.gmra.mxu0 %v3349
        %v4287 = vpop.f32.mrf.mxu0
        %v4288 = vadd.f32 0.0, %v4287
        %v4289 = vpop.f32.mrf.mxu0
        %v4290 = vpop.f32.mrf.mxu0
        %v4291 = vadd.f32 0.0, %v4290
        %v4292 = vpop.f32.mrf.mxu0
        %4293 = vmatprep.mubr.bf16.mxu0 0
        %4294 = vmatmul.mubr.bf16.gmra.mxu0 %v3352
        %v4295 = vpop.f32.mrf.mxu0
        %v4296 = vadd.f32 0.0, %v4295
        %v4297 = vpop.f32.mrf.mxu0
        %v4298 = vpop.f32.mrf.mxu0
        %v4299 = vadd.f32 0.0, %v4298
        %v4300 = vpop.f32.mrf.mxu0
        %4301 = vmatprep.mubr.bf16.mxu0 0
        %4302 = vmatmul.mubr.bf16.gmra.mxu0 %v3355
        %v4303 = vpop.f32.mrf.mxu0
        %v4304 = vadd.f32 0.0, %v4303
        %v4305 = vpop.f32.mrf.mxu0
        %v4306 = vpop.f32.mrf.mxu0
        %v4307 = vadd.f32 0.0, %v4306
        %v4308 = vpop.f32.mrf.mxu0
        %4309 = vmatprep.mubr.bf16.mxu0 0
        %4310 = vmatmul.mubr.bf16.gmra.mxu0 %v3358
        %v4311 = vpop.f32.mrf.mxu0
        %v4312 = vadd.f32 0.0, %v4311
        %v4313 = vpop.f32.mrf.mxu0
        %v4314 = vpop.f32.mrf.mxu0
        %v4315 = vadd.f32 0.0, %v4314
        %v4316 = vpop.f32.mrf.mxu0
        %4317 = vmatprep.mubr.bf16.mxu0 0
        %4318 = vmatmul.mubr.bf16.gmra.mxu0 %v3361
        %v4319 = vpop.f32.mrf.mxu0
        %v4320 = vadd.f32 0.0, %v4319
        %v4321 = vpop.f32.mrf.mxu0
        %v4322 = vpop.f32.mrf.mxu0
        %v4323 = vadd.f32 0.0, %v4322
        %v4324 = vpop.f32.mrf.mxu0
        %4325 = vmatprep.mubr.bf16.mxu0 0
        %4326 = vmatmul.mubr.bf16.gmra.mxu0 %v3364
        %v4327 = vpop.f32.mrf.mxu0
        %v4328 = vadd.f32 0.0, %v4327
        %v4329 = vpop.f32.mrf.mxu0
        %v4330 = vpop.f32.mrf.mxu0
        %v4331 = vadd.f32 0.0, %v4330
        %v4332 = vpop.f32.mrf.mxu0
        %4333 = vmatprep.mubr.bf16.mxu0 0
        %4334 = vmatmul.mubr.bf16.gmra.mxu0 %v3367
        %v4335 = vpop.f32.mrf.mxu0
        %v4336 = vadd.f32 0.0, %v4335
        %v4337 = vpop.f32.mrf.mxu0
        %v4338 = vpop.f32.mrf.mxu0
        %v4339 = vadd.f32 0.0, %v4338
        %v4340 = vpop.f32.mrf.mxu0
        %4341 = vmatprep.mubr.bf16.mxu0 0
        %4342 = vmatmul.mubr.bf16.gmra.mxu0 %v3370
        %v4343 = vpop.f32.mrf.mxu0
        %v4344 = vadd.f32 0.0, %v4343
        %v4345 = vpop.f32.mrf.mxu0
        %v4346 = vpop.f32.mrf.mxu0
        %v4347 = vadd.f32 0.0, %v4346
        %v4348 = vpop.f32.mrf.mxu0
        %4349 = vmatprep.mubr.bf16.mxu0 0
        %4350 = vmatmul.mubr.bf16.gmra.mxu0 %v3373
        %v4351 = vpop.f32.mrf.mxu0
        %v4352 = vadd.f32 0.0, %v4351
        %v4353 = vpop.f32.mrf.mxu0
        %v4354 = vpop.f32.mrf.mxu0
        %v4355 = vadd.f32 0.0, %v4354
        %v4356 = vpop.f32.mrf.mxu0
        %4357 = vmatprep.mubr.bf16.mxu0 0
        %4358 = vmatmul.mubr.bf16.gmra.mxu0 %v3376
        %v4359 = vpop.f32.mrf.mxu0
        %v4360 = vadd.f32 0.0, %v4359
        %v4361 = vpop.f32.mrf.mxu0
        %v4362 = vpop.f32.mrf.mxu0
        %v4363 = vadd.f32 0.0, %v4362
        %v4364 = vpop.f32.mrf.mxu0
        %4365 = vmatprep.mubr.bf16.mxu0 0
        %4366 = vmatmul.mubr.bf16.gmra.mxu0 %v3379
        %v4367 = vpop.f32.mrf.mxu0
        %v4368 = vadd.f32 0.0, %v4367
        %v4369 = vpop.f32.mrf.mxu0
        %v4370 = vpop.f32.mrf.mxu0
        %v4371 = vadd.f32 0.0, %v4370
        %v4372 = vpop.f32.mrf.mxu0
        %4373 = vmatprep.mubr.bf16.mxu0 0
        %4374 = vmatmul.mubr.bf16.gmra.mxu0 %v3382
        %v4375 = vpop.f32.mrf.mxu0
        %v4376 = vadd.f32 0.0, %v4375
        %v4377 = vpop.f32.mrf.mxu0
        %v4378 = vpop.f32.mrf.mxu0
        %v4379 = vadd.f32 0.0, %v4378
        %v4380 = vpop.f32.mrf.mxu0
        %4381 = vmatprep.mubr.bf16.mxu0 0
        %4382 = vmatmul.mubr.bf16.gmra.mxu0 %v3385
        %v4383 = vpop.f32.mrf.mxu0
        %v4384 = vadd.f32 0.0, %v4383
        %v4385 = vpop.f32.mrf.mxu0
        %v4386 = vpop.f32.mrf.mxu0
        %v4387 = vadd.f32 0.0, %v4386
        %v4388 = vpop.f32.mrf.mxu0
        %4389 = vmatprep.mubr.bf16.mxu0 0
        %4390 = vmatmul.mubr.bf16.gmra.mxu0 %v3388
        %v4391 = vpop.f32.mrf.mxu0
        %v4392 = vadd.f32 0.0, %v4391
        %v4393 = vpop.f32.mrf.mxu0
        %v4394 = vpop.f32.mrf.mxu0
        %v4395 = vadd.f32 0.0, %v4394
        %v4396 = vpop.f32.mrf.mxu0
        %4397 = vmatprep.mubr.bf16.mxu0 0
        %4398 = vmatmul.mubr.bf16.gmra.mxu0 %v3391
        %v4399 = vpop.f32.mrf.mxu0
        %v4400 = vadd.f32 0.0, %v4399
        %v4401 = vpop.f32.mrf.mxu0
        %v4402 = vpop.f32.mrf.mxu0
        %v4403 = vadd.f32 0.0, %v4402
        %v4404 = vpop.f32.mrf.mxu0
        %4405 = vmatprep.mubr.bf16.mxu0 0
        %4406 = vmatmul.mubr.bf16.gmra.mxu0 %v3394
        %v4407 = vpop.f32.mrf.mxu0
        %v4408 = vadd.f32 0.0, %v4407
        %v4409 = vpop.f32.mrf.mxu0
        %v4410 = vpop.f32.mrf.mxu0
        %v4411 = vadd.f32 0.0, %v4410
        %v4412 = vpop.f32.mrf.mxu0
        %4413 = vmatprep.mubr.bf16.mxu0 0
        %4414 = vmatmul.mubr.bf16.gmra.mxu0 %v3397
        %v4415 = vpop.f32.mrf.mxu0
        %v4416 = vadd.f32 0.0, %v4415
        %v4417 = vpop.f32.mrf.mxu0
        %v4418 = vpop.f32.mrf.mxu0
        %v4419 = vadd.f32 0.0, %v4418
        %v4420 = vpop.f32.mrf.mxu0
        %4421 = vmatprep.mubr.bf16.mxu0 0
        %4422 = vmatmul.mubr.bf16.gmra.mxu0 %v3400
        %v4423 = vpop.f32.mrf.mxu0
        %v4424 = vadd.f32 0.0, %v4423
        %v4425 = vpop.f32.mrf.mxu0
        %v4426 = vpop.f32.mrf.mxu0
        %v4427 = vadd.f32 0.0, %v4426
        %v4428 = vpop.f32.mrf.mxu0
        %4429 = vmatprep.mubr.bf16.mxu0 0
        %4430 = vmatmul.mubr.bf16.gmra.mxu0 %v3403
        %v4431 = vpop.f32.mrf.mxu0
        %v4432 = vadd.f32 0.0, %v4431
        %v4433 = vpop.f32.mrf.mxu0
        %v4434 = vpop.f32.mrf.mxu0
        %v4435 = vadd.f32 0.0, %v4434
        %v4436 = vpop.f32.mrf.mxu0
        %4437 = vmatprep.mubr.bf16.mxu0 0
        %4438 = vmatmul.mubr.bf16.gmra.mxu0 %v3406
        %v4439 = vpop.f32.mrf.mxu0
        %v4440 = vadd.f32 0.0, %v4439
        %v4441 = vpop.f32.mrf.mxu0
        %v4442 = vpop.f32.mrf.mxu0
        %v4443 = vadd.f32 0.0, %v4442
        %v4444 = vpop.f32.mrf.mxu0
        %4445 = vmatprep.mubr.bf16.mxu0 0
        %4446 = vmatmul.mubr.bf16.gmra.mxu0 %v3409
        %v4447 = vpop.f32.mrf.mxu0
        %v4448 = vadd.f32 0.0, %v4447
        %v4449 = vpop.f32.mrf.mxu0
        %v4450 = vpop.f32.mrf.mxu0
        %v4451 = vadd.f32 0.0, %v4450
        %v4452 = vpop.f32.mrf.mxu0
        %4453 = vmatprep.mubr.bf16.mxu0 0
        %4454 = vmatmul.mubr.bf16.gmra.mxu0 %v3412
        %v4455 = vpop.f32.mrf.mxu0
        %v4456 = vadd.f32 0.0, %v4455
        %v4457 = vpop.f32.mrf.mxu0
        %v4458 = vpop.f32.mrf.mxu0
        %v4459 = vadd.f32 0.0, %v4458
        %v4460 = vpop.f32.mrf.mxu0
        %4461 = vmatprep.mubr.bf16.mxu0 0
        %4462 = vmatmul.mubr.bf16.gmra.mxu0 %v3415
        %v4463 = vpop.f32.mrf.mxu0
        %v4464 = vadd.f32 0.0, %v4463
        %v4465 = vpop.f32.mrf.mxu0
        %v4466 = vpop.f32.mrf.mxu0
        %v4467 = vadd.f32 0.0, %v4466
        %v4468 = vpop.f32.mrf.mxu0
        %4469 = vmatprep.mubr.bf16.mxu0 0
        %4470 = vmatmul.mubr.bf16.gmra.mxu0 %v3418
        %v4471 = vpop.f32.mrf.mxu0
        %v4472 = vadd.f32 0.0, %v4471
        %v4473 = vpop.f32.mrf.mxu0
        %v4474 = vpop.f32.mrf.mxu0
        %v4475 = vadd.f32 0.0, %v4474
        %v4476 = vpop.f32.mrf.mxu0
        %4477 = vmatprep.mubr.bf16.mxu0 0
        %4478 = vmatmul.mubr.bf16.gmra.mxu0 %v3421
        %v4479 = vpop.f32.mrf.mxu0
        %v4480 = vadd.f32 0.0, %v4479
        %v4481 = vpop.f32.mrf.mxu0
        %v4482 = vpop.f32.mrf.mxu0
        %v4483 = vadd.f32 0.0, %v4482
        %v4484 = vpop.f32.mrf.mxu0
        %4485 = vmatprep.mubr.bf16.mxu0 0
        %4486 = vmatmul.mubr.bf16.gmra.mxu0 %v3424
        %v4487 = vpop.f32.mrf.mxu0
        %v4488 = vadd.f32 0.0, %v4487
        %v4489 = vpop.f32.mrf.mxu0
        %v4490 = vpop.f32.mrf.mxu0
        %v4491 = vadd.f32 0.0, %v4490
        %v4492 = vpop.f32.mrf.mxu0
        %4493 = vmatprep.mubr.bf16.mxu0 0
        %4494 = vmatmul.mubr.bf16.gmra.mxu0 %v3427
        %v4495 = vpop.f32.mrf.mxu0
        %v4496 = vadd.f32 0.0, %v4495
        %v4497 = vpop.f32.mrf.mxu0
        %v4498 = vpop.f32.mrf.mxu0
        %v4499 = vadd.f32 0.0, %v4498
        %v4500 = vpop.f32.mrf.mxu0
        %4501 = vmatprep.mubr.bf16.mxu0 0
        %4502 = vmatmul.mubr.bf16.gmra.mxu0 %v3430
        %v4503 = vpop.f32.mrf.mxu0
        %v4504 = vadd.f32 0.0, %v4503
        %v4505 = vpop.f32.mrf.mxu0
        %v4506 = vpop.f32.mrf.mxu0
        %v4507 = vadd.f32 0.0, %v4506
        %v4508 = vpop.f32.mrf.mxu0
        %4509 = vmatprep.mubr.bf16.mxu0 0
        %4510 = vmatmul.mubr.bf16.gmra.mxu0 %v3433
        %v4511 = vpop.f32.mrf.mxu0
        %v4512 = vadd.f32 0.0, %v4511
        %v4513 = vpop.f32.mrf.mxu0
        %v4514 = vpop.f32.mrf.mxu0
        %v4515 = vadd.f32 0.0, %v4514
        %v4516 = vpop.f32.mrf.mxu0
        %4517 = vmatprep.mubr.bf16.mxu0 0
        %4518 = vmatmul.mubr.bf16.gmra.mxu0 %v3436
        %v4519 = vpop.f32.mrf.mxu0
        %v4520 = vadd.f32 0.0, %v4519
        %v4521 = vpop.f32.mrf.mxu0
        %v4522 = vpop.f32.mrf.mxu0
        %v4523 = vadd.f32 0.0, %v4522
        %v4524 = vpop.f32.mrf.mxu0
        %4525 = vmatprep.mubr.bf16.mxu0 0
        %4526 = vmatmul.mubr.bf16.gmra.mxu0 %v3439
        %v4527 = vpop.f32.mrf.mxu0
        %v4528 = vadd.f32 0.0, %v4527
        %v4529 = vpop.f32.mrf.mxu0
        %v4530 = vpop.f32.mrf.mxu0
        %v4531 = vadd.f32 0.0, %v4530
        %v4532 = vpop.f32.mrf.mxu0
        %4533 = vmatprep.mubr.bf16.mxu0 0
        %4534 = vmatmul.mubr.bf16.gmra.mxu0 %v3442
        %v4535 = vpop.f32.mrf.mxu0
        %v4536 = vadd.f32 0.0, %v4535
        %v4537 = vpop.f32.mrf.mxu0
        %v4538 = vpop.f32.mrf.mxu0
        %v4539 = vadd.f32 0.0, %v4538
        %v4540 = vpop.f32.mrf.mxu0
        %4541 = vmatprep.mubr.bf16.mxu0 0
        %4542 = vmatmul.mubr.bf16.gmra.mxu0 %v3445
        %v4543 = vpop.f32.mrf.mxu0
        %v4544 = vadd.f32 0.0, %v4543
        %v4545 = vpop.f32.mrf.mxu0
        %v4546 = vpop.f32.mrf.mxu0
        %v4547 = vadd.f32 0.0, %v4546
        %v4548 = vpop.f32.mrf.mxu0
        %4549 = vmatprep.mubr.bf16.mxu0 0
        %4550 = vmatmul.mubr.bf16.gmra.mxu0 %v3448
        %v4551 = vpop.f32.mrf.mxu0
        %v4552 = vadd.f32 0.0, %v4551
        %v4553 = vpop.f32.mrf.mxu0
        %v4554 = vpop.f32.mrf.mxu0
        %v4555 = vadd.f32 0.0, %v4554
        %v4556 = vpop.f32.mrf.mxu0
        %4557 = vmatprep.mubr.bf16.mxu0 0
        %4558 = vmatmul.mubr.bf16.gmra.mxu0 %v3451
        %v4559 = vpop.f32.mrf.mxu0
        %v4560 = vadd.f32 0.0, %v4559
        %v4561 = vpop.f32.mrf.mxu0
        %v4562 = vpop.f32.mrf.mxu0
        %v4563 = vadd.f32 0.0, %v4562
        %v4564 = vpop.f32.mrf.mxu0
        %4565 = vmatprep.mubr.bf16.mxu0 0
        %4566 = vmatmul.mubr.bf16.gmra.mxu0 %v3454
        %v4567 = vpop.f32.mrf.mxu0
        %v4568 = vadd.f32 0.0, %v4567
        %v4569 = vpop.f32.mrf.mxu0
        %v4570 = vpop.f32.mrf.mxu0
        %v4571 = vadd.f32 0.0, %v4570
        %v4572 = vpop.f32.mrf.mxu0
        %4573 = vmatprep.mubr.bf16.mxu0 0
        %4574 = vmatmul.mubr.bf16.gmra.mxu0 %v3457
        %v4575 = vpop.f32.mrf.mxu0
        %v4576 = vadd.f32 0.0, %v4575
        %v4577 = vpop.f32.mrf.mxu0
        %v4578 = vpop.f32.mrf.mxu0
        %v4579 = vadd.f32 0.0, %v4578
        %v4580 = vpop.f32.mrf.mxu0
        %4581 = vmatprep.mubr.bf16.mxu0 0
        %4582 = vmatmul.mubr.bf16.gmra.mxu0 %v3460
        %v4583 = vpop.f32.mrf.mxu0
        %v4584 = vadd.f32 0.0, %v4583
        %v4585 = vpop.f32.mrf.mxu0
        %v4586 = vpop.f32.mrf.mxu0
        %v4587 = vadd.f32 0.0, %v4586
        %v4588 = vpop.f32.mrf.mxu0
        %4589 = vmatprep.mubr.bf16.mxu0 0
        %4590 = vmatmul.mubr.bf16.gmra.mxu0 %v3463
        %v4591 = vpop.f32.mrf.mxu0
        %v4592 = vadd.f32 0.0, %v4591
        %v4593 = vpop.f32.mrf.mxu0
        %v4594 = vpop.f32.mrf.mxu0
        %v4595 = vadd.f32 0.0, %v4594
        %v4596 = vpop.f32.mrf.mxu0
        %4597 = vmatprep.mubr.bf16.mxu0 0
        %4598 = vmatmul.mubr.bf16.gmra.mxu0 %v3466
        %v4599 = vpop.f32.mrf.mxu0
        %v4600 = vadd.f32 0.0, %v4599
        %v4601 = vpop.f32.mrf.mxu0
        %v4602 = vpop.f32.mrf.mxu0
        %v4603 = vadd.f32 0.0, %v4602
        %v4604 = vpop.f32.mrf.mxu0
        %4605 = vmatprep.mubr.bf16.mxu0 0
        %4606 = vmatmul.mubr.bf16.gmra.mxu0 %v3469
        %v4607 = vpop.f32.mrf.mxu0
        %v4608 = vadd.f32 0.0, %v4607
        %v4609 = vpop.f32.mrf.mxu0
        %v4610 = vpop.f32.mrf.mxu0
        %v4611 = vadd.f32 0.0, %v4610
        %v4612 = vpop.f32.mrf.mxu0
        %4613 = vmatprep.mubr.bf16.mxu0 0
        %4614 = vmatmul.mubr.bf16.gmra.mxu0 %v3472
        %v4615 = vpop.f32.mrf.mxu0
        %v4616 = vadd.f32 0.0, %v4615
        %v4617 = vpop.f32.mrf.mxu0
        %v4618 = vpop.f32.mrf.mxu0
        %v4619 = vadd.f32 0.0, %v4618
        %v4620 = vpop.f32.mrf.mxu0
        %4621 = vmatprep.mubr.bf16.mxu0 0
        %4622 = vmatmul.mubr.bf16.gmra.mxu0 %v3475
        %v4623 = vpop.f32.mrf.mxu0
        %v4624 = vadd.f32 0.0, %v4623
        %v4625 = vpop.f32.mrf.mxu0
        %v4626 = vpop.f32.mrf.mxu0
        %v4627 = vadd.f32 0.0, %v4626
        %v4628 = vpop.f32.mrf.mxu0
        %4629 = vmatprep.mubr.bf16.mxu0 0
        %4630 = vmatmul.mubr.bf16.gmra.mxu0 %v3478
        %v4631 = vpop.f32.mrf.mxu0
        %v4632 = vadd.f32 0.0, %v4631
        %v4633 = vpop.f32.mrf.mxu0
        %v4634 = vpop.f32.mrf.mxu0
        %v4635 = vadd.f32 0.0, %v4634
        %v4636 = vpop.f32.mrf.mxu0
        %4637 = vmatprep.mubr.bf16.mxu0 0
        %4638 = vmatmul.mubr.bf16.gmra.mxu0 %v3481
        %v4639 = vpop.f32.mrf.mxu0
        %v4640 = vadd.f32 0.0, %v4639
        %v4641 = vpop.f32.mrf.mxu0
        %v4642 = vpop.f32.mrf.mxu0
        %v4643 = vadd.f32 0.0, %v4642
        %v4644 = vpop.f32.mrf.mxu0
        %4645 = vmatprep.mubr.bf16.mxu0 0
        %4646 = vmatmul.mubr.bf16.gmra.mxu0 %v3484
        %v4647 = vpop.f32.mrf.mxu0
        %v4648 = vadd.f32 0.0, %v4647
        %v4649 = vpop.f32.mrf.mxu0
        %v4650 = vpop.f32.mrf.mxu0
        %v4651 = vadd.f32 0.0, %v4650
        %v4652 = vpop.f32.mrf.mxu0
        %4653 = vmatprep.mubr.bf16.mxu0 0
        %4654 = vmatmul.mubr.bf16.gmra.mxu0 %v3487
        %v4655 = vpop.f32.mrf.mxu0
        %v4656 = vadd.f32 0.0, %v4655
        %v4657 = vpop.f32.mrf.mxu0
        %v4658 = vpop.f32.mrf.mxu0
        %v4659 = vadd.f32 0.0, %v4658
        %v4660 = vpop.f32.mrf.mxu0
        %4661 = vmatprep.mubr.bf16.mxu0 0
        %4662 = vmatmul.mubr.bf16.gmra.mxu0 %v3490
        %v4663 = vpop.f32.mrf.mxu0
        %v4664 = vadd.f32 0.0, %v4663
        %v4665 = vpop.f32.mrf.mxu0
        %v4666 = vpop.f32.mrf.mxu0
        %v4667 = vadd.f32 0.0, %v4666
        %v4668 = vpop.f32.mrf.mxu0
        %4669 = vmatprep.mubr.bf16.mxu0 0
        %4670 = vmatmul.mubr.bf16.gmra.mxu0 %v3493
        %v4671 = vpop.f32.mrf.mxu0
        %v4672 = vadd.f32 0.0, %v4671
        %v4673 = vpop.f32.mrf.mxu0
        %v4674 = vpop.f32.mrf.mxu0
        %v4675 = vadd.f32 0.0, %v4674
        %v4676 = vpop.f32.mrf.mxu0
        %4677 = vmatprep.mubr.bf16.mxu0 0
        %4678 = vmatmul.mubr.bf16.gmra.mxu0 %v3496
        %v4679 = vpop.f32.mrf.mxu0
        %v4680 = vadd.f32 0.0, %v4679
        %v4681 = vpop.f32.mrf.mxu0
        %v4682 = vpop.f32.mrf.mxu0
        %v4683 = vadd.f32 0.0, %v4682
        %v4684 = vpop.f32.mrf.mxu0
        %4685 = vmatprep.mubr.bf16.mxu0 0
        %4686 = vmatmul.mubr.bf16.gmra.mxu0 %v3499
        %v4687 = vpop.f32.mrf.mxu0
        %v4688 = vadd.f32 0.0, %v4687
        %v4689 = vpop.f32.mrf.mxu0
        %v4690 = vpop.f32.mrf.mxu0
        %v4691 = vadd.f32 0.0, %v4690
        %v4692 = vpop.f32.mrf.mxu0
        %4693 = vmatprep.mubr.bf16.mxu0 0
        %4694 = vmatmul.mubr.bf16.gmra.mxu0 %v3502
        %v4695 = vpop.f32.mrf.mxu0
        %v4696 = vadd.f32 0.0, %v4695
        %v4697 = vpop.f32.mrf.mxu0
        %v4698 = vpop.f32.mrf.mxu0
        %v4699 = vadd.f32 0.0, %v4698
        %v4700 = vpop.f32.mrf.mxu0
        %4701 = vmatprep.mubr.bf16.mxu0 0
        %4702 = vmatmul.mubr.bf16.gmra.mxu0 %v3505
        %v4703 = vpop.f32.mrf.mxu0
        %v4704 = vadd.f32 0.0, %v4703
        %v4705 = vpop.f32.mrf.mxu0
        %v4706 = vpop.f32.mrf.mxu0
        %v4707 = vadd.f32 0.0, %v4706
        %v4708 = vpop.f32.mrf.mxu0
        %4709 = vmatprep.mubr.bf16.mxu0 0
        %4710 = vmatmul.mubr.bf16.gmra.mxu0 %v3508
        %v4711 = vpop.f32.mrf.mxu0
        %v4712 = vadd.f32 0.0, %v4711
        %v4713 = vpop.f32.mrf.mxu0
        %v4714 = vpop.f32.mrf.mxu0
        %v4715 = vadd.f32 0.0, %v4714
        %v4716 = vpop.f32.mrf.mxu0
        %4717 = vmatprep.mubr.bf16.mxu0 0
        %4718 = vmatmul.mubr.bf16.gmra.mxu0 %v3511
        %v4719 = vpop.f32.mrf.mxu0
        %v4720 = vadd.f32 0.0, %v4719
        %v4721 = vpop.f32.mrf.mxu0
        %v4722 = vpop.f32.mrf.mxu0
        %v4723 = vadd.f32 0.0, %v4722
        %v4724 = vpop.f32.mrf.mxu0
        %4725 = vmatprep.mubr.bf16.mxu0 0
        %4726 = vmatmul.mubr.bf16.gmra.mxu0 %v3514
        %v4727 = vpop.f32.mrf.mxu0
        %v4728 = vadd.f32 0.0, %v4727
        %v4729 = vpop.f32.mrf.mxu0
        %v4730 = vpop.f32.mrf.mxu0
        %v4731 = vadd.f32 0.0, %v4730
        %v4732 = vpop.f32.mrf.mxu0
        %4733 = vmatprep.mubr.bf16.mxu0 0
        %4734 = vmatmul.mubr.bf16.gmra.mxu0 %v3517
        %v4735 = vpop.f32.mrf.mxu0
        %v4736 = vadd.f32 0.0, %v4735
        %v4737 = vpop.f32.mrf.mxu0
        %v4738 = vpop.f32.mrf.mxu0
        %v4739 = vadd.f32 0.0, %v4738
        %v4740 = vpop.f32.mrf.mxu0
        %4741 = vmatprep.mubr.bf16.mxu0 0
        %4742 = vmatmul.mubr.bf16.gmra.mxu0 %v3520
        %v4743 = vpop.f32.mrf.mxu0
        %v4744 = vadd.f32 0.0, %v4743
        %v4745 = vpop.f32.mrf.mxu0
        %v4746 = vpop.f32.mrf.mxu0
        %v4747 = vadd.f32 0.0, %v4746
        %v4748 = vpop.f32.mrf.mxu0
        %4749 = vmatprep.mubr.bf16.mxu0 0
        %4750 = vmatmul.mubr.bf16.gmra.mxu0 %v3523
        %v4751 = vpop.f32.mrf.mxu0
        %v4752 = vadd.f32 0.0, %v4751
        %v4753 = vpop.f32.mrf.mxu0
        %v4754 = vpop.f32.mrf.mxu0
        %v4755 = vadd.f32 0.0, %v4754
        %v4756 = vpop.f32.mrf.mxu0
        %4757 = vmatprep.mubr.bf16.mxu0 0
        %4758 = vmatmul.mubr.bf16.gmra.mxu0 %v3526
        %v4759 = vpop.f32.mrf.mxu0
        %v4760 = vadd.f32 0.0, %v4759
        %v4761 = vpop.f32.mrf.mxu0
        %v4762 = vpop.f32.mrf.mxu0
        %v4763 = vadd.f32 0.0, %v4762
        %v4764 = vpop.f32.mrf.mxu0
        %4765 = vmatprep.mubr.bf16.mxu0 0
        %4766 = vmatmul.mubr.bf16.gmra.mxu0 %v3529
        %v4767 = vpop.f32.mrf.mxu0
        %v4768 = vadd.f32 0.0, %v4767
        %v4769 = vpop.f32.mrf.mxu0
        %v4770 = vpop.f32.mrf.mxu0
        %v4771 = vadd.f32 0.0, %v4770
        %v4772 = vpop.f32.mrf.mxu0
        %4773 = vmatprep.mubr.bf16.mxu0 0
        %4774 = vmatmul.mubr.bf16.gmra.mxu0 %v3532
        %v4775 = vpop.f32.mrf.mxu0
        %v4776 = vadd.f32 0.0, %v4775
        %v4777 = vpop.f32.mrf.mxu0
        %v4778 = vpop.f32.mrf.mxu0
        %v4779 = vadd.f32 0.0, %v4778
        %v4780 = vpop.f32.mrf.mxu0
        %4781 = vmatprep.mubr.bf16.mxu0 0
        %4782 = vmatmul.mubr.bf16.gmra.mxu0 %v3535
        %v4783 = vpop.f32.mrf.mxu0
        %v4784 = vadd.f32 0.0, %v4783
        %v4785 = vpop.f32.mrf.mxu0
        %v4786 = vpop.f32.mrf.mxu0
        %v4787 = vadd.f32 0.0, %v4786
        %v4788 = vpop.f32.mrf.mxu0
        %4789 = vmatprep.mubr.bf16.mxu0 0
        %4790 = vmatmul.mubr.bf16.gmra.mxu0 %v3538
        %v4791 = vpop.f32.mrf.mxu0
        %v4792 = vadd.f32 0.0, %v4791
        %v4793 = vpop.f32.mrf.mxu0
        %v4794 = vpop.f32.mrf.mxu0
        %v4795 = vadd.f32 0.0, %v4794
        %v4796 = vpop.f32.mrf.mxu0
        %4797 = vmatprep.mubr.bf16.mxu0 0
        %4798 = vmatmul.mubr.bf16.gmra.mxu0 %v3541
        %v4799 = vpop.f32.mrf.mxu0
        %v4800 = vadd.f32 0.0, %v4799
        %v4801 = vpop.f32.mrf.mxu0
        %v4802 = vpop.f32.mrf.mxu0
        %v4803 = vadd.f32 0.0, %v4802
        %v4804 = vpop.f32.mrf.mxu0
        %4805 = vmatprep.mubr.bf16.mxu0 0
        %4806 = vmatmul.mubr.bf16.gmra.mxu0 %v3544
        %v4807 = vpop.f32.mrf.mxu0
        %v4808 = vadd.f32 0.0, %v4807
        %v4809 = vpop.f32.mrf.mxu0
        %v4810 = vpop.f32.mrf.mxu0
        %v4811 = vadd.f32 0.0, %v4810
        %v4812 = vpop.f32.mrf.mxu0
        %4813 = vmatprep.mubr.bf16.mxu0 0
        %4814 = vmatmul.mubr.bf16.gmra.mxu0 %v3547
        %v4815 = vpop.f32.mrf.mxu0
        %v4816 = vadd.f32 0.0, %v4815
        %v4817 = vpop.f32.mrf.mxu0
        %v4818 = vpop.f32.mrf.mxu0
        %v4819 = vadd.f32 0.0, %v4818
        %v4820 = vpop.f32.mrf.mxu0
        %4821 = vmatprep.mubr.bf16.mxu0 0
        %4822 = vmatmul.mubr.bf16.gmra.mxu0 %v3550
        %v4823 = vpop.f32.mrf.mxu0
        %v4824 = vadd.f32 0.0, %v4823
        %v4825 = vpop.f32.mrf.mxu0
        %v4826 = vpop.f32.mrf.mxu0
        %v4827 = vadd.f32 0.0, %v4826
        %v4828 = vpop.f32.mrf.mxu0
        %4829 = vmatprep.mubr.bf16.mxu0 0
        %4830 = vmatmul.mubr.bf16.gmra.mxu0 %v3553
        %v4831 = vpop.f32.mrf.mxu0
        %v4832 = vadd.f32 0.0, %v4831
        %v4833 = vpop.f32.mrf.mxu0
        %v4834 = vpop.f32.mrf.mxu0
        %v4835 = vadd.f32 0.0, %v4834
        %v4836 = vpop.f32.mrf.mxu0
        %4837 = vmatprep.mubr.bf16.mxu0 0
        %4838 = vmatmul.mubr.bf16.gmra.mxu0 %v3556
        %v4839 = vpop.f32.mrf.mxu0
        %v4840 = vadd.f32 0.0, %v4839
        %v4841 = vpop.f32.mrf.mxu0
        %v4842 = vpop.f32.mrf.mxu0
        %v4843 = vadd.f32 0.0, %v4842
        %v4844 = vpop.f32.mrf.mxu0
        %4845 = vmatprep.mubr.bf16.mxu0 0
        %4846 = vmatmul.mubr.bf16.gmra.mxu0 %v3559
        %v4847 = vpop.f32.mrf.mxu0
        %v4848 = vadd.f32 0.0, %v4847
        %v4849 = vpop.f32.mrf.mxu0
        %v4850 = vpop.f32.mrf.mxu0
        %v4851 = vadd.f32 0.0, %v4850
        %v4852 = vpop.f32.mrf.mxu0
        %4853 = vmatprep.mubr.bf16.mxu0 0
        %4854 = vmatmul.mubr.bf16.gmra.mxu0 %v3562
        %v4855 = vpop.f32.mrf.mxu0
        %v4856 = vadd.f32 0.0, %v4855
        %v4857 = vpop.f32.mrf.mxu0
        %v4858 = vpop.f32.mrf.mxu0
        %v4859 = vadd.f32 0.0, %v4858
        %v4860 = vpop.f32.mrf.mxu0
        %4861 = vmatprep.mubr.bf16.mxu0 0
        %4862 = vmatmul.mubr.bf16.gmra.mxu0 %v3565
        %v4863 = vpop.f32.mrf.mxu0
        %v4864 = vadd.f32 0.0, %v4863
        %v4865 = vpop.f32.mrf.mxu0
        %v4866 = vpop.f32.mrf.mxu0
        %v4867 = vadd.f32 0.0, %v4866
        %v4868 = vpop.f32.mrf.mxu0
        %4869 = vmatprep.mubr.bf16.mxu0 0
        %4870 = vmatmul.mubr.bf16.gmra.mxu0 %v3568
        %v4871 = vpop.f32.mrf.mxu0
        %v4872 = vadd.f32 0.0, %v4871
        %v4873 = vpop.f32.mrf.mxu0
        %v4874 = vpop.f32.mrf.mxu0
        %v4875 = vadd.f32 0.0, %v4874
        %v4876 = vpop.f32.mrf.mxu0
        %4877 = vmatprep.mubr.bf16.mxu0 0
        %4878 = vmatmul.mubr.bf16.gmra.mxu0 %v3571
        %v4879 = vpop.f32.mrf.mxu0
        %v4880 = vadd.f32 0.0, %v4879
        %v4881 = vpop.f32.mrf.mxu0
        %v4882 = vpop.f32.mrf.mxu0
        %v4883 = vadd.f32 0.0, %v4882
        %v4884 = vpop.f32.mrf.mxu0
        %4885 = vmatprep.mubr.bf16.mxu0 0
        %4886 = vmatmul.mubr.bf16.gmra.mxu0 %v3574
        %v4887 = vpop.f32.mrf.mxu0
        %v4888 = vadd.f32 0.0, %v4887
        %v4889 = vpop.f32.mrf.mxu0
        %v4890 = vpop.f32.mrf.mxu0
        %v4891 = vadd.f32 0.0, %v4890
        %v4892 = vpop.f32.mrf.mxu0
        %4893 = vmatprep.mubr.bf16.mxu0 0
        %4894 = vmatmul.mubr.bf16.gmra.mxu0 %v3577
        %v4895 = vpop.f32.mrf.mxu0
        %v4896 = vadd.f32 0.0, %v4895
        %v4897 = vpop.f32.mrf.mxu0
        %v4898 = vpop.f32.mrf.mxu0
        %v4899 = vadd.f32 0.0, %v4898
        %v4900 = vpop.f32.mrf.mxu0
        %4901 = vmatprep.mubr.bf16.mxu0 0
        %4902 = vmatmul.mubr.bf16.gmra.mxu0 %v3580
        %v4903 = vpop.f32.mrf.mxu0
        %v4904 = vadd.f32 0.0, %v4903
        %v4905 = vpop.f32.mrf.mxu0
        %v4906 = vpop.f32.mrf.mxu0
        %v4907 = vadd.f32 0.0, %v4906
        %v4908 = vpop.f32.mrf.mxu0
        %4909 = vmatprep.mubr.bf16.mxu0 0
        %4910 = vmatmul.mubr.bf16.gmra.mxu0 %v3583
        %v4911 = vpop.f32.mrf.mxu0
        %v4912 = vadd.f32 0.0, %v4911
        %v4913 = vpop.f32.mrf.mxu0
        %v4914 = vpop.f32.mrf.mxu0
        %v4915 = vadd.f32 0.0, %v4914
        %v4916 = vpop.f32.mrf.mxu0
        %4917 = vmatprep.mubr.bf16.mxu0 0
        %4918 = vmatmul.mubr.bf16.gmra.mxu0 %v3586
        %v4919 = vpop.f32.mrf.mxu0
        %v4920 = vadd.f32 0.0, %v4919
        %v4921 = vpop.f32.mrf.mxu0
        %v4922 = vpop.f32.mrf.mxu0
        %v4923 = vadd.f32 0.0, %v4922
        %v4924 = vpop.f32.mrf.mxu0
        %4925 = vmatprep.mubr.bf16.mxu0 0
        %4926 = vmatmul.mubr.bf16.gmra.mxu0 %v3589
        %v4927 = vpop.f32.mrf.mxu0
        %v4928 = vadd.f32 0.0, %v4927
        %v4929 = vpop.f32.mrf.mxu0
        %v4930 = vpop.f32.mrf.mxu0
        %v4931 = vadd.f32 0.0, %v4930
        %v4932 = vpop.f32.mrf.mxu0
        %4933 = vmatprep.mubr.bf16.mxu0 0
        %4934 = vmatmul.mubr.bf16.gmra.mxu0 %v3592
        %v4935 = vpop.f32.mrf.mxu0
        %v4936 = vadd.f32 0.0, %v4935
        %v4937 = vpop.f32.mrf.mxu0
        %v4938 = vpop.f32.mrf.mxu0
        %v4939 = vadd.f32 0.0, %v4938
        %v4940 = vpop.f32.mrf.mxu0
        %4941 = vmatprep.mubr.bf16.mxu0 0
        %4942 = vmatmul.mubr.bf16.gmra.mxu0 %v3595
        %v4943 = vpop.f32.mrf.mxu0
        %v4944 = vadd.f32 0.0, %v4943
        %v4945 = vpop.f32.mrf.mxu0
        %v4946 = vpop.f32.mrf.mxu0
        %v4947 = vadd.f32 0.0, %v4946
        %v4948 = vpop.f32.mrf.mxu0
        %4949 = vmatprep.mubr.bf16.mxu0 0
        %4950 = vmatmul.mubr.bf16.gmra.mxu0 %v3598
        %v4951 = vpop.f32.mrf.mxu0
        %v4952 = vadd.f32 0.0, %v4951
        %v4953 = vpop.f32.mrf.mxu0
        %v4954 = vpop.f32.mrf.mxu0
        %v4955 = vadd.f32 0.0, %v4954
        %v4956 = vpop.f32.mrf.mxu0
        %4957 = vmatprep.mubr.bf16.mxu0 0
        %4958 = vmatmul.mubr.bf16.gmra.mxu0 %v3601
        %v4959 = vpop.f32.mrf.mxu0
        %v4960 = vadd.f32 0.0, %v4959
        %v4961 = vpop.f32.mrf.mxu0
        %v4962 = vpop.f32.mrf.mxu0
        %v4963 = vadd.f32 0.0, %v4962
        %v4964 = vpop.f32.mrf.mxu0
        %4965 = vmatprep.mubr.bf16.mxu0 0
        %4966 = vmatmul.mubr.bf16.gmra.mxu0 %v3604
        %v4967 = vpop.f32.mrf.mxu0
        %v4968 = vadd.f32 0.0, %v4967
        %v4969 = vpop.f32.mrf.mxu0
        %v4970 = vpop.f32.mrf.mxu0
        %v4971 = vadd.f32 0.0, %v4970
        %v4972 = vpop.f32.mrf.mxu0
        %4973 = vmatprep.mubr.bf16.mxu0 0
        %4974 = vmatmul.mubr.bf16.gmra.mxu0 %v3607
        %v4975 = vpop.f32.mrf.mxu0
        %v4976 = vadd.f32 0.0, %v4975
        %v4977 = vpop.f32.mrf.mxu0
        %v4978 = vpop.f32.mrf.mxu0
        %v4979 = vadd.f32 0.0, %v4978
        %v4980 = vpop.f32.mrf.mxu0
        %4981 = vmatprep.mubr.bf16.mxu0 0
        %4982 = vmatmul.mubr.bf16.gmra.mxu0 %v3610
        %v4983 = vpop.f32.mrf.mxu0
        %v4984 = vadd.f32 0.0, %v4983
        %v4985 = vpop.f32.mrf.mxu0
        %v4986 = vpop.f32.mrf.mxu0
        %v4987 = vadd.f32 0.0, %v4986
        %v4988 = vpop.f32.mrf.mxu0
        %4989 = vmatprep.mubr.bf16.mxu0 0
        %4990 = vmatmul.mubr.bf16.gmra.mxu0 %v3613
        %v4991 = vpop.f32.mrf.mxu0
        %v4992 = vadd.f32 0.0, %v4991
        %v4993 = vpop.f32.mrf.mxu0
        %v4994 = vpop.f32.mrf.mxu0
        %v4995 = vadd.f32 0.0, %v4994
        %v4996 = vpop.f32.mrf.mxu0
        %4997 = vmatprep.mubr.bf16.mxu0 0
        %4998 = vmatmul.mubr.bf16.gmra.mxu0 %v3616
        %v4999 = vpop.f32.mrf.mxu0
        %v5000 = vadd.f32 0.0, %v4999
        %v5001 = vpop.f32.mrf.mxu0
        %v5002 = vpop.f32.mrf.mxu0
        %v5003 = vadd.f32 0.0, %v5002
        %v5004 = vpop.f32.mrf.mxu0
        %5005 = vmatprep.mubr.bf16.mxu0 0
        %5006 = vmatmul.mubr.bf16.gmra.mxu0 %v3619
        %v5007 = vpop.f32.mrf.mxu0
        %v5008 = vadd.f32 0.0, %v5007
        %v5009 = vpop.f32.mrf.mxu0
        %v5010 = vpop.f32.mrf.mxu0
        %v5011 = vadd.f32 0.0, %v5010
        %v5012 = vpop.f32.mrf.mxu0
        %5013 = vmatprep.mubr.bf16.mxu0 0
        %5014 = vmatmul.mubr.bf16.gmra.mxu0 %v3622
        %v5015 = vpop.f32.mrf.mxu0
        %v5016 = vadd.f32 0.0, %v5015
        %v5017 = vpop.f32.mrf.mxu0
        %v5018 = vpop.f32.mrf.mxu0
        %v5019 = vadd.f32 0.0, %v5018
        %v5020 = vpop.f32.mrf.mxu0
        %5021 = vmatprep.mubr.bf16.mxu0 0
        %5022 = vmatmul.mubr.bf16.gmra.mxu0 %v3625
        %v5023 = vpop.f32.mrf.mxu0
        %v5024 = vadd.f32 0.0, %v5023
        %v5025 = vpop.f32.mrf.mxu0
        %v5026 = vpop.f32.mrf.mxu0
        %v5027 = vadd.f32 0.0, %v5026
        %v5028 = vpop.f32.mrf.mxu0
        %5029 = vmatprep.mubr.bf16.mxu0 0
        %5030 = vmatmul.mubr.bf16.gmra.mxu0 %v3628
        %v5031 = vpop.f32.mrf.mxu0
        %v5032 = vadd.f32 0.0, %v5031
        %v5033 = vpop.f32.mrf.mxu0
        %v5034 = vpop.f32.mrf.mxu0
        %v5035 = vadd.f32 0.0, %v5034
        %v5036 = vpop.f32.mrf.mxu0
        %5037 = vmatprep.mubr.bf16.mxu0 0
        %5038 = vmatmul.mubr.bf16.gmra.mxu0 %v3631
        %v5039 = vpop.f32.mrf.mxu0
        %v5040 = vadd.f32 0.0, %v5039
        %v5041 = vpop.f32.mrf.mxu0
        %v5042 = vpop.f32.mrf.mxu0
        %v5043 = vadd.f32 0.0, %v5042
        %v5044 = vpop.f32.mrf.mxu0
        %5045 = vmatprep.mubr.bf16.mxu0 0
        %5046 = vmatmul.mubr.bf16.gmra.mxu0 %v3634
        %v5047 = vpop.f32.mrf.mxu0
        %v5048 = vadd.f32 0.0, %v5047
        %v5049 = vpop.f32.mrf.mxu0
        %v5050 = vpop.f32.mrf.mxu0
        %v5051 = vadd.f32 0.0, %v5050
        %v5052 = vpop.f32.mrf.mxu0
        %5053 = vmatprep.mubr.bf16.mxu0 0
        %5054 = vmatmul.mubr.bf16.gmra.mxu0 %v3637
        %v5055 = vpop.f32.mrf.mxu0
        %v5056 = vadd.f32 0.0, %v5055
        %v5057 = vpop.f32.mrf.mxu0
        %v5058 = vpop.f32.mrf.mxu0
        %v5059 = vadd.f32 0.0, %v5058
        %v5060 = vpop.f32.mrf.mxu0
        %5061 = vmatprep.mubr.bf16.mxu0 0
        %5062 = vmatmul.mubr.bf16.gmra.mxu0 %v3640
        %v5063 = vpop.f32.mrf.mxu0
        %v5064 = vadd.f32 0.0, %v5063
        %v5065 = vpop.f32.mrf.mxu0
        %v5066 = vpop.f32.mrf.mxu0
        %v5067 = vadd.f32 0.0, %v5066
        %v5068 = vpop.f32.mrf.mxu0
        %5069 = vmatprep.mubr.bf16.mxu0 0
        %5070 = vmatmul.mubr.bf16.gmra.mxu0 %v3643
        %v5071 = vpop.f32.mrf.mxu0
        %v5072 = vadd.f32 0.0, %v5071
        %v5073 = vpop.f32.mrf.mxu0
        %v5074 = vpop.f32.mrf.mxu0
        %v5075 = vadd.f32 0.0, %v5074
        %v5076 = vpop.f32.mrf.mxu0
        %5077 = vmatprep.mubr.bf16.mxu0 0
        %5078 = vmatmul.mubr.bf16.gmra.mxu0 %v3646
        %v5079 = vpop.f32.mrf.mxu0
        %v5080 = vadd.f32 0.0, %v5079
        %v5081 = vpop.f32.mrf.mxu0
        %v5082 = vpop.f32.mrf.mxu0
        %v5083 = vadd.f32 0.0, %v5082
        %v5084 = vpop.f32.mrf.mxu0
        %5085 = vmatprep.mubr.bf16.mxu0 0
        %5086 = vmatmul.mubr.bf16.gmra.mxu0 %v3649
        %v5087 = vpop.f32.mrf.mxu0
        %v5088 = vadd.f32 0.0, %v5087
        %v5089 = vpop.f32.mrf.mxu0
        %v5090 = vpop.f32.mrf.mxu0
        %v5091 = vadd.f32 0.0, %v5090
        %v5092 = vpop.f32.mrf.mxu0
        %5093 = vmatprep.mubr.bf16.mxu0 0
        %5094 = vmatmul.mubr.bf16.gmra.mxu0 %v3652
        %v5095 = vpop.f32.mrf.mxu0
        %v5096 = vadd.f32 0.0, %v5095
        %v5097 = vpop.f32.mrf.mxu0
        %v5098 = vpop.f32.mrf.mxu0
        %v5099 = vadd.f32 0.0, %v5098
        %v5100 = vpop.f32.mrf.mxu0
        %5101 = vmatprep.mubr.bf16.mxu0 0
        %5102 = vmatmul.mubr.bf16.gmra.mxu0 %v3655
        %v5103 = vpop.f32.mrf.mxu0
        %v5104 = vadd.f32 0.0, %v5103
        %v5105 = vpop.f32.mrf.mxu0
        %v5106 = vpop.f32.mrf.mxu0
        %v5107 = vadd.f32 0.0, %v5106
        %v5108 = vpop.f32.mrf.mxu0
        %5109 = vmatprep.mubr.bf16.mxu0 0
        %5110 = vmatmul.mubr.bf16.gmra.mxu0 %v3658
        %v5111 = vpop.f32.mrf.mxu0
        %v5112 = vadd.f32 0.0, %v5111
        %v5113 = vpop.f32.mrf.mxu0
        %v5114 = vpop.f32.mrf.mxu0
        %v5115 = vadd.f32 0.0, %v5114
        %v5116 = vpop.f32.mrf.mxu0
        %5117 = vmatprep.mubr.bf16.mxu0 0
        %5118 = vmatmul.mubr.bf16.gmra.mxu0 %v3661
        %v5119 = vpop.f32.mrf.mxu0
        %v5120 = vadd.f32 0.0, %v5119
        %v5121 = vpop.f32.mrf.mxu0
        %v5122 = vpop.f32.mrf.mxu0
        %v5123 = vadd.f32 0.0, %v5122
        %v5124 = vpop.f32.mrf.mxu0
        %5125 = vmatprep.mubr.bf16.mxu0 0
        %5126 = vmatmul.mubr.bf16.gmra.mxu0 %v3664
        %v5127 = vpop.f32.mrf.mxu0
        %v5128 = vadd.f32 0.0, %v5127
        %v5129 = vpop.f32.mrf.mxu0
        %v5130 = vpop.f32.mrf.mxu0
        %v5131 = vadd.f32 0.0, %v5130
        %v5132 = vpop.f32.mrf.mxu0
        %5133 = vmatprep.mubr.bf16.mxu0 0
        %5134 = vmatmul.mubr.bf16.gmra.mxu0 %v3667
        %v5135 = vpop.f32.mrf.mxu0
        %v5136 = vadd.f32 0.0, %v5135
        %v5137 = vpop.f32.mrf.mxu0
        %v5138 = vpop.f32.mrf.mxu0
        %v5139 = vadd.f32 0.0, %v5138
        %v5140 = vpop.f32.mrf.mxu0
        %5141 = vmatprep.mubr.bf16.mxu0 0
        %5142 = vmatmul.mubr.bf16.gmra.mxu0 %v3670
        %v5143 = vpop.f32.mrf.mxu0
        %v5144 = vadd.f32 0.0, %v5143
        %v5145 = vpop.f32.mrf.mxu0
        %v5146 = vpop.f32.mrf.mxu0
        %v5147 = vadd.f32 0.0, %v5146
        %v5148 = vpop.f32.mrf.mxu0
        %5149 = vmatprep.mubr.bf16.mxu0 0
        %5150 = vmatmul.mubr.bf16.gmra.mxu0 %v3673
        %v5151 = vpop.f32.mrf.mxu0
        %v5152 = vadd.f32 0.0, %v5151
        %v5153 = vpop.f32.mrf.mxu0
        %v5154 = vpop.f32.mrf.mxu0
        %v5155 = vadd.f32 0.0, %v5154
        %v5156 = vpop.f32.mrf.mxu0
        %5157 = vmatprep.mubr.bf16.mxu0 0
        %5158 = vmatmul.mubr.bf16.gmra.mxu0 %v3676
        %v5159 = vpop.f32.mrf.mxu0
        %v5160 = vadd.f32 0.0, %v5159
        %v5161 = vpop.f32.mrf.mxu0
        %v5162 = vpop.f32.mrf.mxu0
        %v5163 = vadd.f32 0.0, %v5162
        %v5164 = vpop.f32.mrf.mxu0
        %5165 = vmatprep.mubr.bf16.mxu0 0
        %5166 = vmatmul.mubr.bf16.gmra.mxu0 %v3679
        %v5167 = vpop.f32.mrf.mxu0
        %v5168 = vadd.f32 0.0, %v5167
        %v5169 = vpop.f32.mrf.mxu0
        %v5170 = vpop.f32.mrf.mxu0
        %v5171 = vadd.f32 0.0, %v5170
        %v5172 = vpop.f32.mrf.mxu0
        %5173 = vmatprep.mubr.bf16.mxu0 0
        %5174 = vmatmul.mubr.bf16.gmra.mxu0 %v3682
        %v5175 = vpop.f32.mrf.mxu0
        %v5176 = vadd.f32 0.0, %v5175
        %v5177 = vpop.f32.mrf.mxu0
        %v5178 = vpop.f32.mrf.mxu0
        %v5179 = vadd.f32 0.0, %v5178
        %v5180 = vpop.f32.mrf.mxu0
        %5181 = vmatprep.mubr.bf16.mxu0 0
        %5182 = vmatmul.mubr.bf16.gmra.mxu0 %v3685
        %v5183 = vpop.f32.mrf.mxu0
        %v5184 = vadd.f32 0.0, %v5183
        %v5185 = vpop.f32.mrf.mxu0
        %v5186 = vpop.f32.mrf.mxu0
        %v5187 = vadd.f32 0.0, %v5186
        %v5188 = vpop.f32.mrf.mxu0
        %5189 = vmatprep.mubr.bf16.mxu0 0
        %5190 = vmatmul.mubr.bf16.gmra.mxu0 %v3688
        %v5191 = vpop.f32.mrf.mxu0
        %v5192 = vadd.f32 0.0, %v5191
        %v5193 = vpop.f32.mrf.mxu0
        %v5194 = vpop.f32.mrf.mxu0
        %v5195 = vadd.f32 0.0, %v5194
        %v5196 = vpop.f32.mrf.mxu0
        %5197 = vmatprep.mubr.bf16.mxu0 0
        %5198 = vmatmul.mubr.bf16.gmra.mxu0 %v3691
        %v5199 = vpop.f32.mrf.mxu0
        %v5200 = vadd.f32 0.0, %v5199
        %v5201 = vpop.f32.mrf.mxu0
        %v5202 = vpop.f32.mrf.mxu0
        %v5203 = vadd.f32 0.0, %v5202
        %v5204 = vpop.f32.mrf.mxu0
        %5205 = vmatprep.mubr.bf16.mxu0 0
        %5206 = vmatmul.mubr.bf16.gmra.mxu0 %v3694
        %v5207 = vpop.f32.mrf.mxu0
        %v5208 = vadd.f32 0.0, %v5207
        %v5209 = vpop.f32.mrf.mxu0
        %v5210 = vpop.f32.mrf.mxu0
        %v5211 = vadd.f32 0.0, %v5210
        %v5212 = vpop.f32.mrf.mxu0
        %5213 = vmatprep.mubr.bf16.mxu0 0
        %5214 = vmatmul.mubr.bf16.gmra.mxu0 %v3697
        %v5215 = vpop.f32.mrf.mxu0
        %v5216 = vadd.f32 0.0, %v5215
        %v5217 = vpop.f32.mrf.mxu0
        %v5218 = vpop.f32.mrf.mxu0
        %v5219 = vadd.f32 0.0, %v5218
        %v5220 = vpop.f32.mrf.mxu0
        %5221 = vmatprep.mubr.bf16.mxu0 0
        %5222 = vmatmul.mubr.bf16.gmra.mxu0 %v3700
        %v5223 = vpop.f32.mrf.mxu0
        %v5224 = vadd.f32 0.0, %v5223
        %v5225 = vpop.f32.mrf.mxu0
        %v5226 = vpop.f32.mrf.mxu0
        %v5227 = vadd.f32 0.0, %v5226
        %v5228 = vpop.f32.mrf.mxu0
        %5229 = vmatprep.mubr.bf16.mxu0 0
        %5230 = vmatmul.mubr.bf16.gmra.mxu0 %v3703
        %v5231 = vpop.f32.mrf.mxu0
        %v5232 = vadd.f32 0.0, %v5231
        %v5233 = vpop.f32.mrf.mxu0
        %v5234 = vpop.f32.mrf.mxu0
        %v5235 = vadd.f32 0.0, %v5234
        %v5236 = vpop.f32.mrf.mxu0
        %5237 = vmatprep.mubr.bf16.mxu0 0
        %5238 = vmatmul.mubr.bf16.gmra.mxu0 %v3706
        %v5239 = vpop.f32.mrf.mxu0
        %v5240 = vadd.f32 0.0, %v5239
        %v5241 = vpop.f32.mrf.mxu0
        %v5242 = vpop.f32.mrf.mxu0
        %v5243 = vadd.f32 0.0, %v5242
        %v5244 = vpop.f32.mrf.mxu0
        %5245 = vmatprep.mubr.bf16.mxu0 0
        %5246 = vmatmul.mubr.bf16.gmra.mxu0 %v3709
        %v5247 = vpop.f32.mrf.mxu0
        %v5248 = vadd.f32 0.0, %v5247
        %v5249 = vpop.f32.mrf.mxu0
        %v5250 = vpop.f32.mrf.mxu0
        %v5251 = vadd.f32 0.0, %v5250
        %v5252 = vpop.f32.mrf.mxu0
        %5253 = vmatprep.mubr.bf16.mxu0 0
        %5254 = vmatmul.mubr.bf16.gmra.mxu0 %v3712
        %v5255 = vpop.f32.mrf.mxu0
        %v5256 = vadd.f32 0.0, %v5255
        %v5257 = vpop.f32.mrf.mxu0
        %v5258 = vpop.f32.mrf.mxu0
        %v5259 = vadd.f32 0.0, %v5258
        %v5260 = vpop.f32.mrf.mxu0
        %5261 = vmatprep.mubr.bf16.mxu0 0
        %5262 = vmatmul.mubr.bf16.gmra.mxu0 %v3715
        %v5263 = vpop.f32.mrf.mxu0
        %v5264 = vadd.f32 0.0, %v5263
        %v5265 = vpop.f32.mrf.mxu0
        %v5266 = vpop.f32.mrf.mxu0
        %v5267 = vadd.f32 0.0, %v5266
        %v5268 = vpop.f32.mrf.mxu0
        %5269 = vmatprep.mubr.bf16.mxu0 0
        %5270 = vmatmul.mubr.bf16.gmra.mxu0 %v3718
        %v5271 = vpop.f32.mrf.mxu0
        %v5272 = vadd.f32 0.0, %v5271
        %v5273 = vpop.f32.mrf.mxu0
        %v5274 = vpop.f32.mrf.mxu0
        %v5275 = vadd.f32 0.0, %v5274
        %v5276 = vpop.f32.mrf.mxu0
        %5277 = vmatprep.mubr.bf16.mxu0 0
        %5278 = vmatmul.mubr.bf16.gmra.mxu0 %v3721
        %v5279 = vpop.f32.mrf.mxu0
        %v5280 = vadd.f32 0.0, %v5279
        %v5281 = vpop.f32.mrf.mxu0
        %v5282 = vpop.f32.mrf.mxu0
        %v5283 = vadd.f32 0.0, %v5282
        %v5284 = vpop.f32.mrf.mxu0
        %5285 = vmatprep.mubr.bf16.mxu0 0
        %5286 = vmatmul.mubr.bf16.gmra.mxu0 %v3724
        %v5287 = vpop.f32.mrf.mxu0
        %v5288 = vadd.f32 0.0, %v5287
        %v5289 = vpop.f32.mrf.mxu0
        %v5290 = vpop.f32.mrf.mxu0
        %v5291 = vadd.f32 0.0, %v5290
        %v5292 = vpop.f32.mrf.mxu0
        %5293 = vmatprep.mubr.bf16.mxu0 0
        %5294 = vmatmul.mubr.bf16.gmra.mxu0 %v3727
        %v5295 = vpop.f32.mrf.mxu0
        %v5296 = vadd.f32 0.0, %v5295
        %v5297 = vpop.f32.mrf.mxu0
        %v5298 = vpop.f32.mrf.mxu0
        %v5299 = vadd.f32 0.0, %v5298
        %v5300 = vpop.f32.mrf.mxu0
        %5301 = vmatprep.mubr.bf16.mxu0 0
        %5302 = vmatmul.mubr.bf16.gmra.mxu0 %v3730
        %v5303 = vpop.f32.mrf.mxu0
        %v5304 = vadd.f32 0.0, %v5303
        %v5305 = vpop.f32.mrf.mxu0
        %v5306 = vpop.f32.mrf.mxu0
        %v5307 = vadd.f32 0.0, %v5306
        %v5308 = vpop.f32.mrf.mxu0
        %5309 = vmatprep.mubr.bf16.mxu0 0
        %5310 = vmatmul.mubr.bf16.gmra.mxu0 %v3733
        %v5311 = vpop.f32.mrf.mxu0
        %v5312 = vadd.f32 0.0, %v5311
        %v5313 = vpop.f32.mrf.mxu0
        %v5314 = vpop.f32.mrf.mxu0
        %v5315 = vadd.f32 0.0, %v5314
        %v5316 = vpop.f32.mrf.mxu0
        %5317 = vmatprep.mubr.bf16.mxu0 0
        %5318 = vmatmul.mubr.bf16.gmra.mxu0 %v3736
        %v5319 = vpop.f32.mrf.mxu0
        %v5320 = vadd.f32 0.0, %v5319
        %v5321 = vpop.f32.mrf.mxu0
        %v5322 = vpop.f32.mrf.mxu0
        %v5323 = vadd.f32 0.0, %v5322
        %v5324 = vpop.f32.mrf.mxu0
        %5325 = vmatprep.mubr.bf16.mxu0 0
        %5326 = vmatmul.mubr.bf16.gmra.mxu0 %v3739
        %v5327 = vpop.f32.mrf.mxu0
        %v5328 = vadd.f32 0.0, %v5327
        %v5329 = vpop.f32.mrf.mxu0
        %v5330 = vpop.f32.mrf.mxu0
        %v5331 = vadd.f32 0.0, %v5330
        %v5332 = vpop.f32.mrf.mxu0
        %5333 = vmatprep.mubr.bf16.mxu0 0
        %5334 = vmatmul.mubr.bf16.gmra.mxu0 %v3742
        %v5335 = vpop.f32.mrf.mxu0
        %v5336 = vadd.f32 0.0, %v5335
        %v5337 = vpop.f32.mrf.mxu0
        %v5338 = vpop.f32.mrf.mxu0
        %v5339 = vadd.f32 0.0, %v5338
        %v5340 = vpop.f32.mrf.mxu0
        %5341 = vmatprep.mubr.bf16.mxu0 0
        %5342 = vmatmul.mubr.bf16.gmra.mxu0 %v3745
        %v5343 = vpop.f32.mrf.mxu0
        %v5344 = vadd.f32 0.0, %v5343
        %v5345 = vpop.f32.mrf.mxu0
        %v5346 = vpop.f32.mrf.mxu0
        %v5347 = vadd.f32 0.0, %v5346
        %v5348 = vpop.f32.mrf.mxu0
        %5349 = vmatprep.mubr.bf16.mxu0 0
        %5350 = vmatmul.mubr.bf16.gmra.mxu0 %v3748
        %v5351 = vpop.f32.mrf.mxu0
        %v5352 = vadd.f32 0.0, %v5351
        %v5353 = vpop.f32.mrf.mxu0
        %v5354 = vpop.f32.mrf.mxu0
        %v5355 = vadd.f32 0.0, %v5354
        %v5356 = vpop.f32.mrf.mxu0
        %5357 = vdwg.mxu0
        %v5358 = vmax.f32 %v3792, %v4184
        %v5359 = vmax.f32 %v3795, %v4187
        %v5360 = vmax.f32 %v3800, %v4192
        %v5361 = vmax.f32 %v3803, %v4195
        %v5362 = vmax.f32 %v3808, %v4200
        %v5363 = vmax.f32 %v3811, %v4203
        %v5364 = vmax.f32 %v3816, %v4208
        %v5365 = vmax.f32 %v3819, %v4211
        %v5366 = vmax.f32 %v3824, %v4216
        %v5367 = vmax.f32 %v3827, %v4219
        %v5368 = vmax.f32 %v3832, %v4224
        %v5369 = vmax.f32 %v3835, %v4227
        %v5370 = vmax.f32 %v3840, %v4232
        %v5371 = vmax.f32 %v3843, %v4235
        %v5372 = vmax.f32 %v3848, %v4240
        %v5373 = vmax.f32 %v3851, %v4243
        %v5374 = vmax.f32 %v3856, %v4248
        %v5375 = vmax.f32 %v3859, %v4251
        %v5376 = vmax.f32 %v3864, %v4256
        %v5377 = vmax.f32 %v3867, %v4259
        %v5378 = vmax.f32 %v3872, %v4264
        %v5379 = vmax.f32 %v3875, %v4267
        %v5380 = vmax.f32 %v3880, %v4272
        %v5381 = vmax.f32 %v3883, %v4275
        %v5382 = vmax.f32 %v3888, %v4280
        %v5383 = vmax.f32 %v3891, %v4283
        %v5384 = vmax.f32 %v3896, %v4288
        %v5385 = vmax.f32 %v3899, %v4291
        %v5386 = vmax.f32 %v3904, %v4296
        %v5387 = vmax.f32 %v3907, %v4299
        %v5388 = vmax.f32 %v3912, %v4304
        %v5389 = vmax.f32 %v3915, %v4307
        %v5390 = vmax.f32 %v3920, %v4312
        %v5391 = vmax.f32 %v3923, %v4315
        %v5392 = vmax.f32 %v3928, %v4320
        %v5393 = vmax.f32 %v3931, %v4323
        %v5394 = vmax.f32 %v3936, %v4328
        %v5395 = vmax.f32 %v3939, %v4331
        %v5396 = vmax.f32 %v3944, %v4336
        %v5397 = vmax.f32 %v3947, %v4339
        %v5398 = vmax.f32 %v3952, %v4344
        %v5399 = vmax.f32 %v3955, %v4347
        %v5400 = vmax.f32 %v3960, %v4352
        %v5401 = vmax.f32 %v3963, %v4355
        %v5402 = vmax.f32 %v3968, %v4360
        %v5403 = vmax.f32 %v3971, %v4363
        %v5404 = vmax.f32 %v3976, %v4368
        %v5405 = vmax.f32 %v3979, %v4371
        %v5406 = vmax.f32 %v3984, %v4376
        %v5407 = vmax.f32 %v3987, %v4379
        %v5408 = vmax.f32 %v3992, %v4384
        %v5409 = vmax.f32 %v3995, %v4387
        %v5410 = vmax.f32 %v4000, %v4392
        %v5411 = vmax.f32 %v4003, %v4395
        %v5412 = vmax.f32 %v4008, %v4400
        %v5413 = vmax.f32 %v4011, %v4403
        %v5414 = vmax.f32 %v4016, %v4408
        %v5415 = vmax.f32 %v4019, %v4411
        %v5416 = vmax.f32 %v4024, %v4416
        %v5417 = vmax.f32 %v4027, %v4419
        %v5418 = vmax.f32 %v4032, %v4424
        %v5419 = vmax.f32 %v4035, %v4427
        %v5420 = vmax.f32 %v4040, %v4432
        %v5421 = vmax.f32 %v4043, %v4435
        %v5422 = vmax.f32 %v4048, %v4440
        %v5423 = vmax.f32 %v4051, %v4443
        %v5424 = vmax.f32 %v4056, %v4448
        %v5425 = vmax.f32 %v4059, %v4451
        %v5426 = vmax.f32 %v4064, %v4456
        %v5427 = vmax.f32 %v4067, %v4459
        %v5428 = vmax.f32 %v4072, %v4464
        %v5429 = vmax.f32 %v4075, %v4467
        %v5430 = vmax.f32 %v4080, %v4472
        %v5431 = vmax.f32 %v4083, %v4475
        %v5432 = vmax.f32 %v4088, %v4480
        %v5433 = vmax.f32 %v4091, %v4483
        %v5434 = vmax.f32 %v4096, %v4488
        %v5435 = vmax.f32 %v4099, %v4491
        %v5436 = vmax.f32 %v4104, %v4496
        %v5437 = vmax.f32 %v4107, %v4499
        %v5438 = vmax.f32 %v4112, %v4504
        %v5439 = vmax.f32 %v4115, %v4507
        %v5440 = vmax.f32 %v4120, %v4512
        %v5441 = vmax.f32 %v4123, %v4515
        %v5442 = vmax.f32 %v4128, %v4520
        %v5443 = vmax.f32 %v4131, %v4523
        %v5444 = vmax.f32 %v4136, %v4528
        %v5445 = vmax.f32 %v4139, %v4531
        %v5446 = vmax.f32 %v4144, %v4536
        %v5447 = vmax.f32 %v4147, %v4539
        %v5448 = vmax.f32 %v4152, %v4544
        %v5449 = vmax.f32 %v4155, %v4547
        %v5450 = vmax.f32 %v4160, %v4552
        %v5451 = vmax.f32 %v4163, %v4555
        %v5452 = vmax.f32 %v4168, %v4560
        %v5453 = vmax.f32 %v4171, %v4563
        %v5454 = vmax.f32 %v4176, %v4568
        %v5455 = vmax.f32 %v4179, %v4571
        %v5456 = vmax.f32 %v4576, %v4968
        %v5457 = vmax.f32 %v4579, %v4971
        %v5458 = vmax.f32 %v4584, %v4976
        %v5459 = vmax.f32 %v4587, %v4979
        %v5460 = vmax.f32 %v4592, %v4984
        %v5461 = vmax.f32 %v4595, %v4987
        %v5462 = vmax.f32 %v4600, %v4992
        %v5463 = vmax.f32 %v4603, %v4995
        %v5464 = vmax.f32 %v4608, %v5000
        %v5465 = vmax.f32 %v4611, %v5003
        %v5466 = vmax.f32 %v4616, %v5008
        %v5467 = vmax.f32 %v4619, %v5011
        %v5468 = vmax.f32 %v4624, %v5016
        %v5469 = vmax.f32 %v4627, %v5019
        %v5470 = vmax.f32 %v4632, %v5024
        %v5471 = vmax.f32 %v4635, %v5027
        %v5472 = vmax.f32 %v4640, %v5032
        %v5473 = vmax.f32 %v4643, %v5035
        %v5474 = vmax.f32 %v4648, %v5040
        %v5475 = vmax.f32 %v4651, %v5043
        %v5476 = vmax.f32 %v4656, %v5048
        %v5477 = vmax.f32 %v4659, %v5051
        %v5478 = vmax.f32 %v4664, %v5056
        %v5479 = vmax.f32 %v4667, %v5059
        %v5480 = vmax.f32 %v4672, %v5064
        %v5481 = vmax.f32 %v4675, %v5067
        %v5482 = vmax.f32 %v4680, %v5072
        %v5483 = vmax.f32 %v4683, %v5075
        %v5484 = vmax.f32 %v4688, %v5080
        %v5485 = vmax.f32 %v4691, %v5083
        %v5486 = vmax.f32 %v4696, %v5088
        %v5487 = vmax.f32 %v4699, %v5091
        %v5488 = vmax.f32 %v4704, %v5096
        %v5489 = vmax.f32 %v4707, %v5099
        %v5490 = vmax.f32 %v4712, %v5104
        %v5491 = vmax.f32 %v4715, %v5107
        %v5492 = vmax.f32 %v4720, %v5112
        %v5493 = vmax.f32 %v4723, %v5115
        %v5494 = vmax.f32 %v4728, %v5120
        %v5495 = vmax.f32 %v4731, %v5123
        %v5496 = vmax.f32 %v4736, %v5128
        %v5497 = vmax.f32 %v4739, %v5131
        %v5498 = vmax.f32 %v4744, %v5136
        %v5499 = vmax.f32 %v4747, %v5139
        %v5500 = vmax.f32 %v4752, %v5144
        %v5501 = vmax.f32 %v4755, %v5147
        %v5502 = vmax.f32 %v4760, %v5152
        %v5503 = vmax.f32 %v4763, %v5155
        %v5504 = vmax.f32 %v4768, %v5160
        %v5505 = vmax.f32 %v4771, %v5163
        %v5506 = vmax.f32 %v4776, %v5168
        %v5507 = vmax.f32 %v4779, %v5171
        %v5508 = vmax.f32 %v4784, %v5176
        %v5509 = vmax.f32 %v4787, %v5179
        %v5510 = vmax.f32 %v4792, %v5184
        %v5511 = vmax.f32 %v4795, %v5187
        %v5512 = vmax.f32 %v4800, %v5192
        %v5513 = vmax.f32 %v4803, %v5195
        %v5514 = vmax.f32 %v4808, %v5200
        %v5515 = vmax.f32 %v4811, %v5203
        %v5516 = vmax.f32 %v4816, %v5208
        %v5517 = vmax.f32 %v4819, %v5211
        %v5518 = vmax.f32 %v4824, %v5216
        %v5519 = vmax.f32 %v4827, %v5219
        %v5520 = vmax.f32 %v4832, %v5224
        %v5521 = vmax.f32 %v4835, %v5227
        %v5522 = vmax.f32 %v4840, %v5232
        %v5523 = vmax.f32 %v4843, %v5235
        %v5524 = vmax.f32 %v4848, %v5240
        %v5525 = vmax.f32 %v4851, %v5243
        %v5526 = vmax.f32 %v4856, %v5248
        %v5527 = vmax.f32 %v4859, %v5251
        %v5528 = vmax.f32 %v4864, %v5256
        %v5529 = vmax.f32 %v4867, %v5259
        %v5530 = vmax.f32 %v4872, %v5264
        %v5531 = vmax.f32 %v4875, %v5267
        %v5532 = vmax.f32 %v4880, %v5272
        %v5533 = vmax.f32 %v4883, %v5275
        %v5534 = vmax.f32 %v4888, %v5280
        %v5535 = vmax.f32 %v4891, %v5283
        %v5536 = vmax.f32 %v4896, %v5288
        %v5537 = vmax.f32 %v4899, %v5291
        %v5538 = vmax.f32 %v4904, %v5296
        %v5539 = vmax.f32 %v4907, %v5299
        %v5540 = vmax.f32 %v4912, %v5304
        %v5541 = vmax.f32 %v4915, %v5307
        %v5542 = vmax.f32 %v4920, %v5312
        %v5543 = vmax.f32 %v4923, %v5315
        %v5544 = vmax.f32 %v4928, %v5320
        %v5545 = vmax.f32 %v4931, %v5323
        %v5546 = vmax.f32 %v4936, %v5328
        %v5547 = vmax.f32 %v4939, %v5331
        %v5548 = vmax.f32 %v4944, %v5336
        %v5549 = vmax.f32 %v4947, %v5339
        %v5550 = vmax.f32 %v4952, %v5344
        %v5551 = vmax.f32 %v4955, %v5347
        %v5552 = vmax.f32 %v4960, %v5352
        %v5553 = vmax.f32 %v4963, %v5355
        %v5554 = vmax.f32 %v5358, %v5456
        %v5555 = vmax.f32 %v5359, %v5457
        %v5556 = vmax.f32 %v5360, %v5458
        %v5557 = vmax.f32 %v5361, %v5459
        %v5558 = vmax.f32 %v5362, %v5460
        %v5559 = vmax.f32 %v5363, %v5461
        %v5560 = vmax.f32 %v5364, %v5462
        %v5561 = vmax.f32 %v5365, %v5463
        %v5562 = vmax.f32 %v5366, %v5464
        %v5563 = vmax.f32 %v5367, %v5465
        %v5564 = vmax.f32 %v5368, %v5466
        %v5565 = vmax.f32 %v5369, %v5467
        %v5566 = vmax.f32 %v5370, %v5468
        %v5567 = vmax.f32 %v5371, %v5469
        %v5568 = vmax.f32 %v5372, %v5470
        %v5569 = vmax.f32 %v5373, %v5471
        %v5570 = vmax.f32 %v5374, %v5472
        %v5571 = vmax.f32 %v5375, %v5473
        %v5572 = vmax.f32 %v5376, %v5474
        %v5573 = vmax.f32 %v5377, %v5475
        %v5574 = vmax.f32 %v5378, %v5476
        %v5575 = vmax.f32 %v5379, %v5477
        %v5576 = vmax.f32 %v5380, %v5478
        %v5577 = vmax.f32 %v5381, %v5479
        %v5578 = vmax.f32 %v5382, %v5480
        %v5579 = vmax.f32 %v5383, %v5481
        %v5580 = vmax.f32 %v5384, %v5482
        %v5581 = vmax.f32 %v5385, %v5483
        %v5582 = vmax.f32 %v5386, %v5484
        %v5583 = vmax.f32 %v5387, %v5485
        %v5584 = vmax.f32 %v5388, %v5486
        %v5585 = vmax.f32 %v5389, %v5487
        %v5586 = vmax.f32 %v5390, %v5488
        %v5587 = vmax.f32 %v5391, %v5489
        %v5588 = vmax.f32 %v5392, %v5490
        %v5589 = vmax.f32 %v5393, %v5491
        %v5590 = vmax.f32 %v5394, %v5492
        %v5591 = vmax.f32 %v5395, %v5493
        %v5592 = vmax.f32 %v5396, %v5494
        %v5593 = vmax.f32 %v5397, %v5495
        %v5594 = vmax.f32 %v5398, %v5496
        %v5595 = vmax.f32 %v5399, %v5497
        %v5596 = vmax.f32 %v5400, %v5498
        %v5597 = vmax.f32 %v5401, %v5499
        %v5598 = vmax.f32 %v5402, %v5500
        %v5599 = vmax.f32 %v5403, %v5501
        %v5600 = vmax.f32 %v5404, %v5502
        %v5601 = vmax.f32 %v5405, %v5503
        %v5602 = vmax.f32 %v5406, %v5504
        %v5603 = vmax.f32 %v5407, %v5505
        %v5604 = vmax.f32 %v5408, %v5506
        %v5605 = vmax.f32 %v5409, %v5507
        %v5606 = vmax.f32 %v5410, %v5508
        %v5607 = vmax.f32 %v5411, %v5509
        %v5608 = vmax.f32 %v5412, %v5510
        %v5609 = vmax.f32 %v5413, %v5511
        %v5610 = vmax.f32 %v5414, %v5512
        %v5611 = vmax.f32 %v5415, %v5513
        %v5612 = vmax.f32 %v5416, %v5514
        %v5613 = vmax.f32 %v5417, %v5515
        %v5614 = vmax.f32 %v5418, %v5516
        %v5615 = vmax.f32 %v5419, %v5517
        %v5616 = vmax.f32 %v5420, %v5518
        %v5617 = vmax.f32 %v5421, %v5519
        %v5618 = vmax.f32 %v5422, %v5520
        %v5619 = vmax.f32 %v5423, %v5521
        %v5620 = vmax.f32 %v5424, %v5522
        %v5621 = vmax.f32 %v5425, %v5523
        %v5622 = vmax.f32 %v5426, %v5524
        %v5623 = vmax.f32 %v5427, %v5525
        %v5624 = vmax.f32 %v5428, %v5526
        %v5625 = vmax.f32 %v5429, %v5527
        %v5626 = vmax.f32 %v5430, %v5528
        %v5627 = vmax.f32 %v5431, %v5529
        %v5628 = vmax.f32 %v5432, %v5530
        %v5629 = vmax.f32 %v5433, %v5531
        %v5630 = vmax.f32 %v5434, %v5532
        %v5631 = vmax.f32 %v5435, %v5533
        %v5632 = vmax.f32 %v5436, %v5534
        %v5633 = vmax.f32 %v5437, %v5535
        %v5634 = vmax.f32 %v5438, %v5536
        %v5635 = vmax.f32 %v5439, %v5537
        %v5636 = vmax.f32 %v5440, %v5538
        %v5637 = vmax.f32 %v5441, %v5539
        %v5638 = vmax.f32 %v5442, %v5540
        %v5639 = vmax.f32 %v5443, %v5541
        %v5640 = vmax.f32 %v5444, %v5542
        %v5641 = vmax.f32 %v5445, %v5543
        %v5642 = vmax.f32 %v5446, %v5544
        %v5643 = vmax.f32 %v5447, %v5545
        %v5644 = vmax.f32 %v5448, %v5546
        %v5645 = vmax.f32 %v5449, %v5547
        %v5646 = vmax.f32 %v5450, %v5548
        %v5647 = vmax.f32 %v5451, %v5549
        %v5648 = vmax.f32 %v5452, %v5550
        %v5649 = vmax.f32 %v5453, %v5551
        %v5650 = vmax.f32 %v5454, %v5552
        %v5651 = vmax.f32 %v5455, %v5553
        %v5652 = vld [vmem:[%s2] sm:$0x1]
        %v5654 = vlaneseq
        %v5655 = vshrl.u32 %v5654, 7
        %v5656 = vsub.s32 0, %v5655
        %v5657 = vrot.slane %v5652, %v5656
        %v5659 = vadd.f32 %v5554, %v5657
        %v5660 = vadd.f32 %v5555, %v5657
        %v5661 = vadd.f32 %v5556, %v5657
        %v5662 = vadd.f32 %v5557, %v5657
        %v5663 = vadd.f32 %v5558, %v5657
        %v5664 = vadd.f32 %v5559, %v5657
        %v5665 = vadd.f32 %v5560, %v5657
        %v5666 = vadd.f32 %v5561, %v5657
        %v5667 = vadd.f32 %v5562, %v5657
        %v5668 = vadd.f32 %v5563, %v5657
        %v5669 = vadd.f32 %v5564, %v5657
        %v5670 = vadd.f32 %v5565, %v5657
        %v5671 = vadd.f32 %v5566, %v5657
        %v5672 = vadd.f32 %v5567, %v5657
        %v5673 = vadd.f32 %v5568, %v5657
        %v5674 = vadd.f32 %v5569, %v5657
        %v5675 = vadd.f32 %v5570, %v5657
        %v5676 = vadd.f32 %v5571, %v5657
        %v5677 = vadd.f32 %v5572, %v5657
        %v5678 = vadd.f32 %v5573, %v5657
        %v5679 = vadd.f32 %v5574, %v5657
        %v5680 = vadd.f32 %v5575, %v5657
        %v5681 = vadd.f32 %v5576, %v5657
        %v5682 = vadd.f32 %v5577, %v5657
        %v5683 = vadd.f32 %v5578, %v5657
        %v5684 = vadd.f32 %v5579, %v5657
        %v5685 = vadd.f32 %v5580, %v5657
        %v5686 = vadd.f32 %v5581, %v5657
        %v5687 = vadd.f32 %v5582, %v5657
        %v5688 = vadd.f32 %v5583, %v5657
        %v5689 = vadd.f32 %v5584, %v5657
        %v5690 = vadd.f32 %v5585, %v5657
        %v5691 = vadd.f32 %v5586, %v5657
        %v5692 = vadd.f32 %v5587, %v5657
        %v5693 = vadd.f32 %v5588, %v5657
        %v5694 = vadd.f32 %v5589, %v5657
        %v5695 = vadd.f32 %v5590, %v5657
        %v5696 = vadd.f32 %v5591, %v5657
        %v5697 = vadd.f32 %v5592, %v5657
        %v5698 = vadd.f32 %v5593, %v5657
        %v5699 = vadd.f32 %v5594, %v5657
        %v5700 = vadd.f32 %v5595, %v5657
        %v5701 = vadd.f32 %v5596, %v5657
        %v5702 = vadd.f32 %v5597, %v5657
        %v5703 = vadd.f32 %v5598, %v5657
        %v5704 = vadd.f32 %v5599, %v5657
        %v5705 = vadd.f32 %v5600, %v5657
        %v5706 = vadd.f32 %v5601, %v5657
        %v5707 = vadd.f32 %v5602, %v5657
        %v5708 = vadd.f32 %v5603, %v5657
        %v5709 = vadd.f32 %v5604, %v5657
        %v5710 = vadd.f32 %v5605, %v5657
        %v5711 = vadd.f32 %v5606, %v5657
        %v5712 = vadd.f32 %v5607, %v5657
        %v5713 = vadd.f32 %v5608, %v5657
        %v5714 = vadd.f32 %v5609, %v5657
        %v5715 = vadd.f32 %v5610, %v5657
        %v5716 = vadd.f32 %v5611, %v5657
        %v5717 = vadd.f32 %v5612, %v5657
        %v5718 = vadd.f32 %v5613, %v5657
        %v5719 = vadd.f32 %v5614, %v5657
        %v5720 = vadd.f32 %v5615, %v5657
        %v5721 = vadd.f32 %v5616, %v5657
        %v5722 = vadd.f32 %v5617, %v5657
        %v5723 = vadd.f32 %v5618, %v5657
        %v5724 = vadd.f32 %v5619, %v5657
        %v5725 = vadd.f32 %v5620, %v5657
        %v5726 = vadd.f32 %v5621, %v5657
        %v5727 = vadd.f32 %v5622, %v5657
        %v5728 = vadd.f32 %v5623, %v5657
        %v5729 = vadd.f32 %v5624, %v5657
        %v5730 = vadd.f32 %v5625, %v5657
        %v5731 = vadd.f32 %v5626, %v5657
        %v5732 = vadd.f32 %v5627, %v5657
        %v5733 = vadd.f32 %v5628, %v5657
        %v5734 = vadd.f32 %v5629, %v5657
        %v5735 = vadd.f32 %v5630, %v5657
        %v5736 = vadd.f32 %v5631, %v5657
        %v5737 = vadd.f32 %v5632, %v5657
        %v5738 = vadd.f32 %v5633, %v5657
        %v5739 = vadd.f32 %v5634, %v5657
        %v5740 = vadd.f32 %v5635, %v5657
        %v5741 = vadd.f32 %v5636, %v5657
        %v5742 = vadd.f32 %v5637, %v5657
        %v5743 = vadd.f32 %v5638, %v5657
        %v5744 = vadd.f32 %v5639, %v5657
        %v5745 = vadd.f32 %v5640, %v5657
        %v5746 = vadd.f32 %v5641, %v5657
        %v5747 = vadd.f32 %v5642, %v5657
        %v5748 = vadd.f32 %v5643, %v5657
        %v5749 = vadd.f32 %v5644, %v5657
        %v5750 = vadd.f32 %v5645, %v5657
        %v5751 = vadd.f32 %v5646, %v5657
        %v5752 = vadd.f32 %v5647, %v5657
        %v5753 = vadd.f32 %v5648, %v5657
        %v5754 = vadd.f32 %v5649, %v5657
        %v5755 = vadd.f32 %v5650, %v5657
        %v5756 = vadd.f32 %v5651, %v5657
        %v5757 = vmax.f32 %v5659, 0.0
        %v5758 = vmax.f32 %v5660, 0.0
        %v5759 = vmax.f32 %v5661, 0.0
        %v5760 = vmax.f32 %v5662, 0.0
        %v5761 = vmax.f32 %v5663, 0.0
        %v5762 = vmax.f32 %v5664, 0.0
        %v5763 = vmax.f32 %v5665, 0.0
        %v5764 = vmax.f32 %v5666, 0.0
        %v5765 = vmax.f32 %v5667, 0.0
        %v5766 = vmax.f32 %v5668, 0.0
        %v5767 = vmax.f32 %v5669, 0.0
        %v5768 = vmax.f32 %v5670, 0.0
        %v5769 = vmax.f32 %v5671, 0.0
        %v5770 = vmax.f32 %v5672, 0.0
        %v5771 = vmax.f32 %v5673, 0.0
        %v5772 = vmax.f32 %v5674, 0.0
        %v5773 = vmax.f32 %v5675, 0.0
        %v5774 = vmax.f32 %v5676, 0.0
        %v5775 = vmax.f32 %v5677, 0.0
        %v5776 = vmax.f32 %v5678, 0.0
        %v5777 = vmax.f32 %v5679, 0.0
        %v5778 = vmax.f32 %v5680, 0.0
        %v5779 = vmax.f32 %v5681, 0.0
        %v5780 = vmax.f32 %v5682, 0.0
        %v5781 = vmax.f32 %v5683, 0.0
        %v5782 = vmax.f32 %v5684, 0.0
        %v5783 = vmax.f32 %v5685, 0.0
        %v5784 = vmax.f32 %v5686, 0.0
        %v5785 = vmax.f32 %v5687, 0.0
        %v5786 = vmax.f32 %v5688, 0.0
        %v5787 = vmax.f32 %v5689, 0.0
        %v5788 = vmax.f32 %v5690, 0.0
        %v5789 = vmax.f32 %v5691, 0.0
        %v5790 = vmax.f32 %v5692, 0.0
        %v5791 = vmax.f32 %v5693, 0.0
        %v5792 = vmax.f32 %v5694, 0.0
        %v5793 = vmax.f32 %v5695, 0.0
        %v5794 = vmax.f32 %v5696, 0.0
        %v5795 = vmax.f32 %v5697, 0.0
        %v5796 = vmax.f32 %v5698, 0.0
        %v5797 = vmax.f32 %v5699, 0.0
        %v5798 = vmax.f32 %v5700, 0.0
        %v5799 = vmax.f32 %v5701, 0.0
        %v5800 = vmax.f32 %v5702, 0.0
        %v5801 = vmax.f32 %v5703, 0.0
        %v5802 = vmax.f32 %v5704, 0.0
        %v5803 = vmax.f32 %v5705, 0.0
        %v5804 = vmax.f32 %v5706, 0.0
        %v5805 = vmax.f32 %v5707, 0.0
        %v5806 = vmax.f32 %v5708, 0.0
        %v5807 = vmax.f32 %v5709, 0.0
        %v5808 = vmax.f32 %v5710, 0.0
        %v5809 = vmax.f32 %v5711, 0.0
        %v5810 = vmax.f32 %v5712, 0.0
        %v5811 = vmax.f32 %v5713, 0.0
        %v5812 = vmax.f32 %v5714, 0.0
        %v5813 = vmax.f32 %v5715, 0.0
        %v5814 = vmax.f32 %v5716, 0.0
        %v5815 = vmax.f32 %v5717, 0.0
        %v5816 = vmax.f32 %v5718, 0.0
        %v5817 = vmax.f32 %v5719, 0.0
        %v5818 = vmax.f32 %v5720, 0.0
        %v5819 = vmax.f32 %v5721, 0.0
        %v5820 = vmax.f32 %v5722, 0.0
        %v5821 = vmax.f32 %v5723, 0.0
        %v5822 = vmax.f32 %v5724, 0.0
        %v5823 = vmax.f32 %v5725, 0.0
        %v5824 = vmax.f32 %v5726, 0.0
        %v5825 = vmax.f32 %v5727, 0.0
        %v5826 = vmax.f32 %v5728, 0.0
        %v5827 = vmax.f32 %v5729, 0.0
        %v5828 = vmax.f32 %v5730, 0.0
        %v5829 = vmax.f32 %v5731, 0.0
        %v5830 = vmax.f32 %v5732, 0.0
        %v5831 = vmax.f32 %v5733, 0.0
        %v5832 = vmax.f32 %v5734, 0.0
        %v5833 = vmax.f32 %v5735, 0.0
        %v5834 = vmax.f32 %v5736, 0.0
        %v5835 = vmax.f32 %v5737, 0.0
        %v5836 = vmax.f32 %v5738, 0.0
        %v5837 = vmax.f32 %v5739, 0.0
        %v5838 = vmax.f32 %v5740, 0.0
        %v5839 = vmax.f32 %v5741, 0.0
        %v5840 = vmax.f32 %v5742, 0.0
        %v5841 = vmax.f32 %v5743, 0.0
        %v5842 = vmax.f32 %v5744, 0.0
        %v5843 = vmax.f32 %v5745, 0.0
        %v5844 = vmax.f32 %v5746, 0.0
        %v5845 = vmax.f32 %v5747, 0.0
        %v5846 = vmax.f32 %v5748, 0.0
        %v5847 = vmax.f32 %v5749, 0.0
        %v5848 = vmax.f32 %v5750, 0.0
        %v5849 = vmax.f32 %v5751, 0.0
        %v5850 = vmax.f32 %v5752, 0.0
        %v5851 = vmax.f32 %v5753, 0.0
        %v5852 = vmax.f32 %v5754, 0.0
        %v5853 = vmax.f32 %v5755, 0.0
        %v5854 = vmax.f32 %v5756, 0.0
        %v5855 = vpack.c.bf16 %v5758, %v5757
        %v5856 = vpack.c.bf16 %v5760, %v5759
        %v5857 = vpack.c.bf16 %v5762, %v5761
        %v5858 = vpack.c.bf16 %v5764, %v5763
        %v5859 = vpack.c.bf16 %v5766, %v5765
        %v5860 = vpack.c.bf16 %v5768, %v5767
        %v5861 = vpack.c.bf16 %v5770, %v5769
        %v5862 = vpack.c.bf16 %v5772, %v5771
        %v5863 = vpack.c.bf16 %v5774, %v5773
        %v5864 = vpack.c.bf16 %v5776, %v5775
        %v5865 = vpack.c.bf16 %v5778, %v5777
        %v5866 = vpack.c.bf16 %v5780, %v5779
        %v5867 = vpack.c.bf16 %v5782, %v5781
        %v5868 = vpack.c.bf16 %v5784, %v5783
        %v5869 = vpack.c.bf16 %v5786, %v5785
        %v5870 = vpack.c.bf16 %v5788, %v5787
        %v5871 = vpack.c.bf16 %v5790, %v5789
        %v5872 = vpack.c.bf16 %v5792, %v5791
        %v5873 = vpack.c.bf16 %v5794, %v5793
        %v5874 = vpack.c.bf16 %v5796, %v5795
        %v5875 = vpack.c.bf16 %v5798, %v5797
        %v5876 = vpack.c.bf16 %v5800, %v5799
        %v5877 = vpack.c.bf16 %v5802, %v5801
        %v5878 = vpack.c.bf16 %v5804, %v5803
        %v5879 = vpack.c.bf16 %v5806, %v5805
        %v5880 = vpack.c.bf16 %v5808, %v5807
        %v5881 = vpack.c.bf16 %v5810, %v5809
        %v5882 = vpack.c.bf16 %v5812, %v5811
        %v5883 = vpack.c.bf16 %v5814, %v5813
        %v5884 = vpack.c.bf16 %v5816, %v5815
        %v5885 = vpack.c.bf16 %v5818, %v5817
        %v5886 = vpack.c.bf16 %v5820, %v5819
        %v5887 = vpack.c.bf16 %v5822, %v5821
        %v5888 = vpack.c.bf16 %v5824, %v5823
        %v5889 = vpack.c.bf16 %v5826, %v5825
        %v5890 = vpack.c.bf16 %v5828, %v5827
        %v5891 = vpack.c.bf16 %v5830, %v5829
        %v5892 = vpack.c.bf16 %v5832, %v5831
        %v5893 = vpack.c.bf16 %v5834, %v5833
        %v5894 = vpack.c.bf16 %v5836, %v5835
        %v5895 = vpack.c.bf16 %v5838, %v5837
        %v5896 = vpack.c.bf16 %v5840, %v5839
        %v5897 = vpack.c.bf16 %v5842, %v5841
        %v5898 = vpack.c.bf16 %v5844, %v5843
        %v5899 = vpack.c.bf16 %v5846, %v5845
        %v5900 = vpack.c.bf16 %v5848, %v5847
        %v5901 = vpack.c.bf16 %v5850, %v5849
        %v5902 = vpack.c.bf16 %v5852, %v5851
        %v5903 = vpack.c.bf16 %v5854, %v5853
        %v5953 = vunpack.c.l.b16 %v5855
        %v5954 = vunpack.c.h.b16 %v5855
        %v5955 = vunpack.c.l.b16 %v5856
        %v5956 = vunpack.c.h.b16 %v5856
        %v5957 = vunpack.c.l.b16 %v5857
        %v5958 = vunpack.c.h.b16 %v5857
        %v5959 = vunpack.c.l.b16 %v5858
        %v5960 = vunpack.c.h.b16 %v5858
        %v5961 = vunpack.c.l.b16 %v5859
        %v5962 = vunpack.c.h.b16 %v5859
        %v5963 = vunpack.c.l.b16 %v5860
        %v5964 = vunpack.c.h.b16 %v5860
        %v5965 = vunpack.c.l.b16 %v5861
        %v5966 = vunpack.c.h.b16 %v5861
        %v5967 = vunpack.c.l.b16 %v5862
        %v5968 = vunpack.c.h.b16 %v5862
        %v5969 = vunpack.c.l.b16 %v5863
        %v5970 = vunpack.c.h.b16 %v5863
        %v5971 = vunpack.c.l.b16 %v5864
        %v5972 = vunpack.c.h.b16 %v5864
        %v5973 = vunpack.c.l.b16 %v5865
        %v5974 = vunpack.c.h.b16 %v5865
        %v5975 = vunpack.c.l.b16 %v5866
        %v5976 = vunpack.c.h.b16 %v5866
        %v5977 = vunpack.c.l.b16 %v5867
        %v5978 = vunpack.c.h.b16 %v5867
        %v5979 = vunpack.c.l.b16 %v5868
        %v5980 = vunpack.c.h.b16 %v5868
        %v5981 = vunpack.c.l.b16 %v5869
        %v5982 = vunpack.c.h.b16 %v5869
        %v5983 = vunpack.c.l.b16 %v5870
        %v5984 = vunpack.c.h.b16 %v5870
        %v5985 = vunpack.c.l.b16 %v5871
        %v5986 = vunpack.c.h.b16 %v5871
        %v5987 = vunpack.c.l.b16 %v5872
        %v5988 = vunpack.c.h.b16 %v5872
        %v5989 = vunpack.c.l.b16 %v5873
        %v5990 = vunpack.c.h.b16 %v5873
        %v5991 = vunpack.c.l.b16 %v5874
        %v5992 = vunpack.c.h.b16 %v5874
        %v5993 = vunpack.c.l.b16 %v5875
        %v5994 = vunpack.c.h.b16 %v5875
        %v5995 = vunpack.c.l.b16 %v5876
        %v5996 = vunpack.c.h.b16 %v5876
        %v5997 = vunpack.c.l.b16 %v5877
        %v5998 = vunpack.c.h.b16 %v5877
        %v5999 = vunpack.c.l.b16 %v5878
        %v6000 = vunpack.c.h.b16 %v5878
        %v6001 = vunpack.c.l.b16 %v5879
        %v6002 = vunpack.c.h.b16 %v5879
        %v6003 = vunpack.c.l.b16 %v5880
        %v6004 = vunpack.c.h.b16 %v5880
        %v6005 = vunpack.c.l.b16 %v5881
        %v6006 = vunpack.c.h.b16 %v5881
        %v6007 = vunpack.c.l.b16 %v5882
        %v6008 = vunpack.c.h.b16 %v5882
        %v6009 = vunpack.c.l.b16 %v5883
        %v6010 = vunpack.c.h.b16 %v5883
        %v6011 = vunpack.c.l.b16 %v5884
        %v6012 = vunpack.c.h.b16 %v5884
        %v6013 = vunpack.c.l.b16 %v5885
        %v6014 = vunpack.c.h.b16 %v5885
        %v6015 = vunpack.c.l.b16 %v5886
        %v6016 = vunpack.c.h.b16 %v5886
        %v6017 = vunpack.c.l.b16 %v5887
        %v6018 = vunpack.c.h.b16 %v5887
        %v6019 = vunpack.c.l.b16 %v5888
        %v6020 = vunpack.c.h.b16 %v5888
        %v6021 = vunpack.c.l.b16 %v5889
        %v6022 = vunpack.c.h.b16 %v5889
        %v6023 = vunpack.c.l.b16 %v5890
        %v6024 = vunpack.c.h.b16 %v5890
        %v6025 = vunpack.c.l.b16 %v5891
        %v6026 = vunpack.c.h.b16 %v5891
        %v6027 = vunpack.c.l.b16 %v5892
        %v6028 = vunpack.c.h.b16 %v5892
        %v6029 = vunpack.c.l.b16 %v5893
        %v6030 = vunpack.c.h.b16 %v5893
        %v6031 = vunpack.c.l.b16 %v5894
        %v6032 = vunpack.c.h.b16 %v5894
        %v6033 = vunpack.c.l.b16 %v5895
        %v6034 = vunpack.c.h.b16 %v5895
        %v6035 = vunpack.c.l.b16 %v5896
        %v6036 = vunpack.c.h.b16 %v5896
        %v6037 = vunpack.c.l.b16 %v5897
        %v6038 = vunpack.c.h.b16 %v5897
        %v6039 = vunpack.c.l.b16 %v5898
        %v6040 = vunpack.c.h.b16 %v5898
        %v6041 = vunpack.c.l.b16 %v5899
        %v6042 = vunpack.c.h.b16 %v5899
        %v6043 = vunpack.c.l.b16 %v5900
        %v6044 = vunpack.c.h.b16 %v5900
        %v6045 = vunpack.c.l.b16 %v5901
        %v6046 = vunpack.c.h.b16 %v5901
        %v6047 = vunpack.c.l.b16 %v5902
        %v6048 = vunpack.c.h.b16 %v5902
        %v6049 = vunpack.c.l.b16 %v5903
        %v6050 = vunpack.c.h.b16 %v5903
        %v6051 = vpack.c.b16 %v5953, %v5953
        %v6052 = vpack.c.b16 %v5954, %v5954
        %v6053 = vpack.c.b16 %v5955, %v5955
        %v6054 = vpack.c.b16 %v5956, %v5956
        %v6055 = vpack.c.b16 %v5957, %v5957
        %v6056 = vpack.c.b16 %v5958, %v5958
        %v6057 = vpack.c.b16 %v5959, %v5959
        %v6058 = vpack.c.b16 %v5960, %v5960
        %v6059 = vpack.c.b16 %v5961, %v5961
        %v6060 = vpack.c.b16 %v5962, %v5962
        %v6061 = vpack.c.b16 %v5963, %v5963
        %v6062 = vpack.c.b16 %v5964, %v5964
        %v6063 = vpack.c.b16 %v5965, %v5965
        %v6064 = vpack.c.b16 %v5966, %v5966
        %v6065 = vpack.c.b16 %v5967, %v5967
        %v6066 = vpack.c.b16 %v5968, %v5968
        %v6067 = vpack.c.b16 %v5969, %v5969
        %v6068 = vpack.c.b16 %v5970, %v5970
        %v6069 = vpack.c.b16 %v5971, %v5971
        %v6070 = vpack.c.b16 %v5972, %v5972
        %v6071 = vpack.c.b16 %v5973, %v5973
        %v6072 = vpack.c.b16 %v5974, %v5974
        %v6073 = vpack.c.b16 %v5975, %v5975
        %v6074 = vpack.c.b16 %v5976, %v5976
        %v6075 = vpack.c.b16 %v5977, %v5977
        %v6076 = vpack.c.b16 %v5978, %v5978
        %v6077 = vpack.c.b16 %v5979, %v5979
        %v6078 = vpack.c.b16 %v5980, %v5980
        %v6079 = vpack.c.b16 %v5981, %v5981
        %v6080 = vpack.c.b16 %v5982, %v5982
        %v6081 = vpack.c.b16 %v5983, %v5983
        %v6082 = vpack.c.b16 %v5984, %v5984
        %v6083 = vpack.c.b16 %v5985, %v5985
        %v6084 = vpack.c.b16 %v5986, %v5986
        %v6085 = vpack.c.b16 %v5987, %v5987
        %v6086 = vpack.c.b16 %v5988, %v5988
        %v6087 = vpack.c.b16 %v5989, %v5989
        %v6088 = vpack.c.b16 %v5990, %v5990
        %v6089 = vpack.c.b16 %v5991, %v5991
        %v6090 = vpack.c.b16 %v5992, %v5992
        %v6091 = vpack.c.b16 %v5993, %v5993
        %v6092 = vpack.c.b16 %v5994, %v5994
        %v6093 = vpack.c.b16 %v5995, %v5995
        %v6094 = vpack.c.b16 %v5996, %v5996
        %v6095 = vpack.c.b16 %v5997, %v5997
        %v6096 = vpack.c.b16 %v5998, %v5998
        %v6097 = vpack.c.b16 %v5999, %v5999
        %v6098 = vpack.c.b16 %v6000, %v6000
        %v6099 = vpack.c.b16 %v6001, %v6001
        %v6100 = vpack.c.b16 %v6002, %v6002
        %v6101 = vpack.c.b16 %v6003, %v6003
        %v6102 = vpack.c.b16 %v6004, %v6004
        %v6103 = vpack.c.b16 %v6005, %v6005
        %v6104 = vpack.c.b16 %v6006, %v6006
        %v6105 = vpack.c.b16 %v6007, %v6007
        %v6106 = vpack.c.b16 %v6008, %v6008
        %v6107 = vpack.c.b16 %v6009, %v6009
        %v6108 = vpack.c.b16 %v6010, %v6010
        %v6109 = vpack.c.b16 %v6011, %v6011
        %v6110 = vpack.c.b16 %v6012, %v6012
        %v6111 = vpack.c.b16 %v6013, %v6013
        %v6112 = vpack.c.b16 %v6014, %v6014
        %v6113 = vpack.c.b16 %v6015, %v6015
        %v6114 = vpack.c.b16 %v6016, %v6016
        %v6115 = vpack.c.b16 %v6017, %v6017
        %v6116 = vpack.c.b16 %v6018, %v6018
        %v6117 = vpack.c.b16 %v6019, %v6019
        %v6118 = vpack.c.b16 %v6020, %v6020
        %v6119 = vpack.c.b16 %v6021, %v6021
        %v6120 = vpack.c.b16 %v6022, %v6022
        %v6121 = vpack.c.b16 %v6023, %v6023
        %v6122 = vpack.c.b16 %v6024, %v6024
        %v6123 = vpack.c.b16 %v6025, %v6025
        %v6124 = vpack.c.b16 %v6026, %v6026
        %v6125 = vpack.c.b16 %v6027, %v6027
        %v6126 = vpack.c.b16 %v6028, %v6028
        %v6127 = vpack.c.b16 %v6029, %v6029
        %v6128 = vpack.c.b16 %v6030, %v6030
        %v6129 = vpack.c.b16 %v6031, %v6031
        %v6130 = vpack.c.b16 %v6032, %v6032
        %v6131 = vpack.c.b16 %v6033, %v6033
        %v6132 = vpack.c.b16 %v6034, %v6034
        %v6133 = vpack.c.b16 %v6035, %v6035
        %v6134 = vpack.c.b16 %v6036, %v6036
        %v6135 = vpack.c.b16 %v6037, %v6037
        %v6136 = vpack.c.b16 %v6038, %v6038
        %v6137 = vpack.c.b16 %v6039, %v6039
        %v6138 = vpack.c.b16 %v6040, %v6040
        %v6139 = vpack.c.b16 %v6041, %v6041
        %v6140 = vpack.c.b16 %v6042, %v6042
        %v6141 = vpack.c.b16 %v6043, %v6043
        %v6142 = vpack.c.b16 %v6044, %v6044
        %v6143 = vpack.c.b16 %v6045, %v6045
        %v6144 = vpack.c.b16 %v6046, %v6046
        %v6145 = vpack.c.b16 %v6047, %v6047
        %v6146 = vpack.c.b16 %v6048, %v6048
        %v6147 = vpack.c.b16 %v6049, %v6049
        %v6148 = vpack.c.b16 %v6050, %v6050
        %6247 = vst [vmem:[%s1779] sm:$0xf] %v6051
        %6248 = vst [vmem:[%s1779 + $0x4] sm:$0xf] %v6052
        %6249 = vst [vmem:[%s1779 + $0x8] sm:$0xf] %v6053
        %6250 = vst [vmem:[%s1779 + $0xc] sm:$0xf] %v6054
        %6251 = vst [vmem:[%s1779 + $0x10] sm:$0xf] %v6055
        %6252 = vst [vmem:[%s1779 + $0x14] sm:$0xf] %v6056
        %6253 = vst [vmem:[%s1779 + $0x18] sm:$0xf] %v6057
        %6254 = vst [vmem:[%s1779 + $0x1c] sm:$0xf] %v6058
        %6255 = vst [vmem:[%s1779 + $0x20] sm:$0xf] %v6059
        %6256 = vst [vmem:[%s1779 + $0x24] sm:$0xf] %v6060
        %6257 = vst [vmem:[%s1779 + $0x28] sm:$0xf] %v6061
        %6258 = vst [vmem:[%s1779 + $0x2c] sm:$0xf] %v6062
        %6259 = vst [vmem:[%s1779 + $0x30] sm:$0xf] %v6063
        %6260 = vst [vmem:[%s1779 + $0x34] sm:$0xf] %v6064
        %6261 = vst [vmem:[%s1779 + $0x38] sm:$0xf] %v6065
        %6262 = vst [vmem:[%s1779 + $0x3c] sm:$0xf] %v6066
        %6263 = vst [vmem:[%s1779 + $0x40] sm:$0xf] %v6067
        %6264 = vst [vmem:[%s1779 + $0x44] sm:$0xf] %v6068
        %6265 = vst [vmem:[%s1779 + $0x48] sm:$0xf] %v6069
        %6266 = vst [vmem:[%s1779 + $0x4c] sm:$0xf] %v6070
        %6267 = vst [vmem:[%s1779 + $0x50] sm:$0xf] %v6071
        %6268 = vst [vmem:[%s1779 + $0x54] sm:$0xf] %v6072
        %6269 = vst [vmem:[%s1779 + $0x58] sm:$0xf] %v6073
        %6270 = vst [vmem:[%s1779 + $0x5c] sm:$0xf] %v6074
        %6271 = vst [vmem:[%s1779 + $0x60] sm:$0xf] %v6075
        %6272 = vst [vmem:[%s1779 + $0x64] sm:$0xf] %v6076
        %6273 = vst [vmem:[%s1779 + $0x68] sm:$0xf] %v6077
        %6274 = vst [vmem:[%s1779 + $0x6c] sm:$0xf] %v6078
        %6275 = vst [vmem:[%s1779 + $0x70] sm:$0xf] %v6079
        %6276 = vst [vmem:[%s1779 + $0x74] sm:$0xf] %v6080
        %6277 = vst [vmem:[%s1779 + $0x78] sm:$0xf] %v6081
        %6278 = vst [vmem:[%s1779 + $0x7c] sm:$0xf] %v6082
        %6279 = vst [vmem:[%s1779 + $0x80] sm:$0xf] %v6083
        %6280 = vst [vmem:[%s1779 + $0x84] sm:$0xf] %v6084
        %6281 = vst [vmem:[%s1779 + $0x88] sm:$0xf] %v6085
        %6282 = vst [vmem:[%s1779 + $0x8c] sm:$0xf] %v6086
        %6283 = vst [vmem:[%s1779 + $0x90] sm:$0xf] %v6087
        %6284 = vst [vmem:[%s1779 + $0x94] sm:$0xf] %v6088
        %6285 = vst [vmem:[%s1779 + $0x98] sm:$0xf] %v6089
        %6286 = vst [vmem:[%s1779 + $0x9c] sm:$0xf] %v6090
        %6287 = vst [vmem:[%s1779 + $0xa0] sm:$0xf] %v6091
        %6288 = vst [vmem:[%s1779 + $0xa4] sm:$0xf] %v6092
        %6289 = vst [vmem:[%s1779 + $0xa8] sm:$0xf] %v6093
        %6290 = vst [vmem:[%s1779 + $0xac] sm:$0xf] %v6094
        %6291 = vst [vmem:[%s1779 + $0xb0] sm:$0xf] %v6095
        %6292 = vst [vmem:[%s1779 + $0xb4] sm:$0xf] %v6096
        %6293 = vst [vmem:[%s1779 + $0xb8] sm:$0xf] %v6097
        %6294 = vst [vmem:[%s1779 + $0xbc] sm:$0xf] %v6098
        %6295 = vst [vmem:[%s1779 + $0xc0] sm:$0xf] %v6099
        %6296 = vst [vmem:[%s1779 + $0xc4] sm:$0xf] %v6100
        %6297 = vst [vmem:[%s1779 + $0xc8] sm:$0xf] %v6101
        %6298 = vst [vmem:[%s1779 + $0xcc] sm:$0xf] %v6102
        %6299 = vst [vmem:[%s1779 + $0xd0] sm:$0xf] %v6103
        %6300 = vst [vmem:[%s1779 + $0xd4] sm:$0xf] %v6104
        %6301 = vst [vmem:[%s1779 + $0xd8] sm:$0xf] %v6105
        %6302 = vst [vmem:[%s1779 + $0xdc] sm:$0xf] %v6106
        %6303 = vst [vmem:[%s1779 + $0xe0] sm:$0xf] %v6107
        %6304 = vst [vmem:[%s1779 + $0xe4] sm:$0xf] %v6108
        %6305 = vst [vmem:[%s1779 + $0xe8] sm:$0xf] %v6109
        %6306 = vst [vmem:[%s1779 + $0xec] sm:$0xf] %v6110
        %6307 = vst [vmem:[%s1779 + $0xf0] sm:$0xf] %v6111
        %6308 = vst [vmem:[%s1779 + $0xf4] sm:$0xf] %v6112
        %6309 = vst [vmem:[%s1779 + $0xf8] sm:$0xf] %v6113
        %6310 = vst [vmem:[%s1779 + $0xfc] sm:$0xf] %v6114
        %6311 = vst [vmem:[%s1779 + $0x100] sm:$0xf] %v6115
        %6312 = vst [vmem:[%s1779 + $0x104] sm:$0xf] %v6116
        %6313 = vst [vmem:[%s1779 + $0x108] sm:$0xf] %v6117
        %6314 = vst [vmem:[%s1779 + $0x10c] sm:$0xf] %v6118
        %6315 = vst [vmem:[%s1779 + $0x110] sm:$0xf] %v6119
        %6316 = vst [vmem:[%s1779 + $0x114] sm:$0xf] %v6120
        %6317 = vst [vmem:[%s1779 + $0x118] sm:$0xf] %v6121
        %6318 = vst [vmem:[%s1779 + $0x11c] sm:$0xf] %v6122
        %6319 = vst [vmem:[%s1779 + $0x120] sm:$0xf] %v6123
        %6320 = vst [vmem:[%s1779 + $0x124] sm:$0xf] %v6124
        %6321 = vst [vmem:[%s1779 + $0x128] sm:$0xf] %v6125
        %6322 = vst [vmem:[%s1779 + $0x12c] sm:$0xf] %v6126
        %6323 = vst [vmem:[%s1779 + $0x130] sm:$0xf] %v6127
        %6324 = vst [vmem:[%s1779 + $0x134] sm:$0xf] %v6128
        %6325 = vst [vmem:[%s1779 + $0x138] sm:$0xf] %v6129
        %6326 = vst [vmem:[%s1779 + $0x13c] sm:$0xf] %v6130
        %6327 = vst [vmem:[%s1779 + $0x140] sm:$0xf] %v6131
        %6328 = vst [vmem:[%s1779 + $0x144] sm:$0xf] %v6132
        %6329 = vst [vmem:[%s1779 + $0x148] sm:$0xf] %v6133
        %6330 = vst [vmem:[%s1779 + $0x14c] sm:$0xf] %v6134
        %6331 = vst [vmem:[%s1779 + $0x150] sm:$0xf] %v6135
        %6332 = vst [vmem:[%s1779 + $0x154] sm:$0xf] %v6136
        %6333 = vst [vmem:[%s1779 + $0x158] sm:$0xf] %v6137
        %6334 = vst [vmem:[%s1779 + $0x15c] sm:$0xf] %v6138
        %6335 = vst [vmem:[%s1779 + $0x160] sm:$0xf] %v6139
        %6336 = vst [vmem:[%s1779 + $0x164] sm:$0xf] %v6140
        %6337 = vst [vmem:[%s1779 + $0x168] sm:$0xf] %v6141
        %6338 = vst [vmem:[%s1779 + $0x16c] sm:$0xf] %v6142
        %6339 = vst [vmem:[%s1779 + $0x170] sm:$0xf] %v6143
        %6340 = vst [vmem:[%s1779 + $0x174] sm:$0xf] %v6144
        %6341 = vst [vmem:[%s1779 + $0x178] sm:$0xf] %v6145
        %6342 = vst [vmem:[%s1779 + $0x17c] sm:$0xf] %v6146
        %6343 = vst [vmem:[%s1779 + $0x180] sm:$0xf] %v6147
        %6344 = vst [vmem:[%s1779 + $0x184] sm:$0xf] %v6148
        %s6345 = smul.u32 98, %s14
        %p6346 = scmp.lt.s32.totalorder %s6345, 195
        %s6347 = scalar_select %p6346, %s6345, 195
        %s6348 = smul.addr %s6347, 4
        %s6349 = scalar_lea.vmem %s3, %s6348
        // Predicated region
        $region74: #{cnn_forward.3} parent=68 // pred_check
          %p6350 = pneg %p100
        $region75: #{cnn_forward.3} parent=68 // pred_check_branch
          %6352 = sbr.rel (%p6350) target = $region77
        $region76: #{cnn_forward.3} parent=68 // pred_region
          %s6353 = smul.u32 98, %s14
        $region77: #{cnn_forward.3} parent=68 // pred_fallthru
          _
      $region69: #{cnn_forward.3} parent=5 // pred_fallthru
        _
      %p6354 = scmp.le.s32.totalorder 2, %s9
      // Predicated region
      $region78: #{cnn_forward.3} parent=5 // pred_check
        %p6355 = pneg %p6354
      $region79: #{cnn_forward.3} parent=5 // pred_check_branch
        %6357 = sbr.rel (%p6355) target = $region81
      $region80: #{cnn_forward.3} parent=5 // pred_region
        %s6358 = ssub.s32 %s9, 2
        // Predicated region
        $region82: #{cnn_forward.3} parent=80 // pred_check
          %p6359 = pneg %p106
        $region83: #{cnn_forward.3} parent=80 // pred_check_branch
          %6361 = sbr.rel (%p6359) target = $region85
        $region84: #{cnn_forward.3} parent=80 // pred_region
          %s6362 = smul.u32 98, %s15
          %p6363 = scmp.lt.s32.totalorder %s6362, 195
          %s6364 = scalar_select %p6363, %s6362, 195
          %s6365 = smul.addr %s6364, 4
          %s6366 = scalar_lea.vmem %s3, %s6365
        $region85: #{cnn_forward.3} parent=80 // pred_fallthru
          _
      $region81: #{cnn_forward.3} parent=5 // pred_fallthru
        _
    $region6: #{cnn_forward.3} parent=1 // loop_footer
      %s13 = sadd.s32 1, %s9
    $region7: #{cnn_forward.3} parent=1 // loop_footer_branch
      %8 = sbr.rel target = $region3
    $region8: #{cnn_forward.3} parent=1 // loop_exit
      _

// kernel: cnn_forward.4
$region0: #{cnn_forward.4}
  #allocation0 [shape = 'u32[]', space=smem, size = 0x4, offset = 0x4, fixed_abs, tag = 'smem constant byte address 0x4 - core index']
  #allocation1 [shape = 'u32[144,128]{1,0:T(1,128)}', space=vmem, size = 0x12000, scoped, tag = 'internal scratch']
  %s0 = inlined_call_operand.vmem [shape: bf16[4,288,288], index: 0, kind: input, shape index: {}]
  %s1 = inlined_call_operand.vmem [shape: bf16[288,128], index: 1, kind: input, shape index: {}]
  %s2 = inlined_call_operand.vmem [shape: f32[1,128], index: 2, kind: input, shape index: {}]
  %s3 = inlined_call_operand.vmem [shape: bf16[288,128], index: 3, kind: output, shape index: {}]
  %s4 = sld [smem:[#allocation0]]
  $region71: #{cnn_forward.4} parent=0
    _
  %s6 = ssub.s32 1, %s4
  %s7 = scalar_select 0, %s6, %s4
  $region1: #{cnn_forward.4} parent=0
    #allocation2 [shape = 'u8[884736]{0}', space=vmem, size = 0xd8000, scoped, tag = 'input window, operand 0']
    loop: start=0, step=1, limit=4
    $region2: #{cnn_forward.4} parent=1 // loop_pre_header
      _
    $region3: #{cnn_forward.4} parent=1 // loop_header
      %s9 = sphi 0, %s13
      %p10 = scmp.ge.s32.totalorder %s9, 4
      %s19 = sphi 0, %s21
      %s22 = sphi 0, %s19
      %s23 = sphi 0, %s22
      %s39 = sphi 0, %s23
      %s43 = sphi 0, %s43
      %s45 = sphi 0, %s43
      %s46 = sphi 0, %s45
      %s60 = sphi 0, %s46
      %s64 = sphi 0, %s64
      %s66 = sphi 0, %s64
      %s67 = sphi 0, %s66
      %s81 = sphi 0, %s67
      %s87 = sphi 0, %s89
      %s90 = sphi 0, %s87
      %s91 = sphi 0, %s90
      %s107 = sphi 0, %s91
    $region4: #{cnn_forward.4} parent=1 // loop_header_branch
      %12 = sbr.rel (%p10) target = $region8
    $region5: #{cnn_forward.4} parent=1 // loop_body
      %s14 = ssub.s32 %s9, 1
      %s15 = ssub.s32 %s9, 2
      %s16 = sadd.s32 %s9, 1
      %s17 = ssub.s32 %s9, %s16
      %p18 = scmp.eq.s32.totalorder %s17, 0
      %s20 = sadd.s32 %s19, 1
      %s21 = scalar_select %p18, %s19, %s20
      %p24 = pneg %p18
      %p25 = scmp.eq.s32.totalorder %s9, 1
      %p26 = por %p24, %p25
      %p27 = scmp.ne.s32.totalorder %s19, %s22
      %p28 = scmp.eq.s32.totalorder %s9, 0
      %p29 = por %p27, %p28
      %p30 = scmp.ne.s32.totalorder %s19, %s22
      %p31 = scmp.eq.s32.totalorder %s14, 1
      %p32 = por %p30, %p31
      %p33 = scmp.ne.s32.totalorder %s22, %s23
      %p34 = scmp.eq.s32.totalorder %s14, 0
      %p35 = por %p33, %p34
      %p36 = scmp.ne.s32.totalorder %s22, %s23
      %p37 = scmp.eq.s32.totalorder %s15, 1
      %p38 = por %p36, %p37
      %p40 = scmp.ne.s32.totalorder %s23, %s39
      %p41 = scmp.eq.s32.totalorder %s15, 0
      %p42 = por %p40, %p41
      %s44 = sadd.s32 %s43, 1
      %p47 = scmp.eq.s32.totalorder %s9, 1
      %p48 = scmp.ne.s32.totalorder %s43, %s45
      %p49 = scmp.eq.s32.totalorder %s9, 0
      %p50 = por %p48, %p49
      %p51 = scmp.ne.s32.totalorder %s43, %s45
      %p52 = scmp.eq.s32.totalorder %s14, 1
      %p53 = por %p51, %p52
      %p54 = scmp.ne.s32.totalorder %s45, %s46
      %p55 = scmp.eq.s32.totalorder %s14, 0
      %p56 = por %p54, %p55
      %p57 = scmp.ne.s32.totalorder %s45, %s46
      %p58 = scmp.eq.s32.totalorder %s15, 1
      %p59 = por %p57, %p58
      %p61 = scmp.ne.s32.totalorder %s46, %s60
      %p62 = scmp.eq.s32.totalorder %s15, 0
      %p63 = por %p61, %p62
      %s65 = sadd.s32 %s64, 1
      %p68 = scmp.eq.s32.totalorder %s9, 1
      %p69 = scmp.ne.s32.totalorder %s64, %s66
      %p70 = scmp.eq.s32.totalorder %s9, 0
      %p71 = por %p69, %p70
      %p72 = scmp.ne.s32.totalorder %s64, %s66
      %p73 = scmp.eq.s32.totalorder %s14, 1
      %p74 = por %p72, %p73
      %p75 = scmp.ne.s32.totalorder %s66, %s67
      %p76 = scmp.eq.s32.totalorder %s14, 0
      %p77 = por %p75, %p76
      %p78 = scmp.ne.s32.totalorder %s66, %s67
      %p79 = scmp.eq.s32.totalorder %s15, 1
      %p80 = por %p78, %p79
      %p82 = scmp.ne.s32.totalorder %s67, %s81
      %p83 = scmp.eq.s32.totalorder %s15, 0
      %p84 = por %p82, %p83
      %s85 = ssub.s32 %s9, %s16
      %p86 = scmp.eq.s32.totalorder %s85, 0
      %s88 = sadd.s32 %s87, 1
      %s89 = scalar_select %p86, %s87, %s88
      %p92 = pneg %p86
      %p93 = scmp.eq.s32.totalorder %s9, 1
      %p94 = por %p92, %p93
      %p95 = scmp.ne.s32.totalorder %s87, %s90
      %p96 = scmp.eq.s32.totalorder %s9, 0
      %p97 = por %p95, %p96
      %p98 = scmp.ne.s32.totalorder %s87, %s90
      %p99 = scmp.eq.s32.totalorder %s14, 1
      %p100 = por %p98, %p99
      %p101 = scmp.ne.s32.totalorder %s90, %s91
      %p102 = scmp.eq.s32.totalorder %s14, 0
      %p103 = por %p101, %p102
      %p104 = scmp.ne.s32.totalorder %s90, %s91
      %p105 = scmp.eq.s32.totalorder %s15, 1
      %p106 = por %p104, %p105
      %p108 = scmp.ne.s32.totalorder %s91, %s107
      %p109 = scmp.eq.s32.totalorder %s15, 0
      %p110 = por %p108, %p109
      %p111 = scmp.le.s32.totalorder 1, %s9
      %p112 = scmp.lt.s32.totalorder %s9, 3
      %p113 = pnand %p111, %p112
      %p114 = pneg %p113
      // Predicated region
      $region9: #{cnn_forward.4} parent=5 // pred_check
        _
      $region10: #{cnn_forward.4} parent=5 // pred_check_branch
        %116 = sbr.rel (%p113) target = $region12
      $region11: #{cnn_forward.4} parent=5 // pred_region
        %s117 = ssub.s32 %s9, 1
        // Predicated region
        $region13: #{cnn_forward.4} parent=11 // pred_check
          %p118 = pneg %p56
        $region14: #{cnn_forward.4} parent=11 // pred_check_branch
          %120 = sbr.rel (%p118) target = $region16
        $region15: #{cnn_forward.4} parent=11 // pred_region
          _
        $region16: #{cnn_forward.4} parent=11 // pred_fallthru
          _
        // Predicated region
        $region17: #{cnn_forward.4} parent=11 // pred_check
          %p121 = pneg %p77
        $region18: #{cnn_forward.4} parent=11 // pred_check_branch
          %123 = sbr.rel (%p121) target = $region20
        $region19: #{cnn_forward.4} parent=11 // pred_region
          _
        $region20: #{cnn_forward.4} parent=11 // pred_fallthru
          _
      $region12: #{cnn_forward.4} parent=5 // pred_fallthru
        _
      %p124 = scmp.lt.s32.totalorder %s9, 2
      // Predicated region
      $region21: #{cnn_forward.4} parent=5 // pred_check
        %p125 = pneg %p124
      $region22: #{cnn_forward.4} parent=5 // pred_check_branch
        %127 = sbr.rel (%p125) target = $region24
      $region23: #{cnn_forward.4} parent=5 // pred_region
        // Predicated region
        $region25: #{cnn_forward.4} parent=23 // pred_check
          %p128 = pneg %p29
        $region26: #{cnn_forward.4} parent=23 // pred_check_branch
          %130 = sbr.rel (%p128) target = $region28
        $region27: #{cnn_forward.4} parent=23 // pred_region
          %s131 = sand.u32 %s19, 1
          %s132 = sand.u32 %s19, 1
          %s133 = smul.addr %s132, 864
          %s134 = scalar_lea.vmem [#allocation2], %s133
          %s135 = smul.u32 18, %s9
          %s136 = smul.addr %s135, 3
          %s137 = smul.addr %s136, 4
          %s138 = scalar_lea.vmem %s0, %s137
          // Predicated region
          $region29: #{cnn_forward.4} parent=27 // pred_check
            _
          $region30: #{cnn_forward.4} parent=27 // pred_check_branch
            %140 = sbr.rel (0) target = $region32
          $region31: #{cnn_forward.4} parent=27 // pred_region
            // Predicated region
            $region33: #{cnn_forward.4} parent=31 // pred_check
              _
            $region34: #{cnn_forward.4} parent=31 // pred_check_branch
              %142 = sbr.rel (0) target = $region36
            $region35: #{cnn_forward.4} parent=31 // pred_region
              %s143 = scalar_lea.vmem %s138, 8
              %s144 = scalar_lea.vmem %s134, 8 [#allocation2]
              loop: start=0, step=1, limit=1
              $region37: #{cnn_forward.4} parent=35 // loop_pre_header
                _
              $region38: #{cnn_forward.4} parent=35 // loop_header
                %s146 = sphi 0, %s150
                %p147 = scmp.ge.s32.totalorder %s146, 1
                %s151 = sphi %s138, %s138
                %s152 = sphi %s134, %s134
              $region39: #{cnn_forward.4} parent=35 // loop_header_branch
                %149 = sbr.rel (%p147) target = $region43
              $region40: #{cnn_forward.4} parent=35 // loop_body
                %v153 = vld [vmem:[%s151] sm:$0xff]
                %154 = vst [vmem:[%s152] sm:$0xff] %v153
                %v155 = vld [vmem:[%s151 + $0xc] sm:$0xff]
                %156 = vst [vmem:[%s152 + $0xc] sm:$0xff] %v155
                %v157 = vld [vmem:[%s151 + $0x18] sm:$0xff]
                %158 = vst [vmem:[%s152 + $0x18] sm:$0xff] %v157
                %v159 = vld [vmem:[%s151 + $0x24] sm:$0xff]
                %160 = vst [vmem:[%s152 + $0x24] sm:$0xff] %v159
                %v161 = vld [vmem:[%s151 + $0x30] sm:$0xff]
                %162 = vst [vmem:[%s152 + $0x30] sm:$0xff] %v161
                %v163 = vld [vmem:[%s151 + $0x3c] sm:$0xff]
                %164 = vst [vmem:[%s152 + $0x3c] sm:$0xff] %v163
                %v165 = vld [vmem:[%s151 + $0x48] sm:$0xff]
                %166 = vst [vmem:[%s152 + $0x48] sm:$0xff] %v165
                %v167 = vld [vmem:[%s151 + $0x54] sm:$0xff]
                %168 = vst [vmem:[%s152 + $0x54] sm:$0xff] %v167
                %v169 = vld [vmem:[%s151 + $0x60] sm:$0xff]
                %170 = vst [vmem:[%s152 + $0x60] sm:$0xff] %v169
                %v171 = vld [vmem:[%s151 + $0x6c] sm:$0xff]
                %172 = vst [vmem:[%s152 + $0x6c] sm:$0xff] %v171
                %v173 = vld [vmem:[%s151 + $0x78] sm:$0xff]
                %174 = vst [vmem:[%s152 + $0x78] sm:$0xff] %v173
                %v175 = vld [vmem:[%s151 + $0x84] sm:$0xff]
                %176 = vst [vmem:[%s152 + $0x84] sm:$0xff] %v175
                %v177 = vld [vmem:[%s151 + $0x90] sm:$0xff]
                %178 = vst [vmem:[%s152 + $0x90] sm:$0xff] %v177
                %v179 = vld [vmem:[%s151 + $0x9c] sm:$0xff]
                %180 = vst [vmem:[%s152 + $0x9c] sm:$0xff] %v179
                %v181 = vld [vmem:[%s151 + $0xa8] sm:$0xff]
                %182 = vst [vmem:[%s152 + $0xa8] sm:$0xff] %v181
                %v183 = vld [vmem:[%s151 + $0xb4] sm:$0xff]
                %184 = vst [vmem:[%s152 + $0xb4] sm:$0xff] %v183
                %v185 = vld [vmem:[%s151 + $0xc0] sm:$0xff]
                %186 = vst [vmem:[%s152 + $0xc0] sm:$0xff] %v185
                %v187 = vld [vmem:[%s151 + $0xcc] sm:$0xff]
                %188 = vst [vmem:[%s152 + $0xcc] sm:$0xff] %v187
                %v189 = vld [vmem:[%s151 + $0x1b0] sm:$0xff]
                %190 = vst [vmem:[%s152 + $0xd8] sm:$0xff] %v189
                %v191 = vld [vmem:[%s151 + $0x1bc] sm:$0xff]
                %192 = vst [vmem:[%s152 + $0xe4] sm:$0xff] %v191
                %v193 = vld [vmem:[%s151 + $0x1c8] sm:$0xff]
                %194 = vst [vmem:[%s152 + $0xf0] sm:$0xff] %v193
                %v195 = vld [vmem:[%s151 + $0x1d4] sm:$0xff]
                %196 = vst [vmem:[%s152 + $0xfc] sm:$0xff] %v195
                %v197 = vld [vmem:[%s151 + $0x1e0] sm:$0xff]
                %198 = vst [vmem:[%s152 + $0x108] sm:$0xff] %v197
                %v199 = vld [vmem:[%s151 + $0x1ec] sm:$0xff]
                %200 = vst [vmem:[%s152 + $0x114] sm:$0xff] %v199
                %v201 = vld [vmem:[%s151 + $0x1f8] sm:$0xff]
                %202 = vst [vmem:[%s152 + $0x120] sm:$0xff] %v201
                %v203 = vld [vmem:[%s151 + $0x204] sm:$0xff]
                %204 = vst [vmem:[%s152 + $0x12c] sm:$0xff] %v203
                %v205 = vld [vmem:[%s151 + $0x210] sm:$0xff]
                %206 = vst [vmem:[%s152 + $0x138] sm:$0xff] %v205
                %v207 = vld [vmem:[%s151 + $0x21c] sm:$0xff]
                %208 = vst [vmem:[%s152 + $0x144] sm:$0xff] %v207
                %v209 = vld [vmem:[%s151 + $0x228] sm:$0xff]
                %210 = vst [vmem:[%s152 + $0x150] sm:$0xff] %v209
                %v211 = vld [vmem:[%s151 + $0x234] sm:$0xff]
                %212 = vst [vmem:[%s152 + $0x15c] sm:$0xff] %v211
                %v213 = vld [vmem:[%s151 + $0x240] sm:$0xff]
                %214 = vst [vmem:[%s152 + $0x168] sm:$0xff] %v213
                %v215 = vld [vmem:[%s151 + $0x24c] sm:$0xff]
                %216 = vst [vmem:[%s152 + $0x174] sm:$0xff] %v215
                %v217 = vld [vmem:[%s151 + $0x258] sm:$0xff]
                %218 = vst [vmem:[%s152 + $0x180] sm:$0xff] %v217
                %v219 = vld [vmem:[%s151 + $0x264] sm:$0xff]
                %220 = vst [vmem:[%s152 + $0x18c] sm:$0xff] %v219
                %v221 = vld [vmem:[%s151 + $0x270] sm:$0xff]
                %222 = vst [vmem:[%s152 + $0x198] sm:$0xff] %v221
                %v223 = vld [vmem:[%s151 + $0x27c] sm:$0xff]
                %224 = vst [vmem:[%s152 + $0x1a4] sm:$0xff] %v223
                %v225 = vld [vmem:[%s151 + $0x360] sm:$0xff]
                %226 = vst [vmem:[%s152 + $0x1b0] sm:$0xff] %v225
                %v227 = vld [vmem:[%s151 + $0x36c] sm:$0xff]
                %228 = vst [vmem:[%s152 + $0x1bc] sm:$0xff] %v227
                %v229 = vld [vmem:[%s151 + $0x378] sm:$0xff]
                %230 = vst [vmem:[%s152 + $0x1c8] sm:$0xff] %v229
                %v231 = vld [vmem:[%s151 + $0x384] sm:$0xff]
                %232 = vst [vmem:[%s152 + $0x1d4] sm:$0xff] %v231
                %v233 = vld [vmem:[%s151 + $0x390] sm:$0xff]
                %234 = vst [vmem:[%s152 + $0x1e0] sm:$0xff] %v233
                %v235 = vld [vmem:[%s151 + $0x39c] sm:$0xff]
                %236 = vst [vmem:[%s152 + $0x1ec] sm:$0xff] %v235
                %v237 = vld [vmem:[%s151 + $0x3a8] sm:$0xff]
                %238 = vst [vmem:[%s152 + $0x1f8] sm:$0xff] %v237
                %v239 = vld [vmem:[%s151 + $0x3b4] sm:$0xff]
                %240 = vst [vmem:[%s152 + $0x204] sm:$0xff] %v239
                %v241 = vld [vmem:[%s151 + $0x3c0] sm:$0xff]
                %242 = vst [vmem:[%s152 + $0x210] sm:$0xff] %v241
                %v243 = vld [vmem:[%s151 + $0x3cc] sm:$0xff]
                %244 = vst [vmem:[%s152 + $0x21c] sm:$0xff] %v243
                %v245 = vld [vmem:[%s151 + $0x3d8] sm:$0xff]
                %246 = vst [vmem:[%s152 + $0x228] sm:$0xff] %v245
                %v247 = vld [vmem:[%s151 + $0x3e4] sm:$0xff]
                %248 = vst [vmem:[%s152 + $0x234] sm:$0xff] %v247
                %v249 = vld [vmem:[%s151 + $0x3f0] sm:$0xff]
                %250 = vst [vmem:[%s152 + $0x240] sm:$0xff] %v249
                %v251 = vld [vmem:[%s151 + $0x3fc] sm:$0xff]
                %252 = vst [vmem:[%s152 + $0x24c] sm:$0xff] %v251
                %v253 = vld [vmem:[%s151 + $0x408] sm:$0xff]
                %254 = vst [vmem:[%s152 + $0x258] sm:$0xff] %v253
                %v255 = vld [vmem:[%s151 + $0x414] sm:$0xff]
                %256 = vst [vmem:[%s152 + $0x264] sm:$0xff] %v255
                %v257 = vld [vmem:[%s151 + $0x420] sm:$0xff]
                %258 = vst [vmem:[%s152 + $0x270] sm:$0xff] %v257
                %v259 = vld [vmem:[%s151 + $0x42c] sm:$0xff]
                %260 = vst [vmem:[%s152 + $0x27c] sm:$0xff] %v259
                %v261 = vld [vmem:[%s151 + $0x510] sm:$0xff]
                %262 = vst [vmem:[%s152 + $0x288] sm:$0xff] %v261
                %v263 = vld [vmem:[%s151 + $0x51c] sm:$0xff]
                %264 = vst [vmem:[%s152 + $0x294] sm:$0xff] %v263
                %v265 = vld [vmem:[%s151 + $0x528] sm:$0xff]
                %266 = vst [vmem:[%s152 + $0x2a0] sm:$0xff] %v265
                %v267 = vld [vmem:[%s151 + $0x534] sm:$0xff]
                %268 = vst [vmem:[%s152 + $0x2ac] sm:$0xff] %v267
                %v269 = vld [vmem:[%s151 + $0x540] sm:$0xff]
                %270 = vst [vmem:[%s152 + $0x2b8] sm:$0xff] %v269
                %v271 = vld [vmem:[%s151 + $0x54c] sm:$0xff]
                %272 = vst [vmem:[%s152 + $0x2c4] sm:$0xff] %v271
                %v273 = vld [vmem:[%s151 + $0x558] sm:$0xff]
                %274 = vst [vmem:[%s152 + $0x2d0] sm:$0xff] %v273
                %v275 = vld [vmem:[%s151 + $0x564] sm:$0xff]
                %276 = vst [vmem:[%s152 + $0x2dc] sm:$0xff] %v275
                %v277 = vld [vmem:[%s151 + $0x570] sm:$0xff]
                %278 = vst [vmem:[%s152 + $0x2e8] sm:$0xff] %v277
                %v279 = vld [vmem:[%s151 + $0x57c] sm:$0xff]
                %280 = vst [vmem:[%s152 + $0x2f4] sm:$0xff] %v279
                %v281 = vld [vmem:[%s151 + $0x588] sm:$0xff]
                %282 = vst [vmem:[%s152 + $0x300] sm:$0xff] %v281
                %v283 = vld [vmem:[%s151 + $0x594] sm:$0xff]
                %284 = vst [vmem:[%s152 + $0x30c] sm:$0xff] %v283
                %v285 = vld [vmem:[%s151 + $0x5a0] sm:$0xff]
                %286 = vst [vmem:[%s152 + $0x318] sm:$0xff] %v285
                %v287 = vld [vmem:[%s151 + $0x5ac] sm:$0xff]
                %288 = vst [vmem:[%s152 + $0x324] sm:$0xff] %v287
                %v289 = vld [vmem:[%s151 + $0x5b8] sm:$0xff]
                %290 = vst [vmem:[%s152 + $0x330] sm:$0xff] %v289
                %v291 = vld [vmem:[%s151 + $0x5c4] sm:$0xff]
                %292 = vst [vmem:[%s152 + $0x33c] sm:$0xff] %v291
                %v293 = vld [vmem:[%s151 + $0x5d0] sm:$0xff]
                %294 = vst [vmem:[%s152 + $0x348] sm:$0xff] %v293
                %v295 = vld [vmem:[%s151 + $0x5dc] sm:$0xff]
                %296 = vst [vmem:[%s152 + $0x354] sm:$0xff] %v295
              $region41: #{cnn_forward.4} parent=35 // loop_footer
                %s150 = sadd.s32 1, %s146
              $region42: #{cnn_forward.4} parent=35 // loop_footer_branch
                %145 = sbr.rel target = $region38
              $region43: #{cnn_forward.4} parent=35 // loop_exit
                _
              %s298 = ssub.s32 16, 1
              loop: start=0, step=1, limit=1
              $region44: #{cnn_forward.4} parent=35 // loop_pre_header
                _
              $region45: #{cnn_forward.4} parent=35 // loop_header
                %s300 = sphi 0, %s304
                %p301 = scmp.ge.s32.totalorder %s300, 1
                %s305 = sphi %s143, %s143
                %s306 = sphi %s144, %s144
              $region46: #{cnn_forward.4} parent=35 // loop_header_branch
                %303 = sbr.rel (%p301) target = $region50
              $region47: #{cnn_forward.4} parent=35 // loop_body
                %v307 = vld [vmem:[%s305] sm:%s298]
                %308 = vst [vmem:[%s306] sm:%s298] %v307
                %v309 = vld [vmem:[%s305 + $0xc] sm:%s298]
                %310 = vst [vmem:[%s306 + $0xc] sm:%s298] %v309
                %v311 = vld [vmem:[%s305 + $0x18] sm:%s298]
                %312 = vst [vmem:[%s306 + $0x18] sm:%s298] %v311
                %v313 = vld [vmem:[%s305 + $0x24] sm:%s298]
                %314 = vst [vmem:[%s306 + $0x24] sm:%s298] %v313
                %v315 = vld [vmem:[%s305 + $0x30] sm:%s298]
                %316 = vst [vmem:[%s306 + $0x30] sm:%s298] %v315
                %v317 = vld [vmem:[%s305 + $0x3c] sm:%s298]
                %318 = vst [vmem:[%s306 + $0x3c] sm:%s298] %v317
                %v319 = vld [vmem:[%s305 + $0x48] sm:%s298]
                %320 = vst [vmem:[%s306 + $0x48] sm:%s298] %v319
                %v321 = vld [vmem:[%s305 + $0x54] sm:%s298]
                %322 = vst [vmem:[%s306 + $0x54] sm:%s298] %v321
                %v323 = vld [vmem:[%s305 + $0x60] sm:%s298]
                %324 = vst [vmem:[%s306 + $0x60] sm:%s298] %v323
                %v325 = vld [vmem:[%s305 + $0x6c] sm:%s298]
                %326 = vst [vmem:[%s306 + $0x6c] sm:%s298] %v325
                %v327 = vld [vmem:[%s305 + $0x78] sm:%s298]
                %328 = vst [vmem:[%s306 + $0x78] sm:%s298] %v327
                %v329 = vld [vmem:[%s305 + $0x84] sm:%s298]
                %330 = vst [vmem:[%s306 + $0x84] sm:%s298] %v329
                %v331 = vld [vmem:[%s305 + $0x90] sm:%s298]
                %332 = vst [vmem:[%s306 + $0x90] sm:%s298] %v331
                %v333 = vld [vmem:[%s305 + $0x9c] sm:%s298]
                %334 = vst [vmem:[%s306 + $0x9c] sm:%s298] %v333
                %v335 = vld [vmem:[%s305 + $0xa8] sm:%s298]
                %336 = vst [vmem:[%s306 + $0xa8] sm:%s298] %v335
                %v337 = vld [vmem:[%s305 + $0xb4] sm:%s298]
                %338 = vst [vmem:[%s306 + $0xb4] sm:%s298] %v337
                %v339 = vld [vmem:[%s305 + $0xc0] sm:%s298]
                %340 = vst [vmem:[%s306 + $0xc0] sm:%s298] %v339
                %v341 = vld [vmem:[%s305 + $0xcc] sm:%s298]
                %342 = vst [vmem:[%s306 + $0xcc] sm:%s298] %v341
                %v343 = vld [vmem:[%s305 + $0x1b0] sm:%s298]
                %344 = vst [vmem:[%s306 + $0xd8] sm:%s298] %v343
                %v345 = vld [vmem:[%s305 + $0x1bc] sm:%s298]
                %346 = vst [vmem:[%s306 + $0xe4] sm:%s298] %v345
                %v347 = vld [vmem:[%s305 + $0x1c8] sm:%s298]
                %348 = vst [vmem:[%s306 + $0xf0] sm:%s298] %v347
                %v349 = vld [vmem:[%s305 + $0x1d4] sm:%s298]
                %350 = vst [vmem:[%s306 + $0xfc] sm:%s298] %v349
                %v351 = vld [vmem:[%s305 + $0x1e0] sm:%s298]
                %352 = vst [vmem:[%s306 + $0x108] sm:%s298] %v351
                %v353 = vld [vmem:[%s305 + $0x1ec] sm:%s298]
                %354 = vst [vmem:[%s306 + $0x114] sm:%s298] %v353
                %v355 = vld [vmem:[%s305 + $0x1f8] sm:%s298]
                %356 = vst [vmem:[%s306 + $0x120] sm:%s298] %v355
                %v357 = vld [vmem:[%s305 + $0x204] sm:%s298]
                %358 = vst [vmem:[%s306 + $0x12c] sm:%s298] %v357
                %v359 = vld [vmem:[%s305 + $0x210] sm:%s298]
                %360 = vst [vmem:[%s306 + $0x138] sm:%s298] %v359
                %v361 = vld [vmem:[%s305 + $0x21c] sm:%s298]
                %362 = vst [vmem:[%s306 + $0x144] sm:%s298] %v361
                %v363 = vld [vmem:[%s305 + $0x228] sm:%s298]
                %364 = vst [vmem:[%s306 + $0x150] sm:%s298] %v363
                %v365 = vld [vmem:[%s305 + $0x234] sm:%s298]
                %366 = vst [vmem:[%s306 + $0x15c] sm:%s298] %v365
                %v367 = vld [vmem:[%s305 + $0x240] sm:%s298]
                %368 = vst [vmem:[%s306 + $0x168] sm:%s298] %v367
                %v369 = vld [vmem:[%s305 + $0x24c] sm:%s298]
                %370 = vst [vmem:[%s306 + $0x174] sm:%s298] %v369
                %v371 = vld [vmem:[%s305 + $0x258] sm:%s298]
                %372 = vst [vmem:[%s306 + $0x180] sm:%s298] %v371
                %v373 = vld [vmem:[%s305 + $0x264] sm:%s298]
                %374 = vst [vmem:[%s306 + $0x18c] sm:%s298] %v373
                %v375 = vld [vmem:[%s305 + $0x270] sm:%s298]
                %376 = vst [vmem:[%s306 + $0x198] sm:%s298] %v375
                %v377 = vld [vmem:[%s305 + $0x27c] sm:%s298]
                %378 = vst [vmem:[%s306 + $0x1a4] sm:%s298] %v377
                %v379 = vld [vmem:[%s305 + $0x360] sm:%s298]
                %380 = vst [vmem:[%s306 + $0x1b0] sm:%s298] %v379
                %v381 = vld [vmem:[%s305 + $0x36c] sm:%s298]
                %382 = vst [vmem:[%s306 + $0x1bc] sm:%s298] %v381
                %v383 = vld [vmem:[%s305 + $0x378] sm:%s298]
                %384 = vst [vmem:[%s306 + $0x1c8] sm:%s298] %v383
                %v385 = vld [vmem:[%s305 + $0x384] sm:%s298]
                %386 = vst [vmem:[%s306 + $0x1d4] sm:%s298] %v385
                %v387 = vld [vmem:[%s305 + $0x390] sm:%s298]
                %388 = vst [vmem:[%s306 + $0x1e0] sm:%s298] %v387
                %v389 = vld [vmem:[%s305 + $0x39c] sm:%s298]
                %390 = vst [vmem:[%s306 + $0x1ec] sm:%s298] %v389
                %v391 = vld [vmem:[%s305 + $0x3a8] sm:%s298]
                %392 = vst [vmem:[%s306 + $0x1f8] sm:%s298] %v391
                %v393 = vld [vmem:[%s305 + $0x3b4] sm:%s298]
                %394 = vst [vmem:[%s306 + $0x204] sm:%s298] %v393
                %v395 = vld [vmem:[%s305 + $0x3c0] sm:%s298]
                %396 = vst [vmem:[%s306 + $0x210] sm:%s298] %v395
                %v397 = vld [vmem:[%s305 + $0x3cc] sm:%s298]
                %398 = vst [vmem:[%s306 + $0x21c] sm:%s298] %v397
                %v399 = vld [vmem:[%s305 + $0x3d8] sm:%s298]
                %400 = vst [vmem:[%s306 + $0x228] sm:%s298] %v399
                %v401 = vld [vmem:[%s305 + $0x3e4] sm:%s298]
                %402 = vst [vmem:[%s306 + $0x234] sm:%s298] %v401
                %v403 = vld [vmem:[%s305 + $0x3f0] sm:%s298]
                %404 = vst [vmem:[%s306 + $0x240] sm:%s298] %v403
                %v405 = vld [vmem:[%s305 + $0x3fc] sm:%s298]
                %406 = vst [vmem:[%s306 + $0x24c] sm:%s298] %v405
                %v407 = vld [vmem:[%s305 + $0x408] sm:%s298]
                %408 = vst [vmem:[%s306 + $0x258] sm:%s298] %v407
                %v409 = vld [vmem:[%s305 + $0x414] sm:%s298]
                %410 = vst [vmem:[%s306 + $0x264] sm:%s298] %v409
                %v411 = vld [vmem:[%s305 + $0x420] sm:%s298]
                %412 = vst [vmem:[%s306 + $0x270] sm:%s298] %v411
                %v413 = vld [vmem:[%s305 + $0x42c] sm:%s298]
                %414 = vst [vmem:[%s306 + $0x27c] sm:%s298] %v413
                %v415 = vld [vmem:[%s305 + $0x510] sm:%s298]
                %416 = vst [vmem:[%s306 + $0x288] sm:%s298] %v415
                %v417 = vld [vmem:[%s305 + $0x51c] sm:%s298]
                %418 = vst [vmem:[%s306 + $0x294] sm:%s298] %v417
                %v419 = vld [vmem:[%s305 + $0x528] sm:%s298]
                %420 = vst [vmem:[%s306 + $0x2a0] sm:%s298] %v419
                %v421 = vld [vmem:[%s305 + $0x534] sm:%s298]
                %422 = vst [vmem:[%s306 + $0x2ac] sm:%s298] %v421
                %v423 = vld [vmem:[%s305 + $0x540] sm:%s298]
                %424 = vst [vmem:[%s306 + $0x2b8] sm:%s298] %v423
                %v425 = vld [vmem:[%s305 + $0x54c] sm:%s298]
                %426 = vst [vmem:[%s306 + $0x2c4] sm:%s298] %v425
                %v427 = vld [vmem:[%s305 + $0x558] sm:%s298]
                %428 = vst [vmem:[%s306 + $0x2d0] sm:%s298] %v427
                %v429 = vld [vmem:[%s305 + $0x564] sm:%s298]
                %430 = vst [vmem:[%s306 + $0x2dc] sm:%s298] %v429
                %v431 = vld [vmem:[%s305 + $0x570] sm:%s298]
                %432 = vst [vmem:[%s306 + $0x2e8] sm:%s298] %v431
                %v433 = vld [vmem:[%s305 + $0x57c] sm:%s298]
                %434 = vst [vmem:[%s306 + $0x2f4] sm:%s298] %v433
                %v435 = vld [vmem:[%s305 + $0x588] sm:%s298]
                %436 = vst [vmem:[%s306 + $0x300] sm:%s298] %v435
                %v437 = vld [vmem:[%s305 + $0x594] sm:%s298]
                %438 = vst [vmem:[%s306 + $0x30c] sm:%s298] %v437
                %v439 = vld [vmem:[%s305 + $0x5a0] sm:%s298]
                %440 = vst [vmem:[%s306 + $0x318] sm:%s298] %v439
                %v441 = vld [vmem:[%s305 + $0x5ac] sm:%s298]
                %442 = vst [vmem:[%s306 + $0x324] sm:%s298] %v441
                %v443 = vld [vmem:[%s305 + $0x5b8] sm:%s298]
                %444 = vst [vmem:[%s306 + $0x330] sm:%s298] %v443
                %v445 = vld [vmem:[%s305 + $0x5c4] sm:%s298]
                %446 = vst [vmem:[%s306 + $0x33c] sm:%s298] %v445
                %v447 = vld [vmem:[%s305 + $0x5d0] sm:%s298]
                %448 = vst [vmem:[%s306 + $0x348] sm:%s298] %v447
                %v449 = vld [vmem:[%s305 + $0x5dc] sm:%s298]
                %450 = vst [vmem:[%s306 + $0x354] sm:%s298] %v449
              $region48: #{cnn_forward.4} parent=35 // loop_footer
                %s304 = sadd.s32 1, %s300
              $region49: #{cnn_forward.4} parent=35 // loop_footer_branch
                %299 = sbr.rel target = $region45
              $region50: #{cnn_forward.4} parent=35 // loop_exit
                _
            $region36: #{cnn_forward.4} parent=31 // pred_fallthru
              _
          $region32: #{cnn_forward.4} parent=27 // pred_fallthru
            _
          %451 = vnop
        $region28: #{cnn_forward.4} parent=23 // pred_fallthru
          _
      $region24: #{cnn_forward.4} parent=5 // pred_fallthru
        _
      %p452 = scmp.le.s32.totalorder 1, %s9
      %p453 = scmp.lt.s32.totalorder %s9, 3
      %p454 = pnand %p452, %p453
      %p455 = pneg %p454
      // Predicated region
      $region51: #{cnn_forward.4} parent=5 // pred_check
        _
      $region52: #{cnn_forward.4} parent=5 // pred_check_branch
        %457 = sbr.rel (%p454) target = $region54
      $region53: #{cnn_forward.4} parent=5 // pred_region
        %s458 = ssub.s32 %s9, 1
        %s459 = sand.u32 %s22, 1
        %s460 = sand.u32 %s22, 1
        %s461 = smul.addr %s460, 864
        %s462 = scalar_lea.vmem [#allocation2], %s461
        // Predicated region
        $region55: #{cnn_forward.4} parent=53 // pred_check
          %p463 = pneg %p35
        $region56: #{cnn_forward.4} parent=53 // pred_check_branch
          %465 = sbr.rel (%p463) target = $region58
        $region57: #{cnn_forward.4} parent=53 // pred_region
          _
        $region58: #{cnn_forward.4} parent=53 // pred_fallthru
          _
        %s466 = sand.u32 %s22, 1
        %s467 = sand.u32 %s22, 1
        %s468 = smul.addr %s467, 864
        %s469 = scalar_lea.vmem [#allocation2], %s468
        %p470 = pneg %p35
        %p471 = pneg %p32
        %p472 = pneg %p56
        %p473 = pneg %p53
        %p474 = pneg %p77
        %p475 = pneg %p74
        %p476 = pneg %p103
        %p477 = pneg %p100
        %s478 = smul.u32 18, %s14
        %p479 = scmp.lt.s32.totalorder %s478, 35
        %s480 = scalar_select %p479, %s478, 35
        %s481 = smul.addr %s480, 4
        %s482 = scalar_lea.vmem %s3, %s481
        %s483 = smul.u32 18, %s14
        %s484 = smul.u32 18, %s14
        %p485 = scmp.lt.s32.totalorder %s484, 35
        %s486 = scalar_select %p485, %s484, 35
        %s487 = smul.addr %s486, 4
        %s488 = scalar_lea.vmem %s3, %s487
        %s489 = smul.u32 18, %s14
        %v491 = vld [vmem:[%s462] sm:$0xff]
        %v492 = vld [vmem:[%s462 + $0x8] sm:$0xf]
        %v493 = vld [vmem:[%s462 + $0xc] sm:$0xff]
        %v494 = vld [vmem:[%s462 + $0x14] sm:$0xf]
        %v495 = vld [vmem:[%s462 + $0x18] sm:$0xff]
        %v496 = vld [vmem:[%s462 + $0x20] sm:$0xf]
        %v497 = vld [vmem:[%s462 + $0x24] sm:$0xff]
        %v498 = vld [vmem:[%s462 + $0x2c] sm:$0xf]
        %v499 = vld [vmem:[%s462 + $0x30] sm:$0xff]
        %v500 = vld [vmem:[%s462 + $0x38] sm:$0xf]
        %v501 = vld [vmem:[%s462 + $0x3c] sm:$0xff]
        %v502 = vld [vmem:[%s462 + $0x44] sm:$0xf]
        %v503 = vld [vmem:[%s462 + $0x48] sm:$0xff]
        %v504 = vld [vmem:[%s462 + $0x50] sm:$0xf]
        %v505 = vld [vmem:[%s462 + $0x54] sm:$0xff]
        %v506 = vld [vmem:[%s462 + $0x5c] sm:$0xf]
        %v507 = vld [vmem:[%s462 + $0x60] sm:$0xff]
        %v508 = vld [vmem:[%s462 + $0x68] sm:$0xf]
        %v509 = vld [vmem:[%s462 + $0x6c] sm:$0xff]
        %v510 = vld [vmem:[%s462 + $0x74] sm:$0xf]
        %v511 = vld [vmem:[%s462 + $0x78] sm:$0xff]
        %v512 = vld [vmem:[%s462 + $0x80] sm:$0xf]
        %v513 = vld [vmem:[%s462 + $0x84] sm:$0xff]
        %v514 = vld [vmem:[%s462 + $0x8c] sm:$0xf]
        %v515 = vld [vmem:[%s462 + $0x90] sm:$0xff]
        %v516 = vld [vmem:[%s462 + $0x98] sm:$0xf]
        %v517 = vld [vmem:[%s462 + $0x9c] sm:$0xff]
        %v518 = vld [vmem:[%s462 + $0xa4] sm:$0xf]
        %v519 = vld [vmem:[%s462 + $0xa8] sm:$0xff]
        %v520 = vld [vmem:[%s462 + $0xb0] sm:$0xf]
        %v521 = vld [vmem:[%s462 + $0xb4] sm:$0xff]
        %v522 = vld [vmem:[%s462 + $0xbc] sm:$0xf]
        %v523 = vld [vmem:[%s462 + $0xc0] sm:$0xff]
        %v524 = vld [vmem:[%s462 + $0xc8] sm:$0xf]
        %v525 = vld [vmem:[%s462 + $0xcc] sm:$0xff]
        %v526 = vld [vmem:[%s462 + $0xd4] sm:$0xf]
        %v527 = vld [vmem:[%s462 + $0xd8] sm:$0xff]
        %v528 = vld [vmem:[%s462 + $0xe0] sm:$0xf]
        %v529 = vld [vmem:[%s462 + $0xe4] sm:$0xff]
        %v530 = vld [vmem:[%s462 + $0xec] sm:$0xf]
        %v531 = vld [vmem:[%s462 + $0xf0] sm:$0xff]
        %v532 = vld [vmem:[%s462 + $0xf8] sm:$0xf]
        %v533 = vld [vmem:[%s462 + $0xfc] sm:$0xff]
        %v534 = vld [vmem:[%s462 + $0x104] sm:$0xf]
        %v535 = vld [vmem:[%s462 + $0x108] sm:$0xff]
        %v536 = vld [vmem:[%s462 + $0x110] sm:$0xf]
        %v537 = vld [vmem:[%s462 + $0x114] sm:$0xff]
        %v538 = vld [vmem:[%s462 + $0x11c] sm:$0xf]
        %v539 = vld [vmem:[%s462 + $0x120] sm:$0xff]
        %v540 = vld [vmem:[%s462 + $0x128] sm:$0xf]
        %v541 = vld [vmem:[%s462 + $0x12c] sm:$0xff]
        %v542 = vld [vmem:[%s462 + $0x134] sm:$0xf]
        %v543 = vld [vmem:[%s462 + $0x138] sm:$0xff]
        %v544 = vld [vmem:[%s462 + $0x140] sm:$0xf]
        %v545 = vld [vmem:[%s462 + $0x144] sm:$0xff]
        %v546 = vld [vmem:[%s462 + $0x14c] sm:$0xf]
        %v547 = vld [vmem:[%s462 + $0x150] sm:$0xff]
        %v548 = vld [vmem:[%s462 + $0x158] sm:$0xf]
        %v549 = vld [vmem:[%s462 + $0x15c] sm:$0xff]
        %v550 = vld [vmem:[%s462 + $0x164] sm:$0xf]
        %v551 = vld [vmem:[%s462 + $0x168] sm:$0xff]
        %v552 = vld [vmem:[%s462 + $0x170] sm:$0xf]
        %v553 = vld [vmem:[%s462 + $0x174] sm:$0xff]
        %v554 = vld [vmem:[%s462 + $0x17c] sm:$0xf]
        %v555 = vld [vmem:[%s462 + $0x180] sm:$0xff]
        %v556 = vld [vmem:[%s462 + $0x188] sm:$0xf]
        %v557 = vld [vmem:[%s462 + $0x18c] sm:$0xff]
        %v558 = vld [vmem:[%s462 + $0x194] sm:$0xf]
        %v559 = vld [vmem:[%s462 + $0x198] sm:$0xff]
        %v560 = vld [vmem:[%s462 + $0x1a0] sm:$0xf]
        %v561 = vld [vmem:[%s462 + $0x1a4] sm:$0xff]
        %v562 = vld [vmem:[%s462 + $0x1ac] sm:$0xf]
        %v563 = vld [vmem:[%s462 + $0x1b0] sm:$0xff]
        %v564 = vld [vmem:[%s462 + $0x1b8] sm:$0xf]
        %v565 = vld [vmem:[%s462 + $0x1bc] sm:$0xff]
        %v566 = vld [vmem:[%s462 + $0x1c4] sm:$0xf]
        %v567 = vld [vmem:[%s462 + $0x1c8] sm:$0xff]
        %v568 = vld [vmem:[%s462 + $0x1d0] sm:$0xf]
        %v569 = vld [vmem:[%s462 + $0x1d4] sm:$0xff]
        %v570 = vld [vmem:[%s462 + $0x1dc] sm:$0xf]
        %v571 = vld [vmem:[%s462 + $0x1e0] sm:$0xff]
        %v572 = vld [vmem:[%s462 + $0x1e8] sm:$0xf]
        %v573 = vld [vmem:[%s462 + $0x1ec] sm:$0xff]
        %v574 = vld [vmem:[%s462 + $0x1f4] sm:$0xf]
        %v575 = vld [vmem:[%s462 + $0x1f8] sm:$0xff]
        %v576 = vld [vmem:[%s462 + $0x200] sm:$0xf]
        %v577 = vld [vmem:[%s462 + $0x204] sm:$0xff]
        %v578 = vld [vmem:[%s462 + $0x20c] sm:$0xf]
        %v579 = vld [vmem:[%s462 + $0x210] sm:$0xff]
        %v580 = vld [vmem:[%s462 + $0x218] sm:$0xf]
        %v581 = vld [vmem:[%s462 + $0x21c] sm:$0xff]
        %v582 = vld [vmem:[%s462 + $0x224] sm:$0xf]
        %v583 = vld [vmem:[%s462 + $0x228] sm:$0xff]
        %v584 = vld [vmem:[%s462 + $0x230] sm:$0xf]
        %v585 = vld [vmem:[%s462 + $0x234] sm:$0xff]
        %v586 = vld [vmem:[%s462 + $0x23c] sm:$0xf]
        %v587 = vld [vmem:[%s462 + $0x240] sm:$0xff]
        %v588 = vld [vmem:[%s462 + $0x248] sm:$0xf]
        %v589 = vld [vmem:[%s462 + $0x24c] sm:$0xff]
        %v590 = vld [vmem:[%s462 + $0x254] sm:$0xf]
        %v591 = vld [vmem:[%s462 + $0x258] sm:$0xff]
        %v592 = vld [vmem:[%s462 + $0x260] sm:$0xf]
        %v593 = vld [vmem:[%s462 + $0x264] sm:$0xff]
        %v594 = vld [vmem:[%s462 + $0x26c] sm:$0xf]
        %v595 = vld [vmem:[%s462 + $0x270] sm:$0xff]
        %v596 = vld [vmem:[%s462 + $0x278] sm:$0xf]
        %v597 = vld [vmem:[%s462 + $0x27c] sm:$0xff]
        %v598 = vld [vmem:[%s462 + $0x284] sm:$0xf]
        %v599 = vld [vmem:[%s462 + $0x288] sm:$0xff]
        %v600 = vld [vmem:[%s462 + $0x290] sm:$0xf]
        %v601 = vld [vmem:[%s462 + $0x294] sm:$0xff]
        %v602 = vld [vmem:[%s462 + $0x29c] sm:$0xf]
        %v603 = vld [vmem:[%s462 + $0x2a0] sm:$0xff]
        %v604 = vld [vmem:[%s462 + $0x2a8] sm:$0xf]
        %v605 = vld [vmem:[%s462 + $0x2ac] sm:$0xff]
        %v606 = vld [vmem:[%s462 + $0x2b4] sm:$0xf]
        %v607 = vld [vmem:[%s462 + $0x2b8] sm:$0xff]
        %v608 = vld [vmem:[%s462 + $0x2c0] sm:$0xf]
        %v609 = vld [vmem:[%s462 + $0x2c4] sm:$0xff]
        %v610 = vld [vmem:[%s462 + $0x2cc] sm:$0xf]
        %v611 = vld [vmem:[%s462 + $0x2d0] sm:$0xff]
        %v612 = vld [vmem:[%s462 + $0x2d8] sm:$0xf]
        %v613 = vld [vmem:[%s462 + $0x2dc] sm:$0xff]
        %v614 = vld [vmem:[%s462 + $0x2e4] sm:$0xf]
        %v615 = vld [vmem:[%s462 + $0x2e8] sm:$0xff]
        %v616 = vld [vmem:[%s462 + $0x2f0] sm:$0xf]
        %v617 = vld [vmem:[%s462 + $0x2f4] sm:$0xff]
        %v618 = vld [vmem:[%s462 + $0x2fc] sm:$0xf]
        %v619 = vld [vmem:[%s462 + $0x300] sm:$0xff]
        %v620 = vld [vmem:[%s462 + $0x308] sm:$0xf]
        %v621 = vld [vmem:[%s462 + $0x30c] sm:$0xff]
        %v622 = vld [vmem:[%s462 + $0x314] sm:$0xf]
        %v623 = vld [vmem:[%s462 + $0x318] sm:$0xff]
        %v624 = vld [vmem:[%s462 + $0x320] sm:$0xf]
        %v625 = vld [vmem:[%s462 + $0x324] sm:$0xff]
        %v626 = vld [vmem:[%s462 + $0x32c] sm:$0xf]
        %v627 = vld [vmem:[%s462 + $0x330] sm:$0xff]
        %v628 = vld [vmem:[%s462 + $0x338] sm:$0xf]
        %v629 = vld [vmem:[%s462 + $0x33c] sm:$0xff]
        %v630 = vld [vmem:[%s462 + $0x344] sm:$0xf]
        %v631 = vld [vmem:[%s462 + $0x348] sm:$0xff]
        %v632 = vld [vmem:[%s462 + $0x350] sm:$0xf]
        %v633 = vld [vmem:[%s462 + $0x354] sm:$0xff]
        %v634 = vld [vmem:[%s462 + $0x35c] sm:$0xf]
        %v635 = vld [vmem:[%s1] sm:$0xf]
        %v636 = vld [vmem:[%s1 + $0x4] sm:$0xf]
        %v637 = vld [vmem:[%s1 + $0x8] sm:$0xf]
        %v638 = vld [vmem:[%s1 + $0xc] sm:$0xf]
        %v639 = vld [vmem:[%s1 + $0x10] sm:$0xf]
        %v640 = vld [vmem:[%s1 + $0x14] sm:$0xf]
        %v641 = vld [vmem:[%s1 + $0x18] sm:$0xf]
        %v642 = vld [vmem:[%s1 + $0x1c] sm:$0xf]
        %v643 = vld [vmem:[%s1 + $0x20] sm:$0xf]
        %v644 = vld [vmem:[%s1 + $0x24] sm:$0xf]
        %v645 = vld [vmem:[%s1 + $0x28] sm:$0xf]
        %v646 = vld [vmem:[%s1 + $0x2c] sm:$0xf]
        %v647 = vld [vmem:[%s1 + $0x30] sm:$0xf]
        %v648 = vld [vmem:[%s1 + $0x34] sm:$0xf]
        %v649 = vld [vmem:[%s1 + $0x38] sm:$0xf]
        %v650 = vld [vmem:[%s1 + $0x3c] sm:$0xf]
        %v651 = vld [vmem:[%s1 + $0x40] sm:$0xf]
        %v652 = vld [vmem:[%s1 + $0x44] sm:$0xf]
        %v653 = vld [vmem:[%s1 + $0x48] sm:$0xf]
        %v654 = vld [vmem:[%s1 + $0x4c] sm:$0xf]
        %v655 = vld [vmem:[%s1 + $0x50] sm:$0xf]
        %v656 = vld [vmem:[%s1 + $0x54] sm:$0xf]
        %v657 = vld [vmem:[%s1 + $0x58] sm:$0xf]
        %v658 = vld [vmem:[%s1 + $0x5c] sm:$0xf]
        %v659 = vld [vmem:[%s1 + $0x60] sm:$0xf]
        %v660 = vld [vmem:[%s1 + $0x64] sm:$0xf]
        %v661 = vld [vmem:[%s1 + $0x68] sm:$0xf]
        %v662 = vld [vmem:[%s1 + $0x6c] sm:$0xf]
        %v663 = vld [vmem:[%s1 + $0x70] sm:$0xf]
        %v664 = vld [vmem:[%s1 + $0x74] sm:$0xf]
        %v665 = vld [vmem:[%s1 + $0x78] sm:$0xf]
        %v666 = vld [vmem:[%s1 + $0x7c] sm:$0xf]
        %v667 = vld [vmem:[%s1 + $0x80] sm:$0xf]
        %v668 = vld [vmem:[%s1 + $0x84] sm:$0xf]
        %v669 = vld [vmem:[%s1 + $0x88] sm:$0xf]
        %v670 = vld [vmem:[%s1 + $0x8c] sm:$0xf]
        %v815 = vunpack.c.l.b16 %v491
        %v816 = vunpack.c.h.b16 %v491
        %v817 = vunpack.c.l.b16 %v492
        %v818 = vunpack.c.l.b16 %v493
        %v819 = vunpack.c.h.b16 %v493
        %v820 = vunpack.c.l.b16 %v494
        %v821 = vunpack.c.l.b16 %v495
        %v822 = vunpack.c.h.b16 %v495
        %v823 = vunpack.c.l.b16 %v496
        %v824 = vunpack.c.l.b16 %v497
        %v825 = vunpack.c.h.b16 %v497
        %v826 = vunpack.c.l.b16 %v498
        %v827 = vunpack.c.l.b16 %v499
        %v828 = vunpack.c.h.b16 %v499
        %v829 = vunpack.c.l.b16 %v500
        %v830 = vunpack.c.l.b16 %v501
        %v831 = vunpack.c.h.b16 %v501
        %v832 = vunpack.c.l.b16 %v502
        %v833 = vunpack.c.l.b16 %v503
        %v834 = vunpack.c.h.b16 %v503
        %v835 = vunpack.c.l.b16 %v504
        %v836 = vunpack.c.l.b16 %v505
        %v837 = vunpack.c.h.b16 %v505
        %v838 = vunpack.c.l.b16 %v506
        %v839 = vunpack.c.l.b16 %v507
        %v840 = vunpack.c.h.b16 %v507
        %v841 = vunpack.c.l.b16 %v508
        %v842 = vunpack.c.l.b16 %v509
        %v843 = vunpack.c.h.b16 %v509
        %v844 = vunpack.c.l.b16 %v510
        %v845 = vunpack.c.l.b16 %v511
        %v846 = vunpack.c.h.b16 %v511
        %v847 = vunpack.c.l.b16 %v512
        %v848 = vunpack.c.l.b16 %v513
        %v849 = vunpack.c.h.b16 %v513
        %v850 = vunpack.c.l.b16 %v514
        %v851 = vunpack.c.l.b16 %v515
        %v852 = vunpack.c.h.b16 %v515
        %v853 = vunpack.c.l.b16 %v516
        %v854 = vunpack.c.l.b16 %v517
        %v855 = vunpack.c.h.b16 %v517
        %v856 = vunpack.c.l.b16 %v518
        %v857 = vunpack.c.l.b16 %v519
        %v858 = vunpack.c.h.b16 %v519
        %v859 = vunpack.c.l.b16 %v520
        %v860 = vunpack.c.l.b16 %v521
        %v861 = vunpack.c.h.b16 %v521
        %v862 = vunpack.c.l.b16 %v522
        %v863 = vunpack.c.l.b16 %v523
        %v864 = vunpack.c.h.b16 %v523
        %v865 = vunpack.c.l.b16 %v524
        %v866 = vunpack.c.l.b16 %v525
        %v867 = vunpack.c.h.b16 %v525
        %v868 = vunpack.c.l.b16 %v526
        %v869 = vunpack.c.l.b16 %v527
        %v870 = vunpack.c.h.b16 %v527
        %v871 = vunpack.c.l.b16 %v528
        %v872 = vunpack.c.l.b16 %v529
        %v873 = vunpack.c.h.b16 %v529
        %v874 = vunpack.c.l.b16 %v530
        %v875 = vunpack.c.l.b16 %v531
        %v876 = vunpack.c.h.b16 %v531
        %v877 = vunpack.c.l.b16 %v532
        %v878 = vunpack.c.l.b16 %v533
        %v879 = vunpack.c.h.b16 %v533
        %v880 = vunpack.c.l.b16 %v534
        %v881 = vunpack.c.l.b16 %v535
        %v882 = vunpack.c.h.b16 %v535
        %v883 = vunpack.c.l.b16 %v536
        %v884 = vunpack.c.l.b16 %v537
        %v885 = vunpack.c.h.b16 %v537
        %v886 = vunpack.c.l.b16 %v538
        %v887 = vunpack.c.l.b16 %v539
        %v888 = vunpack.c.h.b16 %v539
        %v889 = vunpack.c.l.b16 %v540
        %v890 = vunpack.c.l.b16 %v541
        %v891 = vunpack.c.h.b16 %v541
        %v892 = vunpack.c.l.b16 %v542
        %v893 = vunpack.c.l.b16 %v543
        %v894 = vunpack.c.h.b16 %v543
        %v895 = vunpack.c.l.b16 %v544
        %v896 = vunpack.c.l.b16 %v545
        %v897 = vunpack.c.h.b16 %v545
        %v898 = vunpack.c.l.b16 %v546
        %v899 = vunpack.c.l.b16 %v547
        %v900 = vunpack.c.h.b16 %v547
        %v901 = vunpack.c.l.b16 %v548
        %v902 = vunpack.c.l.b16 %v549
        %v903 = vunpack.c.h.b16 %v549
        %v904 = vunpack.c.l.b16 %v550
        %v905 = vunpack.c.l.b16 %v551
        %v906 = vunpack.c.h.b16 %v551
        %v907 = vunpack.c.l.b16 %v552
        %v908 = vunpack.c.l.b16 %v553
        %v909 = vunpack.c.h.b16 %v553
        %v910 = vunpack.c.l.b16 %v554
        %v911 = vunpack.c.l.b16 %v555
        %v912 = vunpack.c.h.b16 %v555
        %v913 = vunpack.c.l.b16 %v556
        %v914 = vunpack.c.l.b16 %v557
        %v915 = vunpack.c.h.b16 %v557
        %v916 = vunpack.c.l.b16 %v558
        %v917 = vunpack.c.l.b16 %v559
        %v918 = vunpack.c.h.b16 %v559
        %v919 = vunpack.c.l.b16 %v560
        %v920 = vunpack.c.l.b16 %v561
        %v921 = vunpack.c.h.b16 %v561
        %v922 = vunpack.c.l.b16 %v562
        %v923 = vunpack.c.l.b16 %v563
        %v924 = vunpack.c.h.b16 %v563
        %v925 = vunpack.c.l.b16 %v564
        %v926 = vunpack.c.l.b16 %v565
        %v927 = vunpack.c.h.b16 %v565
        %v928 = vunpack.c.l.b16 %v566
        %v929 = vunpack.c.l.b16 %v567
        %v930 = vunpack.c.h.b16 %v567
        %v931 = vunpack.c.l.b16 %v568
        %v932 = vunpack.c.l.b16 %v569
        %v933 = vunpack.c.h.b16 %v569
        %v934 = vunpack.c.l.b16 %v570
        %v935 = vunpack.c.l.b16 %v571
        %v936 = vunpack.c.h.b16 %v571
        %v937 = vunpack.c.l.b16 %v572
        %v938 = vunpack.c.l.b16 %v573
        %v939 = vunpack.c.h.b16 %v573
        %v940 = vunpack.c.l.b16 %v574
        %v941 = vunpack.c.l.b16 %v575
        %v942 = vunpack.c.h.b16 %v575
        %v943 = vunpack.c.l.b16 %v576
        %v944 = vunpack.c.l.b16 %v577
        %v945 = vunpack.c.h.b16 %v577
        %v946 = vunpack.c.l.b16 %v578
        %v947 = vunpack.c.l.b16 %v579
        %v948 = vunpack.c.h.b16 %v579
        %v949 = vunpack.c.l.b16 %v580
        %v950 = vunpack.c.l.b16 %v581
        %v951 = vunpack.c.h.b16 %v581
        %v952 = vunpack.c.l.b16 %v582
        %v953 = vunpack.c.l.b16 %v583
        %v954 = vunpack.c.h.b16 %v583
        %v955 = vunpack.c.l.b16 %v584
        %v956 = vunpack.c.l.b16 %v585
        %v957 = vunpack.c.h.b16 %v585
        %v958 = vunpack.c.l.b16 %v586
        %v959 = vunpack.c.l.b16 %v587
        %v960 = vunpack.c.h.b16 %v587
        %v961 = vunpack.c.l.b16 %v588
        %v962 = vunpack.c.l.b16 %v589
        %v963 = vunpack.c.h.b16 %v589
        %v964 = vunpack.c.l.b16 %v590
        %v965 = vunpack.c.l.b16 %v591
        %v966 = vunpack.c.h.b16 %v591
        %v967 = vunpack.c.l.b16 %v592
        %v968 = vunpack.c.l.b16 %v593
        %v969 = vunpack.c.h.b16 %v593
        %v970 = vunpack.c.l.b16 %v594
        %v971 = vunpack.c.l.b16 %v595
        %v972 = vunpack.c.h.b16 %v595
        %v973 = vunpack.c.l.b16 %v596
        %v974 = vunpack.c.l.b16 %v597
        %v975 = vunpack.c.h.b16 %v597
        %v976 = vunpack.c.l.b16 %v598
        %v977 = vunpack.c.l.b16 %v599
        %v978 = vunpack.c.h.b16 %v599
        %v979 = vunpack.c.l.b16 %v600
        %v980 = vunpack.c.l.b16 %v601
        %v981 = vunpack.c.h.b16 %v601
        %v982 = vunpack.c.l.b16 %v602
        %v983 = vunpack.c.l.b16 %v603
        %v984 = vunpack.c.h.b16 %v603
        %v985 = vunpack.c.l.b16 %v604
        %v986 = vunpack.c.l.b16 %v605
        %v987 = vunpack.c.h.b16 %v605
        %v988 = vunpack.c.l.b16 %v606
        %v989 = vunpack.c.l.b16 %v607
        %v990 = vunpack.c.h.b16 %v607
        %v991 = vunpack.c.l.b16 %v608
        %v992 = vunpack.c.l.b16 %v609
        %v993 = vunpack.c.h.b16 %v609
        %v994 = vunpack.c.l.b16 %v610
        %v995 = vunpack.c.l.b16 %v611
        %v996 = vunpack.c.h.b16 %v611
        %v997 = vunpack.c.l.b16 %v612
        %v998 = vunpack.c.l.b16 %v613
        %v999 = vunpack.c.h.b16 %v613
        %v1000 = vunpack.c.l.b16 %v614
        %v1001 = vunpack.c.l.b16 %v615
        %v1002 = vunpack.c.h.b16 %v615
        %v1003 = vunpack.c.l.b16 %v616
        %v1004 = vunpack.c.l.b16 %v617
        %v1005 = vunpack.c.h.b16 %v617
        %v1006 = vunpack.c.l.b16 %v618
        %v1007 = vunpack.c.l.b16 %v619
        %v1008 = vunpack.c.h.b16 %v619
        %v1009 = vunpack.c.l.b16 %v620
        %v1010 = vunpack.c.l.b16 %v621
        %v1011 = vunpack.c.h.b16 %v621
        %v1012 = vunpack.c.l.b16 %v622
        %v1013 = vunpack.c.l.b16 %v623
        %v1014 = vunpack.c.h.b16 %v623
        %v1015 = vunpack.c.l.b16 %v624
        %v1016 = vunpack.c.l.b16 %v625
        %v1017 = vunpack.c.h.b16 %v625
        %v1018 = vunpack.c.l.b16 %v626
        %v1019 = vunpack.c.l.b16 %v627
        %v1020 = vunpack.c.h.b16 %v627
        %v1021 = vunpack.c.l.b16 %v628
        %v1022 = vunpack.c.l.b16 %v629
        %v1023 = vunpack.c.h.b16 %v629
        %v1024 = vunpack.c.l.b16 %v630
        %v1025 = vunpack.c.l.b16 %v631
        %v1026 = vunpack.c.h.b16 %v631
        %v1027 = vunpack.c.l.b16 %v632
        %v1028 = vunpack.c.l.b16 %v633
        %v1029 = vunpack.c.h.b16 %v633
        %v1030 = vunpack.c.l.b16 %v634
        %v1031 = vpack.c.b16 %v818, %v815
        %v1032 = vpack.c.b16 %v819, %v816
        %v1033 = vpack.c.b16 %v820, %v817
        %v1034 = vpack.c.b16 %v824, %v821
        %v1035 = vpack.c.b16 %v825, %v822
        %v1036 = vpack.c.b16 %v826, %v823
        %v1037 = vpack.c.b16 %v830, %v827
        %v1038 = vpack.c.b16 %v831, %v828
        %v1039 = vpack.c.b16 %v832, %v829
        %v1040 = vpack.c.b16 %v836, %v833
        %v1041 = vpack.c.b16 %v837, %v834
        %v1042 = vpack.c.b16 %v838, %v835
        %v1043 = vpack.c.b16 %v842, %v839
        %v1044 = vpack.c.b16 %v843, %v840
        %v1045 = vpack.c.b16 %v844, %v841
        %v1046 = vpack.c.b16 %v848, %v845
        %v1047 = vpack.c.b16 %v849, %v846
        %v1048 = vpack.c.b16 %v850, %v847
        %v1049 = vpack.c.b16 %v854, %v851
        %v1050 = vpack.c.b16 %v855, %v852
        %v1051 = vpack.c.b16 %v856, %v853
        %v1052 = vpack.c.b16 %v860, %v857
        %v1053 = vpack.c.b16 %v861, %v858
        %v1054 = vpack.c.b16 %v862, %v859
        %v1055 = vpack.c.b16 %v866, %v863
        %v1056 = vpack.c.b16 %v867, %v864
        %v1057 = vpack.c.b16 %v868, %v865
        %v1058 = vpack.c.b16 %v872, %v869
        %v1059 = vpack.c.b16 %v873, %v870
        %v1060 = vpack.c.b16 %v874, %v871
        %v1061 = vpack.c.b16 %v878, %v875
        %v1062 = vpack.c.b16 %v879, %v876
        %v1063 = vpack.c.b16 %v880, %v877
        %v1064 = vpack.c.b16 %v884, %v881
        %v1065 = vpack.c.b16 %v885, %v882
        %v1066 = vpack.c.b16 %v886, %v883
        %v1067 = vpack.c.b16 %v890, %v887
        %v1068 = vpack.c.b16 %v891, %v888
        %v1069 = vpack.c.b16 %v892, %v889
        %v1070 = vpack.c.b16 %v896, %v893
        %v1071 = vpack.c.b16 %v897, %v894
        %v1072 = vpack.c.b16 %v898, %v895
        %v1073 = vpack.c.b16 %v902, %v899
        %v1074 = vpack.c.b16 %v903, %v900
        %v1075 = vpack.c.b16 %v904, %v901
        %v1076 = vpack.c.b16 %v908, %v905
        %v1077 = vpack.c.b16 %v909, %v906
        %v1078 = vpack.c.b16 %v910, %v907
        %v1079 = vpack.c.b16 %v914, %v911
        %v1080 = vpack.c.b16 %v915, %v912
        %v1081 = vpack.c.b16 %v916, %v913
        %v1082 = vpack.c.b16 %v920, %v917
        %v1083 = vpack.c.b16 %v921, %v918
        %v1084 = vpack.c.b16 %v922, %v919
        %v1085 = vpack.c.b16 %v926, %v923
        %v1086 = vpack.c.b16 %v927, %v924
        %v1087 = vpack.c.b16 %v928, %v925
        %v1088 = vpack.c.b16 %v932, %v929
        %v1089 = vpack.c.b16 %v933, %v930
        %v1090 = vpack.c.b16 %v934, %v931
        %v1091 = vpack.c.b16 %v938, %v935
        %v1092 = vpack.c.b16 %v939, %v936
        %v1093 = vpack.c.b16 %v940, %v937
        %v1094 = vpack.c.b16 %v944, %v941
        %v1095 = vpack.c.b16 %v945, %v942
        %v1096 = vpack.c.b16 %v946, %v943
        %v1097 = vpack.c.b16 %v950, %v947
        %v1098 = vpack.c.b16 %v951, %v948
        %v1099 = vpack.c.b16 %v952, %v949
        %v1100 = vpack.c.b16 %v956, %v953
        %v1101 = vpack.c.b16 %v957, %v954
        %v1102 = vpack.c.b16 %v958, %v955
        %v1103 = vpack.c.b16 %v962, %v959
        %v1104 = vpack.c.b16 %v963, %v960
        %v1105 = vpack.c.b16 %v964, %v961
        %v1106 = vpack.c.b16 %v968, %v965
        %v1107 = vpack.c.b16 %v969, %v966
        %v1108 = vpack.c.b16 %v970, %v967
        %v1109 = vpack.c.b16 %v974, %v971
        %v1110 = vpack.c.b16 %v975, %v972
        %v1111 = vpack.c.b16 %v976, %v973
        %v1112 = vpack.c.b16 %v980, %v977
        %v1113 = vpack.c.b16 %v981, %v978
        %v1114 = vpack.c.b16 %v982, %v979
        %v1115 = vpack.c.b16 %v986, %v983
        %v1116 = vpack.c.b16 %v987, %v984
        %v1117 = vpack.c.b16 %v988, %v985
        %v1118 = vpack.c.b16 %v992, %v989
        %v1119 = vpack.c.b16 %v993, %v990
        %v1120 = vpack.c.b16 %v994, %v991
        %v1121 = vpack.c.b16 %v998, %v995
        %v1122 = vpack.c.b16 %v999, %v996
        %v1123 = vpack.c.b16 %v1000, %v997
        %v1124 = vpack.c.b16 %v1004, %v1001
        %v1125 = vpack.c.b16 %v1005, %v1002
        %v1126 = vpack.c.b16 %v1006, %v1003
        %v1127 = vpack.c.b16 %v1010, %v1007
        %v1128 = vpack.c.b16 %v1011, %v1008
        %v1129 = vpack.c.b16 %v1012, %v1009
        %v1130 = vpack.c.b16 %v1016, %v1013
        %v1131 = vpack.c.b16 %v1017, %v1014
        %v1132 = vpack.c.b16 %v1018, %v1015
        %v1133 = vpack.c.b16 %v1022, %v1019
        %v1134 = vpack.c.b16 %v1023, %v1020
        %v1135 = vpack.c.b16 %v1024, %v1021
        %v1136 = vpack.c.b16 %v1028, %v1025
        %v1137 = vpack.c.b16 %v1029, %v1026
        %v1138 = vpack.c.b16 %v1030, %v1027
        %v1247 = vunpack.c.l.b16 %v635
        %v1248 = vunpack.c.l.b16 %v636
        %v1249 = vunpack.c.l.b16 %v637
        %v1250 = vunpack.c.l.b16 %v638
        %v1251 = vunpack.c.l.b16 %v639
        %v1252 = vunpack.c.l.b16 %v640
        %v1253 = vunpack.c.l.b16 %v641
        %v1254 = vunpack.c.l.b16 %v642
        %v1255 = vunpack.c.l.b16 %v643
        %v1256 = vunpack.c.l.b16 %v644
        %v1257 = vunpack.c.l.b16 %v645
        %v1258 = vunpack.c.l.b16 %v646
        %v1259 = vunpack.c.l.b16 %v647
        %v1260 = vunpack.c.l.b16 %v648
        %v1261 = vunpack.c.l.b16 %v649
        %v1262 = vunpack.c.l.b16 %v650
        %v1263 = vunpack.c.l.b16 %v651
        %v1264 = vunpack.c.l.b16 %v652
        %v1265 = vunpack.c.l.b16 %v653
        %v1266 = vunpack.c.l.b16 %v654
        %v1267 = vunpack.c.l.b16 %v655
        %v1268 = vunpack.c.l.b16 %v656
        %v1269 = vunpack.c.l.b16 %v657
        %v1270 = vunpack.c.l.b16 %v658
        %v1271 = vunpack.c.l.b16 %v659
        %v1272 = vunpack.c.l.b16 %v660
        %v1273 = vunpack.c.l.b16 %v661
        %v1274 = vunpack.c.l.b16 %v662
        %v1275 = vunpack.c.l.b16 %v663
        %v1276 = vunpack.c.l.b16 %v664
        %v1277 = vunpack.c.l.b16 %v665
        %v1278 = vunpack.c.l.b16 %v666
        %v1279 = vunpack.c.l.b16 %v667
        %v1280 = vunpack.c.l.b16 %v668
        %v1281 = vunpack.c.l.b16 %v669
        %v1282 = vunpack.c.l.b16 %v670
        %v1283 = vpack.c.b16 %v1248, %v1247
        %v1284 = vpack.c.b16 %v1250, %v1249
        %v1285 = vpack.c.b16 %v1252, %v1251
        %v1286 = vpack.c.b16 %v1254, %v1253
        %v1287 = vpack.c.b16 %v1256, %v1255
        %v1288 = vpack.c.b16 %v1258, %v1257
        %v1289 = vpack.c.b16 %v1260, %v1259
        %v1290 = vpack.c.b16 %v1262, %v1261
        %v1291 = vpack.c.b16 %v1264, %v1263
        %v1292 = vpack.c.b16 %v1266, %v1265
        %v1293 = vpack.c.b16 %v1268, %v1267
        %v1294 = vpack.c.b16 %v1270, %v1269
        %v1295 = vpack.c.b16 %v1272, %v1271
        %v1296 = vpack.c.b16 %v1274, %v1273
        %v1297 = vpack.c.b16 %v1276, %v1275
        %v1298 = vpack.c.b16 %v1278, %v1277
        %v1299 = vpack.c.b16 %v1280, %v1279
        %v1300 = vpack.c.b16 %v1282, %v1281
        %vm1319 = vcmask 261120
        %v1321 = vsel %vm1319, %v1033, 0
        %v1324 = vsel %vm1319, %v1036, 0
        %v1327 = vsel %vm1319, %v1039, 0
        %v1330 = vsel %vm1319, %v1042, 0
        %v1333 = vsel %vm1319, %v1045, 0
        %v1336 = vsel %vm1319, %v1048, 0
        %v1339 = vsel %vm1319, %v1051, 0
        %v1342 = vsel %vm1319, %v1054, 0
        %v1345 = vsel %vm1319, %v1057, 0
        %v1348 = vsel %vm1319, %v1060, 0
        %v1351 = vsel %vm1319, %v1063, 0
        %v1354 = vsel %vm1319, %v1066, 0
        %v1357 = vsel %vm1319, %v1069, 0
        %v1360 = vsel %vm1319, %v1072, 0
        %v1363 = vsel %vm1319, %v1075, 0
        %v1366 = vsel %vm1319, %v1078, 0
        %v1369 = vsel %vm1319, %v1081, 0
        %v1372 = vsel %vm1319, %v1084, 0
        %v1375 = vsel %vm1319, %v1087, 0
        %v1378 = vsel %vm1319, %v1090, 0
        %v1381 = vsel %vm1319, %v1093, 0
        %v1384 = vsel %vm1319, %v1096, 0
        %v1387 = vsel %vm1319, %v1099, 0
        %v1390 = vsel %vm1319, %v1102, 0
        %v1393 = vsel %vm1319, %v1105, 0
        %v1396 = vsel %vm1319, %v1108, 0
        %v1399 = vsel %vm1319, %v1111, 0
        %v1402 = vsel %vm1319, %v1114, 0
        %v1405 = vsel %vm1319, %v1117, 0
        %v1408 = vsel %vm1319, %v1120, 0
        %v1411 = vsel %vm1319, %v1123, 0
        %v1414 = vsel %vm1319, %v1126, 0
        %v1417 = vsel %vm1319, %v1129, 0
        %v1420 = vsel %vm1319, %v1132, 0
        %v1423 = vsel %vm1319, %v1135, 0
        %v1426 = vsel %vm1319, %v1138, 0
        %1428 = vmatprep.subr.bf16.mxu0 0
        %1429 = vmatpush1.bf16.msra.mxu0 %v1290
        %1430 = vmatprep.subr.bf16.mxu0 0
        %1431 = vmatpush1.bf16.msra.mxu0 %v1289
        %1432 = vmatprep.subr.bf16.mxu0 0
        %1433 = vmatpush1.bf16.msra.mxu0 %v1288
        %1434 = vmatprep.subr.bf16.mxu0 0
        %1435 = vmatpush1.bf16.msra.mxu0 %v1287
        %1436 = vmatprep.subr.bf16.mxu0 0
        %1437 = vmatpush1.bf16.msra.mxu0 %v1286
        %1438 = vmatprep.subr.bf16.mxu0 0
        %1439 = vmatpush1.bf16.msra.mxu0 %v1285
        %1440 = vmatprep.subr.bf16.mxu0 0
        %1441 = vmatpush1.bf16.msra.mxu0 %v1284
        %1442 = vmatprep.subr.bf16.mxu0 0
        %1443 = vmatpush1.bf16.msra.mxu0 %v1283
        %1444 = vmatprep.subr.bf16.mxu0 0
        %1445 = vmatpush2.bf16.msra.mxu0 %v1298
        %1446 = vmatprep.subr.bf16.mxu0 0
        %1447 = vmatpush2.bf16.msra.mxu0 %v1297
        %1448 = vmatprep.subr.bf16.mxu0 0
        %1449 = vmatpush2.bf16.msra.mxu0 %v1296
        %1450 = vmatprep.subr.bf16.mxu0 0
        %1451 = vmatpush2.bf16.msra.mxu0 %v1295
        %1452 = vmatprep.subr.bf16.mxu0 0
        %1453 = vmatpush2.bf16.msra.mxu0 %v1294
        %1454 = vmatprep.subr.bf16.mxu0 0
        %1455 = vmatpush2.bf16.msra.mxu0 %v1293
        %1456 = vmatprep.subr.bf16.mxu0 0
        %1457 = vmatpush2.bf16.msra.mxu0 %v1292
        %1458 = vmatprep.subr.bf16.mxu0 0
        %1459 = vmatpush2.bf16.msra.mxu0 %v1291
        %1460 = vmatprep.mubr.bf16.mxu0 %v1032
        %1461 = vmatmul.mubr.bf16.gmra.mxu0 %v1031
        %v1462 = vpop.f32.mrf.mxu0
        %v1463 = vadd.f32 0.0, %v1462
        %v1464 = vpop.f32.mrf.mxu0
        %v1465 = vpop.f32.mrf.mxu0
        %v1466 = vadd.f32 0.0, %v1465
        %v1467 = vpop.f32.mrf.mxu0
        %1468 = vmatprep.mubr.bf16.mxu0 %v1035
        %1469 = vmatmul.mubr.bf16.gmra.mxu0 %v1034
        %v1470 = vpop.f32.mrf.mxu0
        %v1471 = vadd.f32 0.0, %v1470
        %v1472 = vpop.f32.mrf.mxu0
        %v1473 = vpop.f32.mrf.mxu0
        %v1474 = vadd.f32 0.0, %v1473
        %v1475 = vpop.f32.mrf.mxu0
        %1476 = vmatprep.mubr.bf16.mxu0 %v1038
        %1477 = vmatmul.mubr.bf16.gmra.mxu0 %v1037
        %v1478 = vpop.f32.mrf.mxu0
        %v1479 = vadd.f32 0.0, %v1478
        %v1480 = vpop.f32.mrf.mxu0
        %v1481 = vpop.f32.mrf.mxu0
        %v1482 = vadd.f32 0.0, %v1481
        %v1483 = vpop.f32.mrf.mxu0
        %1484 = vmatprep.mubr.bf16.mxu0 %v1041
        %1485 = vmatmul.mubr.bf16.gmra.mxu0 %v1040
        %v1486 = vpop.f32.mrf.mxu0
        %v1487 = vadd.f32 0.0, %v1486
        %v1488 = vpop.f32.mrf.mxu0
        %v1489 = vpop.f32.mrf.mxu0
        %v1490 = vadd.f32 0.0, %v1489
        %v1491 = vpop.f32.mrf.mxu0
        %1492 = vmatprep.mubr.bf16.mxu0 %v1044
        %1493 = vmatmul.mubr.bf16.gmra.mxu0 %v1043
        %v1494 = vpop.f32.mrf.mxu0
        %v1495 = vadd.f32 0.0, %v1494
        %v1496 = vpop.f32.mrf.mxu0
        %v1497 = vpop.f32.mrf.mxu0
        %v1498 = vadd.f32 0.0, %v1497
        %v1499 = vpop.f32.mrf.mxu0
        %1500 = vmatprep.mubr.bf16.mxu0 %v1047
        %1501 = vmatmul.mubr.bf16.gmra.mxu0 %v1046
        %v1502 = vpop.f32.mrf.mxu0
        %v1503 = vadd.f32 0.0, %v1502
        %v1504 = vpop.f32.mrf.mxu0
        %v1505 = vpop.f32.mrf.mxu0
        %v1506 = vadd.f32 0.0, %v1505
        %v1507 = vpop.f32.mrf.mxu0
        %1508 = vmatprep.mubr.bf16.mxu0 %v1050
        %1509 = vmatmul.mubr.bf16.gmra.mxu0 %v1049
        %v1510 = vpop.f32.mrf.mxu0
        %v1511 = vadd.f32 0.0, %v1510
        %v1512 = vpop.f32.mrf.mxu0
        %v1513 = vpop.f32.mrf.mxu0
        %v1514 = vadd.f32 0.0, %v1513
        %v1515 = vpop.f32.mrf.mxu0
        %1516 = vmatprep.mubr.bf16.mxu0 %v1053
        %1517 = vmatmul.mubr.bf16.gmra.mxu0 %v1052
        %v1518 = vpop.f32.mrf.mxu0
        %v1519 = vadd.f32 0.0, %v1518
        %v1520 = vpop.f32.mrf.mxu0
        %v1521 = vpop.f32.mrf.mxu0
        %v1522 = vadd.f32 0.0, %v1521
        %v1523 = vpop.f32.mrf.mxu0
        %1524 = vmatprep.mubr.bf16.mxu0 %v1056
        %1525 = vmatmul.mubr.bf16.gmra.mxu0 %v1055
        %v1526 = vpop.f32.mrf.mxu0
        %v1527 = vadd.f32 0.0, %v1526
        %v1528 = vpop.f32.mrf.mxu0
        %v1529 = vpop.f32.mrf.mxu0
        %v1530 = vadd.f32 0.0, %v1529
        %v1531 = vpop.f32.mrf.mxu0
        %1532 = vmatprep.mubr.bf16.mxu0 %v1059
        %1533 = vmatmul.mubr.bf16.gmra.mxu0 %v1058
        %v1534 = vpop.f32.mrf.mxu0
        %v1535 = vadd.f32 0.0, %v1534
        %v1536 = vpop.f32.mrf.mxu0
        %v1537 = vpop.f32.mrf.mxu0
        %v1538 = vadd.f32 0.0, %v1537
        %v1539 = vpop.f32.mrf.mxu0
        %1540 = vmatprep.mubr.bf16.mxu0 %v1062
        %1541 = vmatmul.mubr.bf16.gmra.mxu0 %v1061
        %v1542 = vpop.f32.mrf.mxu0
        %v1543 = vadd.f32 0.0, %v1542
        %v1544 = vpop.f32.mrf.mxu0
        %v1545 = vpop.f32.mrf.mxu0
        %v1546 = vadd.f32 0.0, %v1545
        %v1547 = vpop.f32.mrf.mxu0
        %1548 = vmatprep.mubr.bf16.mxu0 %v1065
        %1549 = vmatmul.mubr.bf16.gmra.mxu0 %v1064
        %v1550 = vpop.f32.mrf.mxu0
        %v1551 = vadd.f32 0.0, %v1550
        %v1552 = vpop.f32.mrf.mxu0
        %v1553 = vpop.f32.mrf.mxu0
        %v1554 = vadd.f32 0.0, %v1553
        %v1555 = vpop.f32.mrf.mxu0
        %1556 = vmatprep.mubr.bf16.mxu0 %v1068
        %1557 = vmatmul.mubr.bf16.gmra.mxu0 %v1067
        %v1558 = vpop.f32.mrf.mxu0
        %v1559 = vadd.f32 0.0, %v1558
        %v1560 = vpop.f32.mrf.mxu0
        %v1561 = vpop.f32.mrf.mxu0
        %v1562 = vadd.f32 0.0, %v1561
        %v1563 = vpop.f32.mrf.mxu0
        %1564 = vmatprep.mubr.bf16.mxu0 %v1071
        %1565 = vmatmul.mubr.bf16.gmra.mxu0 %v1070
        %v1566 = vpop.f32.mrf.mxu0
        %v1567 = vadd.f32 0.0, %v1566
        %v1568 = vpop.f32.mrf.mxu0
        %v1569 = vpop.f32.mrf.mxu0
        %v1570 = vadd.f32 0.0, %v1569
        %v1571 = vpop.f32.mrf.mxu0
        %1572 = vmatprep.mubr.bf16.mxu0 %v1074
        %1573 = vmatmul.mubr.bf16.gmra.mxu0 %v1073
        %v1574 = vpop.f32.mrf.mxu0
        %v1575 = vadd.f32 0.0, %v1574
        %v1576 = vpop.f32.mrf.mxu0
        %v1577 = vpop.f32.mrf.mxu0
        %v1578 = vadd.f32 0.0, %v1577
        %v1579 = vpop.f32.mrf.mxu0
        %1580 = vmatprep.mubr.bf16.mxu0 %v1077
        %1581 = vmatmul.mubr.bf16.gmra.mxu0 %v1076
        %v1582 = vpop.f32.mrf.mxu0
        %v1583 = vadd.f32 0.0, %v1582
        %v1584 = vpop.f32.mrf.mxu0
        %v1585 = vpop.f32.mrf.mxu0
        %v1586 = vadd.f32 0.0, %v1585
        %v1587 = vpop.f32.mrf.mxu0
        %1588 = vmatprep.mubr.bf16.mxu0 %v1080
        %1589 = vmatmul.mubr.bf16.gmra.mxu0 %v1079
        %v1590 = vpop.f32.mrf.mxu0
        %v1591 = vadd.f32 0.0, %v1590
        %v1592 = vpop.f32.mrf.mxu0
        %v1593 = vpop.f32.mrf.mxu0
        %v1594 = vadd.f32 0.0, %v1593
        %v1595 = vpop.f32.mrf.mxu0
        %1596 = vmatprep.mubr.bf16.mxu0 %v1083
        %1597 = vmatmul.mubr.bf16.gmra.mxu0 %v1082
        %v1598 = vpop.f32.mrf.mxu0
        %v1599 = vadd.f32 0.0, %v1598
        %v1600 = vpop.f32.mrf.mxu0
        %v1601 = vpop.f32.mrf.mxu0
        %v1602 = vadd.f32 0.0, %v1601
        %v1603 = vpop.f32.mrf.mxu0
        %1604 = vmatprep.mubr.bf16.mxu0 %v1086
        %1605 = vmatmul.mubr.bf16.gmra.mxu0 %v1085
        %v1606 = vpop.f32.mrf.mxu0
        %v1607 = vadd.f32 0.0, %v1606
        %v1608 = vpop.f32.mrf.mxu0
        %v1609 = vpop.f32.mrf.mxu0
        %v1610 = vadd.f32 0.0, %v1609
        %v1611 = vpop.f32.mrf.mxu0
        %1612 = vmatprep.mubr.bf16.mxu0 %v1089
        %1613 = vmatmul.mubr.bf16.gmra.mxu0 %v1088
        %v1614 = vpop.f32.mrf.mxu0
        %v1615 = vadd.f32 0.0, %v1614
        %v1616 = vpop.f32.mrf.mxu0
        %v1617 = vpop.f32.mrf.mxu0
        %v1618 = vadd.f32 0.0, %v1617
        %v1619 = vpop.f32.mrf.mxu0
        %1620 = vmatprep.mubr.bf16.mxu0 %v1092
        %1621 = vmatmul.mubr.bf16.gmra.mxu0 %v1091
        %v1622 = vpop.f32.mrf.mxu0
        %v1623 = vadd.f32 0.0, %v1622
        %v1624 = vpop.f32.mrf.mxu0
        %v1625 = vpop.f32.mrf.mxu0
        %v1626 = vadd.f32 0.0, %v1625
        %v1627 = vpop.f32.mrf.mxu0
        %1628 = vmatprep.mubr.bf16.mxu0 %v1095
        %1629 = vmatmul.mubr.bf16.gmra.mxu0 %v1094
        %v1630 = vpop.f32.mrf.mxu0
        %v1631 = vadd.f32 0.0, %v1630
        %v1632 = vpop.f32.mrf.mxu0
        %v1633 = vpop.f32.mrf.mxu0
        %v1634 = vadd.f32 0.0, %v1633
        %v1635 = vpop.f32.mrf.mxu0
        %1636 = vmatprep.mubr.bf16.mxu0 %v1098
        %1637 = vmatmul.mubr.bf16.gmra.mxu0 %v1097
        %v1638 = vpop.f32.mrf.mxu0
        %v1639 = vadd.f32 0.0, %v1638
        %v1640 = vpop.f32.mrf.mxu0
        %v1641 = vpop.f32.mrf.mxu0
        %v1642 = vadd.f32 0.0, %v1641
        %v1643 = vpop.f32.mrf.mxu0
        %1644 = vmatprep.mubr.bf16.mxu0 %v1101
        %1645 = vmatmul.mubr.bf16.gmra.mxu0 %v1100
        %v1646 = vpop.f32.mrf.mxu0
        %v1647 = vadd.f32 0.0, %v1646
        %v1648 = vpop.f32.mrf.mxu0
        %v1649 = vpop.f32.mrf.mxu0
        %v1650 = vadd.f32 0.0, %v1649
        %v1651 = vpop.f32.mrf.mxu0
        %1652 = vmatprep.mubr.bf16.mxu0 %v1104
        %1653 = vmatmul.mubr.bf16.gmra.mxu0 %v1103
        %v1654 = vpop.f32.mrf.mxu0
        %v1655 = vadd.f32 0.0, %v1654
        %v1656 = vpop.f32.mrf.mxu0
        %v1657 = vpop.f32.mrf.mxu0
        %v1658 = vadd.f32 0.0, %v1657
        %v1659 = vpop.f32.mrf.mxu0
        %1660 = vmatprep.mubr.bf16.mxu0 %v1107
        %1661 = vmatmul.mubr.bf16.gmra.mxu0 %v1106
        %v1662 = vpop.f32.mrf.mxu0
        %v1663 = vadd.f32 0.0, %v1662
        %v1664 = vpop.f32.mrf.mxu0
        %v1665 = vpop.f32.mrf.mxu0
        %v1666 = vadd.f32 0.0, %v1665
        %v1667 = vpop.f32.mrf.mxu0
        %1668 = vmatprep.mubr.bf16.mxu0 %v1110
        %1669 = vmatmul.mubr.bf16.gmra.mxu0 %v1109
        %v1670 = vpop.f32.mrf.mxu0
        %v1671 = vadd.f32 0.0, %v1670
        %v1672 = vpop.f32.mrf.mxu0
        %v1673 = vpop.f32.mrf.mxu0
        %v1674 = vadd.f32 0.0, %v1673
        %v1675 = vpop.f32.mrf.mxu0
        %1676 = vmatprep.mubr.bf16.mxu0 %v1113
        %1677 = vmatmul.mubr.bf16.gmra.mxu0 %v1112
        %v1678 = vpop.f32.mrf.mxu0
        %v1679 = vadd.f32 0.0, %v1678
        %v1680 = vpop.f32.mrf.mxu0
        %v1681 = vpop.f32.mrf.mxu0
        %v1682 = vadd.f32 0.0, %v1681
        %v1683 = vpop.f32.mrf.mxu0
        %1684 = vmatprep.mubr.bf16.mxu0 %v1116
        %1685 = vmatmul.mubr.bf16.gmra.mxu0 %v1115
        %v1686 = vpop.f32.mrf.mxu0
        %v1687 = vadd.f32 0.0, %v1686
        %v1688 = vpop.f32.mrf.mxu0
        %v1689 = vpop.f32.mrf.mxu0
        %v1690 = vadd.f32 0.0, %v1689
        %v1691 = vpop.f32.mrf.mxu0
        %1692 = vmatprep.mubr.bf16.mxu0 %v1119
        %1693 = vmatmul.mubr.bf16.gmra.mxu0 %v1118
        %v1694 = vpop.f32.mrf.mxu0
        %v1695 = vadd.f32 0.0, %v1694
        %v1696 = vpop.f32.mrf.mxu0
        %v1697 = vpop.f32.mrf.mxu0
        %v1698 = vadd.f32 0.0, %v1697
        %v1699 = vpop.f32.mrf.mxu0
        %1700 = vmatprep.mubr.bf16.mxu0 %v1122
        %1701 = vmatmul.mubr.bf16.gmra.mxu0 %v1121
        %v1702 = vpop.f32.mrf.mxu0
        %v1703 = vadd.f32 0.0, %v1702
        %v1704 = vpop.f32.mrf.mxu0
        %v1705 = vpop.f32.mrf.mxu0
        %v1706 = vadd.f32 0.0, %v1705
        %v1707 = vpop.f32.mrf.mxu0
        %1708 = vmatprep.mubr.bf16.mxu0 %v1125
        %1709 = vmatmul.mubr.bf16.gmra.mxu0 %v1124
        %v1710 = vpop.f32.mrf.mxu0
        %v1711 = vadd.f32 0.0, %v1710
        %v1712 = vpop.f32.mrf.mxu0
        %v1713 = vpop.f32.mrf.mxu0
        %v1714 = vadd.f32 0.0, %v1713
        %v1715 = vpop.f32.mrf.mxu0
        %1716 = vmatprep.mubr.bf16.mxu0 %v1128
        %1717 = vmatmul.mubr.bf16.gmra.mxu0 %v1127
        %v1718 = vpop.f32.mrf.mxu0
        %v1719 = vadd.f32 0.0, %v1718
        %v1720 = vpop.f32.mrf.mxu0
        %v1721 = vpop.f32.mrf.mxu0
        %v1722 = vadd.f32 0.0, %v1721
        %v1723 = vpop.f32.mrf.mxu0
        %1724 = vmatprep.mubr.bf16.mxu0 %v1131
        %1725 = vmatmul.mubr.bf16.gmra.mxu0 %v1130
        %v1726 = vpop.f32.mrf.mxu0
        %v1727 = vadd.f32 0.0, %v1726
        %v1728 = vpop.f32.mrf.mxu0
        %v1729 = vpop.f32.mrf.mxu0
        %v1730 = vadd.f32 0.0, %v1729
        %v1731 = vpop.f32.mrf.mxu0
        %1732 = vmatprep.mubr.bf16.mxu0 %v1134
        %1733 = vmatmul.mubr.bf16.gmra.mxu0 %v1133
        %v1734 = vpop.f32.mrf.mxu0
        %v1735 = vadd.f32 0.0, %v1734
        %v1736 = vpop.f32.mrf.mxu0
        %v1737 = vpop.f32.mrf.mxu0
        %v1738 = vadd.f32 0.0, %v1737
        %v1739 = vpop.f32.mrf.mxu0
        %1740 = vmatprep.mubr.bf16.mxu0 %v1137
        %1741 = vmatmul.mubr.bf16.gmra.mxu0 %v1136
        %v1742 = vpop.f32.mrf.mxu0
        %v1743 = vadd.f32 0.0, %v1742
        %v1744 = vpop.f32.mrf.mxu0
        %v1745 = vpop.f32.mrf.mxu0
        %v1746 = vadd.f32 0.0, %v1745
        %v1747 = vpop.f32.mrf.mxu0
        %1748 = vdwg.mxu0
        %1749 = vmatprep.subr.bf16.mxu0 0
        %1750 = vmatpush1.bf16.msra.mxu0 0
        %1751 = vmatprep.subr.bf16.mxu0 0
        %1752 = vmatpush1.bf16.msra.mxu0 0
        %1753 = vmatprep.subr.bf16.mxu0 0
        %1754 = vmatpush1.bf16.msra.mxu0 0
        %1755 = vmatprep.subr.bf16.mxu0 0
        %1756 = vmatpush1.bf16.msra.mxu0 0
        %1757 = vmatprep.subr.bf16.mxu0 0
        %1758 = vmatpush1.bf16.msra.mxu0 0
        %1759 = vmatprep.subr.bf16.mxu0 0
        %1760 = vmatpush1.bf16.msra.mxu0 0
        %1761 = vmatprep.subr.bf16.mxu0 0
        %1762 = vmatpush1.bf16.msra.mxu0 %v1300
        %1763 = vmatprep.subr.bf16.mxu0 0
        %1764 = vmatpush1.bf16.msra.mxu0 %v1299
        %1765 = vmatprep.subr.bf16.mxu0 0
        %1766 = vmatpush2.bf16.msra.mxu0 0
        %1767 = vmatprep.subr.bf16.mxu0 0
        %1768 = vmatpush2.bf16.msra.mxu0 0
        %1769 = vmatprep.subr.bf16.mxu0 0
        %1770 = vmatpush2.bf16.msra.mxu0 0
        %1771 = vmatprep.subr.bf16.mxu0 0
        %1772 = vmatpush2.bf16.msra.mxu0 0
        %1773 = vmatprep.subr.bf16.mxu0 0
        %1774 = vmatpush2.bf16.msra.mxu0 0
        %1775 = vmatprep.subr.bf16.mxu0 0
        %1776 = vmatpush2.bf16.msra.mxu0 0
        %1777 = vmatprep.subr.bf16.mxu0 0
        %1778 = vmatpush2.bf16.msra.mxu0 0
        %1779 = vmatprep.subr.bf16.mxu0 0
        %1780 = vmatpush2.bf16.msra.mxu0 0
        %1781 = vmatprep.mubr.bf16.mxu0 0
        %1782 = vmatmul.mubr.bf16.gmra.mxu0 %v1321
        %v1783 = vpop.f32.mrf.mxu0
        %v1784 = vadd.f32 %v1463, %v1783
        %v1785 = vpop.f32.mrf.mxu0
        %v1786 = vpop.f32.mrf.mxu0
        %v1787 = vadd.f32 %v1466, %v1786
        %v1788 = vpop.f32.mrf.mxu0
        %1789 = vmatprep.mubr.bf16.mxu0 0
        %1790 = vmatmul.mubr.bf16.gmra.mxu0 %v1324
        %v1791 = vpop.f32.mrf.mxu0
        %v1792 = vadd.f32 %v1471, %v1791
        %v1793 = vpop.f32.mrf.mxu0
        %v1794 = vpop.f32.mrf.mxu0
        %v1795 = vadd.f32 %v1474, %v1794
        %v1796 = vpop.f32.mrf.mxu0
        %1797 = vmatprep.mubr.bf16.mxu0 0
        %1798 = vmatmul.mubr.bf16.gmra.mxu0 %v1327
        %v1799 = vpop.f32.mrf.mxu0
        %v1800 = vadd.f32 %v1479, %v1799
        %v1801 = vpop.f32.mrf.mxu0
        %v1802 = vpop.f32.mrf.mxu0
        %v1803 = vadd.f32 %v1482, %v1802
        %v1804 = vpop.f32.mrf.mxu0
        %1805 = vmatprep.mubr.bf16.mxu0 0
        %1806 = vmatmul.mubr.bf16.gmra.mxu0 %v1330
        %v1807 = vpop.f32.mrf.mxu0
        %v1808 = vadd.f32 %v1487, %v1807
        %v1809 = vpop.f32.mrf.mxu0
        %v1810 = vpop.f32.mrf.mxu0
        %v1811 = vadd.f32 %v1490, %v1810
        %v1812 = vpop.f32.mrf.mxu0
        %1813 = vmatprep.mubr.bf16.mxu0 0
        %1814 = vmatmul.mubr.bf16.gmra.mxu0 %v1333
        %v1815 = vpop.f32.mrf.mxu0
        %v1816 = vadd.f32 %v1495, %v1815
        %v1817 = vpop.f32.mrf.mxu0
        %v1818 = vpop.f32.mrf.mxu0
        %v1819 = vadd.f32 %v1498, %v1818
        %v1820 = vpop.f32.mrf.mxu0
        %1821 = vmatprep.mubr.bf16.mxu0 0
        %1822 = vmatmul.mubr.bf16.gmra.mxu0 %v1336
        %v1823 = vpop.f32.mrf.mxu0
        %v1824 = vadd.f32 %v1503, %v1823
        %v1825 = vpop.f32.mrf.mxu0
        %v1826 = vpop.f32.mrf.mxu0
        %v1827 = vadd.f32 %v1506, %v1826
        %v1828 = vpop.f32.mrf.mxu0
        %1829 = vmatprep.mubr.bf16.mxu0 0
        %1830 = vmatmul.mubr.bf16.gmra.mxu0 %v1339
        %v1831 = vpop.f32.mrf.mxu0
        %v1832 = vadd.f32 %v1511, %v1831
        %v1833 = vpop.f32.mrf.mxu0
        %v1834 = vpop.f32.mrf.mxu0
        %v1835 = vadd.f32 %v1514, %v1834
        %v1836 = vpop.f32.mrf.mxu0
        %1837 = vmatprep.mubr.bf16.mxu0 0
        %1838 = vmatmul.mubr.bf16.gmra.mxu0 %v1342
        %v1839 = vpop.f32.mrf.mxu0
        %v1840 = vadd.f32 %v1519, %v1839
        %v1841 = vpop.f32.mrf.mxu0
        %v1842 = vpop.f32.mrf.mxu0
        %v1843 = vadd.f32 %v1522, %v1842
        %v1844 = vpop.f32.mrf.mxu0
        %1845 = vmatprep.mubr.bf16.mxu0 0
        %1846 = vmatmul.mubr.bf16.gmra.mxu0 %v1345
        %v1847 = vpop.f32.mrf.mxu0
        %v1848 = vadd.f32 %v1527, %v1847
        %v1849 = vpop.f32.mrf.mxu0
        %v1850 = vpop.f32.mrf.mxu0
        %v1851 = vadd.f32 %v1530, %v1850
        %v1852 = vpop.f32.mrf.mxu0
        %1853 = vmatprep.mubr.bf16.mxu0 0
        %1854 = vmatmul.mubr.bf16.gmra.mxu0 %v1348
        %v1855 = vpop.f32.mrf.mxu0
        %v1856 = vadd.f32 %v1535, %v1855
        %v1857 = vpop.f32.mrf.mxu0
        %v1858 = vpop.f32.mrf.mxu0
        %v1859 = vadd.f32 %v1538, %v1858
        %v1860 = vpop.f32.mrf.mxu0
        %1861 = vmatprep.mubr.bf16.mxu0 0
        %1862 = vmatmul.mubr.bf16.gmra.mxu0 %v1351
        %v1863 = vpop.f32.mrf.mxu0
        %v1864 = vadd.f32 %v1543, %v1863
        %v1865 = vpop.f32.mrf.mxu0
        %v1866 = vpop.f32.mrf.mxu0
        %v1867 = vadd.f32 %v1546, %v1866
        %v1868 = vpop.f32.mrf.mxu0
        %1869 = vmatprep.mubr.bf16.mxu0 0
        %1870 = vmatmul.mubr.bf16.gmra.mxu0 %v1354
        %v1871 = vpop.f32.mrf.mxu0
        %v1872 = vadd.f32 %v1551, %v1871
        %v1873 = vpop.f32.mrf.mxu0
        %v1874 = vpop.f32.mrf.mxu0
        %v1875 = vadd.f32 %v1554, %v1874
        %v1876 = vpop.f32.mrf.mxu0
        %1877 = vmatprep.mubr.bf16.mxu0 0
        %1878 = vmatmul.mubr.bf16.gmra.mxu0 %v1357
        %v1879 = vpop.f32.mrf.mxu0
        %v1880 = vadd.f32 %v1559, %v1879
        %v1881 = vpop.f32.mrf.mxu0
        %v1882 = vpop.f32.mrf.mxu0
        %v1883 = vadd.f32 %v1562, %v1882
        %v1884 = vpop.f32.mrf.mxu0
        %1885 = vmatprep.mubr.bf16.mxu0 0
        %1886 = vmatmul.mubr.bf16.gmra.mxu0 %v1360
        %v1887 = vpop.f32.mrf.mxu0
        %v1888 = vadd.f32 %v1567, %v1887
        %v1889 = vpop.f32.mrf.mxu0
        %v1890 = vpop.f32.mrf.mxu0
        %v1891 = vadd.f32 %v1570, %v1890
        %v1892 = vpop.f32.mrf.mxu0
        %1893 = vmatprep.mubr.bf16.mxu0 0
        %1894 = vmatmul.mubr.bf16.gmra.mxu0 %v1363
        %v1895 = vpop.f32.mrf.mxu0
        %v1896 = vadd.f32 %v1575, %v1895
        %v1897 = vpop.f32.mrf.mxu0
        %v1898 = vpop.f32.mrf.mxu0
        %v1899 = vadd.f32 %v1578, %v1898
        %v1900 = vpop.f32.mrf.mxu0
        %1901 = vmatprep.mubr.bf16.mxu0 0
        %1902 = vmatmul.mubr.bf16.gmra.mxu0 %v1366
        %v1903 = vpop.f32.mrf.mxu0
        %v1904 = vadd.f32 %v1583, %v1903
        %v1905 = vpop.f32.mrf.mxu0
        %v1906 = vpop.f32.mrf.mxu0
        %v1907 = vadd.f32 %v1586, %v1906
        %v1908 = vpop.f32.mrf.mxu0
        %1909 = vmatprep.mubr.bf16.mxu0 0
        %1910 = vmatmul.mubr.bf16.gmra.mxu0 %v1369
        %v1911 = vpop.f32.mrf.mxu0
        %v1912 = vadd.f32 %v1591, %v1911
        %v1913 = vpop.f32.mrf.mxu0
        %v1914 = vpop.f32.mrf.mxu0
        %v1915 = vadd.f32 %v1594, %v1914
        %v1916 = vpop.f32.mrf.mxu0
        %1917 = vmatprep.mubr.bf16.mxu0 0
        %1918 = vmatmul.mubr.bf16.gmra.mxu0 %v1372
        %v1919 = vpop.f32.mrf.mxu0
        %v1920 = vadd.f32 %v1599, %v1919
        %v1921 = vpop.f32.mrf.mxu0
        %v1922 = vpop.f32.mrf.mxu0
        %v1923 = vadd.f32 %v1602, %v1922
        %v1924 = vpop.f32.mrf.mxu0
        %1925 = vmatprep.mubr.bf16.mxu0 0
        %1926 = vmatmul.mubr.bf16.gmra.mxu0 %v1375
        %v1927 = vpop.f32.mrf.mxu0
        %v1928 = vadd.f32 %v1607, %v1927
        %v1929 = vpop.f32.mrf.mxu0
        %v1930 = vpop.f32.mrf.mxu0
        %v1931 = vadd.f32 %v1610, %v1930
        %v1932 = vpop.f32.mrf.mxu0
        %1933 = vmatprep.mubr.bf16.mxu0 0
        %1934 = vmatmul.mubr.bf16.gmra.mxu0 %v1378
        %v1935 = vpop.f32.mrf.mxu0
        %v1936 = vadd.f32 %v1615, %v1935
        %v1937 = vpop.f32.mrf.mxu0
        %v1938 = vpop.f32.mrf.mxu0
        %v1939 = vadd.f32 %v1618, %v1938
        %v1940 = vpop.f32.mrf.mxu0
        %1941 = vmatprep.mubr.bf16.mxu0 0
        %1942 = vmatmul.mubr.bf16.gmra.mxu0 %v1381
        %v1943 = vpop.f32.mrf.mxu0
        %v1944 = vadd.f32 %v1623, %v1943
        %v1945 = vpop.f32.mrf.mxu0
        %v1946 = vpop.f32.mrf.mxu0
        %v1947 = vadd.f32 %v1626, %v1946
        %v1948 = vpop.f32.mrf.mxu0
        %1949 = vmatprep.mubr.bf16.mxu0 0
        %1950 = vmatmul.mubr.bf16.gmra.mxu0 %v1384
        %v1951 = vpop.f32.mrf.mxu0
        %v1952 = vadd.f32 %v1631, %v1951
        %v1953 = vpop.f32.mrf.mxu0
        %v1954 = vpop.f32.mrf.mxu0
        %v1955 = vadd.f32 %v1634, %v1954
        %v1956 = vpop.f32.mrf.mxu0
        %1957 = vmatprep.mubr.bf16.mxu0 0
        %1958 = vmatmul.mubr.bf16.gmra.mxu0 %v1387
        %v1959 = vpop.f32.mrf.mxu0
        %v1960 = vadd.f32 %v1639, %v1959
        %v1961 = vpop.f32.mrf.mxu0
        %v1962 = vpop.f32.mrf.mxu0
        %v1963 = vadd.f32 %v1642, %v1962
        %v1964 = vpop.f32.mrf.mxu0
        %1965 = vmatprep.mubr.bf16.mxu0 0
        %1966 = vmatmul.mubr.bf16.gmra.mxu0 %v1390
        %v1967 = vpop.f32.mrf.mxu0
        %v1968 = vadd.f32 %v1647, %v1967
        %v1969 = vpop.f32.mrf.mxu0
        %v1970 = vpop.f32.mrf.mxu0
        %v1971 = vadd.f32 %v1650, %v1970
        %v1972 = vpop.f32.mrf.mxu0
        %1973 = vmatprep.mubr.bf16.mxu0 0
        %1974 = vmatmul.mubr.bf16.gmra.mxu0 %v1393
        %v1975 = vpop.f32.mrf.mxu0
        %v1976 = vadd.f32 %v1655, %v1975
        %v1977 = vpop.f32.mrf.mxu0
        %v1978 = vpop.f32.mrf.mxu0
        %v1979 = vadd.f32 %v1658, %v1978
        %v1980 = vpop.f32.mrf.mxu0
        %1981 = vmatprep.mubr.bf16.mxu0 0
        %1982 = vmatmul.mubr.bf16.gmra.mxu0 %v1396
        %v1983 = vpop.f32.mrf.mxu0
        %v1984 = vadd.f32 %v1663, %v1983
        %v1985 = vpop.f32.mrf.mxu0
        %v1986 = vpop.f32.mrf.mxu0
        %v1987 = vadd.f32 %v1666, %v1986
        %v1988 = vpop.f32.mrf.mxu0
        %1989 = vmatprep.mubr.bf16.mxu0 0
        %1990 = vmatmul.mubr.bf16.gmra.mxu0 %v1399
        %v1991 = vpop.f32.mrf.mxu0
        %v1992 = vadd.f32 %v1671, %v1991
        %v1993 = vpop.f32.mrf.mxu0
        %v1994 = vpop.f32.mrf.mxu0
        %v1995 = vadd.f32 %v1674, %v1994
        %v1996 = vpop.f32.mrf.mxu0
        %1997 = vmatprep.mubr.bf16.mxu0 0
        %1998 = vmatmul.mubr.bf16.gmra.mxu0 %v1402
        %v1999 = vpop.f32.mrf.mxu0
        %v2000 = vadd.f32 %v1679, %v1999
        %v2001 = vpop.f32.mrf.mxu0
        %v2002 = vpop.f32.mrf.mxu0
        %v2003 = vadd.f32 %v1682, %v2002
        %v2004 = vpop.f32.mrf.mxu0
        %2005 = vmatprep.mubr.bf16.mxu0 0
        %2006 = vmatmul.mubr.bf16.gmra.mxu0 %v1405
        %v2007 = vpop.f32.mrf.mxu0
        %v2008 = vadd.f32 %v1687, %v2007
        %v2009 = vpop.f32.mrf.mxu0
        %v2010 = vpop.f32.mrf.mxu0
        %v2011 = vadd.f32 %v1690, %v2010
        %v2012 = vpop.f32.mrf.mxu0
        %2013 = vmatprep.mubr.bf16.mxu0 0
        %2014 = vmatmul.mubr.bf16.gmra.mxu0 %v1408
        %v2015 = vpop.f32.mrf.mxu0
        %v2016 = vadd.f32 %v1695, %v2015
        %v2017 = vpop.f32.mrf.mxu0
        %v2018 = vpop.f32.mrf.mxu0
        %v2019 = vadd.f32 %v1698, %v2018
        %v2020 = vpop.f32.mrf.mxu0
        %2021 = vmatprep.mubr.bf16.mxu0 0
        %2022 = vmatmul.mubr.bf16.gmra.mxu0 %v1411
        %v2023 = vpop.f32.mrf.mxu0
        %v2024 = vadd.f32 %v1703, %v2023
        %v2025 = vpop.f32.mrf.mxu0
        %v2026 = vpop.f32.mrf.mxu0
        %v2027 = vadd.f32 %v1706, %v2026
        %v2028 = vpop.f32.mrf.mxu0
        %2029 = vmatprep.mubr.bf16.mxu0 0
        %2030 = vmatmul.mubr.bf16.gmra.mxu0 %v1414
        %v2031 = vpop.f32.mrf.mxu0
        %v2032 = vadd.f32 %v1711, %v2031
        %v2033 = vpop.f32.mrf.mxu0
        %v2034 = vpop.f32.mrf.mxu0
        %v2035 = vadd.f32 %v1714, %v2034
        %v2036 = vpop.f32.mrf.mxu0
        %2037 = vmatprep.mubr.bf16.mxu0 0
        %2038 = vmatmul.mubr.bf16.gmra.mxu0 %v1417
        %v2039 = vpop.f32.mrf.mxu0
        %v2040 = vadd.f32 %v1719, %v2039
        %v2041 = vpop.f32.mrf.mxu0
        %v2042 = vpop.f32.mrf.mxu0
        %v2043 = vadd.f32 %v1722, %v2042
        %v2044 = vpop.f32.mrf.mxu0
        %2045 = vmatprep.mubr.bf16.mxu0 0
        %2046 = vmatmul.mubr.bf16.gmra.mxu0 %v1420
        %v2047 = vpop.f32.mrf.mxu0
        %v2048 = vadd.f32 %v1727, %v2047
        %v2049 = vpop.f32.mrf.mxu0
        %v2050 = vpop.f32.mrf.mxu0
        %v2051 = vadd.f32 %v1730, %v2050
        %v2052 = vpop.f32.mrf.mxu0
        %2053 = vmatprep.mubr.bf16.mxu0 0
        %2054 = vmatmul.mubr.bf16.gmra.mxu0 %v1423
        %v2055 = vpop.f32.mrf.mxu0
        %v2056 = vadd.f32 %v1735, %v2055
        %v2057 = vpop.f32.mrf.mxu0
        %v2058 = vpop.f32.mrf.mxu0
        %v2059 = vadd.f32 %v1738, %v2058
        %v2060 = vpop.f32.mrf.mxu0
        %2061 = vmatprep.mubr.bf16.mxu0 0
        %2062 = vmatmul.mubr.bf16.gmra.mxu0 %v1426
        %v2063 = vpop.f32.mrf.mxu0
        %v2064 = vadd.f32 %v1743, %v2063
        %v2065 = vpop.f32.mrf.mxu0
        %v2066 = vpop.f32.mrf.mxu0
        %v2067 = vadd.f32 %v1746, %v2066
        %v2068 = vpop.f32.mrf.mxu0
        %2069 = vdwg.mxu0
        %v2070 = vmax.f32 %v1784, %v1856
        %v2071 = vmax.f32 %v1787, %v1859
        %v2072 = vmax.f32 %v1792, %v1864
        %v2073 = vmax.f32 %v1795, %v1867
        %v2074 = vmax.f32 %v1800, %v1872
        %v2075 = vmax.f32 %v1803, %v1875
        %v2076 = vmax.f32 %v1808, %v1880
        %v2077 = vmax.f32 %v1811, %v1883
        %v2078 = vmax.f32 %v1816, %v1888
        %v2079 = vmax.f32 %v1819, %v1891
        %v2080 = vmax.f32 %v1824, %v1896
        %v2081 = vmax.f32 %v1827, %v1899
        %v2082 = vmax.f32 %v1832, %v1904
        %v2083 = vmax.f32 %v1835, %v1907
        %v2084 = vmax.f32 %v1840, %v1912
        %v2085 = vmax.f32 %v1843, %v1915
        %v2086 = vmax.f32 %v1848, %v1920
        %v2087 = vmax.f32 %v1851, %v1923
        %v2088 = vmax.f32 %v1928, %v2000
        %v2089 = vmax.f32 %v1931, %v2003
        %v2090 = vmax.f32 %v1936, %v2008
        %v2091 = vmax.f32 %v1939, %v2011
        %v2092 = vmax.f32 %v1944, %v2016
        %v2093 = vmax.f32 %v1947, %v2019
        %v2094 = vmax.f32 %v1952, %v2024
        %v2095 = vmax.f32 %v1955, %v2027
        %v2096 = vmax.f32 %v1960, %v2032
        %v2097 = vmax.f32 %v1963, %v2035
        %v2098 = vmax.f32 %v1968, %v2040
        %v2099 = vmax.f32 %v1971, %v2043
        %v2100 = vmax.f32 %v1976, %v2048
        %v2101 = vmax.f32 %v1979, %v2051
        %v2102 = vmax.f32 %v1984, %v2056
        %v2103 = vmax.f32 %v1987, %v2059
        %v2104 = vmax.f32 %v1992, %v2064
        %v2105 = vmax.f32 %v1995, %v2067
        %v2106 = vmax.f32 %v2070, %v2088
        %v2107 = vmax.f32 %v2071, %v2089
        %v2108 = vmax.f32 %v2072, %v2090
        %v2109 = vmax.f32 %v2073, %v2091
        %v2110 = vmax.f32 %v2074, %v2092
        %v2111 = vmax.f32 %v2075, %v2093
        %v2112 = vmax.f32 %v2076, %v2094
        %v2113 = vmax.f32 %v2077, %v2095
        %v2114 = vmax.f32 %v2078, %v2096
        %v2115 = vmax.f32 %v2079, %v2097
        %v2116 = vmax.f32 %v2080, %v2098
        %v2117 = vmax.f32 %v2081, %v2099
        %v2118 = vmax.f32 %v2082, %v2100
        %v2119 = vmax.f32 %v2083, %v2101
        %v2120 = vmax.f32 %v2084, %v2102
        %v2121 = vmax.f32 %v2085, %v2103
        %v2122 = vmax.f32 %v2086, %v2104
        %v2123 = vmax.f32 %v2087, %v2105
        %v2124 = vld [vmem:[%s2] sm:$0x1]
        %v2126 = vlaneseq
        %v2127 = vshrl.u32 %v2126, 7
        %v2128 = vsub.s32 0, %v2127
        %v2129 = vrot.slane %v2124, %v2128
        %v2131 = vadd.f32 %v2106, %v2129
        %v2132 = vadd.f32 %v2107, %v2129
        %v2133 = vadd.f32 %v2108, %v2129
        %v2134 = vadd.f32 %v2109, %v2129
        %v2135 = vadd.f32 %v2110, %v2129
        %v2136 = vadd.f32 %v2111, %v2129
        %v2137 = vadd.f32 %v2112, %v2129
        %v2138 = vadd.f32 %v2113, %v2129
        %v2139 = vadd.f32 %v2114, %v2129
        %v2140 = vadd.f32 %v2115, %v2129
        %v2141 = vadd.f32 %v2116, %v2129
        %v2142 = vadd.f32 %v2117, %v2129
        %v2143 = vadd.f32 %v2118, %v2129
        %v2144 = vadd.f32 %v2119, %v2129
        %v2145 = vadd.f32 %v2120, %v2129
        %v2146 = vadd.f32 %v2121, %v2129
        %v2147 = vadd.f32 %v2122, %v2129
        %v2148 = vadd.f32 %v2123, %v2129
        %v2149 = vmax.f32 %v2131, 0.0
        %v2150 = vmax.f32 %v2132, 0.0
        %v2151 = vmax.f32 %v2133, 0.0
        %v2152 = vmax.f32 %v2134, 0.0
        %v2153 = vmax.f32 %v2135, 0.0
        %v2154 = vmax.f32 %v2136, 0.0
        %v2155 = vmax.f32 %v2137, 0.0
        %v2156 = vmax.f32 %v2138, 0.0
        %v2157 = vmax.f32 %v2139, 0.0
        %v2158 = vmax.f32 %v2140, 0.0
        %v2159 = vmax.f32 %v2141, 0.0
        %v2160 = vmax.f32 %v2142, 0.0
        %v2161 = vmax.f32 %v2143, 0.0
        %v2162 = vmax.f32 %v2144, 0.0
        %v2163 = vmax.f32 %v2145, 0.0
        %v2164 = vmax.f32 %v2146, 0.0
        %v2165 = vmax.f32 %v2147, 0.0
        %v2166 = vmax.f32 %v2148, 0.0
        %v2167 = vpack.c.bf16 %v2150, %v2149
        %v2168 = vpack.c.bf16 %v2152, %v2151
        %v2169 = vpack.c.bf16 %v2154, %v2153
        %v2170 = vpack.c.bf16 %v2156, %v2155
        %v2171 = vpack.c.bf16 %v2158, %v2157
        %v2172 = vpack.c.bf16 %v2160, %v2159
        %v2173 = vpack.c.bf16 %v2162, %v2161
        %v2174 = vpack.c.bf16 %v2164, %v2163
        %v2175 = vpack.c.bf16 %v2166, %v2165
        %v2185 = vunpack.c.l.b16 %v2167
        %v2186 = vunpack.c.h.b16 %v2167
        %v2187 = vunpack.c.l.b16 %v2168
        %v2188 = vunpack.c.h.b16 %v2168
        %v2189 = vunpack.c.l.b16 %v2169
        %v2190 = vunpack.c.h.b16 %v2169
        %v2191 = vunpack.c.l.b16 %v2170
        %v2192 = vunpack.c.h.b16 %v2170
        %v2193 = vunpack.c.l.b16 %v2171
        %v2194 = vunpack.c.h.b16 %v2171
        %v2195 = vunpack.c.l.b16 %v2172
        %v2196 = vunpack.c.h.b16 %v2172
        %v2197 = vunpack.c.l.b16 %v2173
        %v2198 = vunpack.c.h.b16 %v2173
        %v2199 = vunpack.c.l.b16 %v2174
        %v2200 = vunpack.c.h.b16 %v2174
        %v2201 = vunpack.c.l.b16 %v2175
        %v2202 = vunpack.c.h.b16 %v2175
        %v2203 = vpack.c.b16 %v2185, %v2185
        %v2204 = vpack.c.b16 %v2186, %v2186
        %v2205 = vpack.c.b16 %v2187, %v2187
        %v2206 = vpack.c.b16 %v2188, %v2188
        %v2207 = vpack.c.b16 %v2189, %v2189
        %v2208 = vpack.c.b16 %v2190, %v2190
        %v2209 = vpack.c.b16 %v2191, %v2191
        %v2210 = vpack.c.b16 %v2192, %v2192
        %v2211 = vpack.c.b16 %v2193, %v2193
        %v2212 = vpack.c.b16 %v2194, %v2194
        %v2213 = vpack.c.b16 %v2195, %v2195
        %v2214 = vpack.c.b16 %v2196, %v2196
        %v2215 = vpack.c.b16 %v2197, %v2197
        %v2216 = vpack.c.b16 %v2198, %v2198
        %v2217 = vpack.c.b16 %v2199, %v2199
        %v2218 = vpack.c.b16 %v2200, %v2200
        %v2219 = vpack.c.b16 %v2201, %v2201
        %v2220 = vpack.c.b16 %v2202, %v2202
        %2239 = vst [vmem:[%s488] sm:$0xf] %v2203
        %2240 = vst [vmem:[%s488 + $0x4] sm:$0xf] %v2204
        %2241 = vst [vmem:[%s488 + $0x8] sm:$0xf] %v2205
        %2242 = vst [vmem:[%s488 + $0xc] sm:$0xf] %v2206
        %2243 = vst [vmem:[%s488 + $0x10] sm:$0xf] %v2207
        %2244 = vst [vmem:[%s488 + $0x14] sm:$0xf] %v2208
        %2245 = vst [vmem:[%s488 + $0x18] sm:$0xf] %v2209
        %2246 = vst [vmem:[%s488 + $0x1c] sm:$0xf] %v2210
        %2247 = vst [vmem:[%s488 + $0x20] sm:$0xf] %v2211
        %2248 = vst [vmem:[%s488 + $0x24] sm:$0xf] %v2212
        %2249 = vst [vmem:[%s488 + $0x28] sm:$0xf] %v2213
        %2250 = vst [vmem:[%s488 + $0x2c] sm:$0xf] %v2214
        %2251 = vst [vmem:[%s488 + $0x30] sm:$0xf] %v2215
        %2252 = vst [vmem:[%s488 + $0x34] sm:$0xf] %v2216
        %2253 = vst [vmem:[%s488 + $0x38] sm:$0xf] %v2217
        %2254 = vst [vmem:[%s488 + $0x3c] sm:$0xf] %v2218
        %2255 = vst [vmem:[%s488 + $0x40] sm:$0xf] %v2219
        %2256 = vst [vmem:[%s488 + $0x44] sm:$0xf] %v2220
        %s2257 = smul.u32 18, %s14
        %p2258 = scmp.lt.s32.totalorder %s2257, 35
        %s2259 = scalar_select %p2258, %s2257, 35
        %s2260 = smul.addr %s2259, 4
        %s2261 = scalar_lea.vmem %s3, %s2260
        // Predicated region
        $region59: #{cnn_forward.4} parent=53 // pred_check
          %p2262 = pneg %p100
        $region60: #{cnn_forward.4} parent=53 // pred_check_branch
          %2264 = sbr.rel (%p2262) target = $region62
        $region61: #{cnn_forward.4} parent=53 // pred_region
          %s2265 = smul.u32 18, %s14
        $region62: #{cnn_forward.4} parent=53 // pred_fallthru
          _
      $region54: #{cnn_forward.4} parent=5 // pred_fallthru
        _
      %p2266 = scmp.le.s32.totalorder 2, %s9
      // Predicated region
      $region63: #{cnn_forward.4} parent=5 // pred_check
        %p2267 = pneg %p2266
      $region64: #{cnn_forward.4} parent=5 // pred_check_branch
        %2269 = sbr.rel (%p2267) target = $region66
      $region65: #{cnn_forward.4} parent=5 // pred_region
        %s2270 = ssub.s32 %s9, 2
        // Predicated region
        $region67: #{cnn_forward.4} parent=65 // pred_check
          %p2271 = pneg %p106
        $region68: #{cnn_forward.4} parent=65 // pred_check_branch
          %2273 = sbr.rel (%p2271) target = $region70
        $region69: #{cnn_forward.4} parent=65 // pred_region
          %s2274 = smul.u32 18, %s15
          %p2275 = scmp.lt.s32.totalorder %s2274, 35
          %s2276 = scalar_select %p2275, %s2274, 35
          %s2277 = smul.addr %s2276, 4
          %s2278 = scalar_lea.vmem %s3, %s2277
        $region70: #{cnn_forward.4} parent=65 // pred_fallthru
          _
      $region66: #{cnn_forward.4} parent=5 // pred_fallthru
        _
    $region6: #{cnn_forward.4} parent=1 // loop_footer
      %s13 = sadd.s32 1, %s9
    $region7: #{cnn_forward.4} parent=1 // loop_footer_branch
      %8 = sbr.rel target = $region3
    $region8: #{cnn_forward.4} parent=1 // loop_exit
      _

// kernel: cnn_forward.5
$region0: #{cnn_forward.5}
  #allocation0 [shape = 'u32[]', space=smem, size = 0x4, offset = 0x4, fixed_abs, tag = 'smem constant byte address 0x4 - core index']
  #allocation1 [shape = 'u32[144,128]{1,0:T(1,128)}', space=vmem, size = 0x12000, scoped, tag = 'internal scratch']
  %s0 = inlined_call_operand.vmem [shape: bf16[4,32,576], index: 0, kind: input, shape index: {}]
  %s1 = inlined_call_operand.vmem [shape: bf16[576,128], index: 1, kind: input, shape index: {}]
  %s2 = inlined_call_operand.vmem [shape: f32[1,128], index: 2, kind: input, shape index: {}]
  %s3 = inlined_call_operand.vmem [shape: bf16[4,128,128], index: 3, kind: input, shape index: {}]
  %s4 = inlined_call_operand.vmem [shape: f32[1,128], index: 4, kind: input, shape index: {}]
  %s5 = inlined_call_operand.vmem [shape: bf16[128,128], index: 5, kind: input, shape index: {}]
  %s6 = inlined_call_operand.vmem [shape: f32[1,128], index: 6, kind: input, shape index: {}]
  %s7 = inlined_call_operand.hbm [shape: f32[8,128], index: 7, kind: output, shape index: {}]
  %s8 = sld [smem:[#allocation0]]
  $region38: #{cnn_forward.5} parent=0
    _
  %s10 = ssub.s32 1, %s8
  %s11 = scalar_select 0, %s10, %s8
  $region1: #{cnn_forward.5} parent=0
    #allocation2 [shape = 'u8[4096]{0}', space=vmem, size = 0x1000, scoped, tag = 'output window, operand 0, single buffered']
    #allocation3 [shape = 's32[1]{0}', space=sflag, size = 0x4, scoped, tag = 'scoped memory for cnn_forward.5']
    %12 = vsyncpa [#allocation3], 0
    // Predicated region
    $region2: #{cnn_forward.5} parent=1 // pred_check
      _
    $region3: #{cnn_forward.5} parent=1 // pred_check_branch
      %14 = sbr.rel (0) target = $region5
    $region4: #{cnn_forward.5} parent=1 // pred_region
      _
    $region5: #{cnn_forward.5} parent=1 // pred_fallthru
      _
    // Predicated region
    $region6: #{cnn_forward.5} parent=1 // pred_check
      _
    $region7: #{cnn_forward.5} parent=1 // pred_check_branch
      %16 = sbr.rel (0) target = $region9
    $region8: #{cnn_forward.5} parent=1 // pred_region
      _
    $region9: #{cnn_forward.5} parent=1 // pred_fallthru
      _
    // Predicated region
    $region10: #{cnn_forward.5} parent=1 // pred_check
      _
    $region11: #{cnn_forward.5} parent=1 // pred_check_branch
      %18 = sbr.rel (0) target = $region13
    $region12: #{cnn_forward.5} parent=1 // pred_region
      _
    $region13: #{cnn_forward.5} parent=1 // pred_fallthru
      _
    // Predicated region
    $region14: #{cnn_forward.5} parent=1 // pred_check
      _
    $region15: #{cnn_forward.5} parent=1 // pred_check_branch
      %20 = sbr.rel (0) target = $region17
    $region16: #{cnn_forward.5} parent=1 // pred_region
      _
    $region17: #{cnn_forward.5} parent=1 // pred_fallthru
      _
    // Predicated region
    $region18: #{cnn_forward.5} parent=1 // pred_check
      _
    $region19: #{cnn_forward.5} parent=1 // pred_check_branch
      %22 = sbr.rel (0) target = $region21
    $region20: #{cnn_forward.5} parent=1 // pred_region
      _
    $region21: #{cnn_forward.5} parent=1 // pred_fallthru
      _
    // Predicated region
    $region22: #{cnn_forward.5} parent=1 // pred_check
      _
    $region23: #{cnn_forward.5} parent=1 // pred_check_branch
      %24 = sbr.rel (0) target = $region25
    $region24: #{cnn_forward.5} parent=1 // pred_region
      _
    $region25: #{cnn_forward.5} parent=1 // pred_fallthru
      _
    // Predicated region
    $region26: #{cnn_forward.5} parent=1 // pred_check
      _
    $region27: #{cnn_forward.5} parent=1 // pred_check_branch
      %26 = sbr.rel (0) target = $region29
    $region28: #{cnn_forward.5} parent=1 // pred_region
      _
    $region29: #{cnn_forward.5} parent=1 // pred_fallthru
      _
    %v28 = vld [vmem:[%s0] sm:$0xff]
    %v29 = vld [vmem:[%s0 + $0x8] sm:$0xff]
    %v30 = vld [vmem:[%s0 + $0x10] sm:$0xf]
    %v31 = vld [vmem:[%s0 + $0x14] sm:$0xff]
    %v32 = vld [vmem:[%s0 + $0x1c] sm:$0xff]
    %v33 = vld [vmem:[%s0 + $0x24] sm:$0xf]
    %v34 = vld [vmem:[%s0 + $0x28] sm:$0xff]
    %v35 = vld [vmem:[%s0 + $0x30] sm:$0xff]
    %v36 = vld [vmem:[%s0 + $0x38] sm:$0xf]
    %v37 = vld [vmem:[%s0 + $0x3c] sm:$0xff]
    %v38 = vld [vmem:[%s0 + $0x44] sm:$0xff]
    %v39 = vld [vmem:[%s0 + $0x4c] sm:$0xf]
    %v40 = vld [vmem:[%s0 + $0x50] sm:$0xff]
    %v41 = vld [vmem:[%s0 + $0x58] sm:$0xff]
    %v42 = vld [vmem:[%s0 + $0x60] sm:$0xf]
    %v43 = vld [vmem:[%s0 + $0x64] sm:$0xff]
    %v44 = vld [vmem:[%s0 + $0x6c] sm:$0xff]
    %v45 = vld [vmem:[%s0 + $0x74] sm:$0xf]
    %v46 = vld [vmem:[%s0 + $0x78] sm:$0xff]
    %v47 = vld [vmem:[%s0 + $0x80] sm:$0xff]
    %v48 = vld [vmem:[%s0 + $0x88] sm:$0xf]
    %v49 = vld [vmem:[%s0 + $0x8c] sm:$0xff]
    %v50 = vld [vmem:[%s0 + $0x94] sm:$0xff]
    %v51 = vld [vmem:[%s0 + $0x9c] sm:$0xf]
    %v52 = vld [vmem:[%s0 + $0xa0] sm:$0xff]
    %v53 = vld [vmem:[%s0 + $0xa8] sm:$0xff]
    %v54 = vld [vmem:[%s0 + $0xb0] sm:$0xf]
    %v55 = vld [vmem:[%s0 + $0xb4] sm:$0xff]
    %v56 = vld [vmem:[%s0 + $0xbc] sm:$0xff]
    %v57 = vld [vmem:[%s0 + $0xc4] sm:$0xf]
    %v58 = vld [vmem:[%s0 + $0xc8] sm:$0xff]
    %v59 = vld [vmem:[%s0 + $0xd0] sm:$0xff]
    %v60 = vld [vmem:[%s0 + $0xd8] sm:$0xf]
    %v61 = vld [vmem:[%s0 + $0xdc] sm:$0xff]
    %v62 = vld [vmem:[%s0 + $0xe4] sm:$0xff]
    %v63 = vld [vmem:[%s0 + $0xec] sm:$0xf]
    %v64 = vld [vmem:[%s0 + $0xf0] sm:$0xff]
    %v65 = vld [vmem:[%s0 + $0xf8] sm:$0xff]
    %v66 = vld [vmem:[%s0 + $0x100] sm:$0xf]
    %v67 = vld [vmem:[%s0 + $0x104] sm:$0xff]
    %v68 = vld [vmem:[%s0 + $0x10c] sm:$0xff]
    %v69 = vld [vmem:[%s0 + $0x114] sm:$0xf]
    %v70 = vld [vmem:[%s0 + $0x118] sm:$0xff]
    %v71 = vld [vmem:[%s0 + $0x120] sm:$0xff]
    %v72 = vld [vmem:[%s0 + $0x128] sm:$0xf]
    %v73 = vld [vmem:[%s0 + $0x12c] sm:$0xff]
    %v74 = vld [vmem:[%s0 + $0x134] sm:$0xff]
    %v75 = vld [vmem:[%s0 + $0x13c] sm:$0xf]
    %v76 = vld [vmem:[%s1] sm:$0xf]
    %v77 = vld [vmem:[%s1 + $0x4] sm:$0xf]
    %v78 = vld [vmem:[%s1 + $0x8] sm:$0xf]
    %v79 = vld [vmem:[%s1 + $0xc] sm:$0xf]
    %v80 = vld [vmem:[%s1 + $0x10] sm:$0xf]
    %v81 = vld [vmem:[%s1 + $0x14] sm:$0xf]
    %v82 = vld [vmem:[%s1 + $0x18] sm:$0xf]
    %v83 = vld [vmem:[%s1 + $0x1c] sm:$0xf]
    %v84 = vld [vmem:[%s1 + $0x20] sm:$0xf]
    %v85 = vld [vmem:[%s1 + $0x24] sm:$0xf]
    %v86 = vld [vmem:[%s1 + $0x28] sm:$0xf]
    %v87 = vld [vmem:[%s1 + $0x2c] sm:$0xf]
    %v88 = vld [vmem:[%s1 + $0x30] sm:$0xf]
    %v89 = vld [vmem:[%s1 + $0x34] sm:$0xf]
    %v90 = vld [vmem:[%s1 + $0x38] sm:$0xf]
    %v91 = vld [vmem:[%s1 + $0x3c] sm:$0xf]
    %v92 = vld [vmem:[%s1 + $0x40] sm:$0xf]
    %v93 = vld [vmem:[%s1 + $0x44] sm:$0xf]
    %v94 = vld [vmem:[%s1 + $0x48] sm:$0xf]
    %v95 = vld [vmem:[%s1 + $0x4c] sm:$0xf]
    %v96 = vld [vmem:[%s1 + $0x50] sm:$0xf]
    %v97 = vld [vmem:[%s1 + $0x54] sm:$0xf]
    %v98 = vld [vmem:[%s1 + $0x58] sm:$0xf]
    %v99 = vld [vmem:[%s1 + $0x5c] sm:$0xf]
    %v100 = vld [vmem:[%s1 + $0x60] sm:$0xf]
    %v101 = vld [vmem:[%s1 + $0x64] sm:$0xf]
    %v102 = vld [vmem:[%s1 + $0x68] sm:$0xf]
    %v103 = vld [vmem:[%s1 + $0x6c] sm:$0xf]
    %v104 = vld [vmem:[%s1 + $0x70] sm:$0xf]
    %v105 = vld [vmem:[%s1 + $0x74] sm:$0xf]
    %v106 = vld [vmem:[%s1 + $0x78] sm:$0xf]
    %v107 = vld [vmem:[%s1 + $0x7c] sm:$0xf]
    %v108 = vld [vmem:[%s1 + $0x80] sm:$0xf]
    %v109 = vld [vmem:[%s1 + $0x84] sm:$0xf]
    %v110 = vld [vmem:[%s1 + $0x88] sm:$0xf]
    %v111 = vld [vmem:[%s1 + $0x8c] sm:$0xf]
    %v112 = vld [vmem:[%s1 + $0x90] sm:$0xf]
    %v113 = vld [vmem:[%s1 + $0x94] sm:$0xf]
    %v114 = vld [vmem:[%s1 + $0x98] sm:$0xf]
    %v115 = vld [vmem:[%s1 + $0x9c] sm:$0xf]
    %v116 = vld [vmem:[%s1 + $0xa0] sm:$0xf]
    %v117 = vld [vmem:[%s1 + $0xa4] sm:$0xf]
    %v118 = vld [vmem:[%s1 + $0xa8] sm:$0xf]
    %v119 = vld [vmem:[%s1 + $0xac] sm:$0xf]
    %v120 = vld [vmem:[%s1 + $0xb0] sm:$0xf]
    %v121 = vld [vmem:[%s1 + $0xb4] sm:$0xf]
    %v122 = vld [vmem:[%s1 + $0xb8] sm:$0xf]
    %v123 = vld [vmem:[%s1 + $0xbc] sm:$0xf]
    %v124 = vld [vmem:[%s1 + $0xc0] sm:$0xf]
    %v125 = vld [vmem:[%s1 + $0xc4] sm:$0xf]
    %v126 = vld [vmem:[%s1 + $0xc8] sm:$0xf]
    %v127 = vld [vmem:[%s1 + $0xcc] sm:$0xf]
    %v128 = vld [vmem:[%s1 + $0xd0] sm:$0xf]
    %v129 = vld [vmem:[%s1 + $0xd4] sm:$0xf]
    %v130 = vld [vmem:[%s1 + $0xd8] sm:$0xf]
    %v131 = vld [vmem:[%s1 + $0xdc] sm:$0xf]
    %v132 = vld [vmem:[%s1 + $0xe0] sm:$0xf]
    %v133 = vld [vmem:[%s1 + $0xe4] sm:$0xf]
    %v134 = vld [vmem:[%s1 + $0xe8] sm:$0xf]
    %v135 = vld [vmem:[%s1 + $0xec] sm:$0xf]
    %v136 = vld [vmem:[%s1 + $0xf0] sm:$0xf]
    %v137 = vld [vmem:[%s1 + $0xf4] sm:$0xf]
    %v138 = vld [vmem:[%s1 + $0xf8] sm:$0xf]
    %v139 = vld [vmem:[%s1 + $0xfc] sm:$0xf]
    %v140 = vld [vmem:[%s1 + $0x100] sm:$0xf]
    %v141 = vld [vmem:[%s1 + $0x104] sm:$0xf]
    %v142 = vld [vmem:[%s1 + $0x108] sm:$0xf]
    %v143 = vld [vmem:[%s1 + $0x10c] sm:$0xf]
    %v144 = vld [vmem:[%s1 + $0x110] sm:$0xf]
    %v145 = vld [vmem:[%s1 + $0x114] sm:$0xf]
    %v146 = vld [vmem:[%s1 + $0x118] sm:$0xf]
    %v147 = vld [vmem:[%s1 + $0x11c] sm:$0xf]
    %v196 = vunpack.c.l.b16 %v28
    %v197 = vunpack.c.h.b16 %v28
    %v198 = vunpack.c.l.b16 %v29
    %v199 = vunpack.c.h.b16 %v29
    %v200 = vunpack.c.l.b16 %v30
    %v201 = vunpack.c.l.b16 %v31
    %v202 = vunpack.c.h.b16 %v31
    %v203 = vunpack.c.l.b16 %v32
    %v204 = vunpack.c.h.b16 %v32
    %v205 = vunpack.c.l.b16 %v33
    %v206 = vunpack.c.l.b16 %v34
    %v207 = vunpack.c.h.b16 %v34
    %v208 = vunpack.c.l.b16 %v35
    %v209 = vunpack.c.h.b16 %v35
    %v210 = vunpack.c.l.b16 %v36
    %v211 = vunpack.c.l.b16 %v37
    %v212 = vunpack.c.h.b16 %v37
    %v213 = vunpack.c.l.b16 %v38
    %v214 = vunpack.c.h.b16 %v38
    %v215 = vunpack.c.l.b16 %v39
    %v216 = vunpack.c.l.b16 %v40
    %v217 = vunpack.c.h.b16 %v40
    %v218 = vunpack.c.l.b16 %v41
    %v219 = vunpack.c.h.b16 %v41
    %v220 = vunpack.c.l.b16 %v42
    %v221 = vunpack.c.l.b16 %v43
    %v222 = vunpack.c.h.b16 %v43
    %v223 = vunpack.c.l.b16 %v44
    %v224 = vunpack.c.h.b16 %v44
    %v225 = vunpack.c.l.b16 %v45
    %v226 = vunpack.c.l.b16 %v46
    %v227 = vunpack.c.h.b16 %v46
    %v228 = vunpack.c.l.b16 %v47
    %v229 = vunpack.c.h.b16 %v47
    %v230 = vunpack.c.l.b16 %v48
    %v231 = vunpack.c.l.b16 %v49
    %v232 = vunpack.c.h.b16 %v49
    %v233 = vunpack.c.l.b16 %v50
    %v234 = vunpack.c.h.b16 %v50
    %v235 = vunpack.c.l.b16 %v51
    %v236 = vunpack.c.l.b16 %v52
    %v237 = vunpack.c.h.b16 %v52
    %v238 = vunpack.c.l.b16 %v53
    %v239 = vunpack.c.h.b16 %v53
    %v240 = vunpack.c.l.b16 %v54
    %v241 = vunpack.c.l.b16 %v55
    %v242 = vunpack.c.h.b16 %v55
    %v243 = vunpack.c.l.b16 %v56
    %v244 = vunpack.c.h.b16 %v56
    %v245 = vunpack.c.l.b16 %v57
    %v246 = vunpack.c.l.b16 %v58
    %v247 = vunpack.c.h.b16 %v58
    %v248 = vunpack.c.l.b16 %v59
    %v249 = vunpack.c.h.b16 %v59
    %v250 = vunpack.c.l.b16 %v60
    %v251 = vunpack.c.l.b16 %v61
    %v252 = vunpack.c.h.b16 %v61
    %v253 = vunpack.c.l.b16 %v62
    %v254 = vunpack.c.h.b16 %v62
    %v255 = vunpack.c.l.b16 %v63
    %v256 = vunpack.c.l.b16 %v64
    %v257 = vunpack.c.h.b16 %v64
    %v258 = vunpack.c.l.b16 %v65
    %v259 = vunpack.c.h.b16 %v65
    %v260 = vunpack.c.l.b16 %v66
    %v261 = vunpack.c.l.b16 %v67
    %v262 = vunpack.c.h.b16 %v67
    %v263 = vunpack.c.l.b16 %v68
    %v264 = vunpack.c.h.b16 %v68
    %v265 = vunpack.c.l.b16 %v69
    %v266 = vunpack.c.l.b16 %v70
    %v267 = vunpack.c.h.b16 %v70
    %v268 = vunpack.c.l.b16 %v71
    %v269 = vunpack.c.h.b16 %v71
    %v270 = vunpack.c.l.b16 %v72
    %v271 = vunpack.c.l.b16 %v73
    %v272 = vunpack.c.h.b16 %v73
    %v273 = vunpack.c.l.b16 %v74
    %v274 = vunpack.c.h.b16 %v74
    %v275 = vunpack.c.l.b16 %v75
    %v276 = vpack.c.b16 %v201, %v196
    %v277 = vpack.c.b16 %v202, %v197
    %v278 = vpack.c.b16 %v203, %v198
    %v279 = vpack.c.b16 %v204, %v199
    %v280 = vpack.c.b16 %v205, %v200
    %v281 = vpack.c.b16 %v211, %v206
    %v282 = vpack.c.b16 %v212, %v207
    %v283 = vpack.c.b16 %v213, %v208
    %v284 = vpack.c.b16 %v214, %v209
    %v285 = vpack.c.b16 %v215, %v210
    %v286 = vpack.c.b16 %v221, %v216
    %v287 = vpack.c.b16 %v222, %v217
    %v288 = vpack.c.b16 %v223, %v218
    %v289 = vpack.c.b16 %v224, %v219
    %v290 = vpack.c.b16 %v225, %v220
    %v291 = vpack.c.b16 %v231, %v226
    %v292 = vpack.c.b16 %v232, %v227
    %v293 = vpack.c.b16 %v233, %v228
    %v294 = vpack.c.b16 %v234, %v229
    %v295 = vpack.c.b16 %v235, %v230
    %v296 = vpack.c.b16 %v241, %v236
    %v297 = vpack.c.b16 %v242, %v237
    %v298 = vpack.c.b16 %v243, %v238
    %v299 = vpack.c.b16 %v244, %v239
    %v300 = vpack.c.b16 %v245, %v240
    %v301 = vpack.c.b16 %v251, %v246
    %v302 = vpack.c.b16 %v252, %v247
    %v303 = vpack.c.b16 %v253, %v248
    %v304 = vpack.c.b16 %v254, %v249
    %v305 = vpack.c.b16 %v255, %v250
    %v306 = vpack.c.b16 %v261, %v256
    %v307 = vpack.c.b16 %v262, %v257
    %v308 = vpack.c.b16 %v263, %v258
    %v309 = vpack.c.b16 %v264, %v259
    %v310 = vpack.c.b16 %v265, %v260
    %v311 = vpack.c.b16 %v271, %v266
    %v312 = vpack.c.b16 %v272, %v267
    %v313 = vpack.c.b16 %v273, %v268
    %v314 = vpack.c.b16 %v274, %v269
    %v315 = vpack.c.b16 %v275, %v270
    %v420 = vunpack.c.l.b16 %v76
    %v421 = vunpack.c.l.b16 %v77
    %v422 = vunpack.c.l.b16 %v78
    %v423 = vunpack.c.l.b16 %v79
    %v424 = vunpack.c.l.b16 %v80
    %v425 = vunpack.c.l.b16 %v81
    %v426 = vunpack.c.l.b16 %v82
    %v427 = vunpack.c.l.b16 %v83
    %v428 = vunpack.c.l.b16 %v84
    %v429 = vunpack.c.l.b16 %v85
    %v430 = vunpack.c.l.b16 %v86
    %v431 = vunpack.c.l.b16 %v87
    %v432 = vunpack.c.l.b16 %v88
    %v433 = vunpack.c.l.b16 %v89
    %v434 = vunpack.c.l.b16 %v90
    %v435 = vunpack.c.l.b16 %v91
    %v436 = vunpack.c.l.b16 %v92
    %v437 = vunpack.c.l.b16 %v93
    %v438 = vunpack.c.l.b16 %v94
    %v439 = vunpack.c.l.b16 %v95
    %v440 = vunpack.c.l.b16 %v96
    %v441 = vunpack.c.l.b16 %v97
    %v442 = vunpack.c.l.b16 %v98
    %v443 = vunpack.c.l.b16 %v99
    %v444 = vunpack.c.l.b16 %v100
    %v445 = vunpack.c.l.b16 %v101
    %v446 = vunpack.c.l.b16 %v102
    %v447 = vunpack.c.l.b16 %v103
    %v448 = vunpack.c.l.b16 %v104
    %v449 = vunpack.c.l.b16 %v105
    %v450 = vunpack.c.l.b16 %v106
    %v451 = vunpack.c.l.b16 %v107
    %v452 = vunpack.c.l.b16 %v108
    %v453 = vunpack.c.l.b16 %v109
    %v454 = vunpack.c.l.b16 %v110
    %v455 = vunpack.c.l.b16 %v111
    %v456 = vunpack.c.l.b16 %v112
    %v457 = vunpack.c.l.b16 %v113
    %v458 = vunpack.c.l.b16 %v114
    %v459 = vunpack.c.l.b16 %v115
    %v460 = vunpack.c.l.b16 %v116
    %v461 = vunpack.c.l.b16 %v117
    %v462 = vunpack.c.l.b16 %v118
    %v463 = vunpack.c.l.b16 %v119
    %v464 = vunpack.c.l.b16 %v120
    %v465 = vunpack.c.l.b16 %v121
    %v466 = vunpack.c.l.b16 %v122
    %v467 = vunpack.c.l.b16 %v123
    %v468 = vunpack.c.l.b16 %v124
    %v469 = vunpack.c.l.b16 %v125
    %v470 = vunpack.c.l.b16 %v126
    %v471 = vunpack.c.l.b16 %v127
    %v472 = vunpack.c.l.b16 %v128
    %v473 = vunpack.c.l.b16 %v129
    %v474 = vunpack.c.l.b16 %v130
    %v475 = vunpack.c.l.b16 %v131
    %v476 = vunpack.c.l.b16 %v132
    %v477 = vunpack.c.l.b16 %v133
    %v478 = vunpack.c.l.b16 %v134
    %v479 = vunpack.c.l.b16 %v135
    %v480 = vunpack.c.l.b16 %v136
    %v481 = vunpack.c.l.b16 %v137
    %v482 = vunpack.c.l.b16 %v138
    %v483 = vunpack.c.l.b16 %v139
    %v484 = vunpack.c.l.b16 %v140
    %v485 = vunpack.c.l.b16 %v141
    %v486 = vunpack.c.l.b16 %v142
    %v487 = vunpack.c.l.b16 %v143
    %v488 = vunpack.c.l.b16 %v144
    %v489 = vunpack.c.l.b16 %v145
    %v490 = vunpack.c.l.b16 %v146
    %v491 = vunpack.c.l.b16 %v147
    %v492 = vpack.c.b16 %v421, %v420
    %v493 = vpack.c.b16 %v423, %v422
    %v494 = vpack.c.b16 %v425, %v424
    %v495 = vpack.c.b16 %v427, %v426
    %v496 = vpack.c.b16 %v429, %v428
    %v497 = vpack.c.b16 %v431, %v430
    %v498 = vpack.c.b16 %v433, %v432
    %v499 = vpack.c.b16 %v435, %v434
    %v500 = vpack.c.b16 %v437, %v436
    %v501 = vpack.c.b16 %v439, %v438
    %v502 = vpack.c.b16 %v441, %v440
    %v503 = vpack.c.b16 %v443, %v442
    %v504 = vpack.c.b16 %v445, %v444
    %v505 = vpack.c.b16 %v447, %v446
    %v506 = vpack.c.b16 %v449, %v448
    %v507 = vpack.c.b16 %v451, %v450
    %v508 = vpack.c.b16 %v453, %v452
    %v509 = vpack.c.b16 %v455, %v454
    %v510 = vpack.c.b16 %v457, %v456
    %v511 = vpack.c.b16 %v459, %v458
    %v512 = vpack.c.b16 %v461, %v460
    %v513 = vpack.c.b16 %v463, %v462
    %v514 = vpack.c.b16 %v465, %v464
    %v515 = vpack.c.b16 %v467, %v466
    %v516 = vpack.c.b16 %v469, %v468
    %v517 = vpack.c.b16 %v471, %v470
    %v518 = vpack.c.b16 %v473, %v472
    %v519 = vpack.c.b16 %v475, %v474
    %v520 = vpack.c.b16 %v477, %v476
    %v521 = vpack.c.b16 %v479, %v478
    %v522 = vpack.c.b16 %v481, %v480
    %v523 = vpack.c.b16 %v483, %v482
    %v524 = vpack.c.b16 %v485, %v484
    %v525 = vpack.c.b16 %v487, %v486
    %v526 = vpack.c.b16 %v489, %v488
    %v527 = vpack.c.b16 %v491, %v490
    %vm564 = vcmask 523264
    %v566 = vsel %vm564, %v280, 0
    %v569 = vsel %vm564, %v285, 0
    %v572 = vsel %vm564, %v290, 0
    %v575 = vsel %vm564, %v295, 0
    %v578 = vsel %vm564, %v300, 0
    %v581 = vsel %vm564, %v305, 0
    %v584 = vsel %vm564, %v310, 0
    %v587 = vsel %vm564, %v315, 0
    %589 = vmatprep.subr.bf16.mxu0 0
    %590 = vmatpush1.bf16.msra.mxu0 %v499
    %591 = vmatprep.subr.bf16.mxu0 0
    %592 = vmatpush1.bf16.msra.mxu0 %v498
    %593 = vmatprep.subr.bf16.mxu0 0
    %594 = vmatpush1.bf16.msra.mxu0 %v497
    %595 = vmatprep.subr.bf16.mxu0 0
    %596 = vmatpush1.bf16.msra.mxu0 %v496
    %597 = vmatprep.subr.bf16.mxu0 0
    %598 = vmatpush1.bf16.msra.mxu0 %v495
    %599 = vmatprep.subr.bf16.mxu0 0
    %600 = vmatpush1.bf16.msra.mxu0 %v494
    %601 = vmatprep.subr.bf16.mxu0 0
    %602 = vmatpush1.bf16.msra.mxu0 %v493
    %603 = vmatprep.subr.bf16.mxu0 0
    %604 = vmatpush1.bf16.msra.mxu0 %v492
    %605 = vmatprep.subr.bf16.mxu0 0
    %606 = vmatpush2.bf16.msra.mxu0 %v507
    %607 = vmatprep.subr.bf16.mxu0 0
    %608 = vmatpush2.bf16.msra.mxu0 %v506
    %609 = vmatprep.subr.bf16.mxu0 0
    %610 = vmatpush2.bf16.msra.mxu0 %v505
    %611 = vmatprep.subr.bf16.mxu0 0
    %612 = vmatpush2.bf16.msra.mxu0 %v504
    %613 = vmatprep.subr.bf16.mxu0 0
    %614 = vmatpush2.bf16.msra.mxu0 %v503
    %615 = vmatprep.subr.bf16.mxu0 0
    %616 = vmatpush2.bf16.msra.mxu0 %v502
    %617 = vmatprep.subr.bf16.mxu0 0
    %618 = vmatpush2.bf16.msra.mxu0 %v501
    %619 = vmatprep.subr.bf16.mxu0 0
    %620 = vmatpush2.bf16.msra.mxu0 %v500
    %621 = vmatprep.mubr.bf16.mxu0 %v277
    %622 = vmatmul.mubr.bf16.gmra.mxu0 %v276
    %v623 = vpop.f32.mrf.mxu0
    %v624 = vadd.f32 0.0, %v623
    %v625 = vpop.f32.mrf.mxu0
    %v626 = vpop.f32.mrf.mxu0
    %v627 = vadd.f32 0.0, %v626
    %v628 = vpop.f32.mrf.mxu0
    %629 = vmatprep.mubr.bf16.mxu0 %v282
    %630 = vmatmul.mubr.bf16.gmra.mxu0 %v281
    %v631 = vpop.f32.mrf.mxu0
    %v632 = vadd.f32 0.0, %v631
    %v633 = vpop.f32.mrf.mxu0
    %v634 = vpop.f32.mrf.mxu0
    %v635 = vadd.f32 0.0, %v634
    %v636 = vpop.f32.mrf.mxu0
    %637 = vmatprep.mubr.bf16.mxu0 %v287
    %638 = vmatmul.mubr.bf16.gmra.mxu0 %v286
    %v639 = vpop.f32.mrf.mxu0
    %v640 = vadd.f32 0.0, %v639
    %v641 = vpop.f32.mrf.mxu0
    %v642 = vpop.f32.mrf.mxu0
    %v643 = vadd.f32 0.0, %v642
    %v644 = vpop.f32.mrf.mxu0
    %645 = vmatprep.mubr.bf16.mxu0 %v292
    %646 = vmatmul.mubr.bf16.gmra.mxu0 %v291
    %v647 = vpop.f32.mrf.mxu0
    %v648 = vadd.f32 0.0, %v647
    %v649 = vpop.f32.mrf.mxu0
    %v650 = vpop.f32.mrf.mxu0
    %v651 = vadd.f32 0.0, %v650
    %v652 = vpop.f32.mrf.mxu0
    %653 = vmatprep.mubr.bf16.mxu0 %v297
    %654 = vmatmul.mubr.bf16.gmra.mxu0 %v296
    %v655 = vpop.f32.mrf.mxu0
    %v656 = vadd.f32 0.0, %v655
    %v657 = vpop.f32.mrf.mxu0
    %v658 = vpop.f32.mrf.mxu0
    %v659 = vadd.f32 0.0, %v658
    %v660 = vpop.f32.mrf.mxu0
    %661 = vmatprep.mubr.bf16.mxu0 %v302
    %662 = vmatmul.mubr.bf16.gmra.mxu0 %v301
    %v663 = vpop.f32.mrf.mxu0
    %v664 = vadd.f32 0.0, %v663
    %v665 = vpop.f32.mrf.mxu0
    %v666 = vpop.f32.mrf.mxu0
    %v667 = vadd.f32 0.0, %v666
    %v668 = vpop.f32.mrf.mxu0
    %669 = vmatprep.mubr.bf16.mxu0 %v307
    %670 = vmatmul.mubr.bf16.gmra.mxu0 %v306
    %v671 = vpop.f32.mrf.mxu0
    %v672 = vadd.f32 0.0, %v671
    %v673 = vpop.f32.mrf.mxu0
    %v674 = vpop.f32.mrf.mxu0
    %v675 = vadd.f32 0.0, %v674
    %v676 = vpop.f32.mrf.mxu0
    %677 = vmatprep.mubr.bf16.mxu0 %v312
    %678 = vmatmul.mubr.bf16.gmra.mxu0 %v311
    %v679 = vpop.f32.mrf.mxu0
    %v680 = vadd.f32 0.0, %v679
    %v681 = vpop.f32.mrf.mxu0
    %v682 = vpop.f32.mrf.mxu0
    %v683 = vadd.f32 0.0, %v682
    %v684 = vpop.f32.mrf.mxu0
    %685 = vdwg.mxu0
    %686 = vmatprep.subr.bf16.mxu0 0
    %687 = vmatpush1.bf16.msra.mxu0 %v515
    %688 = vmatprep.subr.bf16.mxu0 0
    %689 = vmatpush1.bf16.msra.mxu0 %v514
    %690 = vmatprep.subr.bf16.mxu0 0
    %691 = vmatpush1.bf16.msra.mxu0 %v513
    %692 = vmatprep.subr.bf16.mxu0 0
    %693 = vmatpush1.bf16.msra.mxu0 %v512
    %694 = vmatprep.subr.bf16.mxu0 0
    %695 = vmatpush1.bf16.msra.mxu0 %v511
    %696 = vmatprep.subr.bf16.mxu0 0
    %697 = vmatpush1.bf16.msra.mxu0 %v510
    %698 = vmatprep.subr.bf16.mxu0 0
    %699 = vmatpush1.bf16.msra.mxu0 %v509
    %700 = vmatprep.subr.bf16.mxu0 0
    %701 = vmatpush1.bf16.msra.mxu0 %v508
    %702 = vmatprep.subr.bf16.mxu0 0
    %703 = vmatpush2.bf16.msra.mxu0 %v523
    %704 = vmatprep.subr.bf16.mxu0 0
    %705 = vmatpush2.bf16.msra.mxu0 %v522
    %706 = vmatprep.subr.bf16.mxu0 0
    %707 = vmatpush2.bf16.msra.mxu0 %v521
    %708 = vmatprep.subr.bf16.mxu0 0
    %709 = vmatpush2.bf16.msra.mxu0 %v520
    %710 = vmatprep.subr.bf16.mxu0 0
    %711 = vmatpush2.bf16.msra.mxu0 %v519
    %712 = vmatprep.subr.bf16.mxu0 0
    %713 = vmatpush2.bf16.msra.mxu0 %v518
    %714 = vmatprep.subr.bf16.mxu0 0
    %715 = vmatpush2.bf16.msra.mxu0 %v517
    %716 = vmatprep.subr.bf16.mxu0 0
    %717 = vmatpush2.bf16.msra.mxu0 %v516
    %718 = vmatprep.mubr.bf16.mxu0 %v279
    %719 = vmatmul.mubr.bf16.gmra.mxu0 %v278
    %v720 = vpop.f32.mrf.mxu0
    %v721 = vadd.f32 %v624, %v720
    %v722 = vpop.f32.mrf.mxu0
    %v723 = vpop.f32.mrf.mxu0
    %v724 = vadd.f32 %v627, %v723
    %v725 = vpop.f32.mrf.mxu0
    %726 = vmatprep.mubr.bf16.mxu0 %v284
    %727 = vmatmul.mubr.bf16.gmra.mxu0 %v283
    %v728 = vpop.f32.mrf.mxu0
    %v729 = vadd.f32 %v632, %v728
    %v730 = vpop.f32.mrf.mxu0
    %v731 = vpop.f32.mrf.mxu0
    %v732 = vadd.f32 %v635, %v731
    %v733 = vpop.f32.mrf.mxu0
    %734 = vmatprep.mubr.bf16.mxu0 %v289
    %735 = vmatmul.mubr.bf16.gmra.mxu0 %v288
    %v736 = vpop.f32.mrf.mxu0
    %v737 = vadd.f32 %v640, %v736
    %v738 = vpop.f32.mrf.mxu0
    %v739 = vpop.f32.mrf.mxu0
    %v740 = vadd.f32 %v643, %v739
    %v741 = vpop.f32.mrf.mxu0
    %742 = vmatprep.mubr.bf16.mxu0 %v294
    %743 = vmatmul.mubr.bf16.gmra.mxu0 %v293
    %v744 = vpop.f32.mrf.mxu0
    %v745 = vadd.f32 %v648, %v744
    %v746 = vpop.f32.mrf.mxu0
    %v747 = vpop.f32.mrf.mxu0
    %v748 = vadd.f32 %v651, %v747
    %v749 = vpop.f32.mrf.mxu0
    %750 = vmatprep.mubr.bf16.mxu0 %v299
    %751 = vmatmul.mubr.bf16.gmra.mxu0 %v298
    %v752 = vpop.f32.mrf.mxu0
    %v753 = vadd.f32 %v656, %v752
    %v754 = vpop.f32.mrf.mxu0
    %v755 = vpop.f32.mrf.mxu0
    %v756 = vadd.f32 %v659, %v755
    %v757 = vpop.f32.mrf.mxu0
    %758 = vmatprep.mubr.bf16.mxu0 %v304
    %759 = vmatmul.mubr.bf16.gmra.mxu0 %v303
    %v760 = vpop.f32.mrf.mxu0
    %v761 = vadd.f32 %v664, %v760
    %v762 = vpop.f32.mrf.mxu0
    %v763 = vpop.f32.mrf.mxu0
    %v764 = vadd.f32 %v667, %v763
    %v765 = vpop.f32.mrf.mxu0
    %766 = vmatprep.mubr.bf16.mxu0 %v309
    %767 = vmatmul.mubr.bf16.gmra.mxu0 %v308
    %v768 = vpop.f32.mrf.mxu0
    %v769 = vadd.f32 %v672, %v768
    %v770 = vpop.f32.mrf.mxu0
    %v771 = vpop.f32.mrf.mxu0
    %v772 = vadd.f32 %v675, %v771
    %v773 = vpop.f32.mrf.mxu0
    %774 = vmatprep.mubr.bf16.mxu0 %v314
    %775 = vmatmul.mubr.bf16.gmra.mxu0 %v313
    %v776 = vpop.f32.mrf.mxu0
    %v777 = vadd.f32 %v680, %v776
    %v778 = vpop.f32.mrf.mxu0
    %v779 = vpop.f32.mrf.mxu0
    %v780 = vadd.f32 %v683, %v779
    %v781 = vpop.f32.mrf.mxu0
    %782 = vdwg.mxu0
    %783 = vmatprep.subr.bf16.mxu0 0
    %784 = vmatpush1.bf16.msra.mxu0 0
    %785 = vmatprep.subr.bf16.mxu0 0
    %786 = vmatpush1.bf16.msra.mxu0 0
    %787 = vmatprep.subr.bf16.mxu0 0
    %788 = vmatpush1.bf16.msra.mxu0 0
    %789 = vmatprep.subr.bf16.mxu0 0
    %790 = vmatpush1.bf16.msra.mxu0 0
    %791 = vmatprep.subr.bf16.mxu0 0
    %792 = vmatpush1.bf16.msra.mxu0 %v527
    %793 = vmatprep.subr.bf16.mxu0 0
    %794 = vmatpush1.bf16.msra.mxu0 %v526
    %795 = vmatprep.subr.bf16.mxu0 0
    %796 = vmatpush1.bf16.msra.mxu0 %v525
    %797 = vmatprep.subr.bf16.mxu0 0
    %798 = vmatpush1.bf16.msra.mxu0 %v524
    %799 = vmatprep.subr.bf16.mxu0 0
    %800 = vmatpush2.bf16.msra.mxu0 0
    %801 = vmatprep.subr.bf16.mxu0 0
    %802 = vmatpush2.bf16.msra.mxu0 0
    %803 = vmatprep.subr.bf16.mxu0 0
    %804 = vmatpush2.bf16.msra.mxu0 0
    %805 = vmatprep.subr.bf16.mxu0 0
    %806 = vmatpush2.bf16.msra.mxu0 0
    %807 = vmatprep.subr.bf16.mxu0 0
    %808 = vmatpush2.bf16.msra.mxu0 0
    %809 = vmatprep.subr.bf16.mxu0 0
    %810 = vmatpush2.bf16.msra.mxu0 0
    %811 = vmatprep.subr.bf16.mxu0 0
    %812 = vmatpush2.bf16.msra.mxu0 0
    %813 = vmatprep.subr.bf16.mxu0 0
    %814 = vmatpush2.bf16.msra.mxu0 0
    %815 = vmatprep.mubr.bf16.mxu0 0
    %816 = vmatmul.mubr.bf16.gmra.mxu0 %v566
    %v817 = vpop.f32.mrf.mxu0
    %v818 = vadd.f32 %v721, %v817
    %v819 = vpop.f32.mrf.mxu0
    %v820 = vpop.f32.mrf.mxu0
    %v821 = vadd.f32 %v724, %v820
    %v822 = vpop.f32.mrf.mxu0
    %823 = vmatprep.mubr.bf16.mxu0 0
    %824 = vmatmul.mubr.bf16.gmra.mxu0 %v569
    %v825 = vpop.f32.mrf.mxu0
    %v826 = vadd.f32 %v729, %v825
    %v827 = vpop.f32.mrf.mxu0
    %v828 = vpop.f32.mrf.mxu0
    %v829 = vadd.f32 %v732, %v828
    %v830 = vpop.f32.mrf.mxu0
    %831 = vmatprep.mubr.bf16.mxu0 0
    %832 = vmatmul.mubr.bf16.gmra.mxu0 %v572
    %v833 = vpop.f32.mrf.mxu0
    %v834 = vadd.f32 %v737, %v833
    %v835 = vpop.f32.mrf.mxu0
    %v836 = vpop.f32.mrf.mxu0
    %v837 = vadd.f32 %v740, %v836
    %v838 = vpop.f32.mrf.mxu0
    %839 = vmatprep.mubr.bf16.mxu0 0
    %840 = vmatmul.mubr.bf16.gmra.mxu0 %v575
    %v841 = vpop.f32.mrf.mxu0
    %v842 = vadd.f32 %v745, %v841
    %v843 = vpop.f32.mrf.mxu0
    %v844 = vpop.f32.mrf.mxu0
    %v845 = vadd.f32 %v748, %v844
    %v846 = vpop.f32.mrf.mxu0
    %847 = vmatprep.mubr.bf16.mxu0 0
    %848 = vmatmul.mubr.bf16.gmra.mxu0 %v578
    %v849 = vpop.f32.mrf.mxu0
    %v850 = vadd.f32 %v753, %v849
    %v851 = vpop.f32.mrf.mxu0
    %v852 = vpop.f32.mrf.mxu0
    %v853 = vadd.f32 %v756, %v852
    %v854 = vpop.f32.mrf.mxu0
    %855 = vmatprep.mubr.bf16.mxu0 0
    %856 = vmatmul.mubr.bf16.gmra.mxu0 %v581
    %v857 = vpop.f32.mrf.mxu0
    %v858 = vadd.f32 %v761, %v857
    %v859 = vpop.f32.mrf.mxu0
    %v860 = vpop.f32.mrf.mxu0
    %v861 = vadd.f32 %v764, %v860
    %v862 = vpop.f32.mrf.mxu0
    %863 = vmatprep.mubr.bf16.mxu0 0
    %864 = vmatmul.mubr.bf16.gmra.mxu0 %v584
    %v865 = vpop.f32.mrf.mxu0
    %v866 = vadd.f32 %v769, %v865
    %v867 = vpop.f32.mrf.mxu0
    %v868 = vpop.f32.mrf.mxu0
    %v869 = vadd.f32 %v772, %v868
    %v870 = vpop.f32.mrf.mxu0
    %871 = vmatprep.mubr.bf16.mxu0 0
    %872 = vmatmul.mubr.bf16.gmra.mxu0 %v587
    %v873 = vpop.f32.mrf.mxu0
    %v874 = vadd.f32 %v777, %v873
    %v875 = vpop.f32.mrf.mxu0
    %v876 = vpop.f32.mrf.mxu0
    %v877 = vadd.f32 %v780, %v876
    %v878 = vpop.f32.mrf.mxu0
    %879 = vdwg.mxu0
    %v880 = vmax.f32 %v818, %v834
    %v881 = vmax.f32 %v821, %v837
    %v882 = vmax.f32 %v826, %v842
    %v883 = vmax.f32 %v829, %v845
    %v884 = vmax.f32 %v850, %v866
    %v885 = vmax.f32 %v853, %v869
    %v886 = vmax.f32 %v858, %v874
    %v887 = vmax.f32 %v861, %v877
    %v888 = vmax.f32 %v880, %v884
    %v889 = vmax.f32 %v881, %v885
    %v890 = vmax.f32 %v882, %v886
    %v891 = vmax.f32 %v883, %v887
    %v892 = vld [vmem:[%s2] sm:$0x1]
    %v894 = vlaneseq
    %v895 = vshrl.u32 %v894, 7
    %v896 = vsub.s32 0, %v895
    %v897 = vrot.slane %v892, %v896
    %v899 = vadd.f32 %v888, %v897
    %v900 = vadd.f32 %v889, %v897
    %v901 = vadd.f32 %v890, %v897
    %v902 = vadd.f32 %v891, %v897
    %v903 = vmax.f32 %v899, 0.0
    %v904 = vmax.f32 %v900, 0.0
    %v905 = vmax.f32 %v901, 0.0
    %v906 = vmax.f32 %v902, 0.0
    %v907 = vpack.c.bf16 %v903, %v903
    %v908 = vld [vmem:[%s3] sm:$0xf]
    %v909 = vld [vmem:[%s3 + $0x4] sm:$0xf]
    %v910 = vld [vmem:[%s3 + $0x8] sm:$0xf]
    %v911 = vld [vmem:[%s3 + $0xc] sm:$0xf]
    %v912 = vld [vmem:[%s3 + $0x10] sm:$0xf]
    %v913 = vld [vmem:[%s3 + $0x14] sm:$0xf]
    %v914 = vld [vmem:[%s3 + $0x18] sm:$0xf]
    %v915 = vld [vmem:[%s3 + $0x1c] sm:$0xf]
    %v916 = vld [vmem:[%s3 + $0x20] sm:$0xf]
    %v917 = vld [vmem:[%s3 + $0x24] sm:$0xf]
    %v918 = vld [vmem:[%s3 + $0x28] sm:$0xf]
    %v919 = vld [vmem:[%s3 + $0x2c] sm:$0xf]
    %v920 = vld [vmem:[%s3 + $0x30] sm:$0xf]
    %v921 = vld [vmem:[%s3 + $0x34] sm:$0xf]
    %v922 = vld [vmem:[%s3 + $0x38] sm:$0xf]
    %v923 = vld [vmem:[%s3 + $0x3c] sm:$0xf]
    %v924 = vpack.c.bf16 %v904, %v904
    %s925 = scalar_lea.vmem %s3, 64
    %v926 = vld [vmem:[%s925] sm:$0xf]
    %v927 = vld [vmem:[%s925 + $0x4] sm:$0xf]
    %v928 = vld [vmem:[%s925 + $0x8] sm:$0xf]
    %v929 = vld [vmem:[%s925 + $0xc] sm:$0xf]
    %v930 = vld [vmem:[%s925 + $0x10] sm:$0xf]
    %v931 = vld [vmem:[%s925 + $0x14] sm:$0xf]
    %v932 = vld [vmem:[%s925 + $0x18] sm:$0xf]
    %v933 = vld [vmem:[%s925 + $0x1c] sm:$0xf]
    %v934 = vld [vmem:[%s925 + $0x20] sm:$0xf]
    %v935 = vld [vmem:[%s925 + $0x24] sm:$0xf]
    %v936 = vld [vmem:[%s925 + $0x28] sm:$0xf]
    %v937 = vld [vmem:[%s925 + $0x2c] sm:$0xf]
    %v938 = vld [vmem:[%s925 + $0x30] sm:$0xf]
    %v939 = vld [vmem:[%s925 + $0x34] sm:$0xf]
    %v940 = vld [vmem:[%s925 + $0x38] sm:$0xf]
    %v941 = vld [vmem:[%s925 + $0x3c] sm:$0xf]
    %v958 = vunpack.c.l.b16 %v926
    %v959 = vunpack.c.l.b16 %v927
    %v960 = vunpack.c.l.b16 %v928
    %v961 = vunpack.c.l.b16 %v929
    %v962 = vunpack.c.l.b16 %v930
    %v963 = vunpack.c.l.b16 %v931
    %v964 = vunpack.c.l.b16 %v932
    %v965 = vunpack.c.l.b16 %v933
    %v966 = vunpack.c.l.b16 %v934
    %v967 = vunpack.c.l.b16 %v935
    %v968 = vunpack.c.l.b16 %v936
    %v969 = vunpack.c.l.b16 %v937
    %v970 = vunpack.c.l.b16 %v938
    %v971 = vunpack.c.l.b16 %v939
    %v972 = vunpack.c.l.b16 %v940
    %v973 = vunpack.c.l.b16 %v941
    %v974 = vpack.c.b16 %v959, %v958
    %v975 = vpack.c.b16 %v961, %v960
    %v976 = vpack.c.b16 %v963, %v962
    %v977 = vpack.c.b16 %v965, %v964
    %v978 = vpack.c.b16 %v967, %v966
    %v979 = vpack.c.b16 %v969, %v968
    %v980 = vpack.c.b16 %v971, %v970
    %v981 = vpack.c.b16 %v973, %v972
    %990 = vmatprep.subr.bf16.mxu0 0
    %991 = vmatpush1.bf16.msra.mxu0 %v981
    %992 = vmatprep.subr.bf16.mxu0 0
    %993 = vmatpush1.bf16.msra.mxu0 %v980
    %994 = vmatprep.subr.bf16.mxu0 0
    %995 = vmatpush1.bf16.msra.mxu0 %v979
    %996 = vmatprep.subr.bf16.mxu0 0
    %997 = vmatpush1.bf16.msra.mxu0 %v978
    %998 = vmatprep.subr.bf16.mxu0 0
    %999 = vmatpush1.bf16.msra.mxu0 %v977
    %1000 = vmatprep.subr.bf16.mxu0 0
    %1001 = vmatpush1.bf16.msra.mxu0 %v976
    %1002 = vmatprep.subr.bf16.mxu0 0
    %1003 = vmatpush1.bf16.msra.mxu0 %v975
    %1004 = vmatprep.subr.bf16.mxu0 0
    %1005 = vmatpush1.bf16.msra.mxu0 %v974
    %1006 = vmatprep.subr.bf16.mxu0 0
    %1007 = vmatpush2.bf16.msra.mxu0 0
    %1008 = vmatprep.subr.bf16.mxu0 0
    %1009 = vmatpush2.bf16.msra.mxu0 0
    %1010 = vmatprep.subr.bf16.mxu0 0
    %1011 = vmatpush2.bf16.msra.mxu0 0
    %1012 = vmatprep.subr.bf16.mxu0 0
    %1013 = vmatpush2.bf16.msra.mxu0 0
    %1014 = vmatprep.subr.bf16.mxu0 0
    %1015 = vmatpush2.bf16.msra.mxu0 0
    %1016 = vmatprep.subr.bf16.mxu0 0
    %1017 = vmatpush2.bf16.msra.mxu0 0
    %1018 = vmatprep.subr.bf16.mxu0 0
    %1019 = vmatpush2.bf16.msra.mxu0 0
    %1020 = vmatprep.subr.bf16.mxu0 0
    %1021 = vmatpush2.bf16.msra.mxu0 0
    %1022 = vmatprep.mubr.bf16.mxu0 0
    %1023 = vmatmul.mubr.bf16.gmra.mxu0 %v924
    %v1024 = vpop.f32.mrf.mxu0
    %v1025 = vadd.f32 0.0, %v1024
    %v1026 = vpop.f32.mrf.mxu0
    %v1027 = vpop.f32.mrf.mxu0
    %v1028 = vpop.f32.mrf.mxu0
    %1029 = vdwg.mxu0
    %v1046 = vunpack.c.l.b16 %v908
    %v1047 = vunpack.c.l.b16 %v909
    %v1048 = vunpack.c.l.b16 %v910
    %v1049 = vunpack.c.l.b16 %v911
    %v1050 = vunpack.c.l.b16 %v912
    %v1051 = vunpack.c.l.b16 %v913
    %v1052 = vunpack.c.l.b16 %v914
    %v1053 = vunpack.c.l.b16 %v915
    %v1054 = vunpack.c.l.b16 %v916
    %v1055 = vunpack.c.l.b16 %v917
    %v1056 = vunpack.c.l.b16 %v918
    %v1057 = vunpack.c.l.b16 %v919
    %v1058 = vunpack.c.l.b16 %v920
    %v1059 = vunpack.c.l.b16 %v921
    %v1060 = vunpack.c.l.b16 %v922
    %v1061 = vunpack.c.l.b16 %v923
    %v1062 = vpack.c.b16 %v1047, %v1046
    %v1063 = vpack.c.b16 %v1049, %v1048
    %v1064 = vpack.c.b16 %v1051, %v1050
    %v1065 = vpack.c.b16 %v1053, %v1052
    %v1066 = vpack.c.b16 %v1055, %v1054
    %v1067 = vpack.c.b16 %v1057, %v1056
    %v1068 = vpack.c.b16 %v1059, %v1058
    %v1069 = vpack.c.b16 %v1061, %v1060
    %1078 = vmatprep.subr.bf16.mxu0 0
    %1079 = vmatpush1.bf16.msra.mxu0 %v1069
    %1080 = vmatprep.subr.bf16.mxu0 0
    %1081 = vmatpush1.bf16.msra.mxu0 %v1068
    %1082 = vmatprep.subr.bf16.mxu0 0
    %1083 = vmatpush1.bf16.msra.mxu0 %v1067
    %1084 = vmatprep.subr.bf16.mxu0 0
    %1085 = vmatpush1.bf16.msra.mxu0 %v1066
    %1086 = vmatprep.subr.bf16.mxu0 0
    %1087 = vmatpush1.bf16.msra.mxu0 %v1065
    %1088 = vmatprep.subr.bf16.mxu0 0
    %1089 = vmatpush1.bf16.msra.mxu0 %v1064
    %1090 = vmatprep.subr.bf16.mxu0 0
    %1091 = vmatpush1.bf16.msra.mxu0 %v1063
    %1092 = vmatprep.subr.bf16.mxu0 0
    %1093 = vmatpush1.bf16.msra.mxu0 %v1062
    %1094 = vmatprep.subr.bf16.mxu0 0
    %1095 = vmatpush2.bf16.msra.mxu0 0
    %1096 = vmatprep.subr.bf16.mxu0 0
    %1097 = vmatpush2.bf16.msra.mxu0 0
    %1098 = vmatprep.subr.bf16.mxu0 0
    %1099 = vmatpush2.bf16.msra.mxu0 0
    %1100 = vmatprep.subr.bf16.mxu0 0
    %1101 = vmatpush2.bf16.msra.mxu0 0
    %1102 = vmatprep.subr.bf16.mxu0 0
    %1103 = vmatpush2.bf16.msra.mxu0 0
    %1104 = vmatprep.subr.bf16.mxu0 0
    %1105 = vmatpush2.bf16.msra.mxu0 0
    %1106 = vmatprep.subr.bf16.mxu0 0
    %1107 = vmatpush2.bf16.msra.mxu0 0
    %1108 = vmatprep.subr.bf16.mxu0 0
    %1109 = vmatpush2.bf16.msra.mxu0 0
    %1110 = vmatprep.mubr.bf16.mxu0 0
    %1111 = vmatmul.mubr.bf16.gmra.mxu0 %v907
    %v1112 = vpop.f32.mrf.mxu0
    %v1113 = vadd.f32 %v1025, %v1112
    %v1114 = vpop.f32.mrf.mxu0
    %v1115 = vpop.f32.mrf.mxu0
    %v1116 = vpop.f32.mrf.mxu0
    %1117 = vdwg.mxu0
    %v1118 = vpack.c.bf16 %v905, %v905
    %s1119 = scalar_lea.vmem %s3, 128
    %v1120 = vld [vmem:[%s1119] sm:$0xf]
    %v1121 = vld [vmem:[%s1119 + $0x4] sm:$0xf]
    %v1122 = vld [vmem:[%s1119 + $0x8] sm:$0xf]
    %v1123 = vld [vmem:[%s1119 + $0xc] sm:$0xf]
    %v1124 = vld [vmem:[%s1119 + $0x10] sm:$0xf]
    %v1125 = vld [vmem:[%s1119 + $0x14] sm:$0xf]
    %v1126 = vld [vmem:[%s1119 + $0x18] sm:$0xf]
    %v1127 = vld [vmem:[%s1119 + $0x1c] sm:$0xf]
    %v1128 = vld [vmem:[%s1119 + $0x20] sm:$0xf]
    %v1129 = vld [vmem:[%s1119 + $0x24] sm:$0xf]
    %v1130 = vld [vmem:[%s1119 + $0x28] sm:$0xf]
    %v1131 = vld [vmem:[%s1119 + $0x2c] sm:$0xf]
    %v1132 = vld [vmem:[%s1119 + $0x30] sm:$0xf]
    %v1133 = vld [vmem:[%s1119 + $0x34] sm:$0xf]
    %v1134 = vld [vmem:[%s1119 + $0x38] sm:$0xf]
    %v1135 = vld [vmem:[%s1119 + $0x3c] sm:$0xf]
    %v1152 = vunpack.c.l.b16 %v1120
    %v1153 = vunpack.c.l.b16 %v1121
    %v1154 = vunpack.c.l.b16 %v1122
    %v1155 = vunpack.c.l.b16 %v1123
    %v1156 = vunpack.c.l.b16 %v1124
    %v1157 = vunpack.c.l.b16 %v1125
    %v1158 = vunpack.c.l.b16 %v1126
    %v1159 = vunpack.c.l.b16 %v1127
    %v1160 = vunpack.c.l.b16 %v1128
    %v1161 = vunpack.c.l.b16 %v1129
    %v1162 = vunpack.c.l.b16 %v1130
    %v1163 = vunpack.c.l.b16 %v1131
    %v1164 = vunpack.c.l.b16 %v1132
    %v1165 = vunpack.c.l.b16 %v1133
    %v1166 = vunpack.c.l.b16 %v1134
    %v1167 = vunpack.c.l.b16 %v1135
    %v1168 = vpack.c.b16 %v1153, %v1152
    %v1169 = vpack.c.b16 %v1155, %v1154
    %v1170 = vpack.c.b16 %v1157, %v1156
    %v1171 = vpack.c.b16 %v1159, %v1158
    %v1172 = vpack.c.b16 %v1161, %v1160
    %v1173 = vpack.c.b16 %v1163, %v1162
    %v1174 = vpack.c.b16 %v1165, %v1164
    %v1175 = vpack.c.b16 %v1167, %v1166
    %1184 = vmatprep.subr.bf16.mxu0 0
    %1185 = vmatpush1.bf16.msra.mxu0 %v1175
    %1186 = vmatprep.subr.bf16.mxu0 0
    %1187 = vmatpush1.bf16.msra.mxu0 %v1174
    %1188 = vmatprep.subr.bf16.mxu0 0
    %1189 = vmatpush1.bf16.msra.mxu0 %v1173
    %1190 = vmatprep.subr.bf16.mxu0 0
    %1191 = vmatpush1.bf16.msra.mxu0 %v1172
    %1192 = vmatprep.subr.bf16.mxu0 0
    %1193 = vmatpush1.bf16.msra.mxu0 %v1171
    %1194 = vmatprep.subr.bf16.mxu0 0
    %1195 = vmatpush1.bf16.msra.mxu0 %v1170
    %1196 = vmatprep.subr.bf16.mxu0 0
    %1197 = vmatpush1.bf16.msra.mxu0 %v1169
    %1198 = vmatprep.subr.bf16.mxu0 0
    %1199 = vmatpush1.bf16.msra.mxu0 %v1168
    %1200 = vmatprep.subr.bf16.mxu0 0
    %1201 = vmatpush2.bf16.msra.mxu0 0
    %1202 = vmatprep.subr.bf16.mxu0 0
    %1203 = vmatpush2.bf16.msra.mxu0 0
    %1204 = vmatprep.subr.bf16.mxu0 0
    %1205 = vmatpush2.bf16.msra.mxu0 0
    %1206 = vmatprep.subr.bf16.mxu0 0
    %1207 = vmatpush2.bf16.msra.mxu0 0
    %1208 = vmatprep.subr.bf16.mxu0 0
    %1209 = vmatpush2.bf16.msra.mxu0 0
    %1210 = vmatprep.subr.bf16.mxu0 0
    %1211 = vmatpush2.bf16.msra.mxu0 0
    %1212 = vmatprep.subr.bf16.mxu0 0
    %1213 = vmatpush2.bf16.msra.mxu0 0
    %1214 = vmatprep.subr.bf16.mxu0 0
    %1215 = vmatpush2.bf16.msra.mxu0 0
    %1216 = vmatprep.mubr.bf16.mxu0 0
    %1217 = vmatmul.mubr.bf16.gmra.mxu0 %v1118
    %v1218 = vpop.f32.mrf.mxu0
    %v1219 = vadd.f32 0.0, %v1218
    %v1220 = vpop.f32.mrf.mxu0
    %v1221 = vpop.f32.mrf.mxu0
    %v1222 = vpop.f32.mrf.mxu0
    %1223 = vdwg.mxu0
    %v1224 = vadd.f32 %v1113, %v1219
    %v1225 = vpack.c.bf16 %v906, %v906
    %s1226 = scalar_lea.vmem %s3, 192
    %v1227 = vld [vmem:[%s1226] sm:$0xf]
    %v1228 = vld [vmem:[%s1226 + $0x4] sm:$0xf]
    %v1229 = vld [vmem:[%s1226 + $0x8] sm:$0xf]
    %v1230 = vld [vmem:[%s1226 + $0xc] sm:$0xf]
    %v1231 = vld [vmem:[%s1226 + $0x10] sm:$0xf]
    %v1232 = vld [vmem:[%s1226 + $0x14] sm:$0xf]
    %v1233 = vld [vmem:[%s1226 + $0x18] sm:$0xf]
    %v1234 = vld [vmem:[%s1226 + $0x1c] sm:$0xf]
    %v1235 = vld [vmem:[%s1226 + $0x20] sm:$0xf]
    %v1236 = vld [vmem:[%s1226 + $0x24] sm:$0xf]
    %v1237 = vld [vmem:[%s1226 + $0x28] sm:$0xf]
    %v1238 = vld [vmem:[%s1226 + $0x2c] sm:$0xf]
    %v1239 = vld [vmem:[%s1226 + $0x30] sm:$0xf]
    %v1240 = vld [vmem:[%s1226 + $0x34] sm:$0xf]
    %v1241 = vld [vmem:[%s1226 + $0x38] sm:$0xf]
    %v1242 = vld [vmem:[%s1226 + $0x3c] sm:$0xf]
    %v1259 = vunpack.c.l.b16 %v1227
    %v1260 = vunpack.c.l.b16 %v1228
    %v1261 = vunpack.c.l.b16 %v1229
    %v1262 = vunpack.c.l.b16 %v1230
    %v1263 = vunpack.c.l.b16 %v1231
    %v1264 = vunpack.c.l.b16 %v1232
    %v1265 = vunpack.c.l.b16 %v1233
    %v1266 = vunpack.c.l.b16 %v1234
    %v1267 = vunpack.c.l.b16 %v1235
    %v1268 = vunpack.c.l.b16 %v1236
    %v1269 = vunpack.c.l.b16 %v1237
    %v1270 = vunpack.c.l.b16 %v1238
    %v1271 = vunpack.c.l.b16 %v1239
    %v1272 = vunpack.c.l.b16 %v1240
    %v1273 = vunpack.c.l.b16 %v1241
    %v1274 = vunpack.c.l.b16 %v1242
    %v1275 = vpack.c.b16 %v1260, %v1259
    %v1276 = vpack.c.b16 %v1262, %v1261
    %v1277 = vpack.c.b16 %v1264, %v1263
    %v1278 = vpack.c.b16 %v1266, %v1265
    %v1279 = vpack.c.b16 %v1268, %v1267
    %v1280 = vpack.c.b16 %v1270, %v1269
    %v1281 = vpack.c.b16 %v1272, %v1271
    %v1282 = vpack.c.b16 %v1274, %v1273
    %1291 = vmatprep.subr.bf16.mxu0 0
    %1292 = vmatpush1.bf16.msra.mxu0 %v1282
    %1293 = vmatprep.subr.bf16.mxu0 0
    %1294 = vmatpush1.bf16.msra.mxu0 %v1281
    %1295 = vmatprep.subr.bf16.mxu0 0
    %1296 = vmatpush1.bf16.msra.mxu0 %v1280
    %1297 = vmatprep.subr.bf16.mxu0 0
    %1298 = vmatpush1.bf16.msra.mxu0 %v1279
    %1299 = vmatprep.subr.bf16.mxu0 0
    %1300 = vmatpush1.bf16.msra.mxu0 %v1278
    %1301 = vmatprep.subr.bf16.mxu0 0
    %1302 = vmatpush1.bf16.msra.mxu0 %v1277
    %1303 = vmatprep.subr.bf16.mxu0 0
    %1304 = vmatpush1.bf16.msra.mxu0 %v1276
    %1305 = vmatprep.subr.bf16.mxu0 0
    %1306 = vmatpush1.bf16.msra.mxu0 %v1275
    %1307 = vmatprep.subr.bf16.mxu0 0
    %1308 = vmatpush2.bf16.msra.mxu0 0
    %1309 = vmatprep.subr.bf16.mxu0 0
    %1310 = vmatpush2.bf16.msra.mxu0 0
    %1311 = vmatprep.subr.bf16.mxu0 0
    %1312 = vmatpush2.bf16.msra.mxu0 0
    %1313 = vmatprep.subr.bf16.mxu0 0
    %1314 = vmatpush2.bf16.msra.mxu0 0
    %1315 = vmatprep.subr.bf16.mxu0 0
    %1316 = vmatpush2.bf16.msra.mxu0 0
    %1317 = vmatprep.subr.bf16.mxu0 0
    %1318 = vmatpush2.bf16.msra.mxu0 0
    %1319 = vmatprep.subr.bf16.mxu0 0
    %1320 = vmatpush2.bf16.msra.mxu0 0
    %1321 = vmatprep.subr.bf16.mxu0 0
    %1322 = vmatpush2.bf16.msra.mxu0 0
    %1323 = vmatprep.mubr.bf16.mxu0 0
    %1324 = vmatmul.mubr.bf16.gmra.mxu0 %v1225
    %v1325 = vpop.f32.mrf.mxu0
    %v1326 = vadd.f32 0.0, %v1325
    %v1327 = vpop.f32.mrf.mxu0
    %v1328 = vpop.f32.mrf.mxu0
    %v1329 = vpop.f32.mrf.mxu0
    %1330 = vdwg.mxu0
    %v1331 = vadd.f32 %v1224, %v1326
    %v1332 = vld [vmem:[%s4] sm:$0x1]
    %v1334 = vlaneseq
    %v1335 = vshrl.u32 %v1334, 7
    %v1336 = vsub.s32 0, %v1335
    %v1337 = vrot.slane %v1332, %v1336
    %v1339 = vadd.f32 %v1331, %v1337
    %v1340 = vtanh.pop %v1339
    %v1341 = vpack.c.bf16 %v1340, %v1340
    %v1342 = vld [vmem:[%s5] sm:$0xf]
    %v1343 = vld [vmem:[%s5 + $0x4] sm:$0xf]
    %v1344 = vld [vmem:[%s5 + $0x8] sm:$0xf]
    %v1345 = vld [vmem:[%s5 + $0xc] sm:$0xf]
    %v1346 = vld [vmem:[%s5 + $0x10] sm:$0xf]
    %v1347 = vld [vmem:[%s5 + $0x14] sm:$0xf]
    %v1348 = vld [vmem:[%s5 + $0x18] sm:$0xf]
    %v1349 = vld [vmem:[%s5 + $0x1c] sm:$0xf]
    %v1350 = vld [vmem:[%s5 + $0x20] sm:$0xf]
    %v1351 = vld [vmem:[%s5 + $0x24] sm:$0xf]
    %v1352 = vld [vmem:[%s5 + $0x28] sm:$0xf]
    %v1353 = vld [vmem:[%s5 + $0x2c] sm:$0xf]
    %v1354 = vld [vmem:[%s5 + $0x30] sm:$0xf]
    %v1355 = vld [vmem:[%s5 + $0x34] sm:$0xf]
    %v1356 = vld [vmem:[%s5 + $0x38] sm:$0xf]
    %v1357 = vld [vmem:[%s5 + $0x3c] sm:$0xf]
    %v1358 = vld [vmem:[%s6] sm:$0x1]
    %v1360 = vlaneseq
    %v1361 = vshrl.u32 %v1360, 7
    %v1362 = vsub.s32 0, %v1361
    %v1363 = vrot.slane %v1358, %v1362
    %v1381 = vunpack.c.l.b16 %v1342
    %v1382 = vunpack.c.l.b16 %v1343
    %v1383 = vunpack.c.l.b16 %v1344
    %v1384 = vunpack.c.l.b16 %v1345
    %v1385 = vunpack.c.l.b16 %v1346
    %v1386 = vunpack.c.l.b16 %v1347
    %v1387 = vunpack.c.l.b16 %v1348
    %v1388 = vunpack.c.l.b16 %v1349
    %v1389 = vunpack.c.l.b16 %v1350
    %v1390 = vunpack.c.l.b16 %v1351
    %v1391 = vunpack.c.l.b16 %v1352
    %v1392 = vunpack.c.l.b16 %v1353
    %v1393 = vunpack.c.l.b16 %v1354
    %v1394 = vunpack.c.l.b16 %v1355
    %v1395 = vunpack.c.l.b16 %v1356
    %v1396 = vunpack.c.l.b16 %v1357
    %v1397 = vpack.c.b16 %v1382, %v1381
    %v1398 = vpack.c.b16 %v1384, %v1383
    %v1399 = vpack.c.b16 %v1386, %v1385
    %v1400 = vpack.c.b16 %v1388, %v1387
    %v1401 = vpack.c.b16 %v1390, %v1389
    %v1402 = vpack.c.b16 %v1392, %v1391
    %v1403 = vpack.c.b16 %v1394, %v1393
    %v1404 = vpack.c.b16 %v1396, %v1395
    %1413 = vmatprep.subr.bf16.mxu0 0
    %1414 = vmatpush1.bf16.msra.mxu0 %v1404
    %1415 = vmatprep.subr.bf16.mxu0 0
    %1416 = vmatpush1.bf16.msra.mxu0 %v1403
    %1417 = vmatprep.subr.bf16.mxu0 0
    %1418 = vmatpush1.bf16.msra.mxu0 %v1402
    %1419 = vmatprep.subr.bf16.mxu0 0
    %1420 = vmatpush1.bf16.msra.mxu0 %v1401
    %1421 = vmatprep.subr.bf16.mxu0 0
    %1422 = vmatpush1.bf16.msra.mxu0 %v1400
    %1423 = vmatprep.subr.bf16.mxu0 0
    %1424 = vmatpush1.bf16.msra.mxu0 %v1399
    %1425 = vmatprep.subr.bf16.mxu0 0
    %1426 = vmatpush1.bf16.msra.mxu0 %v1398
    %1427 = vmatprep.subr.bf16.mxu0 0
    %1428 = vmatpush1.bf16.msra.mxu0 %v1397
    %1429 = vmatprep.subr.bf16.mxu0 0
    %1430 = vmatpush2.bf16.msra.mxu0 0
    %1431 = vmatprep.subr.bf16.mxu0 0
    %1432 = vmatpush2.bf16.msra.mxu0 0
    %1433 = vmatprep.subr.bf16.mxu0 0
    %1434 = vmatpush2.bf16.msra.mxu0 0
    %1435 = vmatprep.subr.bf16.mxu0 0
    %1436 = vmatpush2.bf16.msra.mxu0 0
    %1437 = vmatprep.subr.bf16.mxu0 0
    %1438 = vmatpush2.bf16.msra.mxu0 0
    %1439 = vmatprep.subr.bf16.mxu0 0
    %1440 = vmatpush2.bf16.msra.mxu0 0
    %1441 = vmatprep.subr.bf16.mxu0 0
    %1442 = vmatpush2.bf16.msra.mxu0 0
    %1443 = vmatprep.subr.bf16.mxu0 0
    %1444 = vmatpush2.bf16.msra.mxu0 0
    %1445 = vmatprep.mubr.bf16.mxu0 0
    %1446 = vmatmul.mubr.bf16.gmra.mxu0 %v1341
    %v1447 = vpop.f32.mrf.mxu0
    %v1448 = vadd.f32 %v1363, %v1447
    %v1449 = vpop.f32.mrf.mxu0
    %v1450 = vpop.f32.mrf.mxu0
    %v1451 = vpop.f32.mrf.mxu0
    %1452 = vdwg.mxu0
    %v1453 = vlaneseq
    %v1454 = vand.u32 %v1453, 127
    %vm1455 = vcmp.lt.s32.totalorder %v1454, 35
    %v1456 = vsel %vm1455, %v1448, -1e+30
    %1457 = vmax.xlane.f32.xlu0 %v1456
    %v1458 = vpop.xlane.xlu0 %1457
    %v1459 = vsub.f32 %v1456, %v1458
    %v1460 = vmul.f32 %v1459, 1.442695
    %v1461 = vpow.pop %v1460
    %1462 = vadd.xlane.f32.xlu0 %v1461
    %v1463 = vpop.xlane.xlu0 %1462
    %v1464 = vrcp.pop %v1463
    %v1465 = vmul.f32 %v1461, %v1464
    %1466 = vst [vmem:[#allocation2] sm:$0xff] %v1465
    // Predicated region
    $region30: #{cnn_forward.5} parent=1 // pred_check
      _
    $region31: #{cnn_forward.5} parent=1 // pred_check_branch
      %1468 = sbr.rel (0) target = $region33
    $region32: #{cnn_forward.5} parent=1 // pred_region
      %s1470 = ssub.s32 128, 128
      %1471 = vsyncadd [#allocation3], %s1470
      %s1473 = sshll.u32 [#allocation2], 4
      %s1474 = int_to_ptr.vmem [resolvable:$true] %s1473
      %1476 = dma.vmem_to_hbm [thread:$0]  %s1474, 128, %s7, [#allocation3]
    $region33: #{cnn_forward.5} parent=1 // pred_fallthru
      _
    // Predicated region
    $region34: #{cnn_forward.5} parent=1 // pred_check
      _
    $region35: #{cnn_forward.5} parent=1 // pred_check_branch
      %1478 = sbr.rel (0) target = $region37
    $region36: #{cnn_forward.5} parent=1 // pred_region
      %1479 = dma.done [#allocation3], 128
    $region37: #{cnn_forward.5} parent=1 // pred_fallthru
      _
    %1480 = vsyncpa [#allocation3], 1

</llo_original>
